<compile_context>
chip_gen: v5e
topology: v5e:2x2
jax: 0.10.0
libtpu: 0.0.40
codegen_flags: <defaults>
</compile_context>

<pallas_src>
import math
from functools import partial

import numpy as np
import jax
import jax.numpy as jnp
from jax.experimental import pallas as pl
from jax.experimental.pallas import tpu as pltpu


# ----------------------------- helpers ---------------------------------------

def _ln(x, g, b, eps):
    m = jnp.mean(x, axis=-1, keepdims=True)
    var = jnp.mean(jnp.square(x - m), axis=-1, keepdims=True)
    return (x - m) * jax.lax.rsqrt(var + eps) * g + b


# ----------------------------- Pallas kernels --------------------------------

def _proj_in_kernel(x_ref, w_ref, b_ref, o_ref):
    # proj_in runs outside torch autocast -> keep f32.
    y = jnp.dot(x_ref[...], w_ref[...], preferred_element_type=jnp.float32)
    o_ref[...] = (y + b_ref[...]).astype(o_ref.dtype)


def proj_in(x, w, b):
    """x: (B, n1, emb) f32; w: (emb, dim) f32; b: (1, dim) f32 -> (B, n1, dim) f32."""
    B, n1, emb = x.shape
    dim = w.shape[1]
    return pl.pallas_call(
        _proj_in_kernel,
        out_shape=jax.ShapeDtypeStruct((B, n1, dim), jnp.float32),
        grid=(B,),
        in_specs=[
            pl.BlockSpec((None, n1, emb), lambda bi: (bi, 0, 0)),
            pl.BlockSpec((emb, dim), lambda bi: (0, 0)),
            pl.BlockSpec((1, dim), lambda bi: (0, 0)),
        ],
        out_specs=pl.BlockSpec((None, n1, dim), lambda bi: (bi, 0, 0)),
        compiler_params=pltpu.CompilerParams(dimension_semantics=("parallel",)),
    )(x, w, b)


def _layer_kernel(xp_ref, lat_ref, posx_ref, posl_ref,
                  g1_ref, b1_ref, g2_ref, b2_ref,
                  qw_ref, kw_ref, vw_ref, ow_ref,
                  gf_ref, bf_ref, w1_ref, w2_ref,
                  out_ref, *, heads, dim_head, eps):
    """One full PositionPerceiverAttention + OursFeedForward layer for one batch item."""
    f32 = jnp.float32
    bf16 = jnp.bfloat16

    lat = lat_ref[...]                                            # (l, dim) f32
    x_ln = _ln(xp_ref[...], g1_ref[...], b1_ref[...], eps)        # (n1, dim) f32
    lat_ln = _ln(lat, g2_ref[...], b2_ref[...], eps)              # (l, dim)  f32

    x_bf = x_ln.astype(bf16)
    lat_bf = lat_ln.astype(bf16)

    qw = qw_ref[...]; kw = kw_ref[...]; vw = vw_ref[...]; ow = ow_ref[...]

    # Projections (bf16 operands, f32 accumulation).
    q = jnp.dot(lat_bf, qw, preferred_element_type=f32)           # (l, inner)
    k_x = jnp.dot(x_bf, kw, preferred_element_type=f32)           # (n1, inner)
    k_l = jnp.dot(lat_bf, kw, preferred_element_type=f32)         # (l, inner)
    v_x = jnp.dot(x_bf, vw, preferred_element_type=f32).astype(bf16)
    v_l = jnp.dot(lat_bf, vw, preferred_element_type=f32).astype(bf16)

    pos_x = posx_ref[...]                                         # (heads, n1) f32
    pos_l = posl_ref[...]                                         # (heads, l)  f32

    l = lat.shape[0]
    dim = lat.shape[1]
    inv_sqrt_dh = 1.0 / math.sqrt(dim_head)                       # scale^2 folded once

    # Per-head attention, accumulated straight into the to_out product.
    attn = jnp.zeros((l, dim), f32)
    for h in range(heads):
        sl = slice(h * dim_head, (h + 1) * dim_head)
        q_h = q[:, sl]                                            # (l, dh)
        # Scores against image features and against latents (KV = [x_ln ; lat_ln]).
        s_x = jnp.dot(q_h, k_x[:, sl].T, preferred_element_type=f32) * inv_sqrt_dh
        s_l = jnp.dot(q_h, k_l[:, sl].T, preferred_element_type=f32) * inv_sqrt_dh
        m = jnp.maximum(jnp.max(s_x, axis=-1, keepdims=True),
                        jnp.max(s_l, axis=-1, keepdims=True))
        e_x = jnp.exp(s_x - m)
        e_l = jnp.exp(s_l - m)
        denom = jnp.sum(e_x, axis=-1, keepdims=True) + jnp.sum(e_l, axis=-1, keepdims=True)
        inv = pl.reciprocal(denom, approx=True)
        # Position weighting after softmax (no renormalization), as in the torch module.
        w_x = (e_x * inv) * pos_x[h:h + 1, :]
        w_l = (e_l * inv) * pos_l[h:h + 1, :]
        o_h = (jnp.dot(w_x.astype(bf16), v_x[:, sl], preferred_element_type=f32)
               + jnp.dot(w_l.astype(bf16), v_l[:, sl], preferred_element_type=f32))  # (l, dh)
        # out_h @ to_out_w[h*dh:(h+1)*dh, :]  ==  concat(heads) @ to_out_w
        attn = attn + jnp.dot(o_h.astype(bf16), ow[sl, :], preferred_element_type=f32)

    lat2 = attn + lat                                             # residual 1

    # --- OursFeedForward: LN -> Linear -> GELU -> Linear, + residual ---
    hid = _ln(lat2, gf_ref[...], bf_ref[...], eps).astype(bf16)
    hid = jnp.dot(hid, w1_ref[...], preferred_element_type=f32)
    # TODO(synk): PyTorch nn.GELU() is exact (erf); tanh approximation used here.
    hid = jax.nn.gelu(hid, approximate=True).astype(bf16)
    hid = jnp.dot(hid, w2_ref[...], preferred_element_type=f32)
    out_ref[...] = (hid + lat2).astype(out_ref.dtype)


def fused_layer(xp, latents, pos_x, pos_l, lyr, *, heads, dim_head):
    B, n1, dim = xp.shape
    l = latents.shape[1]
    inner = heads * dim_head
    hidden = lyr['ff_w1'].shape[1]

    def full2d(r, c):
        return pl.BlockSpec((r, c), lambda bi: (0, 0))

    return pl.pallas_call(
        partial(_layer_kernel, heads=heads, dim_head=dim_head, eps=1e-5),
        out_shape=jax.ShapeDtypeStruct((B, l, dim), jnp.float32),
        grid=(B,),
        in_specs=[
            pl.BlockSpec((None, n1, dim), lambda bi: (bi, 0, 0)),   # xp
            pl.BlockSpec((None, l, dim), lambda bi: (bi, 0, 0)),    # latents
            full2d(heads, n1),                                      # pos (image part)
            full2d(heads, l),                                       # pos (latent part)
            full2d(1, dim), full2d(1, dim),                         # norm1 gamma/beta
            full2d(1, dim), full2d(1, dim),                         # norm2 gamma/beta
            full2d(dim, inner),                                     # to_q
            full2d(dim, inner),                                     # to_k
            full2d(dim, inner),                                     # to_v
            full2d(inner, dim),                                     # to_out
            full2d(1, dim), full2d(1, dim),                         # ff LN gamma/beta
            full2d(dim, hidden),                                    # ff w1
            full2d(hidden, dim),                                    # ff w2
        ],
        out_specs=pl.BlockSpec((None, l, dim), lambda bi: (bi, 0, 0)),
        compiler_params=pltpu.CompilerParams(dimension_semantics=("parallel",)),
    )(xp, latents, pos_x, pos_l,
      lyr['norm1_g'], lyr['norm1_b'], lyr['norm2_g'], lyr['norm2_b'],
      lyr['to_q_w'], lyr['k_w'], lyr['v_w'], lyr['to_out_w'],
      lyr['ff_ln_g'], lyr['ff_ln_b'], lyr['ff_w1'], lyr['ff_w2'])


def _proj_out_norm_kernel(lat_ref, w_ref, b_ref, g_ref, beta_ref, o_ref, *, eps):
    y = jnp.dot(lat_ref[...].astype(jnp.bfloat16), w_ref[...],
                preferred_element_type=jnp.float32) + b_ref[...]
    o_ref[...] = _ln(y, g_ref[...], beta_ref[...], eps).astype(o_ref.dtype)


def proj_out_norm(latents, w, b, gamma, beta):
    """latents: (B, l, dim) f32; w: (dim, out) bf16 -> LayerNorm(latents @ w + b)."""
    B, l, dim = latents.shape
    out_dim = w.shape[1]
    return pl.pallas_call(
        partial(_proj_out_norm_kernel, eps=1e-5),
        out_shape=jax.ShapeDtypeStruct((B, l, out_dim), jnp.float32),
        grid=(B,),
        in_specs=[
            pl.BlockSpec((None, l, dim), lambda bi: (bi, 0, 0)),
            pl.BlockSpec((dim, out_dim), lambda bi: (0, 0)),
            pl.BlockSpec((1, out_dim), lambda bi: (0, 0)),
            pl.BlockSpec((1, out_dim), lambda bi: (0, 0)),
            pl.BlockSpec((1, out_dim), lambda bi: (0, 0)),
        ],
        out_specs=pl.BlockSpec((None, l, out_dim), lambda bi: (bi, 0, 0)),
        compiler_params=pltpu.CompilerParams(dimension_semantics=("parallel",)),
    )(latents, w, b, gamma, beta)


# ------------------------- parameters / position matrices --------------------

def build_pos_heads(heads):
    """Replicates the left/right/top/down matrices from PositionPerceiverAttention."""
    coeff = np.linspace(1, 0, 16)
    inv = np.linspace(0, 1, 16)
    left = np.zeros((16, 16)); right = np.zeros((16, 16))
    top = np.zeros((16, 16)); down = np.zeros((16, 16))
    for i in range(16):
        left[:, i] = coeff[i]
        right[:, i] = inv[i]
        top[i, :] = coeff[i]
        down[i, :] = inv[i]

    def flat(m):
        return np.concatenate([np.ones(1), m.flatten(), np.ones(16)])  # length 273

    mats = [flat(left), flat(right), flat(top), flat(down)]
    S = mats[0].shape[0]                                 # 273 = 1 + 16*16 + 16
    assert heads % 4 == 0, "heads must be divisible by 4 (weight.chunk(4, dim=1))"
    per = heads // 4
    pos = np.stack([mats[g] for g in range(4) for _ in range(per)], axis=0)  # (h, S)
    # TODO(synk): torch casts the position matrices to float16; kept f32 here.
    return jnp.asarray(pos, jnp.float32), S


def init_params(key, *, dim, dim_head, heads, num_queries, embedding_dim,
                output_dim, ff_mult, depth):
    inner = dim_head * heads
    hidden = dim * ff_mult
    ks = iter(jax.random.split(key, 4 + depth * 6))
    bf = jnp.bfloat16

    def nrm(k, shape, std, dtype=jnp.float32):
        return (jax.random.normal(k, shape, jnp.float32) * std).astype(dtype)

    p = {
        'latents': nrm(next(ks), (1, num_queries, dim), 0.02 / math.sqrt(dim)),
        'proj_in_w': nrm(next(ks), (embedding_dim, dim), 1.0 / math.sqrt(embedding_dim)),
        'proj_in_b': jnp.zeros((1, dim), jnp.float32),
        'proj_out_w': nrm(next(ks), (dim, output_dim), 0.5 / math.sqrt(dim), bf),
        'proj_out_b': nrm(next(ks), (1, output_dim), 0.01),
        'norm_out_g': jnp.ones((1, output_dim), jnp.float32),
        'norm_out_b': jnp.zeros((1, output_dim), jnp.float32),
        'layers': [],
    }
    for _ in range(depth):
        p['layers'].append({
            'norm1_g': jnp.ones((1, dim), jnp.float32),
            'norm1_b': jnp.zeros((1, dim), jnp.float32),
            'norm2_g': jnp.ones((1, dim), jnp.float32),
            'norm2_b': jnp.zeros((1, dim), jnp.float32),
            'to_q_w': nrm(next(ks), (dim, inner), 0.02, bf),
            'k_w': nrm(next(ks), (dim, inner), 0.02, bf),
            'v_w': nrm(next(ks), (dim, inner), 0.02, bf),
            'to_out_w': nrm(next(ks), (inner, dim), 0.02, bf),
            'ff_ln_g': jnp.ones((1, dim), jnp.float32),
            'ff_ln_b': jnp.zeros((1, dim), jnp.float32),
            'ff_w1': nrm(next(ks), (dim, hidden), 0.02, bf),
            'ff_w2': nrm(next(ks), (hidden, dim), 0.02, bf),
        })
    return p


# ------------------------------ forward pass ---------------------------------

def position_resampler_forward(params, pos_x, pos_l, x, *, dim, dim_head, heads,
                               num_queries):
    b = x.shape[0]
    # pos_emb is None / to_latents_from_mean_pooled_seq is None (module defaults).
    latents = jnp.broadcast_to(params['latents'], (b, num_queries, dim))
    xp = proj_in(x, params['proj_in_w'], params['proj_in_b'])       # (b, n1, dim)

    for lyr in params['layers']:
        latents = fused_layer(xp, latents, pos_x, pos_l, lyr,
                              heads=heads, dim_head=dim_head)

    return proj_out_norm(latents, params['proj_out_w'], params['proj_out_b'],
                         params['norm_out_g'], params['norm_out_b'])


# ----------------------------------- main -------------------------------------

if __name__ == "__main__":
    # Small config (module defaults scaled down; heads % 4 == 0 required).
    dim = 64
    dim_head = 16
    heads = 8
    num_queries = 8
    embedding_dim = 32
    output_dim = 64
    ff_mult = 2
    depth = 1

    pos_full, S = build_pos_heads(heads)              # (heads, 273)
    # The hard-coded position matrices have length 273, so n1 + num_queries == 273.
    n1 = S - num_queries                              # 265
    batch = 2

    pos_x = pos_full[:, :n1]                          # image-feature part of the weights
    pos_l = pos_full[:, n1:]                          # latent part of the weights

    key = jax.random.PRNGKey(0)
    pkey, xkey = jax.random.split(key)
    params = init_params(pkey, dim=dim, dim_head=dim_head, heads=heads,
                         num_queries=num_queries, embedding_dim=embedding_dim,
                         output_dim=output_dim, ff_mult=ff_mult, depth=depth)
    x = jax.random.normal(xkey, (batch, n1, embedding_dim), jnp.float32)

    fwd = jax.jit(partial(position_resampler_forward, dim=dim, dim_head=dim_head,
                          heads=heads, num_queries=num_queries))
    out = jax.block_until_ready(fwd(params, pos_x, pos_l, x))

    assert out.shape == (batch, num_queries, output_dim)
    assert bool(jnp.all(jnp.isfinite(out)))
    print("KERNEL_OK")
</pallas_src>

<mosaic_0001>
module attributes {stable_mosaic.version = 11 : i64} {
  func.func @_proj_in_kernel(%arg0: i32, %arg1: memref<1x265x32xf32, #tpu.memory_space<vmem>>, %arg2: memref<32x64xf32, #tpu.memory_space<vmem>>, %arg3: memref<1x64xf32, #tpu.memory_space<vmem>>, %arg4: memref<1x265x64xf32, #tpu.memory_space<vmem>>) attributes {dimension_semantics = [#tpu.dimension_semantics<parallel>], iteration_bounds = array<i64: 2>, scalar_prefetch = 0 : i64, scratch_operands = 0 : i64, tpu.core_type = #tpu.core_type<tc>, window_params = [{transform_indices = @transform_0, window_bounds = array<i64: 1, 265, 32>}, {pipeline_mode = #tpu.pipeline_mode<synchronous>, transform_indices = @transform_1, window_bounds = array<i64: 32, 64>}, {pipeline_mode = #tpu.pipeline_mode<synchronous>, transform_indices = @transform_2, window_bounds = array<i64: 1, 64>}, {transform_indices = @transform_3, window_bounds = array<i64: 1, 265, 64>}]} {
    %c0 = arith.constant 0 : index
    %c0_0 = arith.constant 0 : index
    %c0_1 = arith.constant 0 : index
    %0 = vector.load %arg1[%c0, %c0_0, %c0_1] : memref<1x265x32xf32, #tpu.memory_space<vmem>>, vector<1x265x32xf32>
    %1 = vector.shape_cast %0 : vector<1x265x32xf32> to vector<265x32xf32>
    %c0_2 = arith.constant 0 : index
    %c0_3 = arith.constant 0 : index
    %2 = vector.load %arg2[%c0_2, %c0_3] : memref<32x64xf32, #tpu.memory_space<vmem>>, vector<32x64xf32>
    %cst = arith.constant dense<0.000000e+00> : vector<265x64xf32>
    %3 = tpu.matmul %1, %2, %cst {dimension_numbers = #tpu.dot_dimension_numbers<[1], [0], [0], [1], [0, 0, 1, 1], [], []>} : vector<265x32xf32>, vector<32x64xf32>, vector<265x64xf32> -> vector<265x64xf32>
    %c0_4 = arith.constant 0 : index
    %c0_5 = arith.constant 0 : index
    %4 = vector.load %arg3[%c0_4, %c0_5] : memref<1x64xf32, #tpu.memory_space<vmem>>, vector<1x64xf32>
    %5 = vector.broadcast %4 : vector<1x64xf32> to vector<265x64xf32>
    %6 = arith.addf %3, %5 : vector<265x64xf32>
    %c0_6 = arith.constant 0 : index
    %c0_7 = arith.constant 0 : index
    %c0_8 = arith.constant 0 : index
    %7 = vector.load %arg4[%c0_6, %c0_7, %c0_8] : memref<1x265x64xf32, #tpu.memory_space<vmem>>, vector<1x265x64xf32>
    %8 = vector.shape_cast %7 : vector<1x265x64xf32> to vector<265x64xf32>
    %9 = vector.shape_cast %6 : vector<265x64xf32> to vector<1x265x64xf32>
    tpu.vector_store %arg4[%c0_6, %c0_7, %c0_8], %9 {strides = array<i32>} : memref<1x265x64xf32, #tpu.memory_space<vmem>>, vector<1x265x64xf32>,
    return
  }
  func.func @transform_0(%arg0: i32) -> (i32, i32, i32) {
    %c0_i32 = arith.constant 0 : i32
    %c0_i32_0 = arith.constant 0 : i32
    %c0_i32_1 = arith.constant 0 : i32
    return %arg0, %c0_i32, %c0_i32_0 : i32, i32, i32
  }
  func.func @transform_1(%arg0: i32) -> (i32, i32) {
    %c0_i32 = arith.constant 0 : i32
    %c0_i32_0 = arith.constant 0 : i32
    %c0_i32_1 = arith.constant 0 : i32
    return %c0_i32, %c0_i32_0 : i32, i32
  }
  func.func @transform_2(%arg0: i32) -> (i32, i32) {
    %c0_i32 = arith.constant 0 : i32
    %c0_i32_0 = arith.constant 0 : i32
    %c0_i32_1 = arith.constant 0 : i32
    return %c0_i32, %c0_i32_0 : i32, i32
  }
  func.func @transform_3(%arg0: i32) -> (i32, i32, i32) {
    %c0_i32 = arith.constant 0 : i32
    %c0_i32_0 = arith.constant 0 : i32
    %c0_i32_1 = arith.constant 0 : i32
    return %arg0, %c0_i32, %c0_i32_0 : i32, i32, i32
  }
}

module attributes {stable_mosaic.version = 11 : i64} {
  func.func @_layer_kernel(%arg0: i32, %arg1: memref<1x265x64xf32, #tpu.memory_space<vmem>>, %arg2: memref<1x8x64xf32, #tpu.memory_space<vmem>>, %arg3: memref<8x265xf32, #tpu.memory_space<vmem>>, %arg4: memref<8x8xf32, #tpu.memory_space<vmem>>, %arg5: memref<1x64xf32, #tpu.memory_space<vmem>>, %arg6: memref<1x64xf32, #tpu.memory_space<vmem>>, %arg7: memref<1x64xf32, #tpu.memory_space<vmem>>, %arg8: memref<1x64xf32, #tpu.memory_space<vmem>>, %arg9: memref<64x128xbf16, #tpu.memory_space<vmem>>, %arg10: memref<64x128xbf16, #tpu.memory_space<vmem>>, %arg11: memref<64x128xbf16, #tpu.memory_space<vmem>>, %arg12: memref<128x64xbf16, #tpu.memory_space<vmem>>, %arg13: memref<1x64xf32, #tpu.memory_space<vmem>>, %arg14: memref<1x64xf32, #tpu.memory_space<vmem>>, %arg15: memref<64x128xbf16, #tpu.memory_space<vmem>>, %arg16: memref<128x64xbf16, #tpu.memory_space<vmem>>, %arg17: memref<1x8x64xf32, #tpu.memory_space<vmem>>) attributes {dimension_semantics = [#tpu.dimension_semantics<parallel>], iteration_bounds = array<i64: 2>, scalar_prefetch = 0 : i64, scratch_operands = 0 : i64, tpu.core_type = #tpu.core_type<tc>, window_params = [{transform_indices = @transform_0, window_bounds = array<i64: 1, 265, 64>}, {transform_indices = @transform_1, window_bounds = array<i64: 1, 8, 64>}, {pipeline_mode = #tpu.pipeline_mode<synchronous>, transform_indices = @transform_2, window_bounds = array<i64: 8, 265>}, {pipeline_mode = #tpu.pipeline_mode<synchronous>, transform_indices = @transform_3, window_bounds = array<i64: 8, 8>}, {pipeline_mode = #tpu.pipeline_mode<synchronous>, transform_indices = @transform_4, window_bounds = array<i64: 1, 64>}, {pipeline_mode = #tpu.pipeline_mode<synchronous>, transform_indices = @transform_5, window_bounds = array<i64: 1, 64>}, {pipeline_mode = #tpu.pipeline_mode<synchronous>, transform_indices = @transform_6, window_bounds = array<i64: 1, 64>}, {pipeline_mode = #tpu.pipeline_mode<synchronous>, transform_indices = @transform_7, window_bounds = array<i64: 1, 64>}, {pipeline_mode = #tpu.pipeline_mode<synchronous>, transform_indices = @transform_8, window_bounds = array<i64: 64, 128>}, {pipeline_mode = #tpu.pipeline_mode<synchronous>, transform_indices = @transform_9, window_bounds = array<i64: 64, 128>}, {pipeline_mode = #tpu.pipeline_mode<synchronous>, transform_indices = @transform_10, window_bounds = array<i64: 64, 128>}, {pipeline_mode = #tpu.pipeline_mode<synchronous>, transform_indices = @transform_11, window_bounds = array<i64: 128, 64>}, {pipeline_mode = #tpu.pipeline_mode<synchronous>, transform_indices = @transform_12, window_bounds = array<i64: 1, 64>}, {pipeline_mode = #tpu.pipeline_mode<synchronous>, transform_indices = @transform_13, window_bounds = array<i64: 1, 64>}, {pipeline_mode = #tpu.pipeline_mode<synchronous>, transform_indices = @transform_14, window_bounds = array<i64: 64, 128>}, {pipeline_mode = #tpu.pipeline_mode<synchronous>, transform_indices = @transform_15, window_bounds = array<i64: 128, 64>}, {transform_indices = @transform_16, window_bounds = array<i64: 1, 8, 64>}]} {
    %c0 = arith.constant 0 : index
    %c0_0 = arith.constant 0 : index
    %c0_1 = arith.constant 0 : index
    %0 = vector.load %arg2[%c0, %c0_0, %c0_1] : memref<1x8x64xf32, #tpu.memory_space<vmem>>, vector<1x8x64xf32>
    %1 = vector.shape_cast %0 : vector<1x8x64xf32> to vector<8x64xf32>
    %c0_2 = arith.constant 0 : index
    %c0_3 = arith.constant 0 : index
    %c0_4 = arith.constant 0 : index
    %2 = vector.load %arg1[%c0_2, %c0_3, %c0_4] : memref<1x265x64xf32, #tpu.memory_space<vmem>>, vector<1x265x64xf32>
    %3 = vector.shape_cast %2 : vector<1x265x64xf32> to vector<265x64xf32>
    %c0_5 = arith.constant 0 : index
    %c0_6 = arith.constant 0 : index
    %4 = vector.load %arg5[%c0_5, %c0_6] : memref<1x64xf32, #tpu.memory_space<vmem>>, vector<1x64xf32>
    %c0_7 = arith.constant 0 : index
    %c0_8 = arith.constant 0 : index
    %5 = vector.load %arg6[%c0_7, %c0_8] : memref<1x64xf32, #tpu.memory_space<vmem>>, vector<1x64xf32>
    %cst = arith.constant dense<0.000000e+00> : vector<265xf32>
    %6 = vector.multi_reduction <add>, %3, %cst [1] : vector<265x64xf32> to vector<265xf32>
    %7 = vector.shape_cast %6 : vector<265xf32> to vector<265x1xf32>
    %cst_9 = arith.constant 6.400000e+01 : f32
    %8 = vector.broadcast %cst_9 : f32 to vector<265x1xf32>
    %9 = arith.divf %7, %8 : vector<265x1xf32>
    %10 = vector.broadcast %9 : vector<265x1xf32> to vector<265x64xf32>
    %11 = arith.subf %3, %10 : vector<265x64xf32>
    %12 = arith.mulf %11, %11 : vector<265x64xf32>
    %cst_10 = arith.constant dense<0.000000e+00> : vector<265xf32>
    %13 = vector.multi_reduction <add>, %12, %cst_10 [1] : vector<265x64xf32> to vector<265xf32>
    %14 = vector.shape_cast %13 : vector<265xf32> to vector<265x1xf32>
    %cst_11 = arith.constant 6.400000e+01 : f32
    %15 = vector.broadcast %cst_11 : f32 to vector<265x1xf32>
    %16 = arith.divf %14, %15 : vector<265x1xf32>
    %17 = vector.broadcast %9 : vector<265x1xf32> to vector<265x64xf32>
    %18 = arith.subf %3, %17 : vector<265x64xf32>
    %cst_12 = arith.constant 9.99999974E-6 : f32
    %19 = vector.broadcast %cst_12 : f32 to vector<265x1xf32>
    %20 = arith.addf %16, %19 : vector<265x1xf32>
    %21 = math.rsqrt %20 : vector<265x1xf32>
    %22 = vector.broadcast %21 : vector<265x1xf32> to vector<265x64xf32>
    %23 = arith.mulf %18, %22 : vector<265x64xf32>
    %24 = vector.broadcast %4 : vector<1x64xf32> to vector<265x64xf32>
    %25 = arith.mulf %23, %24 : vector<265x64xf32>
    %26 = vector.broadcast %5 : vector<1x64xf32> to vector<265x64xf32>
    %27 = arith.addf %25, %26 : vector<265x64xf32>
    %c0_13 = arith.constant 0 : index
    %c0_14 = arith.constant 0 : index
    %28 = vector.load %arg7[%c0_13, %c0_14] : memref<1x64xf32, #tpu.memory_space<vmem>>, vector<1x64xf32>
    %c0_15 = arith.constant 0 : index
    %c0_16 = arith.constant 0 : index
    %29 = vector.load %arg8[%c0_15, %c0_16] : memref<1x64xf32, #tpu.memory_space<vmem>>, vector<1x64xf32>
    %cst_17 = arith.constant dense<0.000000e+00> : vector<8xf32>
    %30 = vector.multi_reduction <add>, %1, %cst_17 [1] : vector<8x64xf32> to vector<8xf32>
    %31 = vector.shape_cast %30 : vector<8xf32> to vector<8x1xf32>
    %cst_18 = arith.constant 6.400000e+01 : f32
    %32 = vector.broadcast %cst_18 : f32 to vector<8x1xf32>
    %33 = arith.divf %31, %32 : vector<8x1xf32>
    %34 = vector.broadcast %33 : vector<8x1xf32> to vector<8x64xf32>
    %35 = arith.subf %1, %34 : vector<8x64xf32>
    %36 = arith.mulf %35, %35 : vector<8x64xf32>
    %cst_19 = arith.constant dense<0.000000e+00> : vector<8xf32>
    %37 = vector.multi_reduction <add>, %36, %cst_19 [1] : vector<8x64xf32> to vector<8xf32>
    %38 = vector.shape_cast %37 : vector<8xf32> to vector<8x1xf32>
    %cst_20 = arith.constant 6.400000e+01 : f32
    %39 = vector.broadcast %cst_20 : f32 to vector<8x1xf32>
    %40 = arith.divf %38, %39 : vector<8x1xf32>
    %41 = vector.broadcast %33 : vector<8x1xf32> to vector<8x64xf32>
    %42 = arith.subf %1, %41 : vector<8x64xf32>
    %cst_21 = arith.constant 9.99999974E-6 : f32
    %43 = vector.broadcast %cst_21 : f32 to vector<8x1xf32>
    %44 = arith.addf %40, %43 : vector<8x1xf32>
    %45 = math.rsqrt %44 : vector<8x1xf32>
    %46 = vector.broadcast %45 : vector<8x1xf32> to vector<8x64xf32>
    %47 = arith.mulf %42, %46 : vector<8x64xf32>
    %48 = vector.broadcast %28 : vector<1x64xf32> to vector<8x64xf32>
    %49 = arith.mulf %47, %48 : vector<8x64xf32>
    %50 = vector.broadcast %29 : vector<1x64xf32> to vector<8x64xf32>
    %51 = arith.addf %49, %50 : vector<8x64xf32>
    %52 = arith.truncf %27 : vector<265x64xf32> to vector<265x64xbf16>
    %53 = arith.truncf %51 : vector<8x64xf32> to vector<8x64xbf16>
    %c0_22 = arith.constant 0 : index
    %c0_23 = arith.constant 0 : index
    %54 = vector.load %arg9[%c0_22, %c0_23] : memref<64x128xbf16, #tpu.memory_space<vmem>>, vector<64x128xbf16>
    %c0_24 = arith.constant 0 : index
    %c0_25 = arith.constant 0 : index
    %55 = vector.load %arg10[%c0_24, %c0_25] : memref<64x128xbf16, #tpu.memory_space<vmem>>, vector<64x128xbf16>
    %c0_26 = arith.constant 0 : index
    %c0_27 = arith.constant 0 : index
    %56 = vector.load %arg11[%c0_26, %c0_27] : memref<64x128xbf16, #tpu.memory_space<vmem>>, vector<64x128xbf16>
    %c0_28 = arith.constant 0 : index
    %c0_29 = arith.constant 0 : index
    %57 = vector.load %arg12[%c0_28, %c0_29] : memref<128x64xbf16, #tpu.memory_space<vmem>>, vector<128x64xbf16>
    %cst_30 = arith.constant dense<0.000000e+00> : vector<8x128xf32>
    %58 = tpu.matmul %53, %54, %cst_30 {dimension_numbers = #tpu.dot_dimension_numbers<[1], [0], [0], [1], [0, 0, 1, 1], [], []>} : vector<8x64xbf16>, vector<64x128xbf16>, vector<8x128xf32> -> vector<8x128xf32>
    %cst_31 = arith.constant dense<0.000000e+00> : vector<265x128xf32>
    %59 = tpu.matmul %52, %55, %cst_31 {dimension_numbers = #tpu.dot_dimension_numbers<[1], [0], [0], [1], [0, 0, 1, 1], [], []>} : vector<265x64xbf16>, vector<64x128xbf16>, vector<265x128xf32> -> vector<265x128xf32>
    %cst_32 = arith.constant dense<0.000000e+00> : vector<8x128xf32>
    %60 = tpu.matmul %53, %55, %cst_32 {dimension_numbers = #tpu.dot_dimension_numbers<[1], [0], [0], [1], [0, 0, 1, 1], [], []>} : vector<8x64xbf16>, vector<64x128xbf16>, vector<8x128xf32> -> vector<8x128xf32>
    %cst_33 = arith.constant dense<0.000000e+00> : vector<265x128xf32>
    %61 = tpu.matmul %52, %56, %cst_33 {dimension_numbers = #tpu.dot_dimension_numbers<[1], [0], [0], [1], [0, 0, 1, 1], [], []>} : vector<265x64xbf16>, vector<64x128xbf16>, vector<265x128xf32> -> vector<265x128xf32>
    %62 = arith.truncf %61 : vector<265x128xf32> to vector<265x128xbf16>
    %cst_34 = arith.constant dense<0.000000e+00> : vector<8x128xf32>
    %63 = tpu.matmul %53, %56, %cst_34 {dimension_numbers = #tpu.dot_dimension_numbers<[1], [0], [0], [1], [0, 0, 1, 1], [], []>} : vector<8x64xbf16>, vector<64x128xbf16>, vector<8x128xf32> -> vector<8x128xf32>
    %64 = arith.truncf %63 : vector<8x128xf32> to vector<8x128xbf16>
    %c0_35 = arith.constant 0 : index
    %c0_36 = arith.constant 0 : index
    %65 = vector.load %arg3[%c0_35, %c0_36] : memref<8x265xf32, #tpu.memory_space<vmem>>, vector<8x265xf32>
    %c0_37 = arith.constant 0 : index
    %c0_38 = arith.constant 0 : index
    %66 = vector.load %arg4[%c0_37, %c0_38] : memref<8x8xf32, #tpu.memory_space<vmem>>, vector<8x8xf32>
    %cst_39 = arith.constant 0.000000e+00 : f32
    %67 = vector.broadcast %cst_39 : f32 to vector<8x64xf32>
    %68 = vector.extract_strided_slice %58 {offsets = [0, 0], sizes = [8, 16], strides = [1, 1]} : vector<8x128xf32> to vector<8x16xf32>
    %69 = vector.extract_strided_slice %59 {offsets = [0, 0], sizes = [265, 16], strides = [1, 1]} : vector<265x128xf32> to vector<265x16xf32>
    %70 = tpu.transpose %69, [1, 0] : vector<265x16xf32> -> vector<16x265xf32>
    %cst_40 = arith.constant dense<0.000000e+00> : vector<8x265xf32>
    %71 = tpu.matmul %68, %70, %cst_40 {dimension_numbers = #tpu.dot_dimension_numbers<[1], [0], [0], [1], [0, 0, 1, 1], [], []>} : vector<8x16xf32>, vector<16x265xf32>, vector<8x265xf32> -> vector<8x265xf32>
    %cst_41 = arith.constant 2.500000e-01 : f32
    %72 = vector.broadcast %cst_41 : f32 to vector<8x265xf32>
    %73 = arith.mulf %71, %72 : vector<8x265xf32>
    %74 = vector.extract_strided_slice %60 {offsets = [0, 0], sizes = [8, 16], strides = [1, 1]} : vector<8x128xf32> to vector<8x16xf32>
    %75 = tpu.transpose %74, [1, 0] : vector<8x16xf32> -> vector<16x8xf32>
    %cst_42 = arith.constant dense<0.000000e+00> : vector<8x8xf32>
    %76 = tpu.matmul %68, %75, %cst_42 {dimension_numbers = #tpu.dot_dimension_numbers<[1], [0], [0], [1], [0, 0, 1, 1], [], []>} : vector<8x16xf32>, vector<16x8xf32>, vector<8x8xf32> -> vector<8x8xf32>
    %cst_43 = arith.constant 2.500000e-01 : f32
    %77 = vector.broadcast %cst_43 : f32 to vector<8x8xf32>
    %78 = arith.mulf %76, %77 : vector<8x8xf32>
    %cst_44 = arith.constant dense<0xFF800000> : vector<8xf32>
    %79 = vector.multi_reduction <maximumf>, %73, %cst_44 [1] : vector<8x265xf32> to vector<8xf32>
    %80 = vector.shape_cast %79 : vector<8xf32> to vector<8x1xf32>
    %cst_45 = arith.constant dense<0xFF800000> : vector<8xf32>
    %81 = vector.multi_reduction <maximumf>, %78, %cst_45 [1] : vector<8x8xf32> to vector<8xf32>
    %82 = vector.shape_cast %81 : vector<8xf32> to vector<8x1xf32>
    %83 = arith.maximumf %80, %82 : vector<8x1xf32>
    %84 = vector.broadcast %83 : vector<8x1xf32> to vector<8x265xf32>
    %85 = arith.subf %73, %84 : vector<8x265xf32>
    %86 = math.exp %85 : vector<8x265xf32>
    %87 = vector.broadcast %83 : vector<8x1xf32> to vector<8x8xf32>
    %88 = arith.subf %78, %87 : vector<8x8xf32>
    %89 = math.exp %88 : vector<8x8xf32>
    %cst_46 = arith.constant dense<0.000000e+00> : vector<8xf32>
    %90 = vector.multi_reduction <add>, %86, %cst_46 [1] : vector<8x265xf32> to vector<8xf32>
    %91 = vector.shape_cast %90 : vector<8xf32> to vector<8x1xf32>
    %cst_47 = arith.constant dense<0.000000e+00> : vector<8xf32>
    %92 = vector.multi_reduction <add>, %89, %cst_47 [1] : vector<8x8xf32> to vector<8xf32>
    %93 = vector.shape_cast %92 : vector<8xf32> to vector<8x1xf32>
    %94 = arith.addf %91, %93 : vector<8x1xf32>
    %95 = tpu.reciprocal %94 {approx = true} : vector<8x1xf32> -> vector<8x1xf32>
    %96 = vector.broadcast %95 : vector<8x1xf32> to vector<8x265xf32>
    %97 = arith.mulf %86, %96 : vector<8x265xf32>
    %98 = vector.extract_strided_slice %65 {offsets = [0, 0], sizes = [1, 265], strides = [1, 1]} : vector<8x265xf32> to vector<1x265xf32>
    %99 = vector.broadcast %98 : vector<1x265xf32> to vector<8x265xf32>
    %100 = arith.mulf %97, %99 : vector<8x265xf32>
    %101 = vector.broadcast %95 : vector<8x1xf32> to vector<8x8xf32>
    %102 = arith.mulf %89, %101 : vector<8x8xf32>
    %103 = vector.extract_strided_slice %66 {offsets = [0, 0], sizes = [1, 8], strides = [1, 1]} : vector<8x8xf32> to vector<1x8xf32>
    %104 = vector.broadcast %103 : vector<1x8xf32> to vector<8x8xf32>
    %105 = arith.mulf %102, %104 : vector<8x8xf32>
    %106 = arith.truncf %100 : vector<8x265xf32> to vector<8x265xbf16>
    %107 = vector.extract_strided_slice %62 {offsets = [0, 0], sizes = [265, 16], strides = [1, 1]} : vector<265x128xbf16> to vector<265x16xbf16>
    %cst_48 = arith.constant dense<0.000000e+00> : vector<8x16xf32>
    %108 = tpu.matmul %106, %107, %cst_48 {dimension_numbers = #tpu.dot_dimension_numbers<[1], [0], [0], [1], [0, 0, 1, 1], [], []>} : vector<8x265xbf16>, vector<265x16xbf16>, vector<8x16xf32> -> vector<8x16xf32>
    %109 = arith.truncf %105 : vector<8x8xf32> to vector<8x8xbf16>
    %110 = vector.extract_strided_slice %64 {offsets = [0, 0], sizes = [8, 16], strides = [1, 1]} : vector<8x128xbf16> to vector<8x16xbf16>
    %cst_49 = arith.constant dense<0.000000e+00> : vector<8x16xf32>
    %111 = tpu.matmul %109, %110, %cst_49 {dimension_numbers = #tpu.dot_dimension_numbers<[1], [0], [0], [1], [0, 0, 1, 1], [], []>} : vector<8x8xbf16>, vector<8x16xbf16>, vector<8x16xf32> -> vector<8x16xf32>
    %112 = arith.addf %108, %111 : vector<8x16xf32>
    %113 = arith.truncf %112 : vector<8x16xf32> to vector<8x16xbf16>
    %114 = vector.extract_strided_slice %57 {offsets = [0, 0], sizes = [16, 64], strides = [1, 1]} : vector<128x64xbf16> to vector<16x64xbf16>
    %cst_50 = arith.constant dense<0.000000e+00> : vector<8x64xf32>
    %115 = tpu.matmul %113, %114, %cst_50 {dimension_numbers = #tpu.dot_dimension_numbers<[1], [0], [0], [1], [0, 0, 1, 1], [], []>} : vector<8x16xbf16>, vector<16x64xbf16>, vector<8x64xf32> -> vector<8x64xf32>
    %116 = arith.addf %67, %115 : vector<8x64xf32>
    %117 = vector.extract_strided_slice %58 {offsets = [0, 16], sizes = [8, 16], strides = [1, 1]} : vector<8x128xf32> to vector<8x16xf32>
    %118 = vector.extract_strided_slice %59 {offsets = [0, 16], sizes = [265, 16], strides = [1, 1]} : vector<265x128xf32> to vector<265x16xf32>
    %119 = tpu.transpose %118, [1, 0] : vector<265x16xf32> -> vector<16x265xf32>
    %cst_51 = arith.constant dense<0.000000e+00> : vector<8x265xf32>
    %120 = tpu.matmul %117, %119, %cst_51 {dimension_numbers = #tpu.dot_dimension_numbers<[1], [0], [0], [1], [0, 0, 1, 1], [], []>} : vector<8x16xf32>, vector<16x265xf32>, vector<8x265xf32> -> vector<8x265xf32>
    %cst_52 = arith.constant 2.500000e-01 : f32
    %121 = vector.broadcast %cst_52 : f32 to vector<8x265xf32>
    %122 = arith.mulf %120, %121 : vector<8x265xf32>
    %123 = vector.extract_strided_slice %60 {offsets = [0, 16], sizes = [8, 16], strides = [1, 1]} : vector<8x128xf32> to vector<8x16xf32>
    %124 = tpu.transpose %123, [1, 0] : vector<8x16xf32> -> vector<16x8xf32>
    %cst_53 = arith.constant dense<0.000000e+00> : vector<8x8xf32>
    %125 = tpu.matmul %117, %124, %cst_53 {dimension_numbers = #tpu.dot_dimension_numbers<[1], [0], [0], [1], [0, 0, 1, 1], [], []>} : vector<8x16xf32>, vector<16x8xf32>, vector<8x8xf32> -> vector<8x8xf32>
    %cst_54 = arith.constant 2.500000e-01 : f32
    %126 = vector.broadcast %cst_54 : f32 to vector<8x8xf32>
    %127 = arith.mulf %125, %126 : vector<8x8xf32>
    %cst_55 = arith.constant dense<0xFF800000> : vector<8xf32>
    %128 = vector.multi_reduction <maximumf>, %122, %cst_55 [1] : vector<8x265xf32> to vector<8xf32>
    %129 = vector.shape_cast %128 : vector<8xf32> to vector<8x1xf32>
    %cst_56 = arith.constant dense<0xFF800000> : vector<8xf32>
    %130 = vector.multi_reduction <maximumf>, %127, %cst_56 [1] : vector<8x8xf32> to vector<8xf32>
    %131 = vector.shape_cast %130 : vector<8xf32> to vector<8x1xf32>
    %132 = arith.maximumf %129, %131 : vector<8x1xf32>
    %133 = vector.broadcast %132 : vector<8x1xf32> to vector<8x265xf32>
    %134 = arith.subf %122, %133 : vector<8x265xf32>
    %135 = math.exp %134 : vector<8x265xf32>
    %136 = vector.broadcast %132 : vector<8x1xf32> to vector<8x8xf32>
    %137 = arith.subf %127, %136 : vector<8x8xf32>
    %138 = math.exp %137 : vector<8x8xf32>
    %cst_57 = arith.constant dense<0.000000e+00> : vector<8xf32>
    %139 = vector.multi_reduction <add>, %135, %cst_57 [1] : vector<8x265xf32> to vector<8xf32>
    %140 = vector.shape_cast %139 : vector<8xf32> to vector<8x1xf32>
    %cst_58 = arith.constant dense<0.000000e+00> : vector<8xf32>
    %141 = vector.multi_reduction <add>, %138, %cst_58 [1] : vector<8x8xf32> to vector<8xf32>
    %142 = vector.shape_cast %141 : vector<8xf32> to vector<8x1xf32>
    %143 = arith.addf %140, %142 : vector<8x1xf32>
    %144 = tpu.reciprocal %143 {approx = true} : vector<8x1xf32> -> vector<8x1xf32>
    %145 = vector.broadcast %144 : vector<8x1xf32> to vector<8x265xf32>
    %146 = arith.mulf %135, %145 : vector<8x265xf32>
    %147 = vector.extract_strided_slice %65 {offsets = [1, 0], sizes = [1, 265], strides = [1, 1]} : vector<8x265xf32> to vector<1x265xf32>
    %148 = vector.broadcast %147 : vector<1x265xf32> to vector<8x265xf32>
    %149 = arith.mulf %146, %148 : vector<8x265xf32>
    %150 = vector.broadcast %144 : vector<8x1xf32> to vector<8x8xf32>
    %151 = arith.mulf %138, %150 : vector<8x8xf32>
    %152 = vector.extract_strided_slice %66 {offsets = [1, 0], sizes = [1, 8], strides = [1, 1]} : vector<8x8xf32> to vector<1x8xf32>
    %153 = vector.broadcast %152 : vector<1x8xf32> to vector<8x8xf32>
    %154 = arith.mulf %151, %153 : vector<8x8xf32>
    %155 = arith.truncf %149 : vector<8x265xf32> to vector<8x265xbf16>
    %156 = vector.extract_strided_slice %62 {offsets = [0, 16], sizes = [265, 16], strides = [1, 1]} : vector<265x128xbf16> to vector<265x16xbf16>
    %cst_59 = arith.constant dense<0.000000e+00> : vector<8x16xf32>
    %157 = tpu.matmul %155, %156, %cst_59 {dimension_numbers = #tpu.dot_dimension_numbers<[1], [0], [0], [1], [0, 0, 1, 1], [], []>} : vector<8x265xbf16>, vector<265x16xbf16>, vector<8x16xf32> -> vector<8x16xf32>
    %158 = arith.truncf %154 : vector<8x8xf32> to vector<8x8xbf16>
    %159 = vector.extract_strided_slice %64 {offsets = [0, 16], sizes = [8, 16], strides = [1, 1]} : vector<8x128xbf16> to vector<8x16xbf16>
    %cst_60 = arith.constant dense<0.000000e+00> : vector<8x16xf32>
    %160 = tpu.matmul %158, %159, %cst_60 {dimension_numbers = #tpu.dot_dimension_numbers<[1], [0], [0], [1], [0, 0, 1, 1], [], []>} : vector<8x8xbf16>, vector<8x16xbf16>, vector<8x16xf32> -> vector<8x16xf32>
    %161 = arith.addf %157, %160 : vector<8x16xf32>
    %162 = arith.truncf %161 : vector<8x16xf32> to vector<8x16xbf16>
    %163 = vector.extract_strided_slice %57 {offsets = [16, 0], sizes = [16, 64], strides = [1, 1]} : vector<128x64xbf16> to vector<16x64xbf16>
    %cst_61 = arith.constant dense<0.000000e+00> : vector<8x64xf32>
    %164 = tpu.matmul %162, %163, %cst_61 {dimension_numbers = #tpu.dot_dimension_numbers<[1], [0], [0], [1], [0, 0, 1, 1], [], []>} : vector<8x16xbf16>, vector<16x64xbf16>, vector<8x64xf32> -> vector<8x64xf32>
    %165 = arith.addf %116, %164 : vector<8x64xf32>
    %166 = vector.extract_strided_slice %58 {offsets = [0, 32], sizes = [8, 16], strides = [1, 1]} : vector<8x128xf32> to vector<8x16xf32>
    %167 = vector.extract_strided_slice %59 {offsets = [0, 32], sizes = [265, 16], strides = [1, 1]} : vector<265x128xf32> to vector<265x16xf32>
    %168 = tpu.transpose %167, [1, 0] : vector<265x16xf32> -> vector<16x265xf32>
    %cst_62 = arith.constant dense<0.000000e+00> : vector<8x265xf32>
    %169 = tpu.matmul %166, %168, %cst_62 {dimension_numbers = #tpu.dot_dimension_numbers<[1], [0], [0], [1], [0, 0, 1, 1], [], []>} : vector<8x16xf32>, vector<16x265xf32>, vector<8x265xf32> -> vector<8x265xf32>
    %cst_63 = arith.constant 2.500000e-01 : f32
    %170 = vector.broadcast %cst_63 : f32 to vector<8x265xf32>
    %171 = arith.mulf %169, %170 : vector<8x265xf32>
    %172 = vector.extract_strided_slice %60 {offsets = [0, 32], sizes = [8, 16], strides = [1, 1]} : vector<8x128xf32> to vector<8x16xf32>
    %173 = tpu.transpose %172, [1, 0] : vector<8x16xf32> -> vector<16x8xf32>
    %cst_64 = arith.constant dense<0.000000e+00> : vector<8x8xf32>
    %174 = tpu.matmul %166, %173, %cst_64 {dimension_numbers = #tpu.dot_dimension_numbers<[1], [0], [0], [1], [0, 0, 1, 1], [], []>} : vector<8x16xf32>, vector<16x8xf32>, vector<8x8xf32> -> vector<8x8xf32>
    %cst_65 = arith.constant 2.500000e-01 : f32
    %175 = vector.broadcast %cst_65 : f32 to vector<8x8xf32>
    %176 = arith.mulf %174, %175 : vector<8x8xf32>
    %cst_66 = arith.constant dense<0xFF800000> : vector<8xf32>
    %177 = vector.multi_reduction <maximumf>, %171, %cst_66 [1] : vector<8x265xf32> to vector<8xf32>
    %178 = vector.shape_cast %177 : vector<8xf32> to vector<8x1xf32>
    %cst_67 = arith.constant dense<0xFF800000> : vector<8xf32>
    %179 = vector.multi_reduction <maximumf>, %176, %cst_67 [1] : vector<8x8xf32> to vector<8xf32>
    %180 = vector.shape_cast %179 : vector<8xf32> to vector<8x1xf32>
    %181 = arith.maximumf %178, %180 : vector<8x1xf32>
    %182 = vector.broadcast %181 : vector<8x1xf32> to vector<8x265xf32>
    %183 = arith.subf %171, %182 : vector<8x265xf32>
    %184 = math.exp %183 : vector<8x265xf32>
    %185 = vector.broadcast %181 : vector<8x1xf32> to vector<8x8xf32>
    %186 = arith.subf %176, %185 : vector<8x8xf32>
    %187 = math.exp %186 : vector<8x8xf32>
    %cst_68 = arith.constant dense<0.000000e+00> : vector<8xf32>
    %188 = vector.multi_reduction <add>, %184, %cst_68 [1] : vector<8x265xf32> to vector<8xf32>
    %189 = vector.shape_cast %188 : vector<8xf32> to vector<8x1xf32>
    %cst_69 = arith.constant dense<0.000000e+00> : vector<8xf32>
    %190 = vector.multi_reduction <add>, %187, %cst_69 [1] : vector<8x8xf32> to vector<8xf32>
    %191 = vector.shape_cast %190 : vector<8xf32> to vector<8x1xf32>
    %192 = arith.addf %189, %191 : vector<8x1xf32>
    %193 = tpu.reciprocal %192 {approx = true} : vector<8x1xf32> -> vector<8x1xf32>
    %194 = vector.broadcast %193 : vector<8x1xf32> to vector<8x265xf32>
    %195 = arith.mulf %184, %194 : vector<8x265xf32>
    %196 = vector.extract_strided_slice %65 {offsets = [2, 0], sizes = [1, 265], strides = [1, 1]} : vector<8x265xf32> to vector<1x265xf32>
    %197 = vector.broadcast %196 : vector<1x265xf32> to vector<8x265xf32>
    %198 = arith.mulf %195, %197 : vector<8x265xf32>
    %199 = vector.broadcast %193 : vector<8x1xf32> to vector<8x8xf32>
    %200 = arith.mulf %187, %199 : vector<8x8xf32>
    %201 = vector.extract_strided_slice %66 {offsets = [2, 0], sizes = [1, 8], strides = [1, 1]} : vector<8x8xf32> to vector<1x8xf32>
    %202 = vector.broadcast %201 : vector<1x8xf32> to vector<8x8xf32>
    %203 = arith.mulf %200, %202 : vector<8x8xf32>
    %204 = arith.truncf %198 : vector<8x265xf32> to vector<8x265xbf16>
    %205 = vector.extract_strided_slice %62 {offsets = [0, 32], sizes = [265, 16], strides = [1, 1]} : vector<265x128xbf16> to vector<265x16xbf16>
    %cst_70 = arith.constant dense<0.000000e+00> : vector<8x16xf32>
    %206 = tpu.matmul %204, %205, %cst_70 {dimension_numbers = #tpu.dot_dimension_numbers<[1], [0], [0], [1], [0, 0, 1, 1], [], []>} : vector<8x265xbf16>, vector<265x16xbf16>, vector<8x16xf32> -> vector<8x16xf32>
    %207 = arith.truncf %203 : vector<8x8xf32> to vector<8x8xbf16>
    %208 = vector.extract_strided_slice %64 {offsets = [0, 32], sizes = [8, 16], strides = [1, 1]} : vector<8x128xbf16> to vector<8x16xbf16>
    %cst_71 = arith.constant dense<0.000000e+00> : vector<8x16xf32>
    %209 = tpu.matmul %207, %208, %cst_71 {dimension_numbers = #tpu.dot_dimension_numbers<[1], [0], [0], [1], [0, 0, 1, 1], [], []>} : vector<8x8xbf16>, vector<8x16xbf16>, vector<8x16xf32> -> vector<8x16xf32>
    %210 = arith.addf %206, %209 : vector<8x16xf32>
    %211 = arith.truncf %210 : vector<8x16xf32> to vector<8x16xbf16>
    %212 = vector.extract_strided_slice %57 {offsets = [32, 0], sizes = [16, 64], strides = [1, 1]} : vector<128x64xbf16> to vector<16x64xbf16>
    %cst_72 = arith.constant dense<0.000000e+00> : vector<8x64xf32>
    %213 = tpu.matmul %211, %212, %cst_72 {dimension_numbers = #tpu.dot_dimension_numbers<[1], [0], [0], [1], [0, 0, 1, 1], [], []>} : vector<8x16xbf16>, vector<16x64xbf16>, vector<8x64xf32> -> vector<8x64xf32>
    %214 = arith.addf %165, %213 : vector<8x64xf32>
    %215 = vector.extract_strided_slice %58 {offsets = [0, 48], sizes = [8, 16], strides = [1, 1]} : vector<8x128xf32> to vector<8x16xf32>
    %216 = vector.extract_strided_slice %59 {offsets = [0, 48], sizes = [265, 16], strides = [1, 1]} : vector<265x128xf32> to vector<265x16xf32>
    %217 = tpu.transpose %216, [1, 0] : vector<265x16xf32> -> vector<16x265xf32>
    %cst_73 = arith.constant dense<0.000000e+00> : vector<8x265xf32>
    %218 = tpu.matmul %215, %217, %cst_73 {dimension_numbers = #tpu.dot_dimension_numbers<[1], [0], [0], [1], [0, 0, 1, 1], [], []>} : vector<8x16xf32>, vector<16x265xf32>, vector<8x265xf32> -> vector<8x265xf32>
    %cst_74 = arith.constant 2.500000e-01 : f32
    %219 = vector.broadcast %cst_74 : f32 to vector<8x265xf32>
    %220 = arith.mulf %218, %219 : vector<8x265xf32>
    %221 = vector.extract_strided_slice %60 {offsets = [0, 48], sizes = [8, 16], strides = [1, 1]} : vector<8x128xf32> to vector<8x16xf32>
    %222 = tpu.transpose %221, [1, 0] : vector<8x16xf32> -> vector<16x8xf32>
    %cst_75 = arith.constant dense<0.000000e+00> : vector<8x8xf32>
    %223 = tpu.matmul %215, %222, %cst_75 {dimension_numbers = #tpu.dot_dimension_numbers<[1], [0], [0], [1], [0, 0, 1, 1], [], []>} : vector<8x16xf32>, vector<16x8xf32>, vector<8x8xf32> -> vector<8x8xf32>
    %cst_76 = arith.constant 2.500000e-01 : f32
    %224 = vector.broadcast %cst_76 : f32 to vector<8x8xf32>
    %225 = arith.mulf %223, %224 : vector<8x8xf32>
    %cst_77 = arith.constant dense<0xFF800000> : vector<8xf32>
    %226 = vector.multi_reduction <maximumf>, %220, %cst_77 [1] : vector<8x265xf32> to vector<8xf32>
    %227 = vector.shape_cast %226 : vector<8xf32> to vector<8x1xf32>
    %cst_78 = arith.constant dense<0xFF800000> : vector<8xf32>
    %228 = vector.multi_reduction <maximumf>, %225, %cst_78 [1] : vector<8x8xf32> to vector<8xf32>
    %229 = vector.shape_cast %228 : vector<8xf32> to vector<8x1xf32>
    %230 = arith.maximumf %227, %229 : vector<8x1xf32>
    %231 = vector.broadcast %230 : vector<8x1xf32> to vector<8x265xf32>
    %232 = arith.subf %220, %231 : vector<8x265xf32>
    %233 = math.exp %232 : vector<8x265xf32>
    %234 = vector.broadcast %230 : vector<8x1xf32> to vector<8x8xf32>
    %235 = arith.subf %225, %234 : vector<8x8xf32>
    %236 = math.exp %235 : vector<8x8xf32>
    %cst_79 = arith.constant dense<0.000000e+00> : vector<8xf32>
    %237 = vector.multi_reduction <add>, %233, %cst_79 [1] : vector<8x265xf32> to vector<8xf32>
    %238 = vector.shape_cast %237 : vector<8xf32> to vector<8x1xf32>
    %cst_80 = arith.constant dense<0.000000e+00> : vector<8xf32>
    %239 = vector.multi_reduction <add>, %236, %cst_80 [1] : vector<8x8xf32> to vector<8xf32>
    %240 = vector.shape_cast %239 : vector<8xf32> to vector<8x1xf32>
    %241 = arith.addf %238, %240 : vector<8x1xf32>
    %242 = tpu.reciprocal %241 {approx = true} : vector<8x1xf32> -> vector<8x1xf32>
    %243 = vector.broadcast %242 : vector<8x1xf32> to vector<8x265xf32>
    %244 = arith.mulf %233, %243 : vector<8x265xf32>
    %245 = vector.extract_strided_slice %65 {offsets = [3, 0], sizes = [1, 265], strides = [1, 1]} : vector<8x265xf32> to vector<1x265xf32>
    %246 = vector.broadcast %245 : vector<1x265xf32> to vector<8x265xf32>
    %247 = arith.mulf %244, %246 : vector<8x265xf32>
    %248 = vector.broadcast %242 : vector<8x1xf32> to vector<8x8xf32>
    %249 = arith.mulf %236, %248 : vector<8x8xf32>
    %250 = vector.extract_strided_slice %66 {offsets = [3, 0], sizes = [1, 8], strides = [1, 1]} : vector<8x8xf32> to vector<1x8xf32>
    %251 = vector.broadcast %250 : vector<1x8xf32> to vector<8x8xf32>
    %252 = arith.mulf %249, %251 : vector<8x8xf32>
    %253 = arith.truncf %247 : vector<8x265xf32> to vector<8x265xbf16>
    %254 = vector.extract_strided_slice %62 {offsets = [0, 48], sizes = [265, 16], strides = [1, 1]} : vector<265x128xbf16> to vector<265x16xbf16>
    %cst_81 = arith.constant dense<0.000000e+00> : vector<8x16xf32>
    %255 = tpu.matmul %253, %254, %cst_81 {dimension_numbers = #tpu.dot_dimension_numbers<[1], [0], [0], [1], [0, 0, 1, 1], [], []>} : vector<8x265xbf16>, vector<265x16xbf16>, vector<8x16xf32> -> vector<8x16xf32>
    %256 = arith.truncf %252 : vector<8x8xf32> to vector<8x8xbf16>
    %257 = vector.extract_strided_slice %64 {offsets = [0, 48], sizes = [8, 16], strides = [1, 1]} : vector<8x128xbf16> to vector<8x16xbf16>
    %cst_82 = arith.constant dense<0.000000e+00> : vector<8x16xf32>
    %258 = tpu.matmul %256, %257, %cst_82 {dimension_numbers = #tpu.dot_dimension_numbers<[1], [0], [0], [1], [0, 0, 1, 1], [], []>} : vector<8x8xbf16>, vector<8x16xbf16>, vector<8x16xf32> -> vector<8x16xf32>
    %259 = arith.addf %255, %258 : vector<8x16xf32>
    %260 = arith.truncf %259 : vector<8x16xf32> to vector<8x16xbf16>
    %261 = vector.extract_strided_slice %57 {offsets = [48, 0], sizes = [16, 64], strides = [1, 1]} : vector<128x64xbf16> to vector<16x64xbf16>
    %cst_83 = arith.constant dense<0.000000e+00> : vector<8x64xf32>
    %262 = tpu.matmul %260, %261, %cst_83 {dimension_numbers = #tpu.dot_dimension_numbers<[1], [0], [0], [1], [0, 0, 1, 1], [], []>} : vector<8x16xbf16>, vector<16x64xbf16>, vector<8x64xf32> -> vector<8x64xf32>
    %263 = arith.addf %214, %262 : vector<8x64xf32>
    %264 = vector.extract_strided_slice %58 {offsets = [0, 64], sizes = [8, 16], strides = [1, 1]} : vector<8x128xf32> to vector<8x16xf32>
    %265 = vector.extract_strided_slice %59 {offsets = [0, 64], sizes = [265, 16], strides = [1, 1]} : vector<265x128xf32> to vector<265x16xf32>
    %266 = tpu.transpose %265, [1, 0] : vector<265x16xf32> -> vector<16x265xf32>
    %cst_84 = arith.constant dense<0.000000e+00> : vector<8x265xf32>
    %267 = tpu.matmul %264, %266, %cst_84 {dimension_numbers = #tpu.dot_dimension_numbers<[1], [0], [0], [1], [0, 0, 1, 1], [], []>} : vector<8x16xf32>, vector<16x265xf32>, vector<8x265xf32> -> vector<8x265xf32>
    %cst_85 = arith.constant 2.500000e-01 : f32
    %268 = vector.broadcast %cst_85 : f32 to vector<8x265xf32>
    %269 = arith.mulf %267, %268 : vector<8x265xf32>
    %270 = vector.extract_strided_slice %60 {offsets = [0, 64], sizes = [8, 16], strides = [1, 1]} : vector<8x128xf32> to vector<8x16xf32>
    %271 = tpu.transpose %270, [1, 0] : vector<8x16xf32> -> vector<16x8xf32>
    %cst_86 = arith.constant dense<0.000000e+00> : vector<8x8xf32>
    %272 = tpu.matmul %264, %271, %cst_86 {dimension_numbers = #tpu.dot_dimension_numbers<[1], [0], [0], [1], [0, 0, 1, 1], [], []>} : vector<8x16xf32>, vector<16x8xf32>, vector<8x8xf32> -> vector<8x8xf32>
    %cst_87 = arith.constant 2.500000e-01 : f32
    %273 = vector.broadcast %cst_87 : f32 to vector<8x8xf32>
    %274 = arith.mulf %272, %273 : vector<8x8xf32>
    %cst_88 = arith.constant dense<0xFF800000> : vector<8xf32>
    %275 = vector.multi_reduction <maximumf>, %269, %cst_88 [1] : vector<8x265xf32> to vector<8xf32>
    %276 = vector.shape_cast %275 : vector<8xf32> to vector<8x1xf32>
    %cst_89 = arith.constant dense<0xFF800000> : vector<8xf32>
    %277 = vector.multi_reduction <maximumf>, %274, %cst_89 [1] : vector<8x8xf32> to vector<8xf32>
    %278 = vector.shape_cast %277 : vector<8xf32> to vector<8x1xf32>
    %279 = arith.maximumf %276, %278 : vector<8x1xf32>
    %280 = vector.broadcast %279 : vector<8x1xf32> to vector<8x265xf32>
    %281 = arith.subf %269, %280 : vector<8x265xf32>
    %282 = math.exp %281 : vector<8x265xf32>
    %283 = vector.broadcast %279 : vector<8x1xf32> to vector<8x8xf32>
    %284 = arith.subf %274, %283 : vector<8x8xf32>
    %285 = math.exp %284 : vector<8x8xf32>
    %cst_90 = arith.constant dense<0.000000e+00> : vector<8xf32>
    %286 = vector.multi_reduction <add>, %282, %cst_90 [1] : vector<8x265xf32> to vector<8xf32>
    %287 = vector.shape_cast %286 : vector<8xf32> to vector<8x1xf32>
    %cst_91 = arith.constant dense<0.000000e+00> : vector<8xf32>
    %288 = vector.multi_reduction <add>, %285, %cst_91 [1] : vector<8x8xf32> to vector<8xf32>
    %289 = vector.shape_cast %288 : vector<8xf32> to vector<8x1xf32>
    %290 = arith.addf %287, %289 : vector<8x1xf32>
    %291 = tpu.reciprocal %290 {approx = true} : vector<8x1xf32> -> vector<8x1xf32>
    %292 = vector.broadcast %291 : vector<8x1xf32> to vector<8x265xf32>
    %293 = arith.mulf %282, %292 : vector<8x265xf32>
    %294 = vector.extract_strided_slice %65 {offsets = [4, 0], sizes = [1, 265], strides = [1, 1]} : vector<8x265xf32> to vector<1x265xf32>
    %295 = vector.broadcast %294 : vector<1x265xf32> to vector<8x265xf32>
    %296 = arith.mulf %293, %295 : vector<8x265xf32>
    %297 = vector.broadcast %291 : vector<8x1xf32> to vector<8x8xf32>
    %298 = arith.mulf %285, %297 : vector<8x8xf32>
    %299 = vector.extract_strided_slice %66 {offsets = [4, 0], sizes = [1, 8], strides = [1, 1]} : vector<8x8xf32> to vector<1x8xf32>
    %300 = vector.broadcast %299 : vector<1x8xf32> to vector<8x8xf32>
    %301 = arith.mulf %298, %300 : vector<8x8xf32>
    %302 = arith.truncf %296 : vector<8x265xf32> to vector<8x265xbf16>
    %303 = vector.extract_strided_slice %62 {offsets = [0, 64], sizes = [265, 16], strides = [1, 1]} : vector<265x128xbf16> to vector<265x16xbf16>
    %cst_92 = arith.constant dense<0.000000e+00> : vector<8x16xf32>
    %304 = tpu.matmul %302, %303, %cst_92 {dimension_numbers = #tpu.dot_dimension_numbers<[1], [0], [0], [1], [0, 0, 1, 1], [], []>} : vector<8x265xbf16>, vector<265x16xbf16>, vector<8x16xf32> -> vector<8x16xf32>
    %305 = arith.truncf %301 : vector<8x8xf32> to vector<8x8xbf16>
    %306 = vector.extract_strided_slice %64 {offsets = [0, 64], sizes = [8, 16], strides = [1, 1]} : vector<8x128xbf16> to vector<8x16xbf16>
    %cst_93 = arith.constant dense<0.000000e+00> : vector<8x16xf32>
    %307 = tpu.matmul %305, %306, %cst_93 {dimension_numbers = #tpu.dot_dimension_numbers<[1], [0], [0], [1], [0, 0, 1, 1], [], []>} : vector<8x8xbf16>, vector<8x16xbf16>, vector<8x16xf32> -> vector<8x16xf32>
    %308 = arith.addf %304, %307 : vector<8x16xf32>
    %309 = arith.truncf %308 : vector<8x16xf32> to vector<8x16xbf16>
    %310 = vector.extract_strided_slice %57 {offsets = [64, 0], sizes = [16, 64], strides = [1, 1]} : vector<128x64xbf16> to vector<16x64xbf16>
    %cst_94 = arith.constant dense<0.000000e+00> : vector<8x64xf32>
    %311 = tpu.matmul %309, %310, %cst_94 {dimension_numbers = #tpu.dot_dimension_numbers<[1], [0], [0], [1], [0, 0, 1, 1], [], []>} : vector<8x16xbf16>, vector<16x64xbf16>, vector<8x64xf32> -> vector<8x64xf32>
    %312 = arith.addf %263, %311 : vector<8x64xf32>
    %313 = vector.extract_strided_slice %58 {offsets = [0, 80], sizes = [8, 16], strides = [1, 1]} : vector<8x128xf32> to vector<8x16xf32>
    %314 = vector.extract_strided_slice %59 {offsets = [0, 80], sizes = [265, 16], strides = [1, 1]} : vector<265x128xf32> to vector<265x16xf32>
    %315 = tpu.transpose %314, [1, 0] : vector<265x16xf32> -> vector<16x265xf32>
    %cst_95 = arith.constant dense<0.000000e+00> : vector<8x265xf32>
    %316 = tpu.matmul %313, %315, %cst_95 {dimension_numbers = #tpu.dot_dimension_numbers<[1], [0], [0], [1], [0, 0, 1, 1], [], []>} : vector<8x16xf32>, vector<16x265xf32>, vector<8x265xf32> -> vector<8x265xf32>
    %cst_96 = arith.constant 2.500000e-01 : f32
    %317 = vector.broadcast %cst_96 : f32 to vector<8x265xf32>
    %318 = arith.mulf %316, %317 : vector<8x265xf32>
    %319 = vector.extract_strided_slice %60 {offsets = [0, 80], sizes = [8, 16], strides = [1, 1]} : vector<8x128xf32> to vector<8x16xf32>
    %320 = tpu.transpose %319, [1, 0] : vector<8x16xf32> -> vector<16x8xf32>
    %cst_97 = arith.constant dense<0.000000e+00> : vector<8x8xf32>
    %321 = tpu.matmul %313, %320, %cst_97 {dimension_numbers = #tpu.dot_dimension_numbers<[1], [0], [0], [1], [0, 0, 1, 1], [], []>} : vector<8x16xf32>, vector<16x8xf32>, vector<8x8xf32> -> vector<8x8xf32>
    %cst_98 = arith.constant 2.500000e-01 : f32
    %322 = vector.broadcast %cst_98 : f32 to vector<8x8xf32>
    %323 = arith.mulf %321, %322 : vector<8x8xf32>
    %cst_99 = arith.constant dense<0xFF800000> : vector<8xf32>
    %324 = vector.multi_reduction <maximumf>, %318, %cst_99 [1] : vector<8x265xf32> to vector<8xf32>
    %325 = vector.shape_cast %324 : vector<8xf32> to vector<8x1xf32>
    %cst_100 = arith.constant dense<0xFF800000> : vector<8xf32>
    %326 = vector.multi_reduction <maximumf>, %323, %cst_100 [1] : vector<8x8xf32> to vector<8xf32>
    %327 = vector.shape_cast %326 : vector<8xf32> to vector<8x1xf32>
    %328 = arith.maximumf %325, %327 : vector<8x1xf32>
    %329 = vector.broadcast %328 : vector<8x1xf32> to vector<8x265xf32>
    %330 = arith.subf %318, %329 : vector<8x265xf32>
    %331 = math.exp %330 : vector<8x265xf32>
    %332 = vector.broadcast %328 : vector<8x1xf32> to vector<8x8xf32>
    %333 = arith.subf %323, %332 : vector<8x8xf32>
    %334 = math.exp %333 : vector<8x8xf32>
    %cst_101 = arith.constant dense<0.000000e+00> : vector<8xf32>
    %335 = vector.multi_reduction <add>, %331, %cst_101 [1] : vector<8x265xf32> to vector<8xf32>
    %336 = vector.shape_cast %335 : vector<8xf32> to vector<8x1xf32>
    %cst_102 = arith.constant dense<0.000000e+00> : vector<8xf32>
    %337 = vector.multi_reduction <add>, %334, %cst_102 [1] : vector<8x8xf32> to vector<8xf32>
    %338 = vector.shape_cast %337 : vector<8xf32> to vector<8x1xf32>
    %339 = arith.addf %336, %338 : vector<8x1xf32>
    %340 = tpu.reciprocal %339 {approx = true} : vector<8x1xf32> -> vector<8x1xf32>
    %341 = vector.broadcast %340 : vector<8x1xf32> to vector<8x265xf32>
    %342 = arith.mulf %331, %341 : vector<8x265xf32>
    %343 = vector.extract_strided_slice %65 {offsets = [5, 0], sizes = [1, 265], strides = [1, 1]} : vector<8x265xf32> to vector<1x265xf32>
    %344 = vector.broadcast %343 : vector<1x265xf32> to vector<8x265xf32>
    %345 = arith.mulf %342, %344 : vector<8x265xf32>
    %346 = vector.broadcast %340 : vector<8x1xf32> to vector<8x8xf32>
    %347 = arith.mulf %334, %346 : vector<8x8xf32>
    %348 = vector.extract_strided_slice %66 {offsets = [5, 0], sizes = [1, 8], strides = [1, 1]} : vector<8x8xf32> to vector<1x8xf32>
    %349 = vector.broadcast %348 : vector<1x8xf32> to vector<8x8xf32>
    %350 = arith.mulf %347, %349 : vector<8x8xf32>
    %351 = arith.truncf %345 : vector<8x265xf32> to vector<8x265xbf16>
    %352 = vector.extract_strided_slice %62 {offsets = [0, 80], sizes = [265, 16], strides = [1, 1]} : vector<265x128xbf16> to vector<265x16xbf16>
    %cst_103 = arith.constant dense<0.000000e+00> : vector<8x16xf32>
    %353 = tpu.matmul %351, %352, %cst_103 {dimension_numbers = #tpu.dot_dimension_numbers<[1], [0], [0], [1], [0, 0, 1, 1], [], []>} : vector<8x265xbf16>, vector<265x16xbf16>, vector<8x16xf32> -> vector<8x16xf32>
    %354 = arith.truncf %350 : vector<8x8xf32> to vector<8x8xbf16>
    %355 = vector.extract_strided_slice %64 {offsets = [0, 80], sizes = [8, 16], strides = [1, 1]} : vector<8x128xbf16> to vector<8x16xbf16>
    %cst_104 = arith.constant dense<0.000000e+00> : vector<8x16xf32>
    %356 = tpu.matmul %354, %355, %cst_104 {dimension_numbers = #tpu.dot_dimension_numbers<[1], [0], [0], [1], [0, 0, 1, 1], [], []>} : vector<8x8xbf16>, vector<8x16xbf16>, vector<8x16xf32> -> vector<8x16xf32>
    %357 = arith.addf %353, %356 : vector<8x16xf32>
    %358 = arith.truncf %357 : vector<8x16xf32> to vector<8x16xbf16>
    %359 = vector.extract_strided_slice %57 {offsets = [80, 0], sizes = [16, 64], strides = [1, 1]} : vector<128x64xbf16> to vector<16x64xbf16>
    %cst_105 = arith.constant dense<0.000000e+00> : vector<8x64xf32>
    %360 = tpu.matmul %358, %359, %cst_105 {dimension_numbers = #tpu.dot_dimension_numbers<[1], [0], [0], [1], [0, 0, 1, 1], [], []>} : vector<8x16xbf16>, vector<16x64xbf16>, vector<8x64xf32> -> vector<8x64xf32>
    %361 = arith.addf %312, %360 : vector<8x64xf32>
    %362 = vector.extract_strided_slice %58 {offsets = [0, 96], sizes = [8, 16], strides = [1, 1]} : vector<8x128xf32> to vector<8x16xf32>
    %363 = vector.extract_strided_slice %59 {offsets = [0, 96], sizes = [265, 16], strides = [1, 1]} : vector<265x128xf32> to vector<265x16xf32>
    %364 = tpu.transpose %363, [1, 0] : vector<265x16xf32> -> vector<16x265xf32>
    %cst_106 = arith.constant dense<0.000000e+00> : vector<8x265xf32>
    %365 = tpu.matmul %362, %364, %cst_106 {dimension_numbers = #tpu.dot_dimension_numbers<[1], [0], [0], [1], [0, 0, 1, 1], [], []>} : vector<8x16xf32>, vector<16x265xf32>, vector<8x265xf32> -> vector<8x265xf32>
    %cst_107 = arith.constant 2.500000e-01 : f32
    %366 = vector.broadcast %cst_107 : f32 to vector<8x265xf32>
    %367 = arith.mulf %365, %366 : vector<8x265xf32>
    %368 = vector.extract_strided_slice %60 {offsets = [0, 96], sizes = [8, 16], strides = [1, 1]} : vector<8x128xf32> to vector<8x16xf32>
    %369 = tpu.transpose %368, [1, 0] : vector<8x16xf32> -> vector<16x8xf32>
    %cst_108 = arith.constant dense<0.000000e+00> : vector<8x8xf32>
    %370 = tpu.matmul %362, %369, %cst_108 {dimension_numbers = #tpu.dot_dimension_numbers<[1], [0], [0], [1], [0, 0, 1, 1], [], []>} : vector<8x16xf32>, vector<16x8xf32>, vector<8x8xf32> -> vector<8x8xf32>
    %cst_109 = arith.constant 2.500000e-01 : f32
    %371 = vector.broadcast %cst_109 : f32 to vector<8x8xf32>
    %372 = arith.mulf %370, %371 : vector<8x8xf32>
    %cst_110 = arith.constant dense<0xFF800000> : vector<8xf32>
    %373 = vector.multi_reduction <maximumf>, %367, %cst_110 [1] : vector<8x265xf32> to vector<8xf32>
    %374 = vector.shape_cast %373 : vector<8xf32> to vector<8x1xf32>
    %cst_111 = arith.constant dense<0xFF800000> : vector<8xf32>
    %375 = vector.multi_reduction <maximumf>, %372, %cst_111 [1] : vector<8x8xf32> to vector<8xf32>
    %376 = vector.shape_cast %375 : vector<8xf32> to vector<8x1xf32>
    %377 = arith.maximumf %374, %376 : vector<8x1xf32>
    %378 = vector.broadcast %377 : vector<8x1xf32> to vector<8x265xf32>
    %379 = arith.subf %367, %378 : vector<8x265xf32>
    %380 = math.exp %379 : vector<8x265xf32>
    %381 = vector.broadcast %377 : vector<8x1xf32> to vector<8x8xf32>
    %382 = arith.subf %372, %381 : vector<8x8xf32>
    %383 = math.exp %382 : vector<8x8xf32>
    %cst_112 = arith.constant dense<0.000000e+00> : vector<8xf32>
    %384 = vector.multi_reduction <add>, %380, %cst_112 [1] : vector<8x265xf32> to vector<8xf32>
    %385 = vector.shape_cast %384 : vector<8xf32> to vector<8x1xf32>
    %cst_113 = arith.constant dense<0.000000e+00> : vector<8xf32>
    %386 = vector.multi_reduction <add>, %383, %cst_113 [1] : vector<8x8xf32> to vector<8xf32>
    %387 = vector.shape_cast %386 : vector<8xf32> to vector<8x1xf32>
    %388 = arith.addf %385, %387 : vector<8x1xf32>
    %389 = tpu.reciprocal %388 {approx = true} : vector<8x1xf32> -> vector<8x1xf32>
    %390 = vector.broadcast %389 : vector<8x1xf32> to vector<8x265xf32>
    %391 = arith.mulf %380, %390 : vector<8x265xf32>
    %392 = vector.extract_strided_slice %65 {offsets = [6, 0], sizes = [1, 265], strides = [1, 1]} : vector<8x265xf32> to vector<1x265xf32>
    %393 = vector.broadcast %392 : vector<1x265xf32> to vector<8x265xf32>
    %394 = arith.mulf %391, %393 : vector<8x265xf32>
    %395 = vector.broadcast %389 : vector<8x1xf32> to vector<8x8xf32>
    %396 = arith.mulf %383, %395 : vector<8x8xf32>
    %397 = vector.extract_strided_slice %66 {offsets = [6, 0], sizes = [1, 8], strides = [1, 1]} : vector<8x8xf32> to vector<1x8xf32>
    %398 = vector.broadcast %397 : vector<1x8xf32> to vector<8x8xf32>
    %399 = arith.mulf %396, %398 : vector<8x8xf32>
    %400 = arith.truncf %394 : vector<8x265xf32> to vector<8x265xbf16>
    %401 = vector.extract_strided_slice %62 {offsets = [0, 96], sizes = [265, 16], strides = [1, 1]} : vector<265x128xbf16> to vector<265x16xbf16>
    %cst_114 = arith.constant dense<0.000000e+00> : vector<8x16xf32>
    %402 = tpu.matmul %400, %401, %cst_114 {dimension_numbers = #tpu.dot_dimension_numbers<[1], [0], [0], [1], [0, 0, 1, 1], [], []>} : vector<8x265xbf16>, vector<265x16xbf16>, vector<8x16xf32> -> vector<8x16xf32>
    %403 = arith.truncf %399 : vector<8x8xf32> to vector<8x8xbf16>
    %404 = vector.extract_strided_slice %64 {offsets = [0, 96], sizes = [8, 16], strides = [1, 1]} : vector<8x128xbf16> to vector<8x16xbf16>
    %cst_115 = arith.constant dense<0.000000e+00> : vector<8x16xf32>
    %405 = tpu.matmul %403, %404, %cst_115 {dimension_numbers = #tpu.dot_dimension_numbers<[1], [0], [0], [1], [0, 0, 1, 1], [], []>} : vector<8x8xbf16>, vector<8x16xbf16>, vector<8x16xf32> -> vector<8x16xf32>
    %406 = arith.addf %402, %405 : vector<8x16xf32>
    %407 = arith.truncf %406 : vector<8x16xf32> to vector<8x16xbf16>
    %408 = vector.extract_strided_slice %57 {offsets = [96, 0], sizes = [16, 64], strides = [1, 1]} : vector<128x64xbf16> to vector<16x64xbf16>
    %cst_116 = arith.constant dense<0.000000e+00> : vector<8x64xf32>
    %409 = tpu.matmul %407, %408, %cst_116 {dimension_numbers = #tpu.dot_dimension_numbers<[1], [0], [0], [1], [0, 0, 1, 1], [], []>} : vector<8x16xbf16>, vector<16x64xbf16>, vector<8x64xf32> -> vector<8x64xf32>
    %410 = arith.addf %361, %409 : vector<8x64xf32>
    %411 = vector.extract_strided_slice %58 {offsets = [0, 112], sizes = [8, 16], strides = [1, 1]} : vector<8x128xf32> to vector<8x16xf32>
    %412 = vector.extract_strided_slice %59 {offsets = [0, 112], sizes = [265, 16], strides = [1, 1]} : vector<265x128xf32> to vector<265x16xf32>
    %413 = tpu.transpose %412, [1, 0] : vector<265x16xf32> -> vector<16x265xf32>
    %cst_117 = arith.constant dense<0.000000e+00> : vector<8x265xf32>
    %414 = tpu.matmul %411, %413, %cst_117 {dimension_numbers = #tpu.dot_dimension_numbers<[1], [0], [0], [1], [0, 0, 1, 1], [], []>} : vector<8x16xf32>, vector<16x265xf32>, vector<8x265xf32> -> vector<8x265xf32>
    %cst_118 = arith.constant 2.500000e-01 : f32
    %415 = vector.broadcast %cst_118 : f32 to vector<8x265xf32>
    %416 = arith.mulf %414, %415 : vector<8x265xf32>
    %417 = vector.extract_strided_slice %60 {offsets = [0, 112], sizes = [8, 16], strides = [1, 1]} : vector<8x128xf32> to vector<8x16xf32>
    %418 = tpu.transpose %417, [1, 0] : vector<8x16xf32> -> vector<16x8xf32>
    %cst_119 = arith.constant dense<0.000000e+00> : vector<8x8xf32>
    %419 = tpu.matmul %411, %418, %cst_119 {dimension_numbers = #tpu.dot_dimension_numbers<[1], [0], [0], [1], [0, 0, 1, 1], [], []>} : vector<8x16xf32>, vector<16x8xf32>, vector<8x8xf32> -> vector<8x8xf32>
    %cst_120 = arith.constant 2.500000e-01 : f32
    %420 = vector.broadcast %cst_120 : f32 to vector<8x8xf32>
    %421 = arith.mulf %419, %420 : vector<8x8xf32>
    %cst_121 = arith.constant dense<0xFF800000> : vector<8xf32>
    %422 = vector.multi_reduction <maximumf>, %416, %cst_121 [1] : vector<8x265xf32> to vector<8xf32>
    %423 = vector.shape_cast %422 : vector<8xf32> to vector<8x1xf32>
    %cst_122 = arith.constant dense<0xFF800000> : vector<8xf32>
    %424 = vector.multi_reduction <maximumf>, %421, %cst_122 [1] : vector<8x8xf32> to vector<8xf32>
    %425 = vector.shape_cast %424 : vector<8xf32> to vector<8x1xf32>
    %426 = arith.maximumf %423, %425 : vector<8x1xf32>
    %427 = vector.broadcast %426 : vector<8x1xf32> to vector<8x265xf32>
    %428 = arith.subf %416, %427 : vector<8x265xf32>
    %429 = math.exp %428 : vector<8x265xf32>
    %430 = vector.broadcast %426 : vector<8x1xf32> to vector<8x8xf32>
    %431 = arith.subf %421, %430 : vector<8x8xf32>
    %432 = math.exp %431 : vector<8x8xf32>
    %cst_123 = arith.constant dense<0.000000e+00> : vector<8xf32>
    %433 = vector.multi_reduction <add>, %429, %cst_123 [1] : vector<8x265xf32> to vector<8xf32>
    %434 = vector.shape_cast %433 : vector<8xf32> to vector<8x1xf32>
    %cst_124 = arith.constant dense<0.000000e+00> : vector<8xf32>
    %435 = vector.multi_reduction <add>, %432, %cst_124 [1] : vector<8x8xf32> to vector<8xf32>
    %436 = vector.shape_cast %435 : vector<8xf32> to vector<8x1xf32>
    %437 = arith.addf %434, %436 : vector<8x1xf32>
    %438 = tpu.reciprocal %437 {approx = true} : vector<8x1xf32> -> vector<8x1xf32>
    %439 = vector.broadcast %438 : vector<8x1xf32> to vector<8x265xf32>
    %440 = arith.mulf %429, %439 : vector<8x265xf32>
    %441 = vector.extract_strided_slice %65 {offsets = [7, 0], sizes = [1, 265], strides = [1, 1]} : vector<8x265xf32> to vector<1x265xf32>
    %442 = vector.broadcast %441 : vector<1x265xf32> to vector<8x265xf32>
    %443 = arith.mulf %440, %442 : vector<8x265xf32>
    %444 = vector.broadcast %438 : vector<8x1xf32> to vector<8x8xf32>
    %445 = arith.mulf %432, %444 : vector<8x8xf32>
    %446 = vector.extract_strided_slice %66 {offsets = [7, 0], sizes = [1, 8], strides = [1, 1]} : vector<8x8xf32> to vector<1x8xf32>
    %447 = vector.broadcast %446 : vector<1x8xf32> to vector<8x8xf32>
    %448 = arith.mulf %445, %447 : vector<8x8xf32>
    %449 = arith.truncf %443 : vector<8x265xf32> to vector<8x265xbf16>
    %450 = vector.extract_strided_slice %62 {offsets = [0, 112], sizes = [265, 16], strides = [1, 1]} : vector<265x128xbf16> to vector<265x16xbf16>
    %cst_125 = arith.constant dense<0.000000e+00> : vector<8x16xf32>
    %451 = tpu.matmul %449, %450, %cst_125 {dimension_numbers = #tpu.dot_dimension_numbers<[1], [0], [0], [1], [0, 0, 1, 1], [], []>} : vector<8x265xbf16>, vector<265x16xbf16>, vector<8x16xf32> -> vector<8x16xf32>
    %452 = arith.truncf %448 : vector<8x8xf32> to vector<8x8xbf16>
    %453 = vector.extract_strided_slice %64 {offsets = [0, 112], sizes = [8, 16], strides = [1, 1]} : vector<8x128xbf16> to vector<8x16xbf16>
    %cst_126 = arith.constant dense<0.000000e+00> : vector<8x16xf32>
    %454 = tpu.matmul %452, %453, %cst_126 {dimension_numbers = #tpu.dot_dimension_numbers<[1], [0], [0], [1], [0, 0, 1, 1], [], []>} : vector<8x8xbf16>, vector<8x16xbf16>, vector<8x16xf32> -> vector<8x16xf32>
    %455 = arith.addf %451, %454 : vector<8x16xf32>
    %456 = arith.truncf %455 : vector<8x16xf32> to vector<8x16xbf16>
    %457 = vector.extract_strided_slice %57 {offsets = [112, 0], sizes = [16, 64], strides = [1, 1]} : vector<128x64xbf16> to vector<16x64xbf16>
    %cst_127 = arith.constant dense<0.000000e+00> : vector<8x64xf32>
    %458 = tpu.matmul %456, %457, %cst_127 {dimension_numbers = #tpu.dot_dimension_numbers<[1], [0], [0], [1], [0, 0, 1, 1], [], []>} : vector<8x16xbf16>, vector<16x64xbf16>, vector<8x64xf32> -> vector<8x64xf32>
    %459 = arith.addf %410, %458 : vector<8x64xf32>
    %460 = arith.addf %459, %1 : vector<8x64xf32>
    %c0_128 = arith.constant 0 : index
    %c0_129 = arith.constant 0 : index
    %461 = vector.load %arg13[%c0_128, %c0_129] : memref<1x64xf32, #tpu.memory_space<vmem>>, vector<1x64xf32>
    %c0_130 = arith.constant 0 : index
    %c0_131 = arith.constant 0 : index
    %462 = vector.load %arg14[%c0_130, %c0_131] : memref<1x64xf32, #tpu.memory_space<vmem>>, vector<1x64xf32>
    %cst_132 = arith.constant dense<0.000000e+00> : vector<8xf32>
    %463 = vector.multi_reduction <add>, %460, %cst_132 [1] : vector<8x64xf32> to vector<8xf32>
    %464 = vector.shape_cast %463 : vector<8xf32> to vector<8x1xf32>
    %cst_133 = arith.constant 6.400000e+01 : f32
    %465 = vector.broadcast %cst_133 : f32 to vector<8x1xf32>
    %466 = arith.divf %464, %465 : vector<8x1xf32>
    %467 = vector.broadcast %466 : vector<8x1xf32> to vector<8x64xf32>
    %468 = arith.subf %460, %467 : vector<8x64xf32>
    %469 = arith.mulf %468, %468 : vector<8x64xf32>
    %cst_134 = arith.constant dense<0.000000e+00> : vector<8xf32>
    %470 = vector.multi_reduction <add>, %469, %cst_134 [1] : vector<8x64xf32> to vector<8xf32>
    %471 = vector.shape_cast %470 : vector<8xf32> to vector<8x1xf32>
    %cst_135 = arith.constant 6.400000e+01 : f32
    %472 = vector.broadcast %cst_135 : f32 to vector<8x1xf32>
    %473 = arith.divf %471, %472 : vector<8x1xf32>
    %474 = vector.broadcast %466 : vector<8x1xf32> to vector<8x64xf32>
    %475 = arith.subf %460, %474 : vector<8x64xf32>
    %cst_136 = arith.constant 9.99999974E-6 : f32
    %476 = vector.broadcast %cst_136 : f32 to vector<8x1xf32>
    %477 = arith.addf %473, %476 : vector<8x1xf32>
    %478 = math.rsqrt %477 : vector<8x1xf32>
    %479 = vector.broadcast %478 : vector<8x1xf32> to vector<8x64xf32>
    %480 = arith.mulf %475, %479 : vector<8x64xf32>
    %481 = vector.broadcast %461 : vector<1x64xf32> to vector<8x64xf32>
    %482 = arith.mulf %480, %481 : vector<8x64xf32>
    %483 = vector.broadcast %462 : vector<1x64xf32> to vector<8x64xf32>
    %484 = arith.addf %482, %483 : vector<8x64xf32>
    %485 = arith.truncf %484 : vector<8x64xf32> to vector<8x64xbf16>
    %c0_137 = arith.constant 0 : index
    %c0_138 = arith.constant 0 : index
    %486 = vector.load %arg15[%c0_137, %c0_138] : memref<64x128xbf16, #tpu.memory_space<vmem>>, vector<64x128xbf16>
    %cst_139 = arith.constant dense<0.000000e+00> : vector<8x128xf32>
    %487 = tpu.matmul %485, %486, %cst_139 {dimension_numbers = #tpu.dot_dimension_numbers<[1], [0], [0], [1], [0, 0, 1, 1], [], []>} : vector<8x64xbf16>, vector<64x128xbf16>, vector<8x128xf32> -> vector<8x128xf32>
    %488 = arith.mulf %487, %487 : vector<8x128xf32>
    %489 = arith.mulf %487, %488 : vector<8x128xf32>
    %cst_140 = arith.constant 4.471500e-02 : f32
    %490 = vector.broadcast %cst_140 : f32 to vector<8x128xf32>
    %491 = arith.mulf %490, %489 : vector<8x128xf32>
    %492 = arith.addf %487, %491 : vector<8x128xf32>
    %cst_141 = arith.constant 0.797884583 : f32
    %493 = vector.broadcast %cst_141 : f32 to vector<8x128xf32>
    %494 = arith.mulf %493, %492 : vector<8x128xf32>
    %495 = math.tanh %494 : vector<8x128xf32>
    %cst_142 = arith.constant 1.000000e+00 : f32
    %496 = vector.broadcast %cst_142 : f32 to vector<8x128xf32>
    %497 = arith.addf %496, %495 : vector<8x128xf32>
    %cst_143 = arith.constant 5.000000e-01 : f32
    %498 = vector.broadcast %cst_143 : f32 to vector<8x128xf32>
    %499 = arith.mulf %498, %497 : vector<8x128xf32>
    %500 = arith.mulf %487, %499 : vector<8x128xf32>
    %501 = arith.truncf %500 : vector<8x128xf32> to vector<8x128xbf16>
    %c0_144 = arith.constant 0 : index
    %c0_145 = arith.constant 0 : index
    %502 = vector.load %arg16[%c0_144, %c0_145] : memref<128x64xbf16, #tpu.memory_space<vmem>>, vector<128x64xbf16>
    %cst_146 = arith.constant dense<0.000000e+00> : vector<8x64xf32>
    %503 = tpu.matmul %501, %502, %cst_146 {dimension_numbers = #tpu.dot_dimension_numbers<[1], [0], [0], [1], [0, 0, 1, 1], [], []>} : vector<8x128xbf16>, vector<128x64xbf16>, vector<8x64xf32> -> vector<8x64xf32>
    %504 = arith.addf %503, %460 : vector<8x64xf32>
    %c0_147 = arith.constant 0 : index
    %c0_148 = arith.constant 0 : index
    %c0_149 = arith.constant 0 : index
    %505 = vector.load %arg17[%c0_147, %c0_148, %c0_149] : memref<1x8x64xf32, #tpu.memory_space<vmem>>, vector<1x8x64xf32>
    %506 = vector.shape_cast %505 : vector<1x8x64xf32> to vector<8x64xf32>
    %507 = vector.shape_cast %504 : vector<8x64xf32> to vector<1x8x64xf32>
    tpu.vector_store %arg17[%c0_147, %c0_148, %c0_149], %507 {strides = array<i32>} : memref<1x8x64xf32, #tpu.memory_space<vmem>>, vector<1x8x64xf32>,
    return
  }
  func.func @transform_0(%arg0: i32) -> (i32, i32, i32) {
    %c0_i32 = arith.constant 0 : i32
    %c0_i32_0 = arith.constant 0 : i32
    %c0_i32_1 = arith.constant 0 : i32
    return %arg0, %c0_i32, %c0_i32_0 : i32, i32, i32
  }
  func.func @transform_1(%arg0: i32) -> (i32, i32, i32) {
    %c0_i32 = arith.constant 0 : i32
    %c0_i32_0 = arith.constant 0 : i32
    %c0_i32_1 = arith.constant 0 : i32
    return %arg0, %c0_i32, %c0_i32_0 : i32, i32, i32
  }
  func.func @transform_2(%arg0: i32) -> (i32, i32) {
    %c0_i32 = arith.constant 0 : i32
    %c0_i32_0 = arith.constant 0 : i32
    %c0_i32_1 = arith.constant 0 : i32
    return %c0_i32, %c0_i32_0 : i32, i32
  }
  func.func @transform_3(%arg0: i32) -> (i32, i32) {
    %c0_i32 = arith.constant 0 : i32
    %c0_i32_0 = arith.constant 0 : i32
    %c0_i32_1 = arith.constant 0 : i32
    return %c0_i32, %c0_i32_0 : i32, i32
  }
  func.func @transform_4(%arg0: i32) -> (i32, i32) {
    %c0_i32 = arith.constant 0 : i32
    %c0_i32_0 = arith.constant 0 : i32
    %c0_i32_1 = arith.constant 0 : i32
    return %c0_i32, %c0_i32_0 : i32, i32
  }
  func.func @transform_5(%arg0: i32) -> (i32, i32) {
    %c0_i32 = arith.constant 0 : i32
    %c0_i32_0 = arith.constant 0 : i32
    %c0_i32_1 = arith.constant 0 : i32
    return %c0_i32, %c0_i32_0 : i32, i32
  }
  func.func @transform_6(%arg0: i32) -> (i32, i32) {
    %c0_i32 = arith.constant 0 : i32
    %c0_i32_0 = arith.constant 0 : i32
    %c0_i32_1 = arith.constant 0 : i32
    return %c0_i32, %c0_i32_0 : i32, i32
  }
  func.func @transform_7(%arg0: i32) -> (i32, i32) {
    %c0_i32 = arith.constant 0 : i32
    %c0_i32_0 = arith.constant 0 : i32
    %c0_i32_1 = arith.constant 0 : i32
    return %c0_i32, %c0_i32_0 : i32, i32
  }
  func.func @transform_8(%arg0: i32) -> (i32, i32) {
    %c0_i32 = arith.constant 0 : i32
    %c0_i32_0 = arith.constant 0 : i32
    %c0_i32_1 = arith.constant 0 : i32
    return %c0_i32, %c0_i32_0 : i32, i32
  }
  func.func @transform_9(%arg0: i32) -> (i32, i32) {
    %c0_i32 = arith.constant 0 : i32
    %c0_i32_0 = arith.constant 0 : i32
    %c0_i32_1 = arith.constant 0 : i32
    return %c0_i32, %c0_i32_0 : i32, i32
  }
  func.func @transform_10(%arg0: i32) -> (i32, i32) {
    %c0_i32 = arith.constant 0 : i32
    %c0_i32_0 = arith.constant 0 : i32
    %c0_i32_1 = arith.constant 0 : i32
    return %c0_i32, %c0_i32_0 : i32, i32
  }
  func.func @transform_11(%arg0: i32) -> (i32, i32) {
    %c0_i32 = arith.constant 0 : i32
    %c0_i32_0 = arith.constant 0 : i32
    %c0_i32_1 = arith.constant 0 : i32
    return %c0_i32, %c0_i32_0 : i32, i32
  }
  func.func @transform_12(%arg0: i32) -> (i32, i32) {
    %c0_i32 = arith.constant 0 : i32
    %c0_i32_0 = arith.constant 0 : i32
    %c0_i32_1 = arith.constant 0 : i32
    return %c0_i32, %c0_i32_0 : i32, i32
  }
  func.func @transform_13(%arg0: i32) -> (i32, i32) {
    %c0_i32 = arith.constant 0 : i32
    %c0_i32_0 = arith.constant 0 : i32
    %c0_i32_1 = arith.constant 0 : i32
    return %c0_i32, %c0_i32_0 : i32, i32
  }
  func.func @transform_14(%arg0: i32) -> (i32, i32) {
    %c0_i32 = arith.constant 0 : i32
    %c0_i32_0 = arith.constant 0 : i32
    %c0_i32_1 = arith.constant 0 : i32
    return %c0_i32, %c0_i32_0 : i32, i32
  }
  func.func @transform_15(%arg0: i32) -> (i32, i32) {
    %c0_i32 = arith.constant 0 : i32
    %c0_i32_0 = arith.constant 0 : i32
    %c0_i32_1 = arith.constant 0 : i32
    return %c0_i32, %c0_i32_0 : i32, i32
  }
  func.func @transform_16(%arg0: i32) -> (i32, i32, i32) {
    %c0_i32 = arith.constant 0 : i32
    %c0_i32_0 = arith.constant 0 : i32
    %c0_i32_1 = arith.constant 0 : i32
    return %arg0, %c0_i32, %c0_i32_0 : i32, i32, i32
  }
}

module attributes {stable_mosaic.version = 11 : i64} {
  func.func @_proj_out_norm_kernel(%arg0: i32, %arg1: memref<1x8x64xf32, #tpu.memory_space<vmem>>, %arg2: memref<64x64xbf16, #tpu.memory_space<vmem>>, %arg3: memref<1x64xf32, #tpu.memory_space<vmem>>, %arg4: memref<1x64xf32, #tpu.memory_space<vmem>>, %arg5: memref<1x64xf32, #tpu.memory_space<vmem>>, %arg6: memref<1x8x64xf32, #tpu.memory_space<vmem>>) attributes {dimension_semantics = [#tpu.dimension_semantics<parallel>], iteration_bounds = array<i64: 2>, scalar_prefetch = 0 : i64, scratch_operands = 0 : i64, tpu.core_type = #tpu.core_type<tc>, window_params = [{transform_indices = @transform_0, window_bounds = array<i64: 1, 8, 64>}, {pipeline_mode = #tpu.pipeline_mode<synchronous>, transform_indices = @transform_1, window_bounds = array<i64: 64, 64>}, {pipeline_mode = #tpu.pipeline_mode<synchronous>, transform_indices = @transform_2, window_bounds = array<i64: 1, 64>}, {pipeline_mode = #tpu.pipeline_mode<synchronous>, transform_indices = @transform_3, window_bounds = array<i64: 1, 64>}, {pipeline_mode = #tpu.pipeline_mode<synchronous>, transform_indices = @transform_4, window_bounds = array<i64: 1, 64>}, {transform_indices = @transform_5, window_bounds = array<i64: 1, 8, 64>}]} {
    %c0 = arith.constant 0 : index
    %c0_0 = arith.constant 0 : index
    %c0_1 = arith.constant 0 : index
    %0 = vector.load %arg1[%c0, %c0_0, %c0_1] : memref<1x8x64xf32, #tpu.memory_space<vmem>>, vector<1x8x64xf32>
    %1 = vector.shape_cast %0 : vector<1x8x64xf32> to vector<8x64xf32>
    %2 = arith.truncf %1 : vector<8x64xf32> to vector<8x64xbf16>
    %c0_2 = arith.constant 0 : index
    %c0_3 = arith.constant 0 : index
    %3 = vector.load %arg2[%c0_2, %c0_3] : memref<64x64xbf16, #tpu.memory_space<vmem>>, vector<64x64xbf16>
    %cst = arith.constant dense<0.000000e+00> : vector<8x64xf32>
    %4 = tpu.matmul %2, %3, %cst {dimension_numbers = #tpu.dot_dimension_numbers<[1], [0], [0], [1], [0, 0, 1, 1], [], []>} : vector<8x64xbf16>, vector<64x64xbf16>, vector<8x64xf32> -> vector<8x64xf32>
    %c0_4 = arith.constant 0 : index
    %c0_5 = arith.constant 0 : index
    %5 = vector.load %arg3[%c0_4, %c0_5] : memref<1x64xf32, #tpu.memory_space<vmem>>, vector<1x64xf32>
    %6 = vector.broadcast %5 : vector<1x64xf32> to vector<8x64xf32>
    %7 = arith.addf %4, %6 : vector<8x64xf32>
    %c0_6 = arith.constant 0 : index
    %c0_7 = arith.constant 0 : index
    %8 = vector.load %arg4[%c0_6, %c0_7] : memref<1x64xf32, #tpu.memory_space<vmem>>, vector<1x64xf32>
    %c0_8 = arith.constant 0 : index
    %c0_9 = arith.constant 0 : index
    %9 = vector.load %arg5[%c0_8, %c0_9] : memref<1x64xf32, #tpu.memory_space<vmem>>, vector<1x64xf32>
    %cst_10 = arith.constant dense<0.000000e+00> : vector<8xf32>
    %10 = vector.multi_reduction <add>, %7, %cst_10 [1] : vector<8x64xf32> to vector<8xf32>
    %11 = vector.shape_cast %10 : vector<8xf32> to vector<8x1xf32>
    %cst_11 = arith.constant 6.400000e+01 : f32
    %12 = vector.broadcast %cst_11 : f32 to vector<8x1xf32>
    %13 = arith.divf %11, %12 : vector<8x1xf32>
    %14 = vector.broadcast %13 : vector<8x1xf32> to vector<8x64xf32>
    %15 = arith.subf %7, %14 : vector<8x64xf32>
    %16 = arith.mulf %15, %15 : vector<8x64xf32>
    %cst_12 = arith.constant dense<0.000000e+00> : vector<8xf32>
    %17 = vector.multi_reduction <add>, %16, %cst_12 [1] : vector<8x64xf32> to vector<8xf32>
    %18 = vector.shape_cast %17 : vector<8xf32> to vector<8x1xf32>
    %cst_13 = arith.constant 6.400000e+01 : f32
    %19 = vector.broadcast %cst_13 : f32 to vector<8x1xf32>
    %20 = arith.divf %18, %19 : vector<8x1xf32>
    %21 = vector.broadcast %13 : vector<8x1xf32> to vector<8x64xf32>
    %22 = arith.subf %7, %21 : vector<8x64xf32>
    %cst_14 = arith.constant 9.99999974E-6 : f32
    %23 = vector.broadcast %cst_14 : f32 to vector<8x1xf32>
    %24 = arith.addf %20, %23 : vector<8x1xf32>
    %25 = math.rsqrt %24 : vector<8x1xf32>
    %26 = vector.broadcast %25 : vector<8x1xf32> to vector<8x64xf32>
    %27 = arith.mulf %22, %26 : vector<8x64xf32>
    %28 = vector.broadcast %8 : vector<1x64xf32> to vector<8x64xf32>
    %29 = arith.mulf %27, %28 : vector<8x64xf32>
    %30 = vector.broadcast %9 : vector<1x64xf32> to vector<8x64xf32>
    %31 = arith.addf %29, %30 : vector<8x64xf32>
    %c0_15 = arith.constant 0 : index
    %c0_16 = arith.constant 0 : index
    %c0_17 = arith.constant 0 : index
    %32 = vector.load %arg6[%c0_15, %c0_16, %c0_17] : memref<1x8x64xf32, #tpu.memory_space<vmem>>, vector<1x8x64xf32>
    %33 = vector.shape_cast %32 : vector<1x8x64xf32> to vector<8x64xf32>
    %34 = vector.shape_cast %31 : vector<8x64xf32> to vector<1x8x64xf32>
    tpu.vector_store %arg6[%c0_15, %c0_16, %c0_17], %34 {strides = array<i32>} : memref<1x8x64xf32, #tpu.memory_space<vmem>>, vector<1x8x64xf32>,
    return
  }
  func.func @transform_0(%arg0: i32) -> (i32, i32, i32) {
    %c0_i32 = arith.constant 0 : i32
    %c0_i32_0 = arith.constant 0 : i32
    %c0_i32_1 = arith.constant 0 : i32
    return %arg0, %c0_i32, %c0_i32_0 : i32, i32, i32
  }
  func.func @transform_1(%arg0: i32) -> (i32, i32) {
    %c0_i32 = arith.constant 0 : i32
    %c0_i32_0 = arith.constant 0 : i32
    %c0_i32_1 = arith.constant 0 : i32
    return %c0_i32, %c0_i32_0 : i32, i32
  }
  func.func @transform_2(%arg0: i32) -> (i32, i32) {
    %c0_i32 = arith.constant 0 : i32
    %c0_i32_0 = arith.constant 0 : i32
    %c0_i32_1 = arith.constant 0 : i32
    return %c0_i32, %c0_i32_0 : i32, i32
  }
  func.func @transform_3(%arg0: i32) -> (i32, i32) {
    %c0_i32 = arith.constant 0 : i32
    %c0_i32_0 = arith.constant 0 : i32
    %c0_i32_1 = arith.constant 0 : i32
    return %c0_i32, %c0_i32_0 : i32, i32
  }
  func.func @transform_4(%arg0: i32) -> (i32, i32) {
    %c0_i32 = arith.constant 0 : i32
    %c0_i32_0 = arith.constant 0 : i32
    %c0_i32_1 = arith.constant 0 : i32
    return %c0_i32, %c0_i32_0 : i32, i32
  }
  func.func @transform_5(%arg0: i32) -> (i32, i32, i32) {
    %c0_i32 = arith.constant 0 : i32
    %c0_i32_0 = arith.constant 0 : i32
    %c0_i32_1 = arith.constant 0 : i32
    return %arg0, %c0_i32, %c0_i32_0 : i32, i32, i32
  }
}

</mosaic_0001>

<llo_original>
// kernel: position_resampler_forward.3
$region0: #{position_resampler_forward.3}
  #allocation0 [shape = 'u32[]', space=smem, size = 0x4, offset = 0x4, fixed_abs, tag = 'smem constant byte address 0x4 - core index']
  #allocation1 [shape = 'u32[72,128]{1,0:T(1,128)}', space=vmem, size = 0x9000, scoped, tag = 'internal scratch']
  %s0 = inlined_call_operand.vmem [shape: f32[2,265,32], index: 0, kind: input, shape index: {}]
  %s1 = inlined_call_operand.vmem [shape: f32[32,64], index: 1, kind: input, shape index: {}]
  %s2 = inlined_call_operand.vmem [shape: f32[1,64], index: 2, kind: input, shape index: {}]
  %s3 = inlined_call_operand.vmem [shape: f32[2,265,64], index: 3, kind: output, shape index: {}]
  %s4 = sld [smem:[#allocation0]]
  $region45: #{position_resampler_forward.3} parent=0
    _
  %s6 = ssub.s32 1, %s4
  %s7 = scalar_select 0, %s6, %s4
  loop: start=0, step=1, limit=4
  $region2: #{position_resampler_forward.3} parent=0 // loop_pre_header
    _
  $region3: #{position_resampler_forward.3} parent=0 // loop_header
    %s9 = sphi 0, %s13
    %p10 = scmp.ge.s32.totalorder %s9, 4
    %s19 = sphi 0, %s21
    %s22 = sphi 0, %s19
    %s23 = sphi 0, %s22
    %s39 = sphi 0, %s23
    %s43 = sphi 0, %s43
    %s45 = sphi 0, %s43
    %s46 = sphi 0, %s45
    %s60 = sphi 0, %s46
    %s64 = sphi 0, %s64
    %s66 = sphi 0, %s64
    %s67 = sphi 0, %s66
    %s81 = sphi 0, %s67
    %s87 = sphi 0, %s89
    %s90 = sphi 0, %s87
    %s91 = sphi 0, %s90
    %s107 = sphi 0, %s91
  $region4: #{position_resampler_forward.3} parent=0 // loop_header_branch
    %12 = sbr.rel (%p10) target = $region8
  $region5: #{position_resampler_forward.3} parent=0 // loop_body
    %s14 = ssub.s32 %s9, 1
    %s15 = ssub.s32 %s9, 2
    %s16 = sadd.s32 %s9, 1
    %s17 = ssub.s32 %s9, %s16
    %p18 = scmp.eq.s32.totalorder %s17, 0
    %s20 = sadd.s32 %s19, 1
    %s21 = scalar_select %p18, %s19, %s20
    %p24 = pneg %p18
    %p25 = scmp.eq.s32.totalorder %s9, 1
    %p26 = por %p24, %p25
    %p27 = scmp.ne.s32.totalorder %s19, %s22
    %p28 = scmp.eq.s32.totalorder %s9, 0
    %p29 = por %p27, %p28
    %p30 = scmp.ne.s32.totalorder %s19, %s22
    %p31 = scmp.eq.s32.totalorder %s14, 1
    %p32 = por %p30, %p31
    %p33 = scmp.ne.s32.totalorder %s22, %s23
    %p34 = scmp.eq.s32.totalorder %s14, 0
    %p35 = por %p33, %p34
    %p36 = scmp.ne.s32.totalorder %s22, %s23
    %p37 = scmp.eq.s32.totalorder %s15, 1
    %p38 = por %p36, %p37
    %p40 = scmp.ne.s32.totalorder %s23, %s39
    %p41 = scmp.eq.s32.totalorder %s15, 0
    %p42 = por %p40, %p41
    %s44 = sadd.s32 %s43, 1
    %p47 = scmp.eq.s32.totalorder %s9, 1
    %p48 = scmp.ne.s32.totalorder %s43, %s45
    %p49 = scmp.eq.s32.totalorder %s9, 0
    %p50 = por %p48, %p49
    %p51 = scmp.ne.s32.totalorder %s43, %s45
    %p52 = scmp.eq.s32.totalorder %s14, 1
    %p53 = por %p51, %p52
    %p54 = scmp.ne.s32.totalorder %s45, %s46
    %p55 = scmp.eq.s32.totalorder %s14, 0
    %p56 = por %p54, %p55
    %p57 = scmp.ne.s32.totalorder %s45, %s46
    %p58 = scmp.eq.s32.totalorder %s15, 1
    %p59 = por %p57, %p58
    %p61 = scmp.ne.s32.totalorder %s46, %s60
    %p62 = scmp.eq.s32.totalorder %s15, 0
    %p63 = por %p61, %p62
    %s65 = sadd.s32 %s64, 1
    %p68 = scmp.eq.s32.totalorder %s9, 1
    %p69 = scmp.ne.s32.totalorder %s64, %s66
    %p70 = scmp.eq.s32.totalorder %s9, 0
    %p71 = por %p69, %p70
    %p72 = scmp.ne.s32.totalorder %s64, %s66
    %p73 = scmp.eq.s32.totalorder %s14, 1
    %p74 = por %p72, %p73
    %p75 = scmp.ne.s32.totalorder %s66, %s67
    %p76 = scmp.eq.s32.totalorder %s14, 0
    %p77 = por %p75, %p76
    %p78 = scmp.ne.s32.totalorder %s66, %s67
    %p79 = scmp.eq.s32.totalorder %s15, 1
    %p80 = por %p78, %p79
    %p82 = scmp.ne.s32.totalorder %s67, %s81
    %p83 = scmp.eq.s32.totalorder %s15, 0
    %p84 = por %p82, %p83
    %s85 = ssub.s32 %s9, %s16
    %p86 = scmp.eq.s32.totalorder %s85, 0
    %s88 = sadd.s32 %s87, 1
    %s89 = scalar_select %p86, %s87, %s88
    %p92 = pneg %p86
    %p93 = scmp.eq.s32.totalorder %s9, 1
    %p94 = por %p92, %p93
    %p95 = scmp.ne.s32.totalorder %s87, %s90
    %p96 = scmp.eq.s32.totalorder %s9, 0
    %p97 = por %p95, %p96
    %p98 = scmp.ne.s32.totalorder %s87, %s90
    %p99 = scmp.eq.s32.totalorder %s14, 1
    %p100 = por %p98, %p99
    %p101 = scmp.ne.s32.totalorder %s90, %s91
    %p102 = scmp.eq.s32.totalorder %s14, 0
    %p103 = por %p101, %p102
    %p104 = scmp.ne.s32.totalorder %s90, %s91
    %p105 = scmp.eq.s32.totalorder %s15, 1
    %p106 = por %p104, %p105
    %p108 = scmp.ne.s32.totalorder %s91, %s107
    %p109 = scmp.eq.s32.totalorder %s15, 0
    %p110 = por %p108, %p109
    %p111 = scmp.le.s32.totalorder 1, %s9
    %p112 = scmp.lt.s32.totalorder %s9, 3
    %p113 = pnand %p111, %p112
    %p114 = pneg %p113
    // Predicated region
    $region9: #{position_resampler_forward.3} parent=5 // pred_check
      _
    $region10: #{position_resampler_forward.3} parent=5 // pred_check_branch
      %116 = sbr.rel (%p113) target = $region12
    $region11: #{position_resampler_forward.3} parent=5 // pred_region
      %s117 = ssub.s32 %s9, 1
      // Predicated region
      $region13: #{position_resampler_forward.3} parent=11 // pred_check
        %p118 = pneg %p56
      $region14: #{position_resampler_forward.3} parent=11 // pred_check_branch
        %120 = sbr.rel (%p118) target = $region16
      $region15: #{position_resampler_forward.3} parent=11 // pred_region
        _
      $region16: #{position_resampler_forward.3} parent=11 // pred_fallthru
        _
      // Predicated region
      $region17: #{position_resampler_forward.3} parent=11 // pred_check
        %p121 = pneg %p77
      $region18: #{position_resampler_forward.3} parent=11 // pred_check_branch
        %123 = sbr.rel (%p121) target = $region20
      $region19: #{position_resampler_forward.3} parent=11 // pred_region
        _
      $region20: #{position_resampler_forward.3} parent=11 // pred_fallthru
        _
    $region12: #{position_resampler_forward.3} parent=5 // pred_fallthru
      _
    %p124 = scmp.lt.s32.totalorder %s9, 2
    // Predicated region
    $region21: #{position_resampler_forward.3} parent=5 // pred_check
      %p125 = pneg %p124
    $region22: #{position_resampler_forward.3} parent=5 // pred_check_branch
      %127 = sbr.rel (%p125) target = $region24
    $region23: #{position_resampler_forward.3} parent=5 // pred_region
      // Predicated region
      $region25: #{position_resampler_forward.3} parent=23 // pred_check
        %p128 = pneg %p29
      $region26: #{position_resampler_forward.3} parent=23 // pred_check_branch
        %130 = sbr.rel (%p128) target = $region28
      $region27: #{position_resampler_forward.3} parent=23 // pred_region
        %p131 = scmp.lt.s32.totalorder %s9, 1
        %s132 = scalar_select %p131, %s9, 1
        %s133 = smul.addr %s132, 34
        %s134 = smul.addr %s133, 8
        %s135 = scalar_lea.vmem %s0, %s134
      $region28: #{position_resampler_forward.3} parent=23 // pred_fallthru
        _
    $region24: #{position_resampler_forward.3} parent=5 // pred_fallthru
      _
    %p136 = scmp.le.s32.totalorder 1, %s9
    %p137 = scmp.lt.s32.totalorder %s9, 3
    %p138 = pnand %p136, %p137
    %p139 = pneg %p138
    // Predicated region
    $region29: #{position_resampler_forward.3} parent=5 // pred_check
      _
    $region30: #{position_resampler_forward.3} parent=5 // pred_check_branch
      %141 = sbr.rel (%p138) target = $region32
    $region31: #{position_resampler_forward.3} parent=5 // pred_region
      %s142 = ssub.s32 %s9, 1
      %p143 = scmp.lt.s32.totalorder %s14, 1
      %s144 = scalar_select %p143, %s14, 1
      %s145 = smul.addr %s144, 34
      %s146 = smul.addr %s145, 8
      %s147 = scalar_lea.vmem %s0, %s146
      %p148 = pneg %p35
      %p149 = pneg %p32
      %p150 = pneg %p56
      %p151 = pneg %p53
      %p152 = pneg %p77
      %p153 = pneg %p74
      %p154 = pneg %p103
      %p155 = pneg %p100
      %p156 = scmp.lt.s32.totalorder %s14, 1
      %s157 = scalar_select %p156, %s14, 1
      %s158 = smul.addr %s157, 34
      %s159 = smul.addr %s158, 8
      %s160 = scalar_lea.vmem %s3, %s159
      %p161 = scmp.lt.s32.totalorder %s14, 1
      %s162 = scalar_select %p161, %s14, 1
      %s163 = smul.addr %s162, 34
      %s164 = smul.addr %s163, 8
      %s165 = scalar_lea.vmem %s0, %s164
      %p166 = scmp.lt.s32.totalorder %s14, 1
      %s167 = scalar_select %p166, %s14, 1
      %s168 = smul.addr %s167, 34
      %s169 = smul.addr %s168, 8
      %s170 = scalar_lea.vmem %s3, %s169
      %v171 = vld [vmem:[%s165] sm:$0xff]
      %v172 = vld [vmem:[%s165 + $0x8] sm:$0xff]
      %v173 = vld [vmem:[%s165 + $0x10] sm:$0xff]
      %v174 = vld [vmem:[%s165 + $0x18] sm:$0xff]
      %v175 = vld [vmem:[%s165 + $0x20] sm:$0xff]
      %v176 = vld [vmem:[%s165 + $0x28] sm:$0xff]
      %v177 = vld [vmem:[%s165 + $0x30] sm:$0xff]
      %v178 = vld [vmem:[%s165 + $0x38] sm:$0xff]
      %v179 = vld [vmem:[%s165 + $0x40] sm:$0xff]
      %v180 = vld [vmem:[%s165 + $0x48] sm:$0xff]
      %v181 = vld [vmem:[%s165 + $0x50] sm:$0xff]
      %v182 = vld [vmem:[%s165 + $0x58] sm:$0xff]
      %v183 = vld [vmem:[%s165 + $0x60] sm:$0xff]
      %v184 = vld [vmem:[%s165 + $0x68] sm:$0xff]
      %v185 = vld [vmem:[%s165 + $0x70] sm:$0xff]
      %v186 = vld [vmem:[%s165 + $0x78] sm:$0xff]
      %v187 = vld [vmem:[%s165 + $0x80] sm:$0xff]
      %v188 = vld [vmem:[%s165 + $0x88] sm:$0xff]
      %v189 = vld [vmem:[%s165 + $0x90] sm:$0xff]
      %v190 = vld [vmem:[%s165 + $0x98] sm:$0xff]
      %v191 = vld [vmem:[%s165 + $0xa0] sm:$0xff]
      %v192 = vld [vmem:[%s165 + $0xa8] sm:$0xff]
      %v193 = vld [vmem:[%s165 + $0xb0] sm:$0xff]
      %v194 = vld [vmem:[%s165 + $0xb8] sm:$0xff]
      %v195 = vld [vmem:[%s165 + $0xc0] sm:$0xff]
      %v196 = vld [vmem:[%s165 + $0xc8] sm:$0xff]
      %v197 = vld [vmem:[%s165 + $0xd0] sm:$0xff]
      %v198 = vld [vmem:[%s165 + $0xd8] sm:$0xff]
      %v199 = vld [vmem:[%s165 + $0xe0] sm:$0xff]
      %v200 = vld [vmem:[%s165 + $0xe8] sm:$0xff]
      %v201 = vld [vmem:[%s165 + $0xf0] sm:$0xff]
      %v202 = vld [vmem:[%s165 + $0xf8] sm:$0xff]
      %v203 = vld [vmem:[%s165 + $0x100] sm:$0xff]
      %v204 = vld [vmem:[%s165 + $0x108] sm:$0x1]
      %v205 = vld [vmem:[%s1] sm:$0xff]
      %v206 = vld [vmem:[%s1 + $0x8] sm:$0xff]
      %v207 = vld [vmem:[%s1 + $0x10] sm:$0xff]
      %v208 = vld [vmem:[%s1 + $0x18] sm:$0xff]
      %v209 = vld [vmem:[%s2] sm:$0x1]
      %v211 = vperm.slane %v209, 0
      %vm213 = vcmask 261120
      %v215 = vsel %vm213, %v171, 0
      %v218 = vsel %vm213, %v172, 0
      %v221 = vsel %vm213, %v173, 0
      %v224 = vsel %vm213, %v174, 0
      %v227 = vsel %vm213, %v175, 0
      %v230 = vsel %vm213, %v176, 0
      %v233 = vsel %vm213, %v177, 0
      %v236 = vsel %vm213, %v178, 0
      %v239 = vsel %vm213, %v179, 0
      %v242 = vsel %vm213, %v180, 0
      %v245 = vsel %vm213, %v181, 0
      %v248 = vsel %vm213, %v182, 0
      %v251 = vsel %vm213, %v183, 0
      %v254 = vsel %vm213, %v184, 0
      %v257 = vsel %vm213, %v185, 0
      %v260 = vsel %vm213, %v186, 0
      %v263 = vsel %vm213, %v187, 0
      %v266 = vsel %vm213, %v188, 0
      %v269 = vsel %vm213, %v189, 0
      %v272 = vsel %vm213, %v190, 0
      %v275 = vsel %vm213, %v191, 0
      %v278 = vsel %vm213, %v192, 0
      %v281 = vsel %vm213, %v193, 0
      %v284 = vsel %vm213, %v194, 0
      %v287 = vsel %vm213, %v195, 0
      %v290 = vsel %vm213, %v196, 0
      %v293 = vsel %vm213, %v197, 0
      %v296 = vsel %vm213, %v198, 0
      %v299 = vsel %vm213, %v199, 0
      %v302 = vsel %vm213, %v200, 0
      %v305 = vsel %vm213, %v201, 0
      %v308 = vsel %vm213, %v202, 0
      %v311 = vsel %vm213, %v203, 0
      %v314 = vsel %vm213, %v204, 0
      %316 = vmatpush.msra.mxu0 0.0
      %317 = vmatpush.msra.mxu0 0.0
      %318 = vmatpush.msra.mxu0 0.0
      %319 = vmatpush.msra.mxu0 0.0
      %320 = vmatpush.msra.mxu0 0.0
      %321 = vmatpush.msra.mxu0 0.0
      %322 = vmatpush.msra.mxu0 0.0
      %323 = vmatpush.msra.mxu0 0.0
      %324 = vmatpush.msra.mxu0 0.0
      %325 = vmatpush.msra.mxu0 0.0
      %326 = vmatpush.msra.mxu0 0.0
      %327 = vmatpush.msra.mxu0 0.0
      %328 = vmatpush.msra.mxu0 %v208
      %329 = vmatpush.msra.mxu0 %v207
      %330 = vmatpush.msra.mxu0 %v206
      %331 = vmatpush.msra.mxu0 %v205
      %332 = vmatmul.f32.gmra.mxu0 %v215
      %v333 = vpop.f32.mrf.mxu0
      %v334 = vadd.f32 %v211, %v333
      %335 = vmatmul.f32.gmra.mxu0 %v218
      %v336 = vpop.f32.mrf.mxu0
      %v337 = vadd.f32 %v211, %v336
      %338 = vmatmul.f32.gmra.mxu0 %v221
      %v339 = vpop.f32.mrf.mxu0
      %v340 = vadd.f32 %v211, %v339
      %341 = vmatmul.f32.gmra.mxu0 %v224
      %v342 = vpop.f32.mrf.mxu0
      %v343 = vadd.f32 %v211, %v342
      %344 = vmatmul.f32.gmra.mxu0 %v227
      %v345 = vpop.f32.mrf.mxu0
      %v346 = vadd.f32 %v211, %v345
      %347 = vmatmul.f32.gmra.mxu0 %v230
      %v348 = vpop.f32.mrf.mxu0
      %v349 = vadd.f32 %v211, %v348
      %350 = vmatmul.f32.gmra.mxu0 %v233
      %v351 = vpop.f32.mrf.mxu0
      %v352 = vadd.f32 %v211, %v351
      %353 = vmatmul.f32.gmra.mxu0 %v236
      %v354 = vpop.f32.mrf.mxu0
      %v355 = vadd.f32 %v211, %v354
      %356 = vmatmul.f32.gmra.mxu0 %v239
      %v357 = vpop.f32.mrf.mxu0
      %v358 = vadd.f32 %v211, %v357
      %359 = vmatmul.f32.gmra.mxu0 %v242
      %v360 = vpop.f32.mrf.mxu0
      %v361 = vadd.f32 %v211, %v360
      %362 = vmatmul.f32.gmra.mxu0 %v245
      %v363 = vpop.f32.mrf.mxu0
      %v364 = vadd.f32 %v211, %v363
      %365 = vmatmul.f32.gmra.mxu0 %v248
      %v366 = vpop.f32.mrf.mxu0
      %v367 = vadd.f32 %v211, %v366
      %368 = vmatmul.f32.gmra.mxu0 %v251
      %v369 = vpop.f32.mrf.mxu0
      %v370 = vadd.f32 %v211, %v369
      %371 = vmatmul.f32.gmra.mxu0 %v254
      %v372 = vpop.f32.mrf.mxu0
      %v373 = vadd.f32 %v211, %v372
      %374 = vmatmul.f32.gmra.mxu0 %v257
      %v375 = vpop.f32.mrf.mxu0
      %v376 = vadd.f32 %v211, %v375
      %377 = vmatmul.f32.gmra.mxu0 %v260
      %v378 = vpop.f32.mrf.mxu0
      %v379 = vadd.f32 %v211, %v378
      %380 = vmatmul.f32.gmra.mxu0 %v263
      %v381 = vpop.f32.mrf.mxu0
      %v382 = vadd.f32 %v211, %v381
      %383 = vmatmul.f32.gmra.mxu0 %v266
      %v384 = vpop.f32.mrf.mxu0
      %v385 = vadd.f32 %v211, %v384
      %386 = vmatmul.f32.gmra.mxu0 %v269
      %v387 = vpop.f32.mrf.mxu0
      %v388 = vadd.f32 %v211, %v387
      %389 = vmatmul.f32.gmra.mxu0 %v272
      %v390 = vpop.f32.mrf.mxu0
      %v391 = vadd.f32 %v211, %v390
      %392 = vmatmul.f32.gmra.mxu0 %v275
      %v393 = vpop.f32.mrf.mxu0
      %v394 = vadd.f32 %v211, %v393
      %395 = vmatmul.f32.gmra.mxu0 %v278
      %v396 = vpop.f32.mrf.mxu0
      %v397 = vadd.f32 %v211, %v396
      %398 = vmatmul.f32.gmra.mxu0 %v281
      %v399 = vpop.f32.mrf.mxu0
      %v400 = vadd.f32 %v211, %v399
      %401 = vmatmul.f32.gmra.mxu0 %v284
      %v402 = vpop.f32.mrf.mxu0
      %v403 = vadd.f32 %v211, %v402
      %404 = vmatmul.f32.gmra.mxu0 %v287
      %v405 = vpop.f32.mrf.mxu0
      %v406 = vadd.f32 %v211, %v405
      %407 = vmatmul.f32.gmra.mxu0 %v290
      %v408 = vpop.f32.mrf.mxu0
      %v409 = vadd.f32 %v211, %v408
      %410 = vmatmul.f32.gmra.mxu0 %v293
      %v411 = vpop.f32.mrf.mxu0
      %v412 = vadd.f32 %v211, %v411
      %413 = vmatmul.f32.gmra.mxu0 %v296
      %v414 = vpop.f32.mrf.mxu0
      %v415 = vadd.f32 %v211, %v414
      %416 = vmatmul.f32.gmra.mxu0 %v299
      %v417 = vpop.f32.mrf.mxu0
      %v418 = vadd.f32 %v211, %v417
      %419 = vmatmul.f32.gmra.mxu0 %v302
      %v420 = vpop.f32.mrf.mxu0
      %v421 = vadd.f32 %v211, %v420
      %422 = vmatmul.f32.gmra.mxu0 %v305
      %v423 = vpop.f32.mrf.mxu0
      %v424 = vadd.f32 %v211, %v423
      %425 = vmatmul.f32.gmra.mxu0 %v308
      %v426 = vpop.f32.mrf.mxu0
      %v427 = vadd.f32 %v211, %v426
      %428 = vmatmul.f32.gmra.mxu0 %v311
      %v429 = vpop.f32.mrf.mxu0
      %v430 = vadd.f32 %v211, %v429
      %431 = vmatmul.f32.gmra.mxu0 %v314
      %v432 = vpop.f32.mrf.mxu0
      %v433 = vadd.f32 %v211, %v432
      %434 = vdwg.mxu0
      %vm435 = vcmask 523264
      %436 = vst.msk [vmem:[%s170] sm:$0xff] %vm435, %v334
      %437 = vst.msk [vmem:[%s170 + $0x8] sm:$0xff] %vm435, %v337
      %438 = vst.msk [vmem:[%s170 + $0x10] sm:$0xff] %vm435, %v340
      %439 = vst.msk [vmem:[%s170 + $0x18] sm:$0xff] %vm435, %v343
      %440 = vst.msk [vmem:[%s170 + $0x20] sm:$0xff] %vm435, %v346
      %441 = vst.msk [vmem:[%s170 + $0x28] sm:$0xff] %vm435, %v349
      %442 = vst.msk [vmem:[%s170 + $0x30] sm:$0xff] %vm435, %v352
      %443 = vst.msk [vmem:[%s170 + $0x38] sm:$0xff] %vm435, %v355
      %444 = vst.msk [vmem:[%s170 + $0x40] sm:$0xff] %vm435, %v358
      %445 = vst.msk [vmem:[%s170 + $0x48] sm:$0xff] %vm435, %v361
      %446 = vst.msk [vmem:[%s170 + $0x50] sm:$0xff] %vm435, %v364
      %447 = vst.msk [vmem:[%s170 + $0x58] sm:$0xff] %vm435, %v367
      %448 = vst.msk [vmem:[%s170 + $0x60] sm:$0xff] %vm435, %v370
      %449 = vst.msk [vmem:[%s170 + $0x68] sm:$0xff] %vm435, %v373
      %450 = vst.msk [vmem:[%s170 + $0x70] sm:$0xff] %vm435, %v376
      %451 = vst.msk [vmem:[%s170 + $0x78] sm:$0xff] %vm435, %v379
      %452 = vst.msk [vmem:[%s170 + $0x80] sm:$0xff] %vm435, %v382
      %453 = vst.msk [vmem:[%s170 + $0x88] sm:$0xff] %vm435, %v385
      %454 = vst.msk [vmem:[%s170 + $0x90] sm:$0xff] %vm435, %v388
      %455 = vst.msk [vmem:[%s170 + $0x98] sm:$0xff] %vm435, %v391
      %456 = vst.msk [vmem:[%s170 + $0xa0] sm:$0xff] %vm435, %v394
      %457 = vst.msk [vmem:[%s170 + $0xa8] sm:$0xff] %vm435, %v397
      %458 = vst.msk [vmem:[%s170 + $0xb0] sm:$0xff] %vm435, %v400
      %459 = vst.msk [vmem:[%s170 + $0xb8] sm:$0xff] %vm435, %v403
      %460 = vst.msk [vmem:[%s170 + $0xc0] sm:$0xff] %vm435, %v406
      %461 = vst.msk [vmem:[%s170 + $0xc8] sm:$0xff] %vm435, %v409
      %462 = vst.msk [vmem:[%s170 + $0xd0] sm:$0xff] %vm435, %v412
      %463 = vst.msk [vmem:[%s170 + $0xd8] sm:$0xff] %vm435, %v415
      %464 = vst.msk [vmem:[%s170 + $0xe0] sm:$0xff] %vm435, %v418
      %465 = vst.msk [vmem:[%s170 + $0xe8] sm:$0xff] %vm435, %v421
      %466 = vst.msk [vmem:[%s170 + $0xf0] sm:$0xff] %vm435, %v424
      %467 = vst.msk [vmem:[%s170 + $0xf8] sm:$0xff] %vm435, %v427
      %468 = vst.msk [vmem:[%s170 + $0x100] sm:$0xff] %vm435, %v430
      %vm469 = vcmask 516096
      %470 = vst.msk [vmem:[%s170 + $0x108] sm:$0x1] %vm469, %v433
      %p471 = scmp.lt.s32.totalorder %s14, 1
      %s472 = scalar_select %p471, %s14, 1
      %s473 = smul.addr %s472, 34
      %s474 = smul.addr %s473, 8
      %s475 = scalar_lea.vmem %s3, %s474
      // Predicated region
      $region33: #{position_resampler_forward.3} parent=31 // pred_check
        %p476 = pneg %p100
      $region34: #{position_resampler_forward.3} parent=31 // pred_check_branch
        %478 = sbr.rel (%p476) target = $region36
      $region35: #{position_resampler_forward.3} parent=31 // pred_region
        _
      $region36: #{position_resampler_forward.3} parent=31 // pred_fallthru
        _
    $region32: #{position_resampler_forward.3} parent=5 // pred_fallthru
      _
    %p479 = scmp.le.s32.totalorder 2, %s9
    // Predicated region
    $region37: #{position_resampler_forward.3} parent=5 // pred_check
      %p480 = pneg %p479
    $region38: #{position_resampler_forward.3} parent=5 // pred_check_branch
      %482 = sbr.rel (%p480) target = $region40
    $region39: #{position_resampler_forward.3} parent=5 // pred_region
      %s483 = ssub.s32 %s9, 2
      // Predicated region
      $region41: #{position_resampler_forward.3} parent=39 // pred_check
        %p484 = pneg %p106
      $region42: #{position_resampler_forward.3} parent=39 // pred_check_branch
        %486 = sbr.rel (%p484) target = $region44
      $region43: #{position_resampler_forward.3} parent=39 // pred_region
        %p487 = scmp.lt.s32.totalorder %s15, 1
        %s488 = scalar_select %p487, %s15, 1
        %s489 = smul.addr %s488, 34
        %s490 = smul.addr %s489, 8
        %s491 = scalar_lea.vmem %s3, %s490
      $region44: #{position_resampler_forward.3} parent=39 // pred_fallthru
        _
    $region40: #{position_resampler_forward.3} parent=5 // pred_fallthru
      _
  $region6: #{position_resampler_forward.3} parent=0 // loop_footer
    %s13 = sadd.s32 1, %s9
  $region7: #{position_resampler_forward.3} parent=0 // loop_footer_branch
    %8 = sbr.rel target = $region3
  $region8: #{position_resampler_forward.3} parent=0 // loop_exit
    _

// kernel: position_resampler_forward.5
$region0: #{position_resampler_forward.5}
  #allocation0 [shape = 'u32[]', space=smem, size = 0x4, offset = 0x4, fixed_abs, tag = 'smem constant byte address 0x4 - core index']
  #allocation1 [shape = 'u32[72,128]{1,0:T(1,128)}', space=vmem, size = 0x9000, scoped, tag = 'internal scratch']
  %s0 = inlined_call_operand.vmem [shape: f32[2,8,64], index: 0, kind: input, shape index: {}]
  %s1 = inlined_call_operand.vmem [shape: bf16[64,64], index: 1, kind: input, shape index: {}]
  %s2 = inlined_call_operand.vmem [shape: f32[1,64], index: 2, kind: input, shape index: {}]
  %s3 = inlined_call_operand.vmem [shape: f32[1,64], index: 3, kind: input, shape index: {}]
  %s4 = inlined_call_operand.vmem [shape: f32[1,64], index: 4, kind: input, shape index: {}]
  %s5 = inlined_call_operand.hbm [shape: f32[2,8,64], index: 5, kind: output, shape index: {}]
  %s6 = sld [smem:[#allocation0]]
  $region53: #{position_resampler_forward.5} parent=0
    _
  %s8 = ssub.s32 1, %s6
  %s9 = scalar_select 0, %s8, %s6
  $region1: #{position_resampler_forward.5} parent=0
    #allocation2 [shape = 'u8[8192]{0}', space=vmem, size = 0x2000, scoped, tag = 'output window, operand 0']
    #allocation3 [shape = 's32[2]{0}', space=sflag, size = 0x8, scoped, tag = 'scoped memory for position_resampler_forward.5']
    %10 = vsyncpa [#allocation3], 0
    %s11 = scalar_lea.sflag [#allocation3], 1
    %12 = vsyncpa %s11, 0
    loop: start=0, step=1, limit=4
    $region2: #{position_resampler_forward.5} parent=1 // loop_pre_header
      _
    $region3: #{position_resampler_forward.5} parent=1 // loop_header
      %s14 = sphi 0, %s18
      %p15 = scmp.ge.s32.totalorder %s14, 4
      %s24 = sphi 0, %s26
      %s27 = sphi 0, %s24
      %s28 = sphi 0, %s27
      %s44 = sphi 0, %s28
      %s48 = sphi 0, %s48
      %s50 = sphi 0, %s48
      %s51 = sphi 0, %s50
      %s65 = sphi 0, %s51
      %s69 = sphi 0, %s69
      %s71 = sphi 0, %s69
      %s72 = sphi 0, %s71
      %s86 = sphi 0, %s72
      %s90 = sphi 0, %s90
      %s92 = sphi 0, %s90
      %s93 = sphi 0, %s92
      %s107 = sphi 0, %s93
      %s111 = sphi 0, %s111
      %s113 = sphi 0, %s111
      %s114 = sphi 0, %s113
      %s128 = sphi 0, %s114
      %s134 = sphi 0, %s136
      %s137 = sphi 0, %s134
      %s138 = sphi 0, %s137
      %s154 = sphi 0, %s138
    $region4: #{position_resampler_forward.5} parent=1 // loop_header_branch
      %17 = sbr.rel (%p15) target = $region8
    $region5: #{position_resampler_forward.5} parent=1 // loop_body
      %s19 = ssub.s32 %s14, 1
      %s20 = ssub.s32 %s14, 2
      %s21 = sadd.s32 %s14, 1
      %s22 = ssub.s32 %s14, %s21
      %p23 = scmp.eq.s32.totalorder %s22, 0
      %s25 = sadd.s32 %s24, 1
      %s26 = scalar_select %p23, %s24, %s25
      %p29 = pneg %p23
      %p30 = scmp.eq.s32.totalorder %s14, 1
      %p31 = por %p29, %p30
      %p32 = scmp.ne.s32.totalorder %s24, %s27
      %p33 = scmp.eq.s32.totalorder %s14, 0
      %p34 = por %p32, %p33
      %p35 = scmp.ne.s32.totalorder %s24, %s27
      %p36 = scmp.eq.s32.totalorder %s19, 1
      %p37 = por %p35, %p36
      %p38 = scmp.ne.s32.totalorder %s27, %s28
      %p39 = scmp.eq.s32.totalorder %s19, 0
      %p40 = por %p38, %p39
      %p41 = scmp.ne.s32.totalorder %s27, %s28
      %p42 = scmp.eq.s32.totalorder %s20, 1
      %p43 = por %p41, %p42
      %p45 = scmp.ne.s32.totalorder %s28, %s44
      %p46 = scmp.eq.s32.totalorder %s20, 0
      %p47 = por %p45, %p46
      %s49 = sadd.s32 %s48, 1
      %p52 = scmp.eq.s32.totalorder %s14, 1
      %p53 = scmp.ne.s32.totalorder %s48, %s50
      %p54 = scmp.eq.s32.totalorder %s14, 0
      %p55 = por %p53, %p54
      %p56 = scmp.ne.s32.totalorder %s48, %s50
      %p57 = scmp.eq.s32.totalorder %s19, 1
      %p58 = por %p56, %p57
      %p59 = scmp.ne.s32.totalorder %s50, %s51
      %p60 = scmp.eq.s32.totalorder %s19, 0
      %p61 = por %p59, %p60
      %p62 = scmp.ne.s32.totalorder %s50, %s51
      %p63 = scmp.eq.s32.totalorder %s20, 1
      %p64 = por %p62, %p63
      %p66 = scmp.ne.s32.totalorder %s51, %s65
      %p67 = scmp.eq.s32.totalorder %s20, 0
      %p68 = por %p66, %p67
      %s70 = sadd.s32 %s69, 1
      %p73 = scmp.eq.s32.totalorder %s14, 1
      %p74 = scmp.ne.s32.totalorder %s69, %s71
      %p75 = scmp.eq.s32.totalorder %s14, 0
      %p76 = por %p74, %p75
      %p77 = scmp.ne.s32.totalorder %s69, %s71
      %p78 = scmp.eq.s32.totalorder %s19, 1
      %p79 = por %p77, %p78
      %p80 = scmp.ne.s32.totalorder %s71, %s72
      %p81 = scmp.eq.s32.totalorder %s19, 0
      %p82 = por %p80, %p81
      %p83 = scmp.ne.s32.totalorder %s71, %s72
      %p84 = scmp.eq.s32.totalorder %s20, 1
      %p85 = por %p83, %p84
      %p87 = scmp.ne.s32.totalorder %s72, %s86
      %p88 = scmp.eq.s32.totalorder %s20, 0
      %p89 = por %p87, %p88
      %s91 = sadd.s32 %s90, 1
      %p94 = scmp.eq.s32.totalorder %s14, 1
      %p95 = scmp.ne.s32.totalorder %s90, %s92
      %p96 = scmp.eq.s32.totalorder %s14, 0
      %p97 = por %p95, %p96
      %p98 = scmp.ne.s32.totalorder %s90, %s92
      %p99 = scmp.eq.s32.totalorder %s19, 1
      %p100 = por %p98, %p99
      %p101 = scmp.ne.s32.totalorder %s92, %s93
      %p102 = scmp.eq.s32.totalorder %s19, 0
      %p103 = por %p101, %p102
      %p104 = scmp.ne.s32.totalorder %s92, %s93
      %p105 = scmp.eq.s32.totalorder %s20, 1
      %p106 = por %p104, %p105
      %p108 = scmp.ne.s32.totalorder %s93, %s107
      %p109 = scmp.eq.s32.totalorder %s20, 0
      %p110 = por %p108, %p109
      %s112 = sadd.s32 %s111, 1
      %p115 = scmp.eq.s32.totalorder %s14, 1
      %p116 = scmp.ne.s32.totalorder %s111, %s113
      %p117 = scmp.eq.s32.totalorder %s14, 0
      %p118 = por %p116, %p117
      %p119 = scmp.ne.s32.totalorder %s111, %s113
      %p120 = scmp.eq.s32.totalorder %s19, 1
      %p121 = por %p119, %p120
      %p122 = scmp.ne.s32.totalorder %s113, %s114
      %p123 = scmp.eq.s32.totalorder %s19, 0
      %p124 = por %p122, %p123
      %p125 = scmp.ne.s32.totalorder %s113, %s114
      %p126 = scmp.eq.s32.totalorder %s20, 1
      %p127 = por %p125, %p126
      %p129 = scmp.ne.s32.totalorder %s114, %s128
      %p130 = scmp.eq.s32.totalorder %s20, 0
      %p131 = por %p129, %p130
      %s132 = ssub.s32 %s14, %s21
      %p133 = scmp.eq.s32.totalorder %s132, 0
      %s135 = sadd.s32 %s134, 1
      %s136 = scalar_select %p133, %s134, %s135
      %p139 = pneg %p133
      %p140 = scmp.eq.s32.totalorder %s14, 1
      %p141 = por %p139, %p140
      %p142 = scmp.ne.s32.totalorder %s134, %s137
      %p143 = scmp.eq.s32.totalorder %s14, 0
      %p144 = por %p142, %p143
      %p145 = scmp.ne.s32.totalorder %s134, %s137
      %p146 = scmp.eq.s32.totalorder %s19, 1
      %p147 = por %p145, %p146
      %p148 = scmp.ne.s32.totalorder %s137, %s138
      %p149 = scmp.eq.s32.totalorder %s19, 0
      %p150 = por %p148, %p149
      %p151 = scmp.ne.s32.totalorder %s137, %s138
      %p152 = scmp.eq.s32.totalorder %s20, 1
      %p153 = por %p151, %p152
      %p155 = scmp.ne.s32.totalorder %s138, %s154
      %p156 = scmp.eq.s32.totalorder %s20, 0
      %p157 = por %p155, %p156
      %p158 = scmp.le.s32.totalorder 1, %s14
      %p159 = scmp.lt.s32.totalorder %s14, 3
      %p160 = pnand %p158, %p159
      %p161 = pneg %p160
      // Predicated region
      $region9: #{position_resampler_forward.5} parent=5 // pred_check
        _
      $region10: #{position_resampler_forward.5} parent=5 // pred_check_branch
        %163 = sbr.rel (%p160) target = $region12
      $region11: #{position_resampler_forward.5} parent=5 // pred_region
        %s164 = ssub.s32 %s14, 1
        // Predicated region
        $region13: #{position_resampler_forward.5} parent=11 // pred_check
          %p165 = pneg %p61
        $region14: #{position_resampler_forward.5} parent=11 // pred_check_branch
          %167 = sbr.rel (%p165) target = $region16
        $region15: #{position_resampler_forward.5} parent=11 // pred_region
          _
        $region16: #{position_resampler_forward.5} parent=11 // pred_fallthru
          _
        // Predicated region
        $region17: #{position_resampler_forward.5} parent=11 // pred_check
          %p168 = pneg %p82
        $region18: #{position_resampler_forward.5} parent=11 // pred_check_branch
          %170 = sbr.rel (%p168) target = $region20
        $region19: #{position_resampler_forward.5} parent=11 // pred_region
          _
        $region20: #{position_resampler_forward.5} parent=11 // pred_fallthru
          _
        // Predicated region
        $region21: #{position_resampler_forward.5} parent=11 // pred_check
          %p171 = pneg %p103
        $region22: #{position_resampler_forward.5} parent=11 // pred_check_branch
          %173 = sbr.rel (%p171) target = $region24
        $region23: #{position_resampler_forward.5} parent=11 // pred_region
          _
        $region24: #{position_resampler_forward.5} parent=11 // pred_fallthru
          _
        // Predicated region
        $region25: #{position_resampler_forward.5} parent=11 // pred_check
          %p174 = pneg %p124
        $region26: #{position_resampler_forward.5} parent=11 // pred_check_branch
          %176 = sbr.rel (%p174) target = $region28
        $region27: #{position_resampler_forward.5} parent=11 // pred_region
          _
        $region28: #{position_resampler_forward.5} parent=11 // pred_fallthru
          _
      $region12: #{position_resampler_forward.5} parent=5 // pred_fallthru
        _
      %p177 = scmp.lt.s32.totalorder %s14, 2
      // Predicated region
      $region29: #{position_resampler_forward.5} parent=5 // pred_check
        %p178 = pneg %p177
      $region30: #{position_resampler_forward.5} parent=5 // pred_check_branch
        %180 = sbr.rel (%p178) target = $region32
      $region31: #{position_resampler_forward.5} parent=5 // pred_region
        // Predicated region
        $region33: #{position_resampler_forward.5} parent=31 // pred_check
          %p181 = pneg %p34
        $region34: #{position_resampler_forward.5} parent=31 // pred_check_branch
          %183 = sbr.rel (%p181) target = $region36
        $region35: #{position_resampler_forward.5} parent=31 // pred_region
          %p184 = scmp.lt.s32.totalorder %s14, 1
          %s185 = scalar_select %p184, %s14, 1
          %s186 = smul.addr %s185, 8
          %s187 = scalar_lea.vmem %s0, %s186
        $region36: #{position_resampler_forward.5} parent=31 // pred_fallthru
          _
      $region32: #{position_resampler_forward.5} parent=5 // pred_fallthru
        _
      %p188 = scmp.le.s32.totalorder 1, %s14
      %p189 = scmp.lt.s32.totalorder %s14, 3
      %p190 = pnand %p188, %p189
      %p191 = pneg %p190
      // Predicated region
      $region37: #{position_resampler_forward.5} parent=5 // pred_check
        _
      $region38: #{position_resampler_forward.5} parent=5 // pred_check_branch
        %193 = sbr.rel (%p190) target = $region40
      $region39: #{position_resampler_forward.5} parent=5 // pred_region
        %s194 = ssub.s32 %s14, 1
        %p195 = scmp.lt.s32.totalorder %s19, 1
        %s196 = scalar_select %p195, %s19, 1
        %s197 = smul.addr %s196, 8
        %s198 = scalar_lea.vmem %s0, %s197
        %p199 = pneg %p40
        %p200 = pneg %p37
        %p201 = pneg %p61
        %p202 = pneg %p58
        %p203 = pneg %p82
        %p204 = pneg %p79
        %p205 = pneg %p103
        %p206 = pneg %p100
        %p207 = pneg %p124
        %p208 = pneg %p121
        %p209 = pneg %p150
        %p210 = pneg %p147
        %s211 = sand.u32 %s137, 1
        %s212 = scalar_lea.sflag [#allocation3], %s211
        %s213 = sand.u32 %s137, 1
        %s214 = smul.addr %s213, 8
        %s215 = scalar_lea.vmem [#allocation2], %s214
        %p216 = scmp.lt.s32.totalorder %s19, 1
        %s217 = scalar_select %p216, %s19, 1
        %s218 = smul.addr %s217, 8
        %s219 = scalar_lea.vmem %s0, %s218
        %v221 = vld [vmem:[%s219] sm:$0xff]
        %v222 = vpack.c.bf16 %v221, %v221
        %v223 = vld [vmem:[%s1] sm:$0xf]
        %v224 = vld [vmem:[%s1 + $0x4] sm:$0xf]
        %v225 = vld [vmem:[%s1 + $0x8] sm:$0xf]
        %v226 = vld [vmem:[%s1 + $0xc] sm:$0xf]
        %v227 = vld [vmem:[%s1 + $0x10] sm:$0xf]
        %v228 = vld [vmem:[%s1 + $0x14] sm:$0xf]
        %v229 = vld [vmem:[%s1 + $0x18] sm:$0xf]
        %v230 = vld [vmem:[%s1 + $0x1c] sm:$0xf]
        %v231 = vld [vmem:[%s2] sm:$0x1]
        %v233 = vperm.slane %v231, 0
        %v243 = vunpack.c.l.b16 %v223
        %v244 = vunpack.c.l.b16 %v224
        %v245 = vunpack.c.l.b16 %v225
        %v246 = vunpack.c.l.b16 %v226
        %v247 = vunpack.c.l.b16 %v227
        %v248 = vunpack.c.l.b16 %v228
        %v249 = vunpack.c.l.b16 %v229
        %v250 = vunpack.c.l.b16 %v230
        %v251 = vpack.c.b16 %v244, %v243
        %v252 = vpack.c.b16 %v246, %v245
        %v253 = vpack.c.b16 %v248, %v247
        %v254 = vpack.c.b16 %v250, %v249
        %vm259 = vcmask 523264
        %v261 = vsel %vm259, %v222, 0
        %263 = vmatpush.bf16.msra.mxu0 0
        %264 = vmatpush.bf16.msra.mxu0 0
        %265 = vmatpush.bf16.msra.mxu0 0
        %266 = vmatpush.bf16.msra.mxu0 0
        %267 = vmatpush.bf16.msra.mxu0 %v254
        %268 = vmatpush.bf16.msra.mxu0 %v253
        %269 = vmatpush.bf16.msra.mxu0 %v252
        %270 = vmatpush.bf16.msra.mxu0 %v251
        %271 = vmatmul.bf16.gmra.mxu0 %v261
        %v272 = vpop.f32.mrf.mxu0
        %v273 = vadd.f32 %v233, %v272
        %v274 = vpop.f32.mrf.mxu0
        %275 = vdwg.mxu0
        %v276 = vld [vmem:[%s3] sm:$0x1]
        %v277 = vld [vmem:[%s4] sm:$0x1]
        %v278 = vsel %vm259, %v273, 0.0
        %279 = vadd.xlane.f32.xlu0 %v278
        %v280 = vpop.xlane.xlu0 %279
        %v281 = vrcp.pop 64.0
        %v282 = vmul.f32 64.0, %v281
        %v283 = vsub.f32 1.0, %v282
        %v284 = vmul.f32 %v281, %v283
        %v285 = vadd.f32 %v281, %v284
        %vm286 = vweird.f32 %v281
        %v287 = vsel %vm286, %v281, %v285
        %v288 = vmul.f32 %v280, %v287
        %v289 = vsub.f32 %v273, %v288
        %v290 = vmul.f32 %v289, %v289
        %v291 = vsel %vm259, %v290, 0.0
        %292 = vadd.xlane.f32.xlu0 %v291
        %v293 = vpop.xlane.xlu0 %292
        %v294 = vmul.f32 %v293, %v287
        %v295 = vadd.f32 %v294, 1e-05
        %v296 = vrsqrt.pop %v295
        %v297 = vmul.f32 %v296, %v295
        %v298 = vmul.f32 %v297, %v296
        %v299 = vmul.f32 0.5, %v298
        %v300 = vsub.f32 1.5, %v299
        %v301 = vmul.f32 %v296, %v300
        %vm302 = vweird.f32 %v295
        %vm303 = vweird.f32 %v296
        %vm304 = vmor %vm302, %vm303
        %v305 = vsel %vm304, %v296, %v301
        %v306 = vmul.f32 %v289, %v305
        %v308 = vperm.slane %v276, 0
        %v310 = vmul.f32 %v306, %v308
        %v312 = vperm.slane %v277, 0
        %v314 = vadd.f32 %v310, %v312
        %315 = vst.msk [vmem:[%s215] sm:$0xff] %vm259, %v314
        %s316 = sand.u32 %s137, 1
        %s317 = scalar_lea.sflag [#allocation3], %s316
        %s318 = sand.u32 %s137, 1
        %s319 = smul.addr %s318, 8
        %s320 = scalar_lea.vmem [#allocation2], %s319
        // Predicated region
        $region41: #{position_resampler_forward.5} parent=39 // pred_check
          %p321 = pneg %p147
        $region42: #{position_resampler_forward.5} parent=39 // pred_check_branch
          %323 = sbr.rel (%p321) target = $region44
        $region43: #{position_resampler_forward.5} parent=39 // pred_region
          %325 = vsyncadd %s317, 0
          %s326 = smul.addr %s19, 8
          %s327 = scalar_lea.hbm %s5, %s326
          %s329 = sshll.u32 %s320, 4
          %s330 = int_to_ptr.vmem [resolvable:$true] %s329
          %s331 = sshll.u32 %s327, 4
          %s332 = int_to_ptr.hbm [resolvable:$true] %s331
          %334 = dma.vmem_to_hbm [thread:$0]  %s330, 128, %s332, %s317
        $region44: #{position_resampler_forward.5} parent=39 // pred_fallthru
          _
      $region40: #{position_resampler_forward.5} parent=5 // pred_fallthru
        _
      %p335 = scmp.le.s32.totalorder 2, %s14
      // Predicated region
      $region45: #{position_resampler_forward.5} parent=5 // pred_check
        %p336 = pneg %p335
      $region46: #{position_resampler_forward.5} parent=5 // pred_check_branch
        %338 = sbr.rel (%p336) target = $region48
      $region47: #{position_resampler_forward.5} parent=5 // pred_region
        %s339 = ssub.s32 %s14, 2
        // Predicated region
        $region49: #{position_resampler_forward.5} parent=47 // pred_check
          %p340 = pneg %p153
        $region50: #{position_resampler_forward.5} parent=47 // pred_check_branch
          %342 = sbr.rel (%p340) target = $region52
        $region51: #{position_resampler_forward.5} parent=47 // pred_region
          %s343 = sand.u32 %s138, 1
          %s344 = scalar_lea.sflag [#allocation3], %s343
          %s345 = sand.u32 %s138, 1
          %s346 = smul.addr %s345, 8
          %s347 = scalar_lea.vmem [#allocation2], %s346
          %349 = dma.done %s344, 128
        $region52: #{position_resampler_forward.5} parent=47 // pred_fallthru
          _
      $region48: #{position_resampler_forward.5} parent=5 // pred_fallthru
        _
    $region6: #{position_resampler_forward.5} parent=1 // loop_footer
      %s18 = sadd.s32 1, %s14
    $region7: #{position_resampler_forward.5} parent=1 // loop_footer_branch
      %13 = sbr.rel target = $region3
    $region8: #{position_resampler_forward.5} parent=1 // loop_exit
      _
    %350 = vsyncpa [#allocation3], 1
    %s351 = scalar_lea.sflag [#allocation3], 1
    %352 = vsyncpa %s351, 1

// kernel: position_resampler_forward.4
$region0: #{position_resampler_forward.4}
  #allocation0 [shape = 'u32[]', space=smem, size = 0x4, offset = 0x4, fixed_abs, tag = 'smem constant byte address 0x4 - core index']
  #allocation1 [shape = 'u32[72,128]{1,0:T(1,128)}', space=vmem, size = 0x9000, scoped, tag = 'internal scratch']
  %s0 = inlined_call_operand.vmem [shape: f32[2,265,64], index: 0, kind: input, shape index: {}]
  %s1 = inlined_call_operand.vmem [shape: f32[2,8,64], index: 1, kind: input, shape index: {}]
  %s2 = inlined_call_operand.vmem [shape: f32[8,265], index: 2, kind: input, shape index: {}]
  %s3 = inlined_call_operand.vmem [shape: f32[8,8], index: 3, kind: input, shape index: {}]
  %s4 = inlined_call_operand.vmem [shape: f32[1,64], index: 4, kind: input, shape index: {}]
  %s5 = inlined_call_operand.vmem [shape: f32[1,64], index: 5, kind: input, shape index: {}]
  %s6 = inlined_call_operand.vmem [shape: f32[1,64], index: 6, kind: input, shape index: {}]
  %s7 = inlined_call_operand.vmem [shape: f32[1,64], index: 7, kind: input, shape index: {}]
  %s8 = inlined_call_operand.vmem [shape: bf16[64,128], index: 8, kind: input, shape index: {}]
  %s9 = inlined_call_operand.vmem [shape: bf16[64,128], index: 9, kind: input, shape index: {}]
  %s10 = inlined_call_operand.vmem [shape: bf16[64,128], index: 10, kind: input, shape index: {}]
  %s11 = inlined_call_operand.vmem [shape: bf16[128,64], index: 11, kind: input, shape index: {}]
  %s12 = inlined_call_operand.vmem [shape: f32[1,64], index: 12, kind: input, shape index: {}]
  %s13 = inlined_call_operand.vmem [shape: f32[1,64], index: 13, kind: input, shape index: {}]
  %s14 = inlined_call_operand.vmem [shape: bf16[64,128], index: 14, kind: input, shape index: {}]
  %s15 = inlined_call_operand.vmem [shape: bf16[128,64], index: 15, kind: input, shape index: {}]
  %s16 = inlined_call_operand.vmem [shape: f32[2,8,64], index: 16, kind: output, shape index: {}]
  %s17 = sld [smem:[#allocation0]]
  $region97: #{position_resampler_forward.4} parent=0
    _
  %s19 = ssub.s32 1, %s17
  %s20 = scalar_select 0, %s19, %s17
  loop: start=0, step=1, limit=4
  $region2: #{position_resampler_forward.4} parent=0 // loop_pre_header
    _
  $region3: #{position_resampler_forward.4} parent=0 // loop_header
    %s22 = sphi 0, %s26
    %p23 = scmp.ge.s32.totalorder %s22, 4
    %s32 = sphi 0, %s34
    %s35 = sphi 0, %s32
    %s36 = sphi 0, %s35
    %s52 = sphi 0, %s36
    %s58 = sphi 0, %s60
    %s61 = sphi 0, %s58
    %s62 = sphi 0, %s61
    %s78 = sphi 0, %s62
    %s82 = sphi 0, %s82
    %s84 = sphi 0, %s82
    %s85 = sphi 0, %s84
    %s99 = sphi 0, %s85
    %s103 = sphi 0, %s103
    %s105 = sphi 0, %s103
    %s106 = sphi 0, %s105
    %s120 = sphi 0, %s106
    %s124 = sphi 0, %s124
    %s126 = sphi 0, %s124
    %s127 = sphi 0, %s126
    %s141 = sphi 0, %s127
    %s145 = sphi 0, %s145
    %s147 = sphi 0, %s145
    %s148 = sphi 0, %s147
    %s162 = sphi 0, %s148
    %s166 = sphi 0, %s166
    %s168 = sphi 0, %s166
    %s169 = sphi 0, %s168
    %s183 = sphi 0, %s169
    %s187 = sphi 0, %s187
    %s189 = sphi 0, %s187
    %s190 = sphi 0, %s189
    %s204 = sphi 0, %s190
    %s208 = sphi 0, %s208
    %s210 = sphi 0, %s208
    %s211 = sphi 0, %s210
    %s225 = sphi 0, %s211
    %s229 = sphi 0, %s229
    %s231 = sphi 0, %s229
    %s232 = sphi 0, %s231
    %s246 = sphi 0, %s232
    %s250 = sphi 0, %s250
    %s252 = sphi 0, %s250
    %s253 = sphi 0, %s252
    %s267 = sphi 0, %s253
    %s271 = sphi 0, %s271
    %s273 = sphi 0, %s271
    %s274 = sphi 0, %s273
    %s288 = sphi 0, %s274
    %s292 = sphi 0, %s292
    %s294 = sphi 0, %s292
    %s295 = sphi 0, %s294
    %s309 = sphi 0, %s295
    %s313 = sphi 0, %s313
    %s315 = sphi 0, %s313
    %s316 = sphi 0, %s315
    %s330 = sphi 0, %s316
    %s334 = sphi 0, %s334
    %s336 = sphi 0, %s334
    %s337 = sphi 0, %s336
    %s351 = sphi 0, %s337
    %s355 = sphi 0, %s355
    %s357 = sphi 0, %s355
    %s358 = sphi 0, %s357
    %s372 = sphi 0, %s358
    %s378 = sphi 0, %s380
    %s381 = sphi 0, %s378
    %s382 = sphi 0, %s381
    %s398 = sphi 0, %s382
  $region4: #{position_resampler_forward.4} parent=0 // loop_header_branch
    %25 = sbr.rel (%p23) target = $region8
  $region5: #{position_resampler_forward.4} parent=0 // loop_body
    %s27 = ssub.s32 %s22, 1
    %s28 = ssub.s32 %s22, 2
    %s29 = sadd.s32 %s22, 1
    %s30 = ssub.s32 %s22, %s29
    %p31 = scmp.eq.s32.totalorder %s30, 0
    %s33 = sadd.s32 %s32, 1
    %s34 = scalar_select %p31, %s32, %s33
    %p37 = pneg %p31
    %p38 = scmp.eq.s32.totalorder %s22, 1
    %p39 = por %p37, %p38
    %p40 = scmp.ne.s32.totalorder %s32, %s35
    %p41 = scmp.eq.s32.totalorder %s22, 0
    %p42 = por %p40, %p41
    %p43 = scmp.ne.s32.totalorder %s32, %s35
    %p44 = scmp.eq.s32.totalorder %s27, 1
    %p45 = por %p43, %p44
    %p46 = scmp.ne.s32.totalorder %s35, %s36
    %p47 = scmp.eq.s32.totalorder %s27, 0
    %p48 = por %p46, %p47
    %p49 = scmp.ne.s32.totalorder %s35, %s36
    %p50 = scmp.eq.s32.totalorder %s28, 1
    %p51 = por %p49, %p50
    %p53 = scmp.ne.s32.totalorder %s36, %s52
    %p54 = scmp.eq.s32.totalorder %s28, 0
    %p55 = por %p53, %p54
    %s56 = ssub.s32 %s22, %s29
    %p57 = scmp.eq.s32.totalorder %s56, 0
    %s59 = sadd.s32 %s58, 1
    %s60 = scalar_select %p57, %s58, %s59
    %p63 = pneg %p57
    %p64 = scmp.eq.s32.totalorder %s22, 1
    %p65 = por %p63, %p64
    %p66 = scmp.ne.s32.totalorder %s58, %s61
    %p67 = scmp.eq.s32.totalorder %s22, 0
    %p68 = por %p66, %p67
    %p69 = scmp.ne.s32.totalorder %s58, %s61
    %p70 = scmp.eq.s32.totalorder %s27, 1
    %p71 = por %p69, %p70
    %p72 = scmp.ne.s32.totalorder %s61, %s62
    %p73 = scmp.eq.s32.totalorder %s27, 0
    %p74 = por %p72, %p73
    %p75 = scmp.ne.s32.totalorder %s61, %s62
    %p76 = scmp.eq.s32.totalorder %s28, 1
    %p77 = por %p75, %p76
    %p79 = scmp.ne.s32.totalorder %s62, %s78
    %p80 = scmp.eq.s32.totalorder %s28, 0
    %p81 = por %p79, %p80
    %s83 = sadd.s32 %s82, 1
    %p86 = scmp.eq.s32.totalorder %s22, 1
    %p87 = scmp.ne.s32.totalorder %s82, %s84
    %p88 = scmp.eq.s32.totalorder %s22, 0
    %p89 = por %p87, %p88
    %p90 = scmp.ne.s32.totalorder %s82, %s84
    %p91 = scmp.eq.s32.totalorder %s27, 1
    %p92 = por %p90, %p91
    %p93 = scmp.ne.s32.totalorder %s84, %s85
    %p94 = scmp.eq.s32.totalorder %s27, 0
    %p95 = por %p93, %p94
    %p96 = scmp.ne.s32.totalorder %s84, %s85
    %p97 = scmp.eq.s32.totalorder %s28, 1
    %p98 = por %p96, %p97
    %p100 = scmp.ne.s32.totalorder %s85, %s99
    %p101 = scmp.eq.s32.totalorder %s28, 0
    %p102 = por %p100, %p101
    %s104 = sadd.s32 %s103, 1
    %p107 = scmp.eq.s32.totalorder %s22, 1
    %p108 = scmp.ne.s32.totalorder %s103, %s105
    %p109 = scmp.eq.s32.totalorder %s22, 0
    %p110 = por %p108, %p109
    %p111 = scmp.ne.s32.totalorder %s103, %s105
    %p112 = scmp.eq.s32.totalorder %s27, 1
    %p113 = por %p111, %p112
    %p114 = scmp.ne.s32.totalorder %s105, %s106
    %p115 = scmp.eq.s32.totalorder %s27, 0
    %p116 = por %p114, %p115
    %p117 = scmp.ne.s32.totalorder %s105, %s106
    %p118 = scmp.eq.s32.totalorder %s28, 1
    %p119 = por %p117, %p118
    %p121 = scmp.ne.s32.totalorder %s106, %s120
    %p122 = scmp.eq.s32.totalorder %s28, 0
    %p123 = por %p121, %p122
    %s125 = sadd.s32 %s124, 1
    %p128 = scmp.eq.s32.totalorder %s22, 1
    %p129 = scmp.ne.s32.totalorder %s124, %s126
    %p130 = scmp.eq.s32.totalorder %s22, 0
    %p131 = por %p129, %p130
    %p132 = scmp.ne.s32.totalorder %s124, %s126
    %p133 = scmp.eq.s32.totalorder %s27, 1
    %p134 = por %p132, %p133
    %p135 = scmp.ne.s32.totalorder %s126, %s127
    %p136 = scmp.eq.s32.totalorder %s27, 0
    %p137 = por %p135, %p136
    %p138 = scmp.ne.s32.totalorder %s126, %s127
    %p139 = scmp.eq.s32.totalorder %s28, 1
    %p140 = por %p138, %p139
    %p142 = scmp.ne.s32.totalorder %s127, %s141
    %p143 = scmp.eq.s32.totalorder %s28, 0
    %p144 = por %p142, %p143
    %s146 = sadd.s32 %s145, 1
    %p149 = scmp.eq.s32.totalorder %s22, 1
    %p150 = scmp.ne.s32.totalorder %s145, %s147
    %p151 = scmp.eq.s32.totalorder %s22, 0
    %p152 = por %p150, %p151
    %p153 = scmp.ne.s32.totalorder %s145, %s147
    %p154 = scmp.eq.s32.totalorder %s27, 1
    %p155 = por %p153, %p154
    %p156 = scmp.ne.s32.totalorder %s147, %s148
    %p157 = scmp.eq.s32.totalorder %s27, 0
    %p158 = por %p156, %p157
    %p159 = scmp.ne.s32.totalorder %s147, %s148
    %p160 = scmp.eq.s32.totalorder %s28, 1
    %p161 = por %p159, %p160
    %p163 = scmp.ne.s32.totalorder %s148, %s162
    %p164 = scmp.eq.s32.totalorder %s28, 0
    %p165 = por %p163, %p164
    %s167 = sadd.s32 %s166, 1
    %p170 = scmp.eq.s32.totalorder %s22, 1
    %p171 = scmp.ne.s32.totalorder %s166, %s168
    %p172 = scmp.eq.s32.totalorder %s22, 0
    %p173 = por %p171, %p172
    %p174 = scmp.ne.s32.totalorder %s166, %s168
    %p175 = scmp.eq.s32.totalorder %s27, 1
    %p176 = por %p174, %p175
    %p177 = scmp.ne.s32.totalorder %s168, %s169
    %p178 = scmp.eq.s32.totalorder %s27, 0
    %p179 = por %p177, %p178
    %p180 = scmp.ne.s32.totalorder %s168, %s169
    %p181 = scmp.eq.s32.totalorder %s28, 1
    %p182 = por %p180, %p181
    %p184 = scmp.ne.s32.totalorder %s169, %s183
    %p185 = scmp.eq.s32.totalorder %s28, 0
    %p186 = por %p184, %p185
    %s188 = sadd.s32 %s187, 1
    %p191 = scmp.eq.s32.totalorder %s22, 1
    %p192 = scmp.ne.s32.totalorder %s187, %s189
    %p193 = scmp.eq.s32.totalorder %s22, 0
    %p194 = por %p192, %p193
    %p195 = scmp.ne.s32.totalorder %s187, %s189
    %p196 = scmp.eq.s32.totalorder %s27, 1
    %p197 = por %p195, %p196
    %p198 = scmp.ne.s32.totalorder %s189, %s190
    %p199 = scmp.eq.s32.totalorder %s27, 0
    %p200 = por %p198, %p199
    %p201 = scmp.ne.s32.totalorder %s189, %s190
    %p202 = scmp.eq.s32.totalorder %s28, 1
    %p203 = por %p201, %p202
    %p205 = scmp.ne.s32.totalorder %s190, %s204
    %p206 = scmp.eq.s32.totalorder %s28, 0
    %p207 = por %p205, %p206
    %s209 = sadd.s32 %s208, 1
    %p212 = scmp.eq.s32.totalorder %s22, 1
    %p213 = scmp.ne.s32.totalorder %s208, %s210
    %p214 = scmp.eq.s32.totalorder %s22, 0
    %p215 = por %p213, %p214
    %p216 = scmp.ne.s32.totalorder %s208, %s210
    %p217 = scmp.eq.s32.totalorder %s27, 1
    %p218 = por %p216, %p217
    %p219 = scmp.ne.s32.totalorder %s210, %s211
    %p220 = scmp.eq.s32.totalorder %s27, 0
    %p221 = por %p219, %p220
    %p222 = scmp.ne.s32.totalorder %s210, %s211
    %p223 = scmp.eq.s32.totalorder %s28, 1
    %p224 = por %p222, %p223
    %p226 = scmp.ne.s32.totalorder %s211, %s225
    %p227 = scmp.eq.s32.totalorder %s28, 0
    %p228 = por %p226, %p227
    %s230 = sadd.s32 %s229, 1
    %p233 = scmp.eq.s32.totalorder %s22, 1
    %p234 = scmp.ne.s32.totalorder %s229, %s231
    %p235 = scmp.eq.s32.totalorder %s22, 0
    %p236 = por %p234, %p235
    %p237 = scmp.ne.s32.totalorder %s229, %s231
    %p238 = scmp.eq.s32.totalorder %s27, 1
    %p239 = por %p237, %p238
    %p240 = scmp.ne.s32.totalorder %s231, %s232
    %p241 = scmp.eq.s32.totalorder %s27, 0
    %p242 = por %p240, %p241
    %p243 = scmp.ne.s32.totalorder %s231, %s232
    %p244 = scmp.eq.s32.totalorder %s28, 1
    %p245 = por %p243, %p244
    %p247 = scmp.ne.s32.totalorder %s232, %s246
    %p248 = scmp.eq.s32.totalorder %s28, 0
    %p249 = por %p247, %p248
    %s251 = sadd.s32 %s250, 1
    %p254 = scmp.eq.s32.totalorder %s22, 1
    %p255 = scmp.ne.s32.totalorder %s250, %s252
    %p256 = scmp.eq.s32.totalorder %s22, 0
    %p257 = por %p255, %p256
    %p258 = scmp.ne.s32.totalorder %s250, %s252
    %p259 = scmp.eq.s32.totalorder %s27, 1
    %p260 = por %p258, %p259
    %p261 = scmp.ne.s32.totalorder %s252, %s253
    %p262 = scmp.eq.s32.totalorder %s27, 0
    %p263 = por %p261, %p262
    %p264 = scmp.ne.s32.totalorder %s252, %s253
    %p265 = scmp.eq.s32.totalorder %s28, 1
    %p266 = por %p264, %p265
    %p268 = scmp.ne.s32.totalorder %s253, %s267
    %p269 = scmp.eq.s32.totalorder %s28, 0
    %p270 = por %p268, %p269
    %s272 = sadd.s32 %s271, 1
    %p275 = scmp.eq.s32.totalorder %s22, 1
    %p276 = scmp.ne.s32.totalorder %s271, %s273
    %p277 = scmp.eq.s32.totalorder %s22, 0
    %p278 = por %p276, %p277
    %p279 = scmp.ne.s32.totalorder %s271, %s273
    %p280 = scmp.eq.s32.totalorder %s27, 1
    %p281 = por %p279, %p280
    %p282 = scmp.ne.s32.totalorder %s273, %s274
    %p283 = scmp.eq.s32.totalorder %s27, 0
    %p284 = por %p282, %p283
    %p285 = scmp.ne.s32.totalorder %s273, %s274
    %p286 = scmp.eq.s32.totalorder %s28, 1
    %p287 = por %p285, %p286
    %p289 = scmp.ne.s32.totalorder %s274, %s288
    %p290 = scmp.eq.s32.totalorder %s28, 0
    %p291 = por %p289, %p290
    %s293 = sadd.s32 %s292, 1
    %p296 = scmp.eq.s32.totalorder %s22, 1
    %p297 = scmp.ne.s32.totalorder %s292, %s294
    %p298 = scmp.eq.s32.totalorder %s22, 0
    %p299 = por %p297, %p298
    %p300 = scmp.ne.s32.totalorder %s292, %s294
    %p301 = scmp.eq.s32.totalorder %s27, 1
    %p302 = por %p300, %p301
    %p303 = scmp.ne.s32.totalorder %s294, %s295
    %p304 = scmp.eq.s32.totalorder %s27, 0
    %p305 = por %p303, %p304
    %p306 = scmp.ne.s32.totalorder %s294, %s295
    %p307 = scmp.eq.s32.totalorder %s28, 1
    %p308 = por %p306, %p307
    %p310 = scmp.ne.s32.totalorder %s295, %s309
    %p311 = scmp.eq.s32.totalorder %s28, 0
    %p312 = por %p310, %p311
    %s314 = sadd.s32 %s313, 1
    %p317 = scmp.eq.s32.totalorder %s22, 1
    %p318 = scmp.ne.s32.totalorder %s313, %s315
    %p319 = scmp.eq.s32.totalorder %s22, 0
    %p320 = por %p318, %p319
    %p321 = scmp.ne.s32.totalorder %s313, %s315
    %p322 = scmp.eq.s32.totalorder %s27, 1
    %p323 = por %p321, %p322
    %p324 = scmp.ne.s32.totalorder %s315, %s316
    %p325 = scmp.eq.s32.totalorder %s27, 0
    %p326 = por %p324, %p325
    %p327 = scmp.ne.s32.totalorder %s315, %s316
    %p328 = scmp.eq.s32.totalorder %s28, 1
    %p329 = por %p327, %p328
    %p331 = scmp.ne.s32.totalorder %s316, %s330
    %p332 = scmp.eq.s32.totalorder %s28, 0
    %p333 = por %p331, %p332
    %s335 = sadd.s32 %s334, 1
    %p338 = scmp.eq.s32.totalorder %s22, 1
    %p339 = scmp.ne.s32.totalorder %s334, %s336
    %p340 = scmp.eq.s32.totalorder %s22, 0
    %p341 = por %p339, %p340
    %p342 = scmp.ne.s32.totalorder %s334, %s336
    %p343 = scmp.eq.s32.totalorder %s27, 1
    %p344 = por %p342, %p343
    %p345 = scmp.ne.s32.totalorder %s336, %s337
    %p346 = scmp.eq.s32.totalorder %s27, 0
    %p347 = por %p345, %p346
    %p348 = scmp.ne.s32.totalorder %s336, %s337
    %p349 = scmp.eq.s32.totalorder %s28, 1
    %p350 = por %p348, %p349
    %p352 = scmp.ne.s32.totalorder %s337, %s351
    %p353 = scmp.eq.s32.totalorder %s28, 0
    %p354 = por %p352, %p353
    %s356 = sadd.s32 %s355, 1
    %p359 = scmp.eq.s32.totalorder %s22, 1
    %p360 = scmp.ne.s32.totalorder %s355, %s357
    %p361 = scmp.eq.s32.totalorder %s22, 0
    %p362 = por %p360, %p361
    %p363 = scmp.ne.s32.totalorder %s355, %s357
    %p364 = scmp.eq.s32.totalorder %s27, 1
    %p365 = por %p363, %p364
    %p366 = scmp.ne.s32.totalorder %s357, %s358
    %p367 = scmp.eq.s32.totalorder %s27, 0
    %p368 = por %p366, %p367
    %p369 = scmp.ne.s32.totalorder %s357, %s358
    %p370 = scmp.eq.s32.totalorder %s28, 1
    %p371 = por %p369, %p370
    %p373 = scmp.ne.s32.totalorder %s358, %s372
    %p374 = scmp.eq.s32.totalorder %s28, 0
    %p375 = por %p373, %p374
    %s376 = ssub.s32 %s22, %s29
    %p377 = scmp.eq.s32.totalorder %s376, 0
    %s379 = sadd.s32 %s378, 1
    %s380 = scalar_select %p377, %s378, %s379
    %p383 = pneg %p377
    %p384 = scmp.eq.s32.totalorder %s22, 1
    %p385 = por %p383, %p384
    %p386 = scmp.ne.s32.totalorder %s378, %s381
    %p387 = scmp.eq.s32.totalorder %s22, 0
    %p388 = por %p386, %p387
    %p389 = scmp.ne.s32.totalorder %s378, %s381
    %p390 = scmp.eq.s32.totalorder %s27, 1
    %p391 = por %p389, %p390
    %p392 = scmp.ne.s32.totalorder %s381, %s382
    %p393 = scmp.eq.s32.totalorder %s27, 0
    %p394 = por %p392, %p393
    %p395 = scmp.ne.s32.totalorder %s381, %s382
    %p396 = scmp.eq.s32.totalorder %s28, 1
    %p397 = por %p395, %p396
    %p399 = scmp.ne.s32.totalorder %s382, %s398
    %p400 = scmp.eq.s32.totalorder %s28, 0
    %p401 = por %p399, %p400
    %p402 = scmp.le.s32.totalorder 1, %s22
    %p403 = scmp.lt.s32.totalorder %s22, 3
    %p404 = pnand %p402, %p403
    %p405 = pneg %p404
    // Predicated region
    $region9: #{position_resampler_forward.4} parent=5 // pred_check
      _
    $region10: #{position_resampler_forward.4} parent=5 // pred_check_branch
      %407 = sbr.rel (%p404) target = $region12
    $region11: #{position_resampler_forward.4} parent=5 // pred_region
      %s408 = ssub.s32 %s22, 1
      // Predicated region
      $region13: #{position_resampler_forward.4} parent=11 // pred_check
        %p409 = pneg %p95
      $region14: #{position_resampler_forward.4} parent=11 // pred_check_branch
        %411 = sbr.rel (%p409) target = $region16
      $region15: #{position_resampler_forward.4} parent=11 // pred_region
        _
      $region16: #{position_resampler_forward.4} parent=11 // pred_fallthru
        _
      // Predicated region
      $region17: #{position_resampler_forward.4} parent=11 // pred_check
        %p412 = pneg %p116
      $region18: #{position_resampler_forward.4} parent=11 // pred_check_branch
        %414 = sbr.rel (%p412) target = $region20
      $region19: #{position_resampler_forward.4} parent=11 // pred_region
        _
      $region20: #{position_resampler_forward.4} parent=11 // pred_fallthru
        _
      // Predicated region
      $region21: #{position_resampler_forward.4} parent=11 // pred_check
        %p415 = pneg %p137
      $region22: #{position_resampler_forward.4} parent=11 // pred_check_branch
        %417 = sbr.rel (%p415) target = $region24
      $region23: #{position_resampler_forward.4} parent=11 // pred_region
        _
      $region24: #{position_resampler_forward.4} parent=11 // pred_fallthru
        _
      // Predicated region
      $region25: #{position_resampler_forward.4} parent=11 // pred_check
        %p418 = pneg %p158
      $region26: #{position_resampler_forward.4} parent=11 // pred_check_branch
        %420 = sbr.rel (%p418) target = $region28
      $region27: #{position_resampler_forward.4} parent=11 // pred_region
        _
      $region28: #{position_resampler_forward.4} parent=11 // pred_fallthru
        _
      // Predicated region
      $region29: #{position_resampler_forward.4} parent=11 // pred_check
        %p421 = pneg %p179
      $region30: #{position_resampler_forward.4} parent=11 // pred_check_branch
        %423 = sbr.rel (%p421) target = $region32
      $region31: #{position_resampler_forward.4} parent=11 // pred_region
        _
      $region32: #{position_resampler_forward.4} parent=11 // pred_fallthru
        _
      // Predicated region
      $region33: #{position_resampler_forward.4} parent=11 // pred_check
        %p424 = pneg %p200
      $region34: #{position_resampler_forward.4} parent=11 // pred_check_branch
        %426 = sbr.rel (%p424) target = $region36
      $region35: #{position_resampler_forward.4} parent=11 // pred_region
        _
      $region36: #{position_resampler_forward.4} parent=11 // pred_fallthru
        _
      // Predicated region
      $region37: #{position_resampler_forward.4} parent=11 // pred_check
        %p427 = pneg %p221
      $region38: #{position_resampler_forward.4} parent=11 // pred_check_branch
        %429 = sbr.rel (%p427) target = $region40
      $region39: #{position_resampler_forward.4} parent=11 // pred_region
        _
      $region40: #{position_resampler_forward.4} parent=11 // pred_fallthru
        _
      // Predicated region
      $region41: #{position_resampler_forward.4} parent=11 // pred_check
        %p430 = pneg %p242
      $region42: #{position_resampler_forward.4} parent=11 // pred_check_branch
        %432 = sbr.rel (%p430) target = $region44
      $region43: #{position_resampler_forward.4} parent=11 // pred_region
        _
      $region44: #{position_resampler_forward.4} parent=11 // pred_fallthru
        _
      // Predicated region
      $region45: #{position_resampler_forward.4} parent=11 // pred_check
        %p433 = pneg %p263
      $region46: #{position_resampler_forward.4} parent=11 // pred_check_branch
        %435 = sbr.rel (%p433) target = $region48
      $region47: #{position_resampler_forward.4} parent=11 // pred_region
        _
      $region48: #{position_resampler_forward.4} parent=11 // pred_fallthru
        _
      // Predicated region
      $region49: #{position_resampler_forward.4} parent=11 // pred_check
        %p436 = pneg %p284
      $region50: #{position_resampler_forward.4} parent=11 // pred_check_branch
        %438 = sbr.rel (%p436) target = $region52
      $region51: #{position_resampler_forward.4} parent=11 // pred_region
        _
      $region52: #{position_resampler_forward.4} parent=11 // pred_fallthru
        _
      // Predicated region
      $region53: #{position_resampler_forward.4} parent=11 // pred_check
        %p439 = pneg %p305
      $region54: #{position_resampler_forward.4} parent=11 // pred_check_branch
        %441 = sbr.rel (%p439) target = $region56
      $region55: #{position_resampler_forward.4} parent=11 // pred_region
        _
      $region56: #{position_resampler_forward.4} parent=11 // pred_fallthru
        _
      // Predicated region
      $region57: #{position_resampler_forward.4} parent=11 // pred_check
        %p442 = pneg %p326
      $region58: #{position_resampler_forward.4} parent=11 // pred_check_branch
        %444 = sbr.rel (%p442) target = $region60
      $region59: #{position_resampler_forward.4} parent=11 // pred_region
        _
      $region60: #{position_resampler_forward.4} parent=11 // pred_fallthru
        _
      // Predicated region
      $region61: #{position_resampler_forward.4} parent=11 // pred_check
        %p445 = pneg %p347
      $region62: #{position_resampler_forward.4} parent=11 // pred_check_branch
        %447 = sbr.rel (%p445) target = $region64
      $region63: #{position_resampler_forward.4} parent=11 // pred_region
        _
      $region64: #{position_resampler_forward.4} parent=11 // pred_fallthru
        _
      // Predicated region
      $region65: #{position_resampler_forward.4} parent=11 // pred_check
        %p448 = pneg %p368
      $region66: #{position_resampler_forward.4} parent=11 // pred_check_branch
        %450 = sbr.rel (%p448) target = $region68
      $region67: #{position_resampler_forward.4} parent=11 // pred_region
        _
      $region68: #{position_resampler_forward.4} parent=11 // pred_fallthru
        _
    $region12: #{position_resampler_forward.4} parent=5 // pred_fallthru
      _
    %p451 = scmp.lt.s32.totalorder %s22, 2
    // Predicated region
    $region69: #{position_resampler_forward.4} parent=5 // pred_check
      %p452 = pneg %p451
    $region70: #{position_resampler_forward.4} parent=5 // pred_check_branch
      %454 = sbr.rel (%p452) target = $region72
    $region71: #{position_resampler_forward.4} parent=5 // pred_region
      // Predicated region
      $region73: #{position_resampler_forward.4} parent=71 // pred_check
        %p455 = pneg %p42
      $region74: #{position_resampler_forward.4} parent=71 // pred_check_branch
        %457 = sbr.rel (%p455) target = $region76
      $region75: #{position_resampler_forward.4} parent=71 // pred_region
        %p458 = scmp.lt.s32.totalorder %s22, 1
        %s459 = scalar_select %p458, %s22, 1
        %s460 = smul.addr %s459, 34
        %s461 = smul.addr %s460, 8
        %s462 = scalar_lea.vmem %s0, %s461
      $region76: #{position_resampler_forward.4} parent=71 // pred_fallthru
        _
      // Predicated region
      $region77: #{position_resampler_forward.4} parent=71 // pred_check
        %p463 = pneg %p68
      $region78: #{position_resampler_forward.4} parent=71 // pred_check_branch
        %465 = sbr.rel (%p463) target = $region80
      $region79: #{position_resampler_forward.4} parent=71 // pred_region
        %p466 = scmp.lt.s32.totalorder %s22, 1
        %s467 = scalar_select %p466, %s22, 1
        %s468 = smul.addr %s467, 8
        %s469 = scalar_lea.vmem %s1, %s468
      $region80: #{position_resampler_forward.4} parent=71 // pred_fallthru
        _
    $region72: #{position_resampler_forward.4} parent=5 // pred_fallthru
      _
    %p470 = scmp.le.s32.totalorder 1, %s22
    %p471 = scmp.lt.s32.totalorder %s22, 3
    %p472 = pnand %p470, %p471
    %p473 = pneg %p472
    // Predicated region
    $region81: #{position_resampler_forward.4} parent=5 // pred_check
      _
    $region82: #{position_resampler_forward.4} parent=5 // pred_check_branch
      %475 = sbr.rel (%p472) target = $region84
    $region83: #{position_resampler_forward.4} parent=5 // pred_region
      %s476 = ssub.s32 %s22, 1
      %p477 = scmp.lt.s32.totalorder %s27, 1
      %s478 = scalar_select %p477, %s27, 1
      %s479 = smul.addr %s478, 34
      %s480 = smul.addr %s479, 8
      %s481 = scalar_lea.vmem %s0, %s480
      %p482 = pneg %p48
      %p483 = pneg %p45
      %p484 = scmp.lt.s32.totalorder %s27, 1
      %s485 = scalar_select %p484, %s27, 1
      %s486 = smul.addr %s485, 8
      %s487 = scalar_lea.vmem %s1, %s486
      %p488 = pneg %p74
      %p489 = pneg %p71
      %p490 = pneg %p95
      %p491 = pneg %p92
      %p492 = pneg %p116
      %p493 = pneg %p113
      %p494 = pneg %p137
      %p495 = pneg %p134
      %p496 = pneg %p158
      %p497 = pneg %p155
      %p498 = pneg %p179
      %p499 = pneg %p176
      %p500 = pneg %p200
      %p501 = pneg %p197
      %p502 = pneg %p221
      %p503 = pneg %p218
      %p504 = pneg %p242
      %p505 = pneg %p239
      %p506 = pneg %p263
      %p507 = pneg %p260
      %p508 = pneg %p284
      %p509 = pneg %p281
      %p510 = pneg %p305
      %p511 = pneg %p302
      %p512 = pneg %p326
      %p513 = pneg %p323
      %p514 = pneg %p347
      %p515 = pneg %p344
      %p516 = pneg %p368
      %p517 = pneg %p365
      %p518 = pneg %p394
      %p519 = pneg %p391
      %p520 = scmp.lt.s32.totalorder %s27, 1
      %s521 = scalar_select %p520, %s27, 1
      %s522 = smul.addr %s521, 8
      %s523 = scalar_lea.vmem %s16, %s522
      %p524 = scmp.lt.s32.totalorder %s27, 1
      %s525 = scalar_select %p524, %s27, 1
      %s526 = smul.addr %s525, 34
      %s527 = smul.addr %s526, 8
      %s528 = scalar_lea.vmem %s0, %s527
      %p529 = scmp.lt.s32.totalorder %s27, 1
      %s530 = scalar_select %p529, %s27, 1
      %s531 = smul.addr %s530, 8
      %s532 = scalar_lea.vmem %s1, %s531
      %p533 = scmp.lt.s32.totalorder %s27, 1
      %s534 = scalar_select %p533, %s27, 1
      %s535 = smul.addr %s534, 8
      %s536 = scalar_lea.vmem %s16, %s535
      %v538 = vld [vmem:[%s532] sm:$0xff]
      %v539 = vld [vmem:[%s528] sm:$0xff]
      %v540 = vld [vmem:[%s528 + $0x8] sm:$0xff]
      %v541 = vld [vmem:[%s528 + $0x10] sm:$0xff]
      %v542 = vld [vmem:[%s528 + $0x18] sm:$0xff]
      %v543 = vld [vmem:[%s528 + $0x20] sm:$0xff]
      %v544 = vld [vmem:[%s528 + $0x28] sm:$0xff]
      %v545 = vld [vmem:[%s528 + $0x30] sm:$0xff]
      %v546 = vld [vmem:[%s528 + $0x38] sm:$0xff]
      %v547 = vld [vmem:[%s528 + $0x40] sm:$0xff]
      %v548 = vld [vmem:[%s528 + $0x48] sm:$0xff]
      %v549 = vld [vmem:[%s528 + $0x50] sm:$0xff]
      %v550 = vld [vmem:[%s528 + $0x58] sm:$0xff]
      %v551 = vld [vmem:[%s528 + $0x60] sm:$0xff]
      %v552 = vld [vmem:[%s528 + $0x68] sm:$0xff]
      %v553 = vld [vmem:[%s528 + $0x70] sm:$0xff]
      %v554 = vld [vmem:[%s528 + $0x78] sm:$0xff]
      %v555 = vld [vmem:[%s528 + $0x80] sm:$0xff]
      %v556 = vld [vmem:[%s528 + $0x88] sm:$0xff]
      %v557 = vld [vmem:[%s528 + $0x90] sm:$0xff]
      %v558 = vld [vmem:[%s528 + $0x98] sm:$0xff]
      %v559 = vld [vmem:[%s528 + $0xa0] sm:$0xff]
      %v560 = vld [vmem:[%s528 + $0xa8] sm:$0xff]
      %v561 = vld [vmem:[%s528 + $0xb0] sm:$0xff]
      %v562 = vld [vmem:[%s528 + $0xb8] sm:$0xff]
      %v563 = vld [vmem:[%s528 + $0xc0] sm:$0xff]
      %v564 = vld [vmem:[%s528 + $0xc8] sm:$0xff]
      %v565 = vld [vmem:[%s528 + $0xd0] sm:$0xff]
      %v566 = vld [vmem:[%s528 + $0xd8] sm:$0xff]
      %v567 = vld [vmem:[%s528 + $0xe0] sm:$0xff]
      %v568 = vld [vmem:[%s528 + $0xe8] sm:$0xff]
      %v569 = vld [vmem:[%s528 + $0xf0] sm:$0xff]
      %v570 = vld [vmem:[%s528 + $0xf8] sm:$0xff]
      %v571 = vld [vmem:[%s528 + $0x100] sm:$0xff]
      %v572 = vld [vmem:[%s528 + $0x108] sm:$0x1]
      %v573 = vld [vmem:[%s4] sm:$0x1]
      %v574 = vld [vmem:[%s5] sm:$0x1]
      %vm575 = vcmask 523264
      %v576 = vsel %vm575, %v539, 0.0
      %577 = vadd.xlane.f32.xlu0 %v576
      %v578 = vpop.xlane.xlu0 %577
      %v579 = vsel %vm575, %v540, 0.0
      %580 = vadd.xlane.f32.xlu0 %v579
      %v581 = vpop.xlane.xlu0 %580
      %v582 = vsel %vm575, %v541, 0.0
      %583 = vadd.xlane.f32.xlu0 %v582
      %v584 = vpop.xlane.xlu0 %583
      %v585 = vsel %vm575, %v542, 0.0
      %586 = vadd.xlane.f32.xlu0 %v585
      %v587 = vpop.xlane.xlu0 %586
      %v588 = vsel %vm575, %v543, 0.0
      %589 = vadd.xlane.f32.xlu0 %v588
      %v590 = vpop.xlane.xlu0 %589
      %v591 = vsel %vm575, %v544, 0.0
      %592 = vadd.xlane.f32.xlu0 %v591
      %v593 = vpop.xlane.xlu0 %592
      %v594 = vsel %vm575, %v545, 0.0
      %595 = vadd.xlane.f32.xlu0 %v594
      %v596 = vpop.xlane.xlu0 %595
      %v597 = vsel %vm575, %v546, 0.0
      %598 = vadd.xlane.f32.xlu0 %v597
      %v599 = vpop.xlane.xlu0 %598
      %v600 = vsel %vm575, %v547, 0.0
      %601 = vadd.xlane.f32.xlu0 %v600
      %v602 = vpop.xlane.xlu0 %601
      %v603 = vsel %vm575, %v548, 0.0
      %604 = vadd.xlane.f32.xlu0 %v603
      %v605 = vpop.xlane.xlu0 %604
      %v606 = vsel %vm575, %v549, 0.0
      %607 = vadd.xlane.f32.xlu0 %v606
      %v608 = vpop.xlane.xlu0 %607
      %v609 = vsel %vm575, %v550, 0.0
      %610 = vadd.xlane.f32.xlu0 %v609
      %v611 = vpop.xlane.xlu0 %610
      %v612 = vsel %vm575, %v551, 0.0
      %613 = vadd.xlane.f32.xlu0 %v612
      %v614 = vpop.xlane.xlu0 %613
      %v615 = vsel %vm575, %v552, 0.0
      %616 = vadd.xlane.f32.xlu0 %v615
      %v617 = vpop.xlane.xlu0 %616
      %v618 = vsel %vm575, %v553, 0.0
      %619 = vadd.xlane.f32.xlu0 %v618
      %v620 = vpop.xlane.xlu0 %619
      %v621 = vsel %vm575, %v554, 0.0
      %622 = vadd.xlane.f32.xlu0 %v621
      %v623 = vpop.xlane.xlu0 %622
      %v624 = vsel %vm575, %v555, 0.0
      %625 = vadd.xlane.f32.xlu0 %v624
      %v626 = vpop.xlane.xlu0 %625
      %v627 = vsel %vm575, %v556, 0.0
      %628 = vadd.xlane.f32.xlu0 %v627
      %v629 = vpop.xlane.xlu0 %628
      %v630 = vsel %vm575, %v557, 0.0
      %631 = vadd.xlane.f32.xlu0 %v630
      %v632 = vpop.xlane.xlu0 %631
      %v633 = vsel %vm575, %v558, 0.0
      %634 = vadd.xlane.f32.xlu0 %v633
      %v635 = vpop.xlane.xlu0 %634
      %v636 = vsel %vm575, %v559, 0.0
      %637 = vadd.xlane.f32.xlu0 %v636
      %v638 = vpop.xlane.xlu0 %637
      %v639 = vsel %vm575, %v560, 0.0
      %640 = vadd.xlane.f32.xlu0 %v639
      %v641 = vpop.xlane.xlu0 %640
      %v642 = vsel %vm575, %v561, 0.0
      %643 = vadd.xlane.f32.xlu0 %v642
      %v644 = vpop.xlane.xlu0 %643
      %v645 = vsel %vm575, %v562, 0.0
      %646 = vadd.xlane.f32.xlu0 %v645
      %v647 = vpop.xlane.xlu0 %646
      %v648 = vsel %vm575, %v563, 0.0
      %649 = vadd.xlane.f32.xlu0 %v648
      %v650 = vpop.xlane.xlu0 %649
      %v651 = vsel %vm575, %v564, 0.0
      %652 = vadd.xlane.f32.xlu0 %v651
      %v653 = vpop.xlane.xlu0 %652
      %v654 = vsel %vm575, %v565, 0.0
      %655 = vadd.xlane.f32.xlu0 %v654
      %v656 = vpop.xlane.xlu0 %655
      %v657 = vsel %vm575, %v566, 0.0
      %658 = vadd.xlane.f32.xlu0 %v657
      %v659 = vpop.xlane.xlu0 %658
      %v660 = vsel %vm575, %v567, 0.0
      %661 = vadd.xlane.f32.xlu0 %v660
      %v662 = vpop.xlane.xlu0 %661
      %v663 = vsel %vm575, %v568, 0.0
      %664 = vadd.xlane.f32.xlu0 %v663
      %v665 = vpop.xlane.xlu0 %664
      %v666 = vsel %vm575, %v569, 0.0
      %667 = vadd.xlane.f32.xlu0 %v666
      %v668 = vpop.xlane.xlu0 %667
      %v669 = vsel %vm575, %v570, 0.0
      %670 = vadd.xlane.f32.xlu0 %v669
      %v671 = vpop.xlane.xlu0 %670
      %v672 = vsel %vm575, %v571, 0.0
      %673 = vadd.xlane.f32.xlu0 %v672
      %v674 = vpop.xlane.xlu0 %673
      %vm675 = vcmask 516096
      %v676 = vsel %vm675, %v572, 0.0
      %677 = vadd.xlane.f32.xlu0 %v676
      %v678 = vpop.xlane.xlu0 %677
      %v679 = vrcp.pop 64.0
      %v680 = vmul.f32 64.0, %v679
      %v681 = vsub.f32 1.0, %v680
      %v682 = vmul.f32 %v679, %v681
      %v683 = vadd.f32 %v679, %v682
      %vm684 = vweird.f32 %v679
      %v685 = vsel %vm684, %v679, %v683
      %v686 = vmul.f32 %v578, %v685
      %v687 = vmul.f32 %v581, %v685
      %v688 = vmul.f32 %v584, %v685
      %v689 = vmul.f32 %v587, %v685
      %v690 = vmul.f32 %v590, %v685
      %v691 = vmul.f32 %v593, %v685
      %v692 = vmul.f32 %v596, %v685
      %v693 = vmul.f32 %v599, %v685
      %v694 = vmul.f32 %v602, %v685
      %v695 = vmul.f32 %v605, %v685
      %v696 = vmul.f32 %v608, %v685
      %v697 = vmul.f32 %v611, %v685
      %v698 = vmul.f32 %v614, %v685
      %v699 = vmul.f32 %v617, %v685
      %v700 = vmul.f32 %v620, %v685
      %v701 = vmul.f32 %v623, %v685
      %v702 = vmul.f32 %v626, %v685
      %v703 = vmul.f32 %v629, %v685
      %v704 = vmul.f32 %v632, %v685
      %v705 = vmul.f32 %v635, %v685
      %v706 = vmul.f32 %v638, %v685
      %v707 = vmul.f32 %v641, %v685
      %v708 = vmul.f32 %v644, %v685
      %v709 = vmul.f32 %v647, %v685
      %v710 = vmul.f32 %v650, %v685
      %v711 = vmul.f32 %v653, %v685
      %v712 = vmul.f32 %v656, %v685
      %v713 = vmul.f32 %v659, %v685
      %v714 = vmul.f32 %v662, %v685
      %v715 = vmul.f32 %v665, %v685
      %v716 = vmul.f32 %v668, %v685
      %v717 = vmul.f32 %v671, %v685
      %v718 = vmul.f32 %v674, %v685
      %v719 = vmul.f32 %v678, %v685
      %v720 = vsub.f32 %v539, %v686
      %v721 = vsub.f32 %v540, %v687
      %v722 = vsub.f32 %v541, %v688
      %v723 = vsub.f32 %v542, %v689
      %v724 = vsub.f32 %v543, %v690
      %v725 = vsub.f32 %v544, %v691
      %v726 = vsub.f32 %v545, %v692
      %v727 = vsub.f32 %v546, %v693
      %v728 = vsub.f32 %v547, %v694
      %v729 = vsub.f32 %v548, %v695
      %v730 = vsub.f32 %v549, %v696
      %v731 = vsub.f32 %v550, %v697
      %v732 = vsub.f32 %v551, %v698
      %v733 = vsub.f32 %v552, %v699
      %v734 = vsub.f32 %v553, %v700
      %v735 = vsub.f32 %v554, %v701
      %v736 = vsub.f32 %v555, %v702
      %v737 = vsub.f32 %v556, %v703
      %v738 = vsub.f32 %v557, %v704
      %v739 = vsub.f32 %v558, %v705
      %v740 = vsub.f32 %v559, %v706
      %v741 = vsub.f32 %v560, %v707
      %v742 = vsub.f32 %v561, %v708
      %v743 = vsub.f32 %v562, %v709
      %v744 = vsub.f32 %v563, %v710
      %v745 = vsub.f32 %v564, %v711
      %v746 = vsub.f32 %v565, %v712
      %v747 = vsub.f32 %v566, %v713
      %v748 = vsub.f32 %v567, %v714
      %v749 = vsub.f32 %v568, %v715
      %v750 = vsub.f32 %v569, %v716
      %v751 = vsub.f32 %v570, %v717
      %v752 = vsub.f32 %v571, %v718
      %v753 = vsub.f32 %v572, %v719
      %v754 = vmul.f32 %v720, %v720
      %v755 = vmul.f32 %v721, %v721
      %v756 = vmul.f32 %v722, %v722
      %v757 = vmul.f32 %v723, %v723
      %v758 = vmul.f32 %v724, %v724
      %v759 = vmul.f32 %v725, %v725
      %v760 = vmul.f32 %v726, %v726
      %v761 = vmul.f32 %v727, %v727
      %v762 = vmul.f32 %v728, %v728
      %v763 = vmul.f32 %v729, %v729
      %v764 = vmul.f32 %v730, %v730
      %v765 = vmul.f32 %v731, %v731
      %v766 = vmul.f32 %v732, %v732
      %v767 = vmul.f32 %v733, %v733
      %v768 = vmul.f32 %v734, %v734
      %v769 = vmul.f32 %v735, %v735
      %v770 = vmul.f32 %v736, %v736
      %v771 = vmul.f32 %v737, %v737
      %v772 = vmul.f32 %v738, %v738
      %v773 = vmul.f32 %v739, %v739
      %v774 = vmul.f32 %v740, %v740
      %v775 = vmul.f32 %v741, %v741
      %v776 = vmul.f32 %v742, %v742
      %v777 = vmul.f32 %v743, %v743
      %v778 = vmul.f32 %v744, %v744
      %v779 = vmul.f32 %v745, %v745
      %v780 = vmul.f32 %v746, %v746
      %v781 = vmul.f32 %v747, %v747
      %v782 = vmul.f32 %v748, %v748
      %v783 = vmul.f32 %v749, %v749
      %v784 = vmul.f32 %v750, %v750
      %v785 = vmul.f32 %v751, %v751
      %v786 = vmul.f32 %v752, %v752
      %v787 = vmul.f32 %v753, %v753
      %v788 = vsel %vm575, %v754, 0.0
      %789 = vadd.xlane.f32.xlu0 %v788
      %v790 = vpop.xlane.xlu0 %789
      %v791 = vsel %vm575, %v755, 0.0
      %792 = vadd.xlane.f32.xlu0 %v791
      %v793 = vpop.xlane.xlu0 %792
      %v794 = vsel %vm575, %v756, 0.0
      %795 = vadd.xlane.f32.xlu0 %v794
      %v796 = vpop.xlane.xlu0 %795
      %v797 = vsel %vm575, %v757, 0.0
      %798 = vadd.xlane.f32.xlu0 %v797
      %v799 = vpop.xlane.xlu0 %798
      %v800 = vsel %vm575, %v758, 0.0
      %801 = vadd.xlane.f32.xlu0 %v800
      %v802 = vpop.xlane.xlu0 %801
      %v803 = vsel %vm575, %v759, 0.0
      %804 = vadd.xlane.f32.xlu0 %v803
      %v805 = vpop.xlane.xlu0 %804
      %v806 = vsel %vm575, %v760, 0.0
      %807 = vadd.xlane.f32.xlu0 %v806
      %v808 = vpop.xlane.xlu0 %807
      %v809 = vsel %vm575, %v761, 0.0
      %810 = vadd.xlane.f32.xlu0 %v809
      %v811 = vpop.xlane.xlu0 %810
      %v812 = vsel %vm575, %v762, 0.0
      %813 = vadd.xlane.f32.xlu0 %v812
      %v814 = vpop.xlane.xlu0 %813
      %v815 = vsel %vm575, %v763, 0.0
      %816 = vadd.xlane.f32.xlu0 %v815
      %v817 = vpop.xlane.xlu0 %816
      %v818 = vsel %vm575, %v764, 0.0
      %819 = vadd.xlane.f32.xlu0 %v818
      %v820 = vpop.xlane.xlu0 %819
      %v821 = vsel %vm575, %v765, 0.0
      %822 = vadd.xlane.f32.xlu0 %v821
      %v823 = vpop.xlane.xlu0 %822
      %v824 = vsel %vm575, %v766, 0.0
      %825 = vadd.xlane.f32.xlu0 %v824
      %v826 = vpop.xlane.xlu0 %825
      %v827 = vsel %vm575, %v767, 0.0
      %828 = vadd.xlane.f32.xlu0 %v827
      %v829 = vpop.xlane.xlu0 %828
      %v830 = vsel %vm575, %v768, 0.0
      %831 = vadd.xlane.f32.xlu0 %v830
      %v832 = vpop.xlane.xlu0 %831
      %v833 = vsel %vm575, %v769, 0.0
      %834 = vadd.xlane.f32.xlu0 %v833
      %v835 = vpop.xlane.xlu0 %834
      %v836 = vsel %vm575, %v770, 0.0
      %837 = vadd.xlane.f32.xlu0 %v836
      %v838 = vpop.xlane.xlu0 %837
      %v839 = vsel %vm575, %v771, 0.0
      %840 = vadd.xlane.f32.xlu0 %v839
      %v841 = vpop.xlane.xlu0 %840
      %v842 = vsel %vm575, %v772, 0.0
      %843 = vadd.xlane.f32.xlu0 %v842
      %v844 = vpop.xlane.xlu0 %843
      %v845 = vsel %vm575, %v773, 0.0
      %846 = vadd.xlane.f32.xlu0 %v845
      %v847 = vpop.xlane.xlu0 %846
      %v848 = vsel %vm575, %v774, 0.0
      %849 = vadd.xlane.f32.xlu0 %v848
      %v850 = vpop.xlane.xlu0 %849
      %v851 = vsel %vm575, %v775, 0.0
      %852 = vadd.xlane.f32.xlu0 %v851
      %v853 = vpop.xlane.xlu0 %852
      %v854 = vsel %vm575, %v776, 0.0
      %855 = vadd.xlane.f32.xlu0 %v854
      %v856 = vpop.xlane.xlu0 %855
      %v857 = vsel %vm575, %v777, 0.0
      %858 = vadd.xlane.f32.xlu0 %v857
      %v859 = vpop.xlane.xlu0 %858
      %v860 = vsel %vm575, %v778, 0.0
      %861 = vadd.xlane.f32.xlu0 %v860
      %v862 = vpop.xlane.xlu0 %861
      %v863 = vsel %vm575, %v779, 0.0
      %864 = vadd.xlane.f32.xlu0 %v863
      %v865 = vpop.xlane.xlu0 %864
      %v866 = vsel %vm575, %v780, 0.0
      %867 = vadd.xlane.f32.xlu0 %v866
      %v868 = vpop.xlane.xlu0 %867
      %v869 = vsel %vm575, %v781, 0.0
      %870 = vadd.xlane.f32.xlu0 %v869
      %v871 = vpop.xlane.xlu0 %870
      %v872 = vsel %vm575, %v782, 0.0
      %873 = vadd.xlane.f32.xlu0 %v872
      %v874 = vpop.xlane.xlu0 %873
      %v875 = vsel %vm575, %v783, 0.0
      %876 = vadd.xlane.f32.xlu0 %v875
      %v877 = vpop.xlane.xlu0 %876
      %v878 = vsel %vm575, %v784, 0.0
      %879 = vadd.xlane.f32.xlu0 %v878
      %v880 = vpop.xlane.xlu0 %879
      %v881 = vsel %vm575, %v785, 0.0
      %882 = vadd.xlane.f32.xlu0 %v881
      %v883 = vpop.xlane.xlu0 %882
      %v884 = vsel %vm575, %v786, 0.0
      %885 = vadd.xlane.f32.xlu0 %v884
      %v886 = vpop.xlane.xlu0 %885
      %v887 = vsel %vm675, %v787, 0.0
      %888 = vadd.xlane.f32.xlu0 %v887
      %v889 = vpop.xlane.xlu0 %888
      %v890 = vmul.f32 %v790, %v685
      %v891 = vmul.f32 %v793, %v685
      %v892 = vmul.f32 %v796, %v685
      %v893 = vmul.f32 %v799, %v685
      %v894 = vmul.f32 %v802, %v685
      %v895 = vmul.f32 %v805, %v685
      %v896 = vmul.f32 %v808, %v685
      %v897 = vmul.f32 %v811, %v685
      %v898 = vmul.f32 %v814, %v685
      %v899 = vmul.f32 %v817, %v685
      %v900 = vmul.f32 %v820, %v685
      %v901 = vmul.f32 %v823, %v685
      %v902 = vmul.f32 %v826, %v685
      %v903 = vmul.f32 %v829, %v685
      %v904 = vmul.f32 %v832, %v685
      %v905 = vmul.f32 %v835, %v685
      %v906 = vmul.f32 %v838, %v685
      %v907 = vmul.f32 %v841, %v685
      %v908 = vmul.f32 %v844, %v685
      %v909 = vmul.f32 %v847, %v685
      %v910 = vmul.f32 %v850, %v685
      %v911 = vmul.f32 %v853, %v685
      %v912 = vmul.f32 %v856, %v685
      %v913 = vmul.f32 %v859, %v685
      %v914 = vmul.f32 %v862, %v685
      %v915 = vmul.f32 %v865, %v685
      %v916 = vmul.f32 %v868, %v685
      %v917 = vmul.f32 %v871, %v685
      %v918 = vmul.f32 %v874, %v685
      %v919 = vmul.f32 %v877, %v685
      %v920 = vmul.f32 %v880, %v685
      %v921 = vmul.f32 %v883, %v685
      %v922 = vmul.f32 %v886, %v685
      %v923 = vmul.f32 %v889, %v685
      %v924 = vadd.f32 %v890, 1e-05
      %v925 = vadd.f32 %v891, 1e-05
      %v926 = vadd.f32 %v892, 1e-05
      %v927 = vadd.f32 %v893, 1e-05
      %v928 = vadd.f32 %v894, 1e-05
      %v929 = vadd.f32 %v895, 1e-05
      %v930 = vadd.f32 %v896, 1e-05
      %v931 = vadd.f32 %v897, 1e-05
      %v932 = vadd.f32 %v898, 1e-05
      %v933 = vadd.f32 %v899, 1e-05
      %v934 = vadd.f32 %v900, 1e-05
      %v935 = vadd.f32 %v901, 1e-05
      %v936 = vadd.f32 %v902, 1e-05
      %v937 = vadd.f32 %v903, 1e-05
      %v938 = vadd.f32 %v904, 1e-05
      %v939 = vadd.f32 %v905, 1e-05
      %v940 = vadd.f32 %v906, 1e-05
      %v941 = vadd.f32 %v907, 1e-05
      %v942 = vadd.f32 %v908, 1e-05
      %v943 = vadd.f32 %v909, 1e-05
      %v944 = vadd.f32 %v910, 1e-05
      %v945 = vadd.f32 %v911, 1e-05
      %v946 = vadd.f32 %v912, 1e-05
      %v947 = vadd.f32 %v913, 1e-05
      %v948 = vadd.f32 %v914, 1e-05
      %v949 = vadd.f32 %v915, 1e-05
      %v950 = vadd.f32 %v916, 1e-05
      %v951 = vadd.f32 %v917, 1e-05
      %v952 = vadd.f32 %v918, 1e-05
      %v953 = vadd.f32 %v919, 1e-05
      %v954 = vadd.f32 %v920, 1e-05
      %v955 = vadd.f32 %v921, 1e-05
      %v956 = vadd.f32 %v922, 1e-05
      %v957 = vadd.f32 %v923, 1e-05
      %v958 = vrsqrt.pop %v924
      %v959 = vmul.f32 %v958, %v924
      %v960 = vmul.f32 %v959, %v958
      %v961 = vmul.f32 0.5, %v960
      %v962 = vsub.f32 1.5, %v961
      %v963 = vmul.f32 %v958, %v962
      %vm964 = vweird.f32 %v924
      %vm965 = vweird.f32 %v958
      %vm966 = vmor %vm964, %vm965
      %v967 = vsel %vm966, %v958, %v963
      %v968 = vrsqrt.pop %v925
      %v969 = vmul.f32 %v968, %v925
      %v970 = vmul.f32 %v969, %v968
      %v971 = vmul.f32 0.5, %v970
      %v972 = vsub.f32 1.5, %v971
      %v973 = vmul.f32 %v968, %v972
      %vm974 = vweird.f32 %v925
      %vm975 = vweird.f32 %v968
      %vm976 = vmor %vm974, %vm975
      %v977 = vsel %vm976, %v968, %v973
      %v978 = vrsqrt.pop %v926
      %v979 = vmul.f32 %v978, %v926
      %v980 = vmul.f32 %v979, %v978
      %v981 = vmul.f32 0.5, %v980
      %v982 = vsub.f32 1.5, %v981
      %v983 = vmul.f32 %v978, %v982
      %vm984 = vweird.f32 %v926
      %vm985 = vweird.f32 %v978
      %vm986 = vmor %vm984, %vm985
      %v987 = vsel %vm986, %v978, %v983
      %v988 = vrsqrt.pop %v927
      %v989 = vmul.f32 %v988, %v927
      %v990 = vmul.f32 %v989, %v988
      %v991 = vmul.f32 0.5, %v990
      %v992 = vsub.f32 1.5, %v991
      %v993 = vmul.f32 %v988, %v992
      %vm994 = vweird.f32 %v927
      %vm995 = vweird.f32 %v988
      %vm996 = vmor %vm994, %vm995
      %v997 = vsel %vm996, %v988, %v993
      %v998 = vrsqrt.pop %v928
      %v999 = vmul.f32 %v998, %v928
      %v1000 = vmul.f32 %v999, %v998
      %v1001 = vmul.f32 0.5, %v1000
      %v1002 = vsub.f32 1.5, %v1001
      %v1003 = vmul.f32 %v998, %v1002
      %vm1004 = vweird.f32 %v928
      %vm1005 = vweird.f32 %v998
      %vm1006 = vmor %vm1004, %vm1005
      %v1007 = vsel %vm1006, %v998, %v1003
      %v1008 = vrsqrt.pop %v929
      %v1009 = vmul.f32 %v1008, %v929
      %v1010 = vmul.f32 %v1009, %v1008
      %v1011 = vmul.f32 0.5, %v1010
      %v1012 = vsub.f32 1.5, %v1011
      %v1013 = vmul.f32 %v1008, %v1012
      %vm1014 = vweird.f32 %v929
      %vm1015 = vweird.f32 %v1008
      %vm1016 = vmor %vm1014, %vm1015
      %v1017 = vsel %vm1016, %v1008, %v1013
      %v1018 = vrsqrt.pop %v930
      %v1019 = vmul.f32 %v1018, %v930
      %v1020 = vmul.f32 %v1019, %v1018
      %v1021 = vmul.f32 0.5, %v1020
      %v1022 = vsub.f32 1.5, %v1021
      %v1023 = vmul.f32 %v1018, %v1022
      %vm1024 = vweird.f32 %v930
      %vm1025 = vweird.f32 %v1018
      %vm1026 = vmor %vm1024, %vm1025
      %v1027 = vsel %vm1026, %v1018, %v1023
      %v1028 = vrsqrt.pop %v931
      %v1029 = vmul.f32 %v1028, %v931
      %v1030 = vmul.f32 %v1029, %v1028
      %v1031 = vmul.f32 0.5, %v1030
      %v1032 = vsub.f32 1.5, %v1031
      %v1033 = vmul.f32 %v1028, %v1032
      %vm1034 = vweird.f32 %v931
      %vm1035 = vweird.f32 %v1028
      %vm1036 = vmor %vm1034, %vm1035
      %v1037 = vsel %vm1036, %v1028, %v1033
      %v1038 = vrsqrt.pop %v932
      %v1039 = vmul.f32 %v1038, %v932
      %v1040 = vmul.f32 %v1039, %v1038
      %v1041 = vmul.f32 0.5, %v1040
      %v1042 = vsub.f32 1.5, %v1041
      %v1043 = vmul.f32 %v1038, %v1042
      %vm1044 = vweird.f32 %v932
      %vm1045 = vweird.f32 %v1038
      %vm1046 = vmor %vm1044, %vm1045
      %v1047 = vsel %vm1046, %v1038, %v1043
      %v1048 = vrsqrt.pop %v933
      %v1049 = vmul.f32 %v1048, %v933
      %v1050 = vmul.f32 %v1049, %v1048
      %v1051 = vmul.f32 0.5, %v1050
      %v1052 = vsub.f32 1.5, %v1051
      %v1053 = vmul.f32 %v1048, %v1052
      %vm1054 = vweird.f32 %v933
      %vm1055 = vweird.f32 %v1048
      %vm1056 = vmor %vm1054, %vm1055
      %v1057 = vsel %vm1056, %v1048, %v1053
      %v1058 = vrsqrt.pop %v934
      %v1059 = vmul.f32 %v1058, %v934
      %v1060 = vmul.f32 %v1059, %v1058
      %v1061 = vmul.f32 0.5, %v1060
      %v1062 = vsub.f32 1.5, %v1061
      %v1063 = vmul.f32 %v1058, %v1062
      %vm1064 = vweird.f32 %v934
      %vm1065 = vweird.f32 %v1058
      %vm1066 = vmor %vm1064, %vm1065
      %v1067 = vsel %vm1066, %v1058, %v1063
      %v1068 = vrsqrt.pop %v935
      %v1069 = vmul.f32 %v1068, %v935
      %v1070 = vmul.f32 %v1069, %v1068
      %v1071 = vmul.f32 0.5, %v1070
      %v1072 = vsub.f32 1.5, %v1071
      %v1073 = vmul.f32 %v1068, %v1072
      %vm1074 = vweird.f32 %v935
      %vm1075 = vweird.f32 %v1068
      %vm1076 = vmor %vm1074, %vm1075
      %v1077 = vsel %vm1076, %v1068, %v1073
      %v1078 = vrsqrt.pop %v936
      %v1079 = vmul.f32 %v1078, %v936
      %v1080 = vmul.f32 %v1079, %v1078
      %v1081 = vmul.f32 0.5, %v1080
      %v1082 = vsub.f32 1.5, %v1081
      %v1083 = vmul.f32 %v1078, %v1082
      %vm1084 = vweird.f32 %v936
      %vm1085 = vweird.f32 %v1078
      %vm1086 = vmor %vm1084, %vm1085
      %v1087 = vsel %vm1086, %v1078, %v1083
      %v1088 = vrsqrt.pop %v937
      %v1089 = vmul.f32 %v1088, %v937
      %v1090 = vmul.f32 %v1089, %v1088
      %v1091 = vmul.f32 0.5, %v1090
      %v1092 = vsub.f32 1.5, %v1091
      %v1093 = vmul.f32 %v1088, %v1092
      %vm1094 = vweird.f32 %v937
      %vm1095 = vweird.f32 %v1088
      %vm1096 = vmor %vm1094, %vm1095
      %v1097 = vsel %vm1096, %v1088, %v1093
      %v1098 = vrsqrt.pop %v938
      %v1099 = vmul.f32 %v1098, %v938
      %v1100 = vmul.f32 %v1099, %v1098
      %v1101 = vmul.f32 0.5, %v1100
      %v1102 = vsub.f32 1.5, %v1101
      %v1103 = vmul.f32 %v1098, %v1102
      %vm1104 = vweird.f32 %v938
      %vm1105 = vweird.f32 %v1098
      %vm1106 = vmor %vm1104, %vm1105
      %v1107 = vsel %vm1106, %v1098, %v1103
      %v1108 = vrsqrt.pop %v939
      %v1109 = vmul.f32 %v1108, %v939
      %v1110 = vmul.f32 %v1109, %v1108
      %v1111 = vmul.f32 0.5, %v1110
      %v1112 = vsub.f32 1.5, %v1111
      %v1113 = vmul.f32 %v1108, %v1112
      %vm1114 = vweird.f32 %v939
      %vm1115 = vweird.f32 %v1108
      %vm1116 = vmor %vm1114, %vm1115
      %v1117 = vsel %vm1116, %v1108, %v1113
      %v1118 = vrsqrt.pop %v940
      %v1119 = vmul.f32 %v1118, %v940
      %v1120 = vmul.f32 %v1119, %v1118
      %v1121 = vmul.f32 0.5, %v1120
      %v1122 = vsub.f32 1.5, %v1121
      %v1123 = vmul.f32 %v1118, %v1122
      %vm1124 = vweird.f32 %v940
      %vm1125 = vweird.f32 %v1118
      %vm1126 = vmor %vm1124, %vm1125
      %v1127 = vsel %vm1126, %v1118, %v1123
      %v1128 = vrsqrt.pop %v941
      %v1129 = vmul.f32 %v1128, %v941
      %v1130 = vmul.f32 %v1129, %v1128
      %v1131 = vmul.f32 0.5, %v1130
      %v1132 = vsub.f32 1.5, %v1131
      %v1133 = vmul.f32 %v1128, %v1132
      %vm1134 = vweird.f32 %v941
      %vm1135 = vweird.f32 %v1128
      %vm1136 = vmor %vm1134, %vm1135
      %v1137 = vsel %vm1136, %v1128, %v1133
      %v1138 = vrsqrt.pop %v942
      %v1139 = vmul.f32 %v1138, %v942
      %v1140 = vmul.f32 %v1139, %v1138
      %v1141 = vmul.f32 0.5, %v1140
      %v1142 = vsub.f32 1.5, %v1141
      %v1143 = vmul.f32 %v1138, %v1142
      %vm1144 = vweird.f32 %v942
      %vm1145 = vweird.f32 %v1138
      %vm1146 = vmor %vm1144, %vm1145
      %v1147 = vsel %vm1146, %v1138, %v1143
      %v1148 = vrsqrt.pop %v943
      %v1149 = vmul.f32 %v1148, %v943
      %v1150 = vmul.f32 %v1149, %v1148
      %v1151 = vmul.f32 0.5, %v1150
      %v1152 = vsub.f32 1.5, %v1151
      %v1153 = vmul.f32 %v1148, %v1152
      %vm1154 = vweird.f32 %v943
      %vm1155 = vweird.f32 %v1148
      %vm1156 = vmor %vm1154, %vm1155
      %v1157 = vsel %vm1156, %v1148, %v1153
      %v1158 = vrsqrt.pop %v944
      %v1159 = vmul.f32 %v1158, %v944
      %v1160 = vmul.f32 %v1159, %v1158
      %v1161 = vmul.f32 0.5, %v1160
      %v1162 = vsub.f32 1.5, %v1161
      %v1163 = vmul.f32 %v1158, %v1162
      %vm1164 = vweird.f32 %v944
      %vm1165 = vweird.f32 %v1158
      %vm1166 = vmor %vm1164, %vm1165
      %v1167 = vsel %vm1166, %v1158, %v1163
      %v1168 = vrsqrt.pop %v945
      %v1169 = vmul.f32 %v1168, %v945
      %v1170 = vmul.f32 %v1169, %v1168
      %v1171 = vmul.f32 0.5, %v1170
      %v1172 = vsub.f32 1.5, %v1171
      %v1173 = vmul.f32 %v1168, %v1172
      %vm1174 = vweird.f32 %v945
      %vm1175 = vweird.f32 %v1168
      %vm1176 = vmor %vm1174, %vm1175
      %v1177 = vsel %vm1176, %v1168, %v1173
      %v1178 = vrsqrt.pop %v946
      %v1179 = vmul.f32 %v1178, %v946
      %v1180 = vmul.f32 %v1179, %v1178
      %v1181 = vmul.f32 0.5, %v1180
      %v1182 = vsub.f32 1.5, %v1181
      %v1183 = vmul.f32 %v1178, %v1182
      %vm1184 = vweird.f32 %v946
      %vm1185 = vweird.f32 %v1178
      %vm1186 = vmor %vm1184, %vm1185
      %v1187 = vsel %vm1186, %v1178, %v1183
      %v1188 = vrsqrt.pop %v947
      %v1189 = vmul.f32 %v1188, %v947
      %v1190 = vmul.f32 %v1189, %v1188
      %v1191 = vmul.f32 0.5, %v1190
      %v1192 = vsub.f32 1.5, %v1191
      %v1193 = vmul.f32 %v1188, %v1192
      %vm1194 = vweird.f32 %v947
      %vm1195 = vweird.f32 %v1188
      %vm1196 = vmor %vm1194, %vm1195
      %v1197 = vsel %vm1196, %v1188, %v1193
      %v1198 = vrsqrt.pop %v948
      %v1199 = vmul.f32 %v1198, %v948
      %v1200 = vmul.f32 %v1199, %v1198
      %v1201 = vmul.f32 0.5, %v1200
      %v1202 = vsub.f32 1.5, %v1201
      %v1203 = vmul.f32 %v1198, %v1202
      %vm1204 = vweird.f32 %v948
      %vm1205 = vweird.f32 %v1198
      %vm1206 = vmor %vm1204, %vm1205
      %v1207 = vsel %vm1206, %v1198, %v1203
      %v1208 = vrsqrt.pop %v949
      %v1209 = vmul.f32 %v1208, %v949
      %v1210 = vmul.f32 %v1209, %v1208
      %v1211 = vmul.f32 0.5, %v1210
      %v1212 = vsub.f32 1.5, %v1211
      %v1213 = vmul.f32 %v1208, %v1212
      %vm1214 = vweird.f32 %v949
      %vm1215 = vweird.f32 %v1208
      %vm1216 = vmor %vm1214, %vm1215
      %v1217 = vsel %vm1216, %v1208, %v1213
      %v1218 = vrsqrt.pop %v950
      %v1219 = vmul.f32 %v1218, %v950
      %v1220 = vmul.f32 %v1219, %v1218
      %v1221 = vmul.f32 0.5, %v1220
      %v1222 = vsub.f32 1.5, %v1221
      %v1223 = vmul.f32 %v1218, %v1222
      %vm1224 = vweird.f32 %v950
      %vm1225 = vweird.f32 %v1218
      %vm1226 = vmor %vm1224, %vm1225
      %v1227 = vsel %vm1226, %v1218, %v1223
      %v1228 = vrsqrt.pop %v951
      %v1229 = vmul.f32 %v1228, %v951
      %v1230 = vmul.f32 %v1229, %v1228
      %v1231 = vmul.f32 0.5, %v1230
      %v1232 = vsub.f32 1.5, %v1231
      %v1233 = vmul.f32 %v1228, %v1232
      %vm1234 = vweird.f32 %v951
      %vm1235 = vweird.f32 %v1228
      %vm1236 = vmor %vm1234, %vm1235
      %v1237 = vsel %vm1236, %v1228, %v1233
      %v1238 = vrsqrt.pop %v952
      %v1239 = vmul.f32 %v1238, %v952
      %v1240 = vmul.f32 %v1239, %v1238
      %v1241 = vmul.f32 0.5, %v1240
      %v1242 = vsub.f32 1.5, %v1241
      %v1243 = vmul.f32 %v1238, %v1242
      %vm1244 = vweird.f32 %v952
      %vm1245 = vweird.f32 %v1238
      %vm1246 = vmor %vm1244, %vm1245
      %v1247 = vsel %vm1246, %v1238, %v1243
      %v1248 = vrsqrt.pop %v953
      %v1249 = vmul.f32 %v1248, %v953
      %v1250 = vmul.f32 %v1249, %v1248
      %v1251 = vmul.f32 0.5, %v1250
      %v1252 = vsub.f32 1.5, %v1251
      %v1253 = vmul.f32 %v1248, %v1252
      %vm1254 = vweird.f32 %v953
      %vm1255 = vweird.f32 %v1248
      %vm1256 = vmor %vm1254, %vm1255
      %v1257 = vsel %vm1256, %v1248, %v1253
      %v1258 = vrsqrt.pop %v954
      %v1259 = vmul.f32 %v1258, %v954
      %v1260 = vmul.f32 %v1259, %v1258
      %v1261 = vmul.f32 0.5, %v1260
      %v1262 = vsub.f32 1.5, %v1261
      %v1263 = vmul.f32 %v1258, %v1262
      %vm1264 = vweird.f32 %v954
      %vm1265 = vweird.f32 %v1258
      %vm1266 = vmor %vm1264, %vm1265
      %v1267 = vsel %vm1266, %v1258, %v1263
      %v1268 = vrsqrt.pop %v955
      %v1269 = vmul.f32 %v1268, %v955
      %v1270 = vmul.f32 %v1269, %v1268
      %v1271 = vmul.f32 0.5, %v1270
      %v1272 = vsub.f32 1.5, %v1271
      %v1273 = vmul.f32 %v1268, %v1272
      %vm1274 = vweird.f32 %v955
      %vm1275 = vweird.f32 %v1268
      %vm1276 = vmor %vm1274, %vm1275
      %v1277 = vsel %vm1276, %v1268, %v1273
      %v1278 = vrsqrt.pop %v956
      %v1279 = vmul.f32 %v1278, %v956
      %v1280 = vmul.f32 %v1279, %v1278
      %v1281 = vmul.f32 0.5, %v1280
      %v1282 = vsub.f32 1.5, %v1281
      %v1283 = vmul.f32 %v1278, %v1282
      %vm1284 = vweird.f32 %v956
      %vm1285 = vweird.f32 %v1278
      %vm1286 = vmor %vm1284, %vm1285
      %v1287 = vsel %vm1286, %v1278, %v1283
      %v1288 = vrsqrt.pop %v957
      %v1289 = vmul.f32 %v1288, %v957
      %v1290 = vmul.f32 %v1289, %v1288
      %v1291 = vmul.f32 0.5, %v1290
      %v1292 = vsub.f32 1.5, %v1291
      %v1293 = vmul.f32 %v1288, %v1292
      %vm1294 = vweird.f32 %v957
      %vm1295 = vweird.f32 %v1288
      %vm1296 = vmor %vm1294, %vm1295
      %v1297 = vsel %vm1296, %v1288, %v1293
      %v1298 = vmul.f32 %v720, %v967
      %v1299 = vmul.f32 %v721, %v977
      %v1300 = vmul.f32 %v722, %v987
      %v1301 = vmul.f32 %v723, %v997
      %v1302 = vmul.f32 %v724, %v1007
      %v1303 = vmul.f32 %v725, %v1017
      %v1304 = vmul.f32 %v726, %v1027
      %v1305 = vmul.f32 %v727, %v1037
      %v1306 = vmul.f32 %v728, %v1047
      %v1307 = vmul.f32 %v729, %v1057
      %v1308 = vmul.f32 %v730, %v1067
      %v1309 = vmul.f32 %v731, %v1077
      %v1310 = vmul.f32 %v732, %v1087
      %v1311 = vmul.f32 %v733, %v1097
      %v1312 = vmul.f32 %v734, %v1107
      %v1313 = vmul.f32 %v735, %v1117
      %v1314 = vmul.f32 %v736, %v1127
      %v1315 = vmul.f32 %v737, %v1137
      %v1316 = vmul.f32 %v738, %v1147
      %v1317 = vmul.f32 %v739, %v1157
      %v1318 = vmul.f32 %v740, %v1167
      %v1319 = vmul.f32 %v741, %v1177
      %v1320 = vmul.f32 %v742, %v1187
      %v1321 = vmul.f32 %v743, %v1197
      %v1322 = vmul.f32 %v744, %v1207
      %v1323 = vmul.f32 %v745, %v1217
      %v1324 = vmul.f32 %v746, %v1227
      %v1325 = vmul.f32 %v747, %v1237
      %v1326 = vmul.f32 %v748, %v1247
      %v1327 = vmul.f32 %v749, %v1257
      %v1328 = vmul.f32 %v750, %v1267
      %v1329 = vmul.f32 %v751, %v1277
      %v1330 = vmul.f32 %v752, %v1287
      %v1331 = vmul.f32 %v753, %v1297
      %v1333 = vperm.slane %v573, 0
      %v1335 = vmul.f32 %v1298, %v1333
      %v1336 = vmul.f32 %v1299, %v1333
      %v1337 = vmul.f32 %v1300, %v1333
      %v1338 = vmul.f32 %v1301, %v1333
      %v1339 = vmul.f32 %v1302, %v1333
      %v1340 = vmul.f32 %v1303, %v1333
      %v1341 = vmul.f32 %v1304, %v1333
      %v1342 = vmul.f32 %v1305, %v1333
      %v1343 = vmul.f32 %v1306, %v1333
      %v1344 = vmul.f32 %v1307, %v1333
      %v1345 = vmul.f32 %v1308, %v1333
      %v1346 = vmul.f32 %v1309, %v1333
      %v1347 = vmul.f32 %v1310, %v1333
      %v1348 = vmul.f32 %v1311, %v1333
      %v1349 = vmul.f32 %v1312, %v1333
      %v1350 = vmul.f32 %v1313, %v1333
      %v1351 = vmul.f32 %v1314, %v1333
      %v1352 = vmul.f32 %v1315, %v1333
      %v1353 = vmul.f32 %v1316, %v1333
      %v1354 = vmul.f32 %v1317, %v1333
      %v1355 = vmul.f32 %v1318, %v1333
      %v1356 = vmul.f32 %v1319, %v1333
      %v1357 = vmul.f32 %v1320, %v1333
      %v1358 = vmul.f32 %v1321, %v1333
      %v1359 = vmul.f32 %v1322, %v1333
      %v1360 = vmul.f32 %v1323, %v1333
      %v1361 = vmul.f32 %v1324, %v1333
      %v1362 = vmul.f32 %v1325, %v1333
      %v1363 = vmul.f32 %v1326, %v1333
      %v1364 = vmul.f32 %v1327, %v1333
      %v1365 = vmul.f32 %v1328, %v1333
      %v1366 = vmul.f32 %v1329, %v1333
      %v1367 = vmul.f32 %v1330, %v1333
      %v1368 = vmul.f32 %v1331, %v1333
      %v1370 = vperm.slane %v574, 0
      %v1372 = vadd.f32 %v1335, %v1370
      %v1373 = vadd.f32 %v1336, %v1370
      %v1374 = vadd.f32 %v1337, %v1370
      %v1375 = vadd.f32 %v1338, %v1370
      %v1376 = vadd.f32 %v1339, %v1370
      %v1377 = vadd.f32 %v1340, %v1370
      %v1378 = vadd.f32 %v1341, %v1370
      %v1379 = vadd.f32 %v1342, %v1370
      %v1380 = vadd.f32 %v1343, %v1370
      %v1381 = vadd.f32 %v1344, %v1370
      %v1382 = vadd.f32 %v1345, %v1370
      %v1383 = vadd.f32 %v1346, %v1370
      %v1384 = vadd.f32 %v1347, %v1370
      %v1385 = vadd.f32 %v1348, %v1370
      %v1386 = vadd.f32 %v1349, %v1370
      %v1387 = vadd.f32 %v1350, %v1370
      %v1388 = vadd.f32 %v1351, %v1370
      %v1389 = vadd.f32 %v1352, %v1370
      %v1390 = vadd.f32 %v1353, %v1370
      %v1391 = vadd.f32 %v1354, %v1370
      %v1392 = vadd.f32 %v1355, %v1370
      %v1393 = vadd.f32 %v1356, %v1370
      %v1394 = vadd.f32 %v1357, %v1370
      %v1395 = vadd.f32 %v1358, %v1370
      %v1396 = vadd.f32 %v1359, %v1370
      %v1397 = vadd.f32 %v1360, %v1370
      %v1398 = vadd.f32 %v1361, %v1370
      %v1399 = vadd.f32 %v1362, %v1370
      %v1400 = vadd.f32 %v1363, %v1370
      %v1401 = vadd.f32 %v1364, %v1370
      %v1402 = vadd.f32 %v1365, %v1370
      %v1403 = vadd.f32 %v1366, %v1370
      %v1404 = vadd.f32 %v1367, %v1370
      %v1405 = vadd.f32 %v1368, %v1370
      %v1406 = vld [vmem:[%s6] sm:$0x1]
      %v1407 = vld [vmem:[%s7] sm:$0x1]
      %v1408 = vsel %vm575, %v538, 0.0
      %1409 = vadd.xlane.f32.xlu0 %v1408
      %v1410 = vpop.xlane.xlu0 %1409
      %v1411 = vmul.f32 %v1410, %v685
      %v1412 = vsub.f32 %v538, %v1411
      %v1413 = vmul.f32 %v1412, %v1412
      %v1414 = vsel %vm575, %v1413, 0.0
      %1415 = vadd.xlane.f32.xlu0 %v1414
      %v1416 = vpop.xlane.xlu0 %1415
      %v1417 = vmul.f32 %v1416, %v685
      %v1418 = vadd.f32 %v1417, 1e-05
      %v1419 = vrsqrt.pop %v1418
      %v1420 = vmul.f32 %v1419, %v1418
      %v1421 = vmul.f32 %v1420, %v1419
      %v1422 = vmul.f32 0.5, %v1421
      %v1423 = vsub.f32 1.5, %v1422
      %v1424 = vmul.f32 %v1419, %v1423
      %vm1425 = vweird.f32 %v1418
      %vm1426 = vweird.f32 %v1419
      %vm1427 = vmor %vm1425, %vm1426
      %v1428 = vsel %vm1427, %v1419, %v1424
      %v1429 = vmul.f32 %v1412, %v1428
      %v1431 = vperm.slane %v1406, 0
      %v1433 = vmul.f32 %v1429, %v1431
      %v1435 = vperm.slane %v1407, 0
      %v1437 = vadd.f32 %v1433, %v1435
      %v1438 = vpack.c.bf16 %v1373, %v1372
      %v1439 = vpack.c.bf16 %v1375, %v1374
      %v1440 = vpack.c.bf16 %v1377, %v1376
      %v1441 = vpack.c.bf16 %v1379, %v1378
      %v1442 = vpack.c.bf16 %v1381, %v1380
      %v1443 = vpack.c.bf16 %v1383, %v1382
      %v1444 = vpack.c.bf16 %v1385, %v1384
      %v1445 = vpack.c.bf16 %v1387, %v1386
      %v1446 = vpack.c.bf16 %v1389, %v1388
      %v1447 = vpack.c.bf16 %v1391, %v1390
      %v1448 = vpack.c.bf16 %v1393, %v1392
      %v1449 = vpack.c.bf16 %v1395, %v1394
      %v1450 = vpack.c.bf16 %v1397, %v1396
      %v1451 = vpack.c.bf16 %v1399, %v1398
      %v1452 = vpack.c.bf16 %v1401, %v1400
      %v1453 = vpack.c.bf16 %v1403, %v1402
      %v1454 = vpack.c.bf16 %v1405, %v1404
      %v1455 = vpack.c.bf16 %v1437, %v1437
      %v1456 = vld [vmem:[%s8] sm:$0xf]
      %v1457 = vld [vmem:[%s8 + $0x4] sm:$0xf]
      %v1458 = vld [vmem:[%s8 + $0x8] sm:$0xf]
      %v1459 = vld [vmem:[%s8 + $0xc] sm:$0xf]
      %v1460 = vld [vmem:[%s8 + $0x10] sm:$0xf]
      %v1461 = vld [vmem:[%s8 + $0x14] sm:$0xf]
      %v1462 = vld [vmem:[%s8 + $0x18] sm:$0xf]
      %v1463 = vld [vmem:[%s8 + $0x1c] sm:$0xf]
      %v1464 = vld [vmem:[%s9] sm:$0xf]
      %v1465 = vld [vmem:[%s9 + $0x4] sm:$0xf]
      %v1466 = vld [vmem:[%s9 + $0x8] sm:$0xf]
      %v1467 = vld [vmem:[%s9 + $0xc] sm:$0xf]
      %v1468 = vld [vmem:[%s9 + $0x10] sm:$0xf]
      %v1469 = vld [vmem:[%s9 + $0x14] sm:$0xf]
      %v1470 = vld [vmem:[%s9 + $0x18] sm:$0xf]
      %v1471 = vld [vmem:[%s9 + $0x1c] sm:$0xf]
      %v1472 = vld [vmem:[%s10] sm:$0xf]
      %v1473 = vld [vmem:[%s10 + $0x4] sm:$0xf]
      %v1474 = vld [vmem:[%s10 + $0x8] sm:$0xf]
      %v1475 = vld [vmem:[%s10 + $0xc] sm:$0xf]
      %v1476 = vld [vmem:[%s10 + $0x10] sm:$0xf]
      %v1477 = vld [vmem:[%s10 + $0x14] sm:$0xf]
      %v1478 = vld [vmem:[%s10 + $0x18] sm:$0xf]
      %v1479 = vld [vmem:[%s10 + $0x1c] sm:$0xf]
      %v1480 = vld [vmem:[%s11] sm:$0xf]
      %v1481 = vld [vmem:[%s11 + $0x4] sm:$0xf]
      %v1482 = vld [vmem:[%s11 + $0x8] sm:$0xf]
      %v1483 = vld [vmem:[%s11 + $0xc] sm:$0xf]
      %v1484 = vld [vmem:[%s11 + $0x10] sm:$0xf]
      %v1485 = vld [vmem:[%s11 + $0x14] sm:$0xf]
      %v1486 = vld [vmem:[%s11 + $0x18] sm:$0xf]
      %v1487 = vld [vmem:[%s11 + $0x1c] sm:$0xf]
      %v1488 = vld [vmem:[%s11 + $0x20] sm:$0xf]
      %v1489 = vld [vmem:[%s11 + $0x24] sm:$0xf]
      %v1490 = vld [vmem:[%s11 + $0x28] sm:$0xf]
      %v1491 = vld [vmem:[%s11 + $0x2c] sm:$0xf]
      %v1492 = vld [vmem:[%s11 + $0x30] sm:$0xf]
      %v1493 = vld [vmem:[%s11 + $0x34] sm:$0xf]
      %v1494 = vld [vmem:[%s11 + $0x38] sm:$0xf]
      %v1495 = vld [vmem:[%s11 + $0x3c] sm:$0xf]
      %v1504 = vunpack.c.l.b16 %v1456
      %v1505 = vunpack.c.l.b16 %v1457
      %v1506 = vunpack.c.l.b16 %v1458
      %v1507 = vunpack.c.l.b16 %v1459
      %v1508 = vunpack.c.l.b16 %v1460
      %v1509 = vunpack.c.l.b16 %v1461
      %v1510 = vunpack.c.l.b16 %v1462
      %v1511 = vunpack.c.l.b16 %v1463
      %v1512 = vpack.c.b16 %v1505, %v1504
      %v1513 = vpack.c.b16 %v1507, %v1506
      %v1514 = vpack.c.b16 %v1509, %v1508
      %v1515 = vpack.c.b16 %v1511, %v1510
      %v1521 = vsel %vm575, %v1455, 0
      %1523 = vmatpush.bf16.msra.mxu0 0
      %1524 = vmatpush.bf16.msra.mxu0 0
      %1525 = vmatpush.bf16.msra.mxu0 0
      %1526 = vmatpush.bf16.msra.mxu0 0
      %1527 = vmatpush.bf16.msra.mxu0 %v1515
      %1528 = vmatpush.bf16.msra.mxu0 %v1514
      %1529 = vmatpush.bf16.msra.mxu0 %v1513
      %1530 = vmatpush.bf16.msra.mxu0 %v1512
      %1531 = vmatmul.bf16.gmra.mxu0 %v1521
      %v1532 = vpop.f32.mrf.mxu0
      %v1533 = vadd.f32 0.0, %v1532
      %v1534 = vpop.f32.mrf.mxu0
      %1535 = vdwg.mxu0
      %v1544 = vunpack.c.l.b16 %v1464
      %v1545 = vunpack.c.l.b16 %v1465
      %v1546 = vunpack.c.l.b16 %v1466
      %v1547 = vunpack.c.l.b16 %v1467
      %v1548 = vunpack.c.l.b16 %v1468
      %v1549 = vunpack.c.l.b16 %v1469
      %v1550 = vunpack.c.l.b16 %v1470
      %v1551 = vunpack.c.l.b16 %v1471
      %v1552 = vpack.c.b16 %v1545, %v1544
      %v1553 = vpack.c.b16 %v1547, %v1546
      %v1554 = vpack.c.b16 %v1549, %v1548
      %v1555 = vpack.c.b16 %v1551, %v1550
      %v1561 = vsel %vm575, %v1438, 0
      %v1564 = vsel %vm575, %v1439, 0
      %v1567 = vsel %vm575, %v1440, 0
      %v1570 = vsel %vm575, %v1441, 0
      %v1573 = vsel %vm575, %v1442, 0
      %v1576 = vsel %vm575, %v1443, 0
      %v1579 = vsel %vm575, %v1444, 0
      %v1582 = vsel %vm575, %v1445, 0
      %v1585 = vsel %vm575, %v1446, 0
      %v1588 = vsel %vm575, %v1447, 0
      %v1591 = vsel %vm575, %v1448, 0
      %v1594 = vsel %vm575, %v1449, 0
      %v1597 = vsel %vm575, %v1450, 0
      %v1600 = vsel %vm575, %v1451, 0
      %v1603 = vsel %vm575, %v1452, 0
      %v1606 = vsel %vm575, %v1453, 0
      %v1609 = vsel %vm575, %v1454, 0
      %1611 = vmatpush.bf16.msra.mxu0 0
      %1612 = vmatpush.bf16.msra.mxu0 0
      %1613 = vmatpush.bf16.msra.mxu0 0
      %1614 = vmatpush.bf16.msra.mxu0 0
      %1615 = vmatpush.bf16.msra.mxu0 %v1555
      %1616 = vmatpush.bf16.msra.mxu0 %v1554
      %1617 = vmatpush.bf16.msra.mxu0 %v1553
      %1618 = vmatpush.bf16.msra.mxu0 %v1552
      %1619 = vmatmul.bf16.gmra.mxu0 %v1561
      %v1620 = vpop.f32.mrf.mxu0
      %v1621 = vadd.f32 0.0, %v1620
      %v1622 = vpop.f32.mrf.mxu0
      %v1623 = vadd.f32 0.0, %v1622
      %1624 = vmatmul.bf16.gmra.mxu0 %v1564
      %v1625 = vpop.f32.mrf.mxu0
      %v1626 = vadd.f32 0.0, %v1625
      %v1627 = vpop.f32.mrf.mxu0
      %v1628 = vadd.f32 0.0, %v1627
      %1629 = vmatmul.bf16.gmra.mxu0 %v1567
      %v1630 = vpop.f32.mrf.mxu0
      %v1631 = vadd.f32 0.0, %v1630
      %v1632 = vpop.f32.mrf.mxu0
      %v1633 = vadd.f32 0.0, %v1632
      %1634 = vmatmul.bf16.gmra.mxu0 %v1570
      %v1635 = vpop.f32.mrf.mxu0
      %v1636 = vadd.f32 0.0, %v1635
      %v1637 = vpop.f32.mrf.mxu0
      %v1638 = vadd.f32 0.0, %v1637
      %1639 = vmatmul.bf16.gmra.mxu0 %v1573
      %v1640 = vpop.f32.mrf.mxu0
      %v1641 = vadd.f32 0.0, %v1640
      %v1642 = vpop.f32.mrf.mxu0
      %v1643 = vadd.f32 0.0, %v1642
      %1644 = vmatmul.bf16.gmra.mxu0 %v1576
      %v1645 = vpop.f32.mrf.mxu0
      %v1646 = vadd.f32 0.0, %v1645
      %v1647 = vpop.f32.mrf.mxu0
      %v1648 = vadd.f32 0.0, %v1647
      %1649 = vmatmul.bf16.gmra.mxu0 %v1579
      %v1650 = vpop.f32.mrf.mxu0
      %v1651 = vadd.f32 0.0, %v1650
      %v1652 = vpop.f32.mrf.mxu0
      %v1653 = vadd.f32 0.0, %v1652
      %1654 = vmatmul.bf16.gmra.mxu0 %v1582
      %v1655 = vpop.f32.mrf.mxu0
      %v1656 = vadd.f32 0.0, %v1655
      %v1657 = vpop.f32.mrf.mxu0
      %v1658 = vadd.f32 0.0, %v1657
      %1659 = vmatmul.bf16.gmra.mxu0 %v1585
      %v1660 = vpop.f32.mrf.mxu0
      %v1661 = vadd.f32 0.0, %v1660
      %v1662 = vpop.f32.mrf.mxu0
      %v1663 = vadd.f32 0.0, %v1662
      %1664 = vmatmul.bf16.gmra.mxu0 %v1588
      %v1665 = vpop.f32.mrf.mxu0
      %v1666 = vadd.f32 0.0, %v1665
      %v1667 = vpop.f32.mrf.mxu0
      %v1668 = vadd.f32 0.0, %v1667
      %1669 = vmatmul.bf16.gmra.mxu0 %v1591
      %v1670 = vpop.f32.mrf.mxu0
      %v1671 = vadd.f32 0.0, %v1670
      %v1672 = vpop.f32.mrf.mxu0
      %v1673 = vadd.f32 0.0, %v1672
      %1674 = vmatmul.bf16.gmra.mxu0 %v1594
      %v1675 = vpop.f32.mrf.mxu0
      %v1676 = vadd.f32 0.0, %v1675
      %v1677 = vpop.f32.mrf.mxu0
      %v1678 = vadd.f32 0.0, %v1677
      %1679 = vmatmul.bf16.gmra.mxu0 %v1597
      %v1680 = vpop.f32.mrf.mxu0
      %v1681 = vadd.f32 0.0, %v1680
      %v1682 = vpop.f32.mrf.mxu0
      %v1683 = vadd.f32 0.0, %v1682
      %1684 = vmatmul.bf16.gmra.mxu0 %v1600
      %v1685 = vpop.f32.mrf.mxu0
      %v1686 = vadd.f32 0.0, %v1685
      %v1687 = vpop.f32.mrf.mxu0
      %v1688 = vadd.f32 0.0, %v1687
      %1689 = vmatmul.bf16.gmra.mxu0 %v1603
      %v1690 = vpop.f32.mrf.mxu0
      %v1691 = vadd.f32 0.0, %v1690
      %v1692 = vpop.f32.mrf.mxu0
      %v1693 = vadd.f32 0.0, %v1692
      %1694 = vmatmul.bf16.gmra.mxu0 %v1606
      %v1695 = vpop.f32.mrf.mxu0
      %v1696 = vadd.f32 0.0, %v1695
      %v1697 = vpop.f32.mrf.mxu0
      %v1698 = vadd.f32 0.0, %v1697
      %1699 = vmatmul.bf16.gmra.mxu0 %v1609
      %v1700 = vpop.f32.mrf.mxu0
      %v1701 = vadd.f32 0.0, %v1700
      %v1702 = vpop.f32.mrf.mxu0
      %v1703 = vadd.f32 0.0, %v1702
      %1704 = vdwg.mxu0
      %1705 = vmatpush.bf16.msra.mxu0 0
      %1706 = vmatpush.bf16.msra.mxu0 0
      %1707 = vmatpush.bf16.msra.mxu0 0
      %1708 = vmatpush.bf16.msra.mxu0 0
      %1709 = vmatpush.bf16.msra.mxu0 %v1555
      %1710 = vmatpush.bf16.msra.mxu0 %v1554
      %1711 = vmatpush.bf16.msra.mxu0 %v1553
      %1712 = vmatpush.bf16.msra.mxu0 %v1552
      %1713 = vmatmul.bf16.gmra.mxu0 %v1521
      %v1714 = vpop.f32.mrf.mxu0
      %v1715 = vadd.f32 0.0, %v1714
      %v1716 = vpop.f32.mrf.mxu0
      %1717 = vdwg.mxu0
      %v1726 = vunpack.c.l.b16 %v1472
      %v1727 = vunpack.c.l.b16 %v1473
      %v1728 = vunpack.c.l.b16 %v1474
      %v1729 = vunpack.c.l.b16 %v1475
      %v1730 = vunpack.c.l.b16 %v1476
      %v1731 = vunpack.c.l.b16 %v1477
      %v1732 = vunpack.c.l.b16 %v1478
      %v1733 = vunpack.c.l.b16 %v1479
      %v1734 = vpack.c.b16 %v1727, %v1726
      %v1735 = vpack.c.b16 %v1729, %v1728
      %v1736 = vpack.c.b16 %v1731, %v1730
      %v1737 = vpack.c.b16 %v1733, %v1732
      %1742 = vmatpush.bf16.msra.mxu0 0
      %1743 = vmatpush.bf16.msra.mxu0 0
      %1744 = vmatpush.bf16.msra.mxu0 0
      %1745 = vmatpush.bf16.msra.mxu0 0
      %1746 = vmatpush.bf16.msra.mxu0 %v1737
      %1747 = vmatpush.bf16.msra.mxu0 %v1736
      %1748 = vmatpush.bf16.msra.mxu0 %v1735
      %1749 = vmatpush.bf16.msra.mxu0 %v1734
      %1750 = vmatmul.bf16.gmra.mxu0 %v1561
      %v1751 = vpop.f32.mrf.mxu0
      %v1752 = vadd.f32 0.0, %v1751
      %v1753 = vpop.f32.mrf.mxu0
      %v1754 = vadd.f32 0.0, %v1753
      %1755 = vmatmul.bf16.gmra.mxu0 %v1564
      %v1756 = vpop.f32.mrf.mxu0
      %v1757 = vadd.f32 0.0, %v1756
      %v1758 = vpop.f32.mrf.mxu0
      %v1759 = vadd.f32 0.0, %v1758
      %1760 = vmatmul.bf16.gmra.mxu0 %v1567
      %v1761 = vpop.f32.mrf.mxu0
      %v1762 = vadd.f32 0.0, %v1761
      %v1763 = vpop.f32.mrf.mxu0
      %v1764 = vadd.f32 0.0, %v1763
      %1765 = vmatmul.bf16.gmra.mxu0 %v1570
      %v1766 = vpop.f32.mrf.mxu0
      %v1767 = vadd.f32 0.0, %v1766
      %v1768 = vpop.f32.mrf.mxu0
      %v1769 = vadd.f32 0.0, %v1768
      %1770 = vmatmul.bf16.gmra.mxu0 %v1573
      %v1771 = vpop.f32.mrf.mxu0
      %v1772 = vadd.f32 0.0, %v1771
      %v1773 = vpop.f32.mrf.mxu0
      %v1774 = vadd.f32 0.0, %v1773
      %1775 = vmatmul.bf16.gmra.mxu0 %v1576
      %v1776 = vpop.f32.mrf.mxu0
      %v1777 = vadd.f32 0.0, %v1776
      %v1778 = vpop.f32.mrf.mxu0
      %v1779 = vadd.f32 0.0, %v1778
      %1780 = vmatmul.bf16.gmra.mxu0 %v1579
      %v1781 = vpop.f32.mrf.mxu0
      %v1782 = vadd.f32 0.0, %v1781
      %v1783 = vpop.f32.mrf.mxu0
      %v1784 = vadd.f32 0.0, %v1783
      %1785 = vmatmul.bf16.gmra.mxu0 %v1582
      %v1786 = vpop.f32.mrf.mxu0
      %v1787 = vadd.f32 0.0, %v1786
      %v1788 = vpop.f32.mrf.mxu0
      %v1789 = vadd.f32 0.0, %v1788
      %1790 = vmatmul.bf16.gmra.mxu0 %v1585
      %v1791 = vpop.f32.mrf.mxu0
      %v1792 = vadd.f32 0.0, %v1791
      %v1793 = vpop.f32.mrf.mxu0
      %v1794 = vadd.f32 0.0, %v1793
      %1795 = vmatmul.bf16.gmra.mxu0 %v1588
      %v1796 = vpop.f32.mrf.mxu0
      %v1797 = vadd.f32 0.0, %v1796
      %v1798 = vpop.f32.mrf.mxu0
      %v1799 = vadd.f32 0.0, %v1798
      %1800 = vmatmul.bf16.gmra.mxu0 %v1591
      %v1801 = vpop.f32.mrf.mxu0
      %v1802 = vadd.f32 0.0, %v1801
      %v1803 = vpop.f32.mrf.mxu0
      %v1804 = vadd.f32 0.0, %v1803
      %1805 = vmatmul.bf16.gmra.mxu0 %v1594
      %v1806 = vpop.f32.mrf.mxu0
      %v1807 = vadd.f32 0.0, %v1806
      %v1808 = vpop.f32.mrf.mxu0
      %v1809 = vadd.f32 0.0, %v1808
      %1810 = vmatmul.bf16.gmra.mxu0 %v1597
      %v1811 = vpop.f32.mrf.mxu0
      %v1812 = vadd.f32 0.0, %v1811
      %v1813 = vpop.f32.mrf.mxu0
      %v1814 = vadd.f32 0.0, %v1813
      %1815 = vmatmul.bf16.gmra.mxu0 %v1600
      %v1816 = vpop.f32.mrf.mxu0
      %v1817 = vadd.f32 0.0, %v1816
      %v1818 = vpop.f32.mrf.mxu0
      %v1819 = vadd.f32 0.0, %v1818
      %1820 = vmatmul.bf16.gmra.mxu0 %v1603
      %v1821 = vpop.f32.mrf.mxu0
      %v1822 = vadd.f32 0.0, %v1821
      %v1823 = vpop.f32.mrf.mxu0
      %v1824 = vadd.f32 0.0, %v1823
      %1825 = vmatmul.bf16.gmra.mxu0 %v1606
      %v1826 = vpop.f32.mrf.mxu0
      %v1827 = vadd.f32 0.0, %v1826
      %v1828 = vpop.f32.mrf.mxu0
      %v1829 = vadd.f32 0.0, %v1828
      %1830 = vmatmul.bf16.gmra.mxu0 %v1609
      %v1831 = vpop.f32.mrf.mxu0
      %v1832 = vadd.f32 0.0, %v1831
      %v1833 = vpop.f32.mrf.mxu0
      %v1834 = vadd.f32 0.0, %v1833
      %1835 = vdwg.mxu0
      %v1836 = vpack.c.bf16 %v1752, %v1752
      %v1837 = vpack.c.bf16 %v1754, %v1754
      %v1838 = vpack.c.bf16 %v1757, %v1757
      %v1839 = vpack.c.bf16 %v1759, %v1759
      %v1840 = vpack.c.bf16 %v1762, %v1762
      %v1841 = vpack.c.bf16 %v1764, %v1764
      %v1842 = vpack.c.bf16 %v1767, %v1767
      %v1843 = vpack.c.bf16 %v1769, %v1769
      %v1844 = vpack.c.bf16 %v1772, %v1772
      %v1845 = vpack.c.bf16 %v1774, %v1774
      %v1846 = vpack.c.bf16 %v1777, %v1777
      %v1847 = vpack.c.bf16 %v1779, %v1779
      %v1848 = vpack.c.bf16 %v1782, %v1782
      %v1849 = vpack.c.bf16 %v1784, %v1784
      %v1850 = vpack.c.bf16 %v1787, %v1787
      %v1851 = vpack.c.bf16 %v1789, %v1789
      %v1852 = vpack.c.bf16 %v1792, %v1792
      %v1853 = vpack.c.bf16 %v1794, %v1794
      %v1854 = vpack.c.bf16 %v1797, %v1797
      %v1855 = vpack.c.bf16 %v1799, %v1799
      %v1856 = vpack.c.bf16 %v1802, %v1802
      %v1857 = vpack.c.bf16 %v1804, %v1804
      %v1858 = vpack.c.bf16 %v1807, %v1807
      %v1859 = vpack.c.bf16 %v1809, %v1809
      %v1860 = vpack.c.bf16 %v1812, %v1812
      %v1861 = vpack.c.bf16 %v1814, %v1814
      %v1862 = vpack.c.bf16 %v1817, %v1817
      %v1863 = vpack.c.bf16 %v1819, %v1819
      %v1864 = vpack.c.bf16 %v1822, %v1822
      %v1865 = vpack.c.bf16 %v1824, %v1824
      %v1866 = vpack.c.bf16 %v1827, %v1827
      %v1867 = vpack.c.bf16 %v1829, %v1829
      %v1868 = vpack.c.bf16 %v1832, %v1832
      %v1869 = vpack.c.bf16 %v1834, %v1834
      %1870 = vmatpush.bf16.msra.mxu0 0
      %1871 = vmatpush.bf16.msra.mxu0 0
      %1872 = vmatpush.bf16.msra.mxu0 0
      %1873 = vmatpush.bf16.msra.mxu0 0
      %1874 = vmatpush.bf16.msra.mxu0 %v1737
      %1875 = vmatpush.bf16.msra.mxu0 %v1736
      %1876 = vmatpush.bf16.msra.mxu0 %v1735
      %1877 = vmatpush.bf16.msra.mxu0 %v1734
      %1878 = vmatmul.bf16.gmra.mxu0 %v1521
      %v1879 = vpop.f32.mrf.mxu0
      %v1880 = vadd.f32 0.0, %v1879
      %v1881 = vpop.f32.mrf.mxu0
      %1882 = vdwg.mxu0
      %v1883 = vpack.c.bf16 %v1880, %v1880
      %v1884 = vld [vmem:[%s2] sm:$0xff]
      %v1885 = vld [vmem:[%s2 + $0x8] sm:$0xff]
      %v1886 = vld [vmem:[%s2 + $0x10] sm:$0xff]
      %v1887 = vld [vmem:[%s3] sm:$0xff]
      %vm1888 = vcmask 130048
      %v1890 = vsel %vm1888, %v1533, 0
      %v1893 = vsel %vm1888, %v1621, 0
      %v1896 = vsel %vm1888, %v1623, 0
      %v1899 = vsel %vm1888, %v1626, 0
      %v1902 = vsel %vm1888, %v1628, 0
      %v1905 = vsel %vm1888, %v1631, 0
      %v1908 = vsel %vm1888, %v1633, 0
      %v1911 = vsel %vm1888, %v1636, 0
      %v1914 = vsel %vm1888, %v1638, 0
      %v1917 = vsel %vm1888, %v1641, 0
      %v1920 = vsel %vm1888, %v1643, 0
      %v1923 = vsel %vm1888, %v1646, 0
      %v1926 = vsel %vm1888, %v1648, 0
      %v1929 = vsel %vm1888, %v1651, 0
      %v1932 = vsel %vm1888, %v1653, 0
      %v1935 = vsel %vm1888, %v1656, 0
      %v1938 = vsel %vm1888, %v1658, 0
      %v1941 = vsel %vm1888, %v1661, 0
      %v1944 = vsel %vm1888, %v1663, 0
      %v1947 = vsel %vm1888, %v1666, 0
      %v1950 = vsel %vm1888, %v1668, 0
      %v1953 = vsel %vm1888, %v1671, 0
      %v1956 = vsel %vm1888, %v1673, 0
      %v1959 = vsel %vm1888, %v1676, 0
      %v1962 = vsel %vm1888, %v1678, 0
      %v1965 = vsel %vm1888, %v1681, 0
      %v1968 = vsel %vm1888, %v1683, 0
      %v1971 = vsel %vm1888, %v1686, 0
      %v1974 = vsel %vm1888, %v1688, 0
      %v1977 = vsel %vm1888, %v1691, 0
      %v1980 = vsel %vm1888, %v1693, 0
      %v1983 = vsel %vm1888, %v1696, 0
      %v1986 = vsel %vm1888, %v1698, 0
      %v1989 = vsel %vm1888, %v1701, 0
      %v1992 = vsel %vm1888, %v1703, 0
      %1994 = vmatpush.xpose.msra.mxu0 %v1938
      %1995 = vmatpush.xpose.msra.mxu0 %v1935
      %1996 = vmatpush.xpose.msra.mxu0 %v1932
      %1997 = vmatpush.xpose.msra.mxu0 %v1929
      %1998 = vmatpush.xpose.msra.mxu0 %v1926
      %1999 = vmatpush.xpose.msra.mxu0 %v1923
      %2000 = vmatpush.xpose.msra.mxu0 %v1920
      %2001 = vmatpush.xpose.msra.mxu0 %v1917
      %2002 = vmatpush.xpose.msra.mxu0 %v1914
      %2003 = vmatpush.xpose.msra.mxu0 %v1911
      %2004 = vmatpush.xpose.msra.mxu0 %v1908
      %2005 = vmatpush.xpose.msra.mxu0 %v1905
      %2006 = vmatpush.xpose.msra.mxu0 %v1902
      %2007 = vmatpush.xpose.msra.mxu0 %v1899
      %2008 = vmatpush.xpose.msra.mxu0 %v1896
      %2009 = vmatpush.xpose.msra.mxu0 %v1893
      %2010 = vmatmul.f32.gmra.mxu0 %v1890
      %v2011 = vpop.f32.mrf.mxu0
      %v2012 = vadd.f32 0.0, %v2011
      %2013 = vdwg.mxu0
      %2014 = vmatpush.xpose.msra.mxu0 %v1986
      %2015 = vmatpush.xpose.msra.mxu0 %v1983
      %2016 = vmatpush.xpose.msra.mxu0 %v1980
      %2017 = vmatpush.xpose.msra.mxu0 %v1977
      %2018 = vmatpush.xpose.msra.mxu0 %v1974
      %2019 = vmatpush.xpose.msra.mxu0 %v1971
      %2020 = vmatpush.xpose.msra.mxu0 %v1968
      %2021 = vmatpush.xpose.msra.mxu0 %v1965
      %2022 = vmatpush.xpose.msra.mxu0 %v1962
      %2023 = vmatpush.xpose.msra.mxu0 %v1959
      %2024 = vmatpush.xpose.msra.mxu0 %v1956
      %2025 = vmatpush.xpose.msra.mxu0 %v1953
      %2026 = vmatpush.xpose.msra.mxu0 %v1950
      %2027 = vmatpush.xpose.msra.mxu0 %v1947
      %2028 = vmatpush.xpose.msra.mxu0 %v1944
      %2029 = vmatpush.xpose.msra.mxu0 %v1941
      %2030 = vmatmul.f32.gmra.mxu0 %v1890
      %v2031 = vpop.f32.mrf.mxu0
      %v2032 = vadd.f32 0.0, %v2031
      %2033 = vdwg.mxu0
      %2034 = vmatpush.xpose.msra.mxu0 0.0
      %2035 = vmatpush.xpose.msra.mxu0 0.0
      %2036 = vmatpush.xpose.msra.mxu0 0.0
      %2037 = vmatpush.xpose.msra.mxu0 0.0
      %2038 = vmatpush.xpose.msra.mxu0 0.0
      %2039 = vmatpush.xpose.msra.mxu0 0.0
      %2040 = vmatpush.xpose.msra.mxu0 0.0
      %2041 = vmatpush.xpose.msra.mxu0 0.0
      %2042 = vmatpush.xpose.msra.mxu0 0.0
      %2043 = vmatpush.xpose.msra.mxu0 0.0
      %2044 = vmatpush.xpose.msra.mxu0 0.0
      %2045 = vmatpush.xpose.msra.mxu0 0.0
      %2046 = vmatpush.xpose.msra.mxu0 0.0
      %2047 = vmatpush.xpose.msra.mxu0 0.0
      %2048 = vmatpush.xpose.msra.mxu0 %v1992
      %2049 = vmatpush.xpose.msra.mxu0 %v1989
      %2050 = vmatmul.f32.gmra.mxu0 %v1890
      %v2051 = vpop.f32.mrf.mxu0
      %v2052 = vadd.f32 0.0, %v2051
      %2053 = vdwg.mxu0
      %v2054 = vmul.f32 %v2012, 0.25
      %v2055 = vmul.f32 %v2032, 0.25
      %v2056 = vmul.f32 %v2052, 0.25
      %v2058 = vsel %vm1888, %v1715, 0
      %2060 = vmatpush.xpose.msra.mxu0 0.0
      %2061 = vmatpush.xpose.msra.mxu0 0.0
      %2062 = vmatpush.xpose.msra.mxu0 0.0
      %2063 = vmatpush.xpose.msra.mxu0 0.0
      %2064 = vmatpush.xpose.msra.mxu0 0.0
      %2065 = vmatpush.xpose.msra.mxu0 0.0
      %2066 = vmatpush.xpose.msra.mxu0 0.0
      %2067 = vmatpush.xpose.msra.mxu0 0.0
      %2068 = vmatpush.xpose.msra.mxu0 0.0
      %2069 = vmatpush.xpose.msra.mxu0 0.0
      %2070 = vmatpush.xpose.msra.mxu0 0.0
      %2071 = vmatpush.xpose.msra.mxu0 0.0
      %2072 = vmatpush.xpose.msra.mxu0 0.0
      %2073 = vmatpush.xpose.msra.mxu0 0.0
      %2074 = vmatpush.xpose.msra.mxu0 0.0
      %2075 = vmatpush.xpose.msra.mxu0 %v2058
      %2076 = vmatmul.f32.gmra.mxu0 %v1890
      %v2077 = vpop.f32.mrf.mxu0
      %v2078 = vadd.f32 0.0, %v2077
      %2079 = vdwg.mxu0
      %v2080 = vmul.f32 %v2078, 0.25
      %vm2081 = vcmask 72704
      %v2082 = vsel %vm2081, %v2056, -inf
      %v2083 = vmax.f32 %v2054, %v2055
      %v2084 = vmax.f32 %v2083, %v2082
      %2085 = vmax.xlane.f32.xlu0 %v2084
      %v2086 = vpop.xlane.xlu0 %2085
      %vm2087 = vcmask 64512
      %v2088 = vsel %vm2087, %v2080, -inf
      %2089 = vmax.xlane.f32.xlu0 %v2088
      %v2090 = vpop.xlane.xlu0 %2089
      %v2091 = vmax.f32 %v2086, %v2090
      %v2092 = vsub.f32 %v2054, %v2091
      %v2093 = vsub.f32 %v2055, %v2091
      %v2094 = vsub.f32 %v2056, %v2091
      %v2095 = vmul.f32 %v2092, 1.442695
      %v2096 = vpow.pop %v2095
      %v2097 = vmul.f32 %v2093, 1.442695
      %v2098 = vpow.pop %v2097
      %v2099 = vmul.f32 %v2094, 1.442695
      %v2100 = vpow.pop %v2099
      %v2101 = vsub.f32 %v2080, %v2091
      %v2102 = vmul.f32 %v2101, 1.442695
      %v2103 = vpow.pop %v2102
      %v2104 = vadd.f32 %v2096, %v2098
      %v2105 = vsel %vm2081, %v2100, 0.0
      %v2106 = vadd.f32 %v2104, %v2105
      %2107 = vadd.xlane.f32.xlu0 %v2106
      %v2108 = vpop.xlane.xlu0 %2107
      %v2109 = vsel %vm2087, %v2103, 0.0
      %2110 = vadd.xlane.f32.xlu0 %v2109
      %v2111 = vpop.xlane.xlu0 %2110
      %v2112 = vadd.f32 %v2108, %v2111
      %v2113 = vrcp.pop %v2112
      %v2114 = vmul.f32 %v2096, %v2113
      %v2115 = vmul.f32 %v2098, %v2113
      %v2116 = vmul.f32 %v2100, %v2113
      %v2117 = vperm.slane %v1884, 0
      %v2118 = vperm.slane %v1885, 0
      %v2119 = vperm.slane %v1886, 0
      %v2120 = vmul.f32 %v2114, %v2117
      %v2121 = vmul.f32 %v2115, %v2118
      %v2122 = vmul.f32 %v2116, %v2119
      %v2123 = vmul.f32 %v2103, %v2113
      %v2124 = vperm.slane %v1887, 0
      %v2125 = vmul.f32 %v2123, %v2124
      %v2126 = vpack.c.bf16 %v2120, %v2120
      %v2127 = vpack.c.bf16 %v2121, %v2121
      %v2128 = vpack.c.bf16 %v2122, %v2122
      %v2129 = vpack.c.bf16 %v2125, %v2125
      %v2131 = vsel %vm2087, %v2129, 0
      %vm2133 = vcmask 1043456
      %v2135 = vsel %vm2133, %v1883, 0
      %2137 = vmatpush.bf16.msra.mxu0 0
      %2138 = vmatpush.bf16.msra.mxu0 0
      %2139 = vmatpush.bf16.msra.mxu0 0
      %2140 = vmatpush.bf16.msra.mxu0 0
      %2141 = vmatpush.bf16.msra.mxu0 0
      %2142 = vmatpush.bf16.msra.mxu0 0
      %2143 = vmatpush.bf16.msra.mxu0 0
      %2144 = vmatpush.bf16.msra.mxu0 %v2135
      %2145 = vmatmul.bf16.gmra.mxu0 %v2131
      %v2146 = vpop.f32.mrf.mxu0
      %v2147 = vadd.f32 0.0, %v2146
      %v2148 = vpop.f32.mrf.mxu0
      %2149 = vdwg.mxu0
      %v2184 = vunpack.c.l.b16 %v1836
      %v2185 = vunpack.c.l.b16 %v1837
      %v2186 = vunpack.c.l.b16 %v1838
      %v2187 = vunpack.c.l.b16 %v1839
      %v2188 = vunpack.c.l.b16 %v1840
      %v2189 = vunpack.c.l.b16 %v1841
      %v2190 = vunpack.c.l.b16 %v1842
      %v2191 = vunpack.c.l.b16 %v1843
      %v2192 = vunpack.c.l.b16 %v1844
      %v2193 = vunpack.c.l.b16 %v1845
      %v2194 = vunpack.c.l.b16 %v1846
      %v2195 = vunpack.c.l.b16 %v1847
      %v2196 = vunpack.c.l.b16 %v1848
      %v2197 = vunpack.c.l.b16 %v1849
      %v2198 = vunpack.c.l.b16 %v1850
      %v2199 = vunpack.c.l.b16 %v1851
      %v2200 = vunpack.c.l.b16 %v1852
      %v2201 = vunpack.c.l.b16 %v1853
      %v2202 = vunpack.c.l.b16 %v1854
      %v2203 = vunpack.c.l.b16 %v1855
      %v2204 = vunpack.c.l.b16 %v1856
      %v2205 = vunpack.c.l.b16 %v1857
      %v2206 = vunpack.c.l.b16 %v1858
      %v2207 = vunpack.c.l.b16 %v1859
      %v2208 = vunpack.c.l.b16 %v1860
      %v2209 = vunpack.c.l.b16 %v1861
      %v2210 = vunpack.c.l.b16 %v1862
      %v2211 = vunpack.c.l.b16 %v1863
      %v2212 = vunpack.c.l.b16 %v1864
      %v2213 = vunpack.c.l.b16 %v1865
      %v2214 = vunpack.c.l.b16 %v1866
      %v2215 = vunpack.c.l.b16 %v1867
      %v2216 = vunpack.c.l.b16 %v1868
      %v2217 = vunpack.c.l.b16 %v1869
      %v2218 = vpack.c.b16 %v2185, %v2184
      %v2219 = vpack.c.b16 %v2187, %v2186
      %v2220 = vpack.c.b16 %v2189, %v2188
      %v2221 = vpack.c.b16 %v2191, %v2190
      %v2222 = vpack.c.b16 %v2193, %v2192
      %v2223 = vpack.c.b16 %v2195, %v2194
      %v2224 = vpack.c.b16 %v2197, %v2196
      %v2225 = vpack.c.b16 %v2199, %v2198
      %v2226 = vpack.c.b16 %v2201, %v2200
      %v2227 = vpack.c.b16 %v2203, %v2202
      %v2228 = vpack.c.b16 %v2205, %v2204
      %v2229 = vpack.c.b16 %v2207, %v2206
      %v2230 = vpack.c.b16 %v2209, %v2208
      %v2231 = vpack.c.b16 %v2211, %v2210
      %v2232 = vpack.c.b16 %v2213, %v2212
      %v2233 = vpack.c.b16 %v2215, %v2214
      %v2234 = vpack.c.b16 %v2217, %v2216
      %v2252 = vsel %vm2081, %v2128, 0
      %vm2254 = vcmask 1044480
      %v2255 = vsel %vm2133, 4294967295, 65535
      %v2256 = vsel %vm2254, %v2255, 0
      %v2258 = vand.u32 %v2234, %v2256
      %2260 = vmatpush.bf16.msra.mxu0 %v2225
      %2261 = vmatpush.bf16.msra.mxu0 %v2224
      %2262 = vmatpush.bf16.msra.mxu0 %v2223
      %2263 = vmatpush.bf16.msra.mxu0 %v2222
      %2264 = vmatpush.bf16.msra.mxu0 %v2221
      %2265 = vmatpush.bf16.msra.mxu0 %v2220
      %2266 = vmatpush.bf16.msra.mxu0 %v2219
      %2267 = vmatpush.bf16.msra.mxu0 %v2218
      %2268 = vmatmul.bf16.gmra.mxu0 %v2126
      %v2269 = vpop.f32.mrf.mxu0
      %v2270 = vadd.f32 %v2147, %v2269
      %v2271 = vpop.f32.mrf.mxu0
      %2272 = vdwg.mxu0
      %2273 = vmatpush.bf16.msra.mxu0 %v2233
      %2274 = vmatpush.bf16.msra.mxu0 %v2232
      %2275 = vmatpush.bf16.msra.mxu0 %v2231
      %2276 = vmatpush.bf16.msra.mxu0 %v2230
      %2277 = vmatpush.bf16.msra.mxu0 %v2229
      %2278 = vmatpush.bf16.msra.mxu0 %v2228
      %2279 = vmatpush.bf16.msra.mxu0 %v2227
      %2280 = vmatpush.bf16.msra.mxu0 %v2226
      %2281 = vmatmul.bf16.gmra.mxu0 %v2127
      %v2282 = vpop.f32.mrf.mxu0
      %v2283 = vadd.f32 %v2270, %v2282
      %v2284 = vpop.f32.mrf.mxu0
      %2285 = vdwg.mxu0
      %2286 = vmatpush.bf16.msra.mxu0 0
      %2287 = vmatpush.bf16.msra.mxu0 0
      %2288 = vmatpush.bf16.msra.mxu0 0
      %2289 = vmatpush.bf16.msra.mxu0 0
      %2290 = vmatpush.bf16.msra.mxu0 0
      %2291 = vmatpush.bf16.msra.mxu0 0
      %2292 = vmatpush.bf16.msra.mxu0 0
      %2293 = vmatpush.bf16.msra.mxu0 %v2258
      %2294 = vmatmul.bf16.gmra.mxu0 %v2252
      %v2295 = vpop.f32.mrf.mxu0
      %v2296 = vadd.f32 %v2283, %v2295
      %v2297 = vpop.f32.mrf.mxu0
      %2298 = vdwg.mxu0
      %v2299 = vpack.c.bf16 %v2296, %v2296
      %2300 = vrot.lane.b32.xlu0 %v1533, 112
      %v2301 = vpop.permute.xlu0 %2300
      %2302 = vrot.lane.b32.xlu0 %v1621, 112
      %v2303 = vpop.permute.xlu0 %2302
      %2304 = vrot.lane.b32.xlu0 %v1623, 112
      %v2305 = vpop.permute.xlu0 %2304
      %2306 = vrot.lane.b32.xlu0 %v1626, 112
      %v2307 = vpop.permute.xlu0 %2306
      %2308 = vrot.lane.b32.xlu0 %v1628, 112
      %v2309 = vpop.permute.xlu0 %2308
      %2310 = vrot.lane.b32.xlu0 %v1631, 112
      %v2311 = vpop.permute.xlu0 %2310
      %2312 = vrot.lane.b32.xlu0 %v1633, 112
      %v2313 = vpop.permute.xlu0 %2312
      %2314 = vrot.lane.b32.xlu0 %v1636, 112
      %v2315 = vpop.permute.xlu0 %2314
      %2316 = vrot.lane.b32.xlu0 %v1638, 112
      %v2317 = vpop.permute.xlu0 %2316
      %2318 = vrot.lane.b32.xlu0 %v1641, 112
      %v2319 = vpop.permute.xlu0 %2318
      %2320 = vrot.lane.b32.xlu0 %v1643, 112
      %v2321 = vpop.permute.xlu0 %2320
      %2322 = vrot.lane.b32.xlu0 %v1646, 112
      %v2323 = vpop.permute.xlu0 %2322
      %2324 = vrot.lane.b32.xlu0 %v1648, 112
      %v2325 = vpop.permute.xlu0 %2324
      %2326 = vrot.lane.b32.xlu0 %v1651, 112
      %v2327 = vpop.permute.xlu0 %2326
      %2328 = vrot.lane.b32.xlu0 %v1653, 112
      %v2329 = vpop.permute.xlu0 %2328
      %2330 = vrot.lane.b32.xlu0 %v1656, 112
      %v2331 = vpop.permute.xlu0 %2330
      %2332 = vrot.lane.b32.xlu0 %v1658, 112
      %v2333 = vpop.permute.xlu0 %2332
      %2334 = vrot.lane.b32.xlu0 %v1661, 112
      %v2335 = vpop.permute.xlu0 %2334
      %2336 = vrot.lane.b32.xlu0 %v1663, 112
      %v2337 = vpop.permute.xlu0 %2336
      %2338 = vrot.lane.b32.xlu0 %v1666, 112
      %v2339 = vpop.permute.xlu0 %2338
      %2340 = vrot.lane.b32.xlu0 %v1668, 112
      %v2341 = vpop.permute.xlu0 %2340
      %2342 = vrot.lane.b32.xlu0 %v1671, 112
      %v2343 = vpop.permute.xlu0 %2342
      %2344 = vrot.lane.b32.xlu0 %v1673, 112
      %v2345 = vpop.permute.xlu0 %2344
      %2346 = vrot.lane.b32.xlu0 %v1676, 112
      %v2347 = vpop.permute.xlu0 %2346
      %2348 = vrot.lane.b32.xlu0 %v1678, 112
      %v2349 = vpop.permute.xlu0 %2348
      %2350 = vrot.lane.b32.xlu0 %v1681, 112
      %v2351 = vpop.permute.xlu0 %2350
      %2352 = vrot.lane.b32.xlu0 %v1683, 112
      %v2353 = vpop.permute.xlu0 %2352
      %2354 = vrot.lane.b32.xlu0 %v1686, 112
      %v2355 = vpop.permute.xlu0 %2354
      %2356 = vrot.lane.b32.xlu0 %v1688, 112
      %v2357 = vpop.permute.xlu0 %2356
      %2358 = vrot.lane.b32.xlu0 %v1691, 112
      %v2359 = vpop.permute.xlu0 %2358
      %2360 = vrot.lane.b32.xlu0 %v1693, 112
      %v2361 = vpop.permute.xlu0 %2360
      %2362 = vrot.lane.b32.xlu0 %v1696, 112
      %v2363 = vpop.permute.xlu0 %2362
      %2364 = vrot.lane.b32.xlu0 %v1698, 112
      %v2365 = vpop.permute.xlu0 %2364
      %2366 = vrot.lane.b32.xlu0 %v1701, 112
      %v2367 = vpop.permute.xlu0 %2366
      %2368 = vrot.lane.b32.xlu0 %v1703, 112
      %v2369 = vpop.permute.xlu0 %2368
      %v2370 = vsel %vm1888, %v2301, 0
      %v2372 = vsel %vm1888, %v2303, 0
      %v2374 = vsel %vm1888, %v2305, 0
      %v2376 = vsel %vm1888, %v2307, 0
      %v2378 = vsel %vm1888, %v2309, 0
      %v2380 = vsel %vm1888, %v2311, 0
      %v2382 = vsel %vm1888, %v2313, 0
      %v2384 = vsel %vm1888, %v2315, 0
      %v2386 = vsel %vm1888, %v2317, 0
      %v2388 = vsel %vm1888, %v2319, 0
      %v2390 = vsel %vm1888, %v2321, 0
      %v2392 = vsel %vm1888, %v2323, 0
      %v2394 = vsel %vm1888, %v2325, 0
      %v2396 = vsel %vm1888, %v2327, 0
      %v2398 = vsel %vm1888, %v2329, 0
      %v2400 = vsel %vm1888, %v2331, 0
      %v2402 = vsel %vm1888, %v2333, 0
      %v2404 = vsel %vm1888, %v2335, 0
      %v2406 = vsel %vm1888, %v2337, 0
      %v2408 = vsel %vm1888, %v2339, 0
      %v2410 = vsel %vm1888, %v2341, 0
      %v2412 = vsel %vm1888, %v2343, 0
      %v2414 = vsel %vm1888, %v2345, 0
      %v2416 = vsel %vm1888, %v2347, 0
      %v2418 = vsel %vm1888, %v2349, 0
      %v2420 = vsel %vm1888, %v2351, 0
      %v2422 = vsel %vm1888, %v2353, 0
      %v2424 = vsel %vm1888, %v2355, 0
      %v2426 = vsel %vm1888, %v2357, 0
      %v2428 = vsel %vm1888, %v2359, 0
      %v2430 = vsel %vm1888, %v2361, 0
      %v2432 = vsel %vm1888, %v2363, 0
      %v2434 = vsel %vm1888, %v2365, 0
      %v2436 = vsel %vm1888, %v2367, 0
      %v2438 = vsel %vm1888, %v2369, 0
      %2440 = vmatpush.xpose.msra.mxu0 %v2402
      %2441 = vmatpush.xpose.msra.mxu0 %v2400
      %2442 = vmatpush.xpose.msra.mxu0 %v2398
      %2443 = vmatpush.xpose.msra.mxu0 %v2396
      %2444 = vmatpush.xpose.msra.mxu0 %v2394
      %2445 = vmatpush.xpose.msra.mxu0 %v2392
      %2446 = vmatpush.xpose.msra.mxu0 %v2390
      %2447 = vmatpush.xpose.msra.mxu0 %v2388
      %2448 = vmatpush.xpose.msra.mxu0 %v2386
      %2449 = vmatpush.xpose.msra.mxu0 %v2384
      %2450 = vmatpush.xpose.msra.mxu0 %v2382
      %2451 = vmatpush.xpose.msra.mxu0 %v2380
      %2452 = vmatpush.xpose.msra.mxu0 %v2378
      %2453 = vmatpush.xpose.msra.mxu0 %v2376
      %2454 = vmatpush.xpose.msra.mxu0 %v2374
      %2455 = vmatpush.xpose.msra.mxu0 %v2372
      %2456 = vmatmul.f32.gmra.mxu0 %v2370
      %v2457 = vpop.f32.mrf.mxu0
      %v2458 = vadd.f32 0.0, %v2457
      %2459 = vdwg.mxu0
      %2460 = vmatpush.xpose.msra.mxu0 %v2434
      %2461 = vmatpush.xpose.msra.mxu0 %v2432
      %2462 = vmatpush.xpose.msra.mxu0 %v2430
      %2463 = vmatpush.xpose.msra.mxu0 %v2428
      %2464 = vmatpush.xpose.msra.mxu0 %v2426
      %2465 = vmatpush.xpose.msra.mxu0 %v2424
      %2466 = vmatpush.xpose.msra.mxu0 %v2422
      %2467 = vmatpush.xpose.msra.mxu0 %v2420
      %2468 = vmatpush.xpose.msra.mxu0 %v2418
      %2469 = vmatpush.xpose.msra.mxu0 %v2416
      %2470 = vmatpush.xpose.msra.mxu0 %v2414
      %2471 = vmatpush.xpose.msra.mxu0 %v2412
      %2472 = vmatpush.xpose.msra.mxu0 %v2410
      %2473 = vmatpush.xpose.msra.mxu0 %v2408
      %2474 = vmatpush.xpose.msra.mxu0 %v2406
      %2475 = vmatpush.xpose.msra.mxu0 %v2404
      %2476 = vmatmul.f32.gmra.mxu0 %v2370
      %v2477 = vpop.f32.mrf.mxu0
      %v2478 = vadd.f32 0.0, %v2477
      %2479 = vdwg.mxu0
      %2480 = vmatpush.xpose.msra.mxu0 0.0
      %2481 = vmatpush.xpose.msra.mxu0 0.0
      %2482 = vmatpush.xpose.msra.mxu0 0.0
      %2483 = vmatpush.xpose.msra.mxu0 0.0
      %2484 = vmatpush.xpose.msra.mxu0 0.0
      %2485 = vmatpush.xpose.msra.mxu0 0.0
      %2486 = vmatpush.xpose.msra.mxu0 0.0
      %2487 = vmatpush.xpose.msra.mxu0 0.0
      %2488 = vmatpush.xpose.msra.mxu0 0.0
      %2489 = vmatpush.xpose.msra.mxu0 0.0
      %2490 = vmatpush.xpose.msra.mxu0 0.0
      %2491 = vmatpush.xpose.msra.mxu0 0.0
      %2492 = vmatpush.xpose.msra.mxu0 0.0
      %2493 = vmatpush.xpose.msra.mxu0 0.0
      %2494 = vmatpush.xpose.msra.mxu0 %v2438
      %2495 = vmatpush.xpose.msra.mxu0 %v2436
      %2496 = vmatmul.f32.gmra.mxu0 %v2370
      %v2497 = vpop.f32.mrf.mxu0
      %v2498 = vadd.f32 0.0, %v2497
      %2499 = vdwg.mxu0
      %v2500 = vmul.f32 %v2458, 0.25
      %v2501 = vmul.f32 %v2478, 0.25
      %v2502 = vmul.f32 %v2498, 0.25
      %2503 = vrot.lane.b32.xlu0 %v1715, 112
      %v2504 = vpop.permute.xlu0 %2503
      %v2505 = vsel %vm1888, %v2504, 0
      %2507 = vmatpush.xpose.msra.mxu0 0.0
      %2508 = vmatpush.xpose.msra.mxu0 0.0
      %2509 = vmatpush.xpose.msra.mxu0 0.0
      %2510 = vmatpush.xpose.msra.mxu0 0.0
      %2511 = vmatpush.xpose.msra.mxu0 0.0
      %2512 = vmatpush.xpose.msra.mxu0 0.0
      %2513 = vmatpush.xpose.msra.mxu0 0.0
      %2514 = vmatpush.xpose.msra.mxu0 0.0
      %2515 = vmatpush.xpose.msra.mxu0 0.0
      %2516 = vmatpush.xpose.msra.mxu0 0.0
      %2517 = vmatpush.xpose.msra.mxu0 0.0
      %2518 = vmatpush.xpose.msra.mxu0 0.0
      %2519 = vmatpush.xpose.msra.mxu0 0.0
      %2520 = vmatpush.xpose.msra.mxu0 0.0
      %2521 = vmatpush.xpose.msra.mxu0 0.0
      %2522 = vmatpush.xpose.msra.mxu0 %v2505
      %2523 = vmatmul.f32.gmra.mxu0 %v2370
      %v2524 = vpop.f32.mrf.mxu0
      %v2525 = vadd.f32 0.0, %v2524
      %2526 = vdwg.mxu0
      %v2527 = vmul.f32 %v2525, 0.25
      %v2528 = vsel %vm2081, %v2502, -inf
      %v2529 = vmax.f32 %v2500, %v2501
      %v2530 = vmax.f32 %v2529, %v2528
      %2531 = vmax.xlane.f32.xlu0 %v2530
      %v2532 = vpop.xlane.xlu0 %2531
      %v2533 = vsel %vm2087, %v2527, -inf
      %2534 = vmax.xlane.f32.xlu0 %v2533
      %v2535 = vpop.xlane.xlu0 %2534
      %v2536 = vmax.f32 %v2532, %v2535
      %v2537 = vsub.f32 %v2500, %v2536
      %v2538 = vsub.f32 %v2501, %v2536
      %v2539 = vsub.f32 %v2502, %v2536
      %v2540 = vmul.f32 %v2537, 1.442695
      %v2541 = vpow.pop %v2540
      %v2542 = vmul.f32 %v2538, 1.442695
      %v2543 = vpow.pop %v2542
      %v2544 = vmul.f32 %v2539, 1.442695
      %v2545 = vpow.pop %v2544
      %v2546 = vsub.f32 %v2527, %v2536
      %v2547 = vmul.f32 %v2546, 1.442695
      %v2548 = vpow.pop %v2547
      %v2549 = vadd.f32 %v2541, %v2543
      %v2550 = vsel %vm2081, %v2545, 0.0
      %v2551 = vadd.f32 %v2549, %v2550
      %2552 = vadd.xlane.f32.xlu0 %v2551
      %v2553 = vpop.xlane.xlu0 %2552
      %v2554 = vsel %vm2087, %v2548, 0.0
      %2555 = vadd.xlane.f32.xlu0 %v2554
      %v2556 = vpop.xlane.xlu0 %2555
      %v2557 = vadd.f32 %v2553, %v2556
      %v2558 = vrcp.pop %v2557
      %v2559 = vmul.f32 %v2541, %v2558
      %v2560 = vmul.f32 %v2543, %v2558
      %v2561 = vmul.f32 %v2545, %v2558
      %v2562 = vperm.slane %v1884, 1
      %v2563 = vperm.slane %v1885, 1
      %v2564 = vperm.slane %v1886, 1
      %v2565 = vmul.f32 %v2559, %v2562
      %v2566 = vmul.f32 %v2560, %v2563
      %v2567 = vmul.f32 %v2561, %v2564
      %v2568 = vmul.f32 %v2548, %v2558
      %v2569 = vperm.slane %v1887, 1
      %v2570 = vmul.f32 %v2568, %v2569
      %v2571 = vpack.c.bf16 %v2565, %v2565
      %v2572 = vpack.c.bf16 %v2566, %v2566
      %v2573 = vpack.c.bf16 %v2567, %v2567
      %v2574 = vpack.c.bf16 %v2570, %v2570
      %v2576 = vunpack.c.l.b16 %v1883
      %v2577 = vpack.c.b16 %v2576, %v2576
      %2578 = vrot.lane.b32.xlu0 %v2577, 112
      %v2579 = vpop.permute.xlu0 %2578
      %v2581 = vsel %vm2087, %v2574, 0
      %v2584 = vsel %vm2133, %v2579, 0
      %2586 = vmatpush.bf16.msra.mxu0 0
      %2587 = vmatpush.bf16.msra.mxu0 0
      %2588 = vmatpush.bf16.msra.mxu0 0
      %2589 = vmatpush.bf16.msra.mxu0 0
      %2590 = vmatpush.bf16.msra.mxu0 0
      %2591 = vmatpush.bf16.msra.mxu0 0
      %2592 = vmatpush.bf16.msra.mxu0 0
      %2593 = vmatpush.bf16.msra.mxu0 %v2584
      %2594 = vmatmul.bf16.gmra.mxu0 %v2581
      %v2595 = vpop.f32.mrf.mxu0
      %v2596 = vadd.f32 0.0, %v2595
      %v2597 = vpop.f32.mrf.mxu0
      %2598 = vdwg.mxu0
      %2599 = vrot.lane.b32.xlu0 %v2218, 112
      %v2600 = vpop.permute.xlu0 %2599
      %2601 = vrot.lane.b32.xlu0 %v2219, 112
      %v2602 = vpop.permute.xlu0 %2601
      %2603 = vrot.lane.b32.xlu0 %v2220, 112
      %v2604 = vpop.permute.xlu0 %2603
      %2605 = vrot.lane.b32.xlu0 %v2221, 112
      %v2606 = vpop.permute.xlu0 %2605
      %2607 = vrot.lane.b32.xlu0 %v2222, 112
      %v2608 = vpop.permute.xlu0 %2607
      %2609 = vrot.lane.b32.xlu0 %v2223, 112
      %v2610 = vpop.permute.xlu0 %2609
      %2611 = vrot.lane.b32.xlu0 %v2224, 112
      %v2612 = vpop.permute.xlu0 %2611
      %2613 = vrot.lane.b32.xlu0 %v2225, 112
      %v2614 = vpop.permute.xlu0 %2613
      %2615 = vrot.lane.b32.xlu0 %v2226, 112
      %v2616 = vpop.permute.xlu0 %2615
      %2617 = vrot.lane.b32.xlu0 %v2227, 112
      %v2618 = vpop.permute.xlu0 %2617
      %2619 = vrot.lane.b32.xlu0 %v2228, 112
      %v2620 = vpop.permute.xlu0 %2619
      %2621 = vrot.lane.b32.xlu0 %v2229, 112
      %v2622 = vpop.permute.xlu0 %2621
      %2623 = vrot.lane.b32.xlu0 %v2230, 112
      %v2624 = vpop.permute.xlu0 %2623
      %2625 = vrot.lane.b32.xlu0 %v2231, 112
      %v2626 = vpop.permute.xlu0 %2625
      %2627 = vrot.lane.b32.xlu0 %v2232, 112
      %v2628 = vpop.permute.xlu0 %2627
      %2629 = vrot.lane.b32.xlu0 %v2233, 112
      %v2630 = vpop.permute.xlu0 %2629
      %2631 = vrot.lane.b32.xlu0 %v2234, 112
      %v2632 = vpop.permute.xlu0 %2631
      %v2650 = vsel %vm2081, %v2573, 0
      %v2653 = vand.u32 %v2632, %v2256
      %2655 = vmatpush.bf16.msra.mxu0 %v2614
      %2656 = vmatpush.bf16.msra.mxu0 %v2612
      %2657 = vmatpush.bf16.msra.mxu0 %v2610
      %2658 = vmatpush.bf16.msra.mxu0 %v2608
      %2659 = vmatpush.bf16.msra.mxu0 %v2606
      %2660 = vmatpush.bf16.msra.mxu0 %v2604
      %2661 = vmatpush.bf16.msra.mxu0 %v2602
      %2662 = vmatpush.bf16.msra.mxu0 %v2600
      %2663 = vmatmul.bf16.gmra.mxu0 %v2571
      %v2664 = vpop.f32.mrf.mxu0
      %v2665 = vadd.f32 %v2596, %v2664
      %v2666 = vpop.f32.mrf.mxu0
      %2667 = vdwg.mxu0
      %2668 = vmatpush.bf16.msra.mxu0 %v2630
      %2669 = vmatpush.bf16.msra.mxu0 %v2628
      %2670 = vmatpush.bf16.msra.mxu0 %v2626
      %2671 = vmatpush.bf16.msra.mxu0 %v2624
      %2672 = vmatpush.bf16.msra.mxu0 %v2622
      %2673 = vmatpush.bf16.msra.mxu0 %v2620
      %2674 = vmatpush.bf16.msra.mxu0 %v2618
      %2675 = vmatpush.bf16.msra.mxu0 %v2616
      %2676 = vmatmul.bf16.gmra.mxu0 %v2572
      %v2677 = vpop.f32.mrf.mxu0
      %v2678 = vadd.f32 %v2665, %v2677
      %v2679 = vpop.f32.mrf.mxu0
      %2680 = vdwg.mxu0
      %2681 = vmatpush.bf16.msra.mxu0 0
      %2682 = vmatpush.bf16.msra.mxu0 0
      %2683 = vmatpush.bf16.msra.mxu0 0
      %2684 = vmatpush.bf16.msra.mxu0 0
      %2685 = vmatpush.bf16.msra.mxu0 0
      %2686 = vmatpush.bf16.msra.mxu0 0
      %2687 = vmatpush.bf16.msra.mxu0 0
      %2688 = vmatpush.bf16.msra.mxu0 %v2653
      %2689 = vmatmul.bf16.gmra.mxu0 %v2650
      %v2690 = vpop.f32.mrf.mxu0
      %v2691 = vadd.f32 %v2678, %v2690
      %v2692 = vpop.f32.mrf.mxu0
      %2693 = vdwg.mxu0
      %v2694 = vpack.c.bf16 %v2691, %v2691
      %v2697 = vunpack.c.l.b16 %v1482
      %v2698 = vunpack.c.l.b16 %v1483
      %v2699 = vpack.c.b16 %v2698, %v2697
      %v2702 = vsel %vm1888, %v2694, 0
      %2704 = vmatpush.bf16.msra.mxu0 0
      %2705 = vmatpush.bf16.msra.mxu0 0
      %2706 = vmatpush.bf16.msra.mxu0 0
      %2707 = vmatpush.bf16.msra.mxu0 0
      %2708 = vmatpush.bf16.msra.mxu0 0
      %2709 = vmatpush.bf16.msra.mxu0 0
      %2710 = vmatpush.bf16.msra.mxu0 0
      %2711 = vmatpush.bf16.msra.mxu0 %v2699
      %2712 = vmatmul.bf16.gmra.mxu0 %v2702
      %v2713 = vpop.f32.mrf.mxu0
      %v2714 = vadd.f32 0.0, %v2713
      %v2715 = vpop.f32.mrf.mxu0
      %2716 = vdwg.mxu0
      %v2719 = vunpack.c.l.b16 %v1480
      %v2720 = vunpack.c.l.b16 %v1481
      %v2721 = vpack.c.b16 %v2720, %v2719
      %v2724 = vsel %vm1888, %v2299, 0
      %2726 = vmatpush.bf16.msra.mxu0 0
      %2727 = vmatpush.bf16.msra.mxu0 0
      %2728 = vmatpush.bf16.msra.mxu0 0
      %2729 = vmatpush.bf16.msra.mxu0 0
      %2730 = vmatpush.bf16.msra.mxu0 0
      %2731 = vmatpush.bf16.msra.mxu0 0
      %2732 = vmatpush.bf16.msra.mxu0 0
      %2733 = vmatpush.bf16.msra.mxu0 %v2721
      %2734 = vmatmul.bf16.gmra.mxu0 %v2724
      %v2735 = vpop.f32.mrf.mxu0
      %v2736 = vadd.f32 %v2714, %v2735
      %v2737 = vpop.f32.mrf.mxu0
      %2738 = vdwg.mxu0
      %2739 = vrot.lane.b32.xlu0 %v1533, 96
      %v2740 = vpop.permute.xlu0 %2739
      %2741 = vrot.lane.b32.xlu0 %v1621, 96
      %v2742 = vpop.permute.xlu0 %2741
      %2743 = vrot.lane.b32.xlu0 %v1623, 96
      %v2744 = vpop.permute.xlu0 %2743
      %2745 = vrot.lane.b32.xlu0 %v1626, 96
      %v2746 = vpop.permute.xlu0 %2745
      %2747 = vrot.lane.b32.xlu0 %v1628, 96
      %v2748 = vpop.permute.xlu0 %2747
      %2749 = vrot.lane.b32.xlu0 %v1631, 96
      %v2750 = vpop.permute.xlu0 %2749
      %2751 = vrot.lane.b32.xlu0 %v1633, 96
      %v2752 = vpop.permute.xlu0 %2751
      %2753 = vrot.lane.b32.xlu0 %v1636, 96
      %v2754 = vpop.permute.xlu0 %2753
      %2755 = vrot.lane.b32.xlu0 %v1638, 96
      %v2756 = vpop.permute.xlu0 %2755
      %2757 = vrot.lane.b32.xlu0 %v1641, 96
      %v2758 = vpop.permute.xlu0 %2757
      %2759 = vrot.lane.b32.xlu0 %v1643, 96
      %v2760 = vpop.permute.xlu0 %2759
      %2761 = vrot.lane.b32.xlu0 %v1646, 96
      %v2762 = vpop.permute.xlu0 %2761
      %2763 = vrot.lane.b32.xlu0 %v1648, 96
      %v2764 = vpop.permute.xlu0 %2763
      %2765 = vrot.lane.b32.xlu0 %v1651, 96
      %v2766 = vpop.permute.xlu0 %2765
      %2767 = vrot.lane.b32.xlu0 %v1653, 96
      %v2768 = vpop.permute.xlu0 %2767
      %2769 = vrot.lane.b32.xlu0 %v1656, 96
      %v2770 = vpop.permute.xlu0 %2769
      %2771 = vrot.lane.b32.xlu0 %v1658, 96
      %v2772 = vpop.permute.xlu0 %2771
      %2773 = vrot.lane.b32.xlu0 %v1661, 96
      %v2774 = vpop.permute.xlu0 %2773
      %2775 = vrot.lane.b32.xlu0 %v1663, 96
      %v2776 = vpop.permute.xlu0 %2775
      %2777 = vrot.lane.b32.xlu0 %v1666, 96
      %v2778 = vpop.permute.xlu0 %2777
      %2779 = vrot.lane.b32.xlu0 %v1668, 96
      %v2780 = vpop.permute.xlu0 %2779
      %2781 = vrot.lane.b32.xlu0 %v1671, 96
      %v2782 = vpop.permute.xlu0 %2781
      %2783 = vrot.lane.b32.xlu0 %v1673, 96
      %v2784 = vpop.permute.xlu0 %2783
      %2785 = vrot.lane.b32.xlu0 %v1676, 96
      %v2786 = vpop.permute.xlu0 %2785
      %2787 = vrot.lane.b32.xlu0 %v1678, 96
      %v2788 = vpop.permute.xlu0 %2787
      %2789 = vrot.lane.b32.xlu0 %v1681, 96
      %v2790 = vpop.permute.xlu0 %2789
      %2791 = vrot.lane.b32.xlu0 %v1683, 96
      %v2792 = vpop.permute.xlu0 %2791
      %2793 = vrot.lane.b32.xlu0 %v1686, 96
      %v2794 = vpop.permute.xlu0 %2793
      %2795 = vrot.lane.b32.xlu0 %v1688, 96
      %v2796 = vpop.permute.xlu0 %2795
      %2797 = vrot.lane.b32.xlu0 %v1691, 96
      %v2798 = vpop.permute.xlu0 %2797
      %2799 = vrot.lane.b32.xlu0 %v1693, 96
      %v2800 = vpop.permute.xlu0 %2799
      %2801 = vrot.lane.b32.xlu0 %v1696, 96
      %v2802 = vpop.permute.xlu0 %2801
      %2803 = vrot.lane.b32.xlu0 %v1698, 96
      %v2804 = vpop.permute.xlu0 %2803
      %2805 = vrot.lane.b32.xlu0 %v1701, 96
      %v2806 = vpop.permute.xlu0 %2805
      %2807 = vrot.lane.b32.xlu0 %v1703, 96
      %v2808 = vpop.permute.xlu0 %2807
      %v2809 = vsel %vm1888, %v2740, 0
      %v2811 = vsel %vm1888, %v2742, 0
      %v2813 = vsel %vm1888, %v2744, 0
      %v2815 = vsel %vm1888, %v2746, 0
      %v2817 = vsel %vm1888, %v2748, 0
      %v2819 = vsel %vm1888, %v2750, 0
      %v2821 = vsel %vm1888, %v2752, 0
      %v2823 = vsel %vm1888, %v2754, 0
      %v2825 = vsel %vm1888, %v2756, 0
      %v2827 = vsel %vm1888, %v2758, 0
      %v2829 = vsel %vm1888, %v2760, 0
      %v2831 = vsel %vm1888, %v2762, 0
      %v2833 = vsel %vm1888, %v2764, 0
      %v2835 = vsel %vm1888, %v2766, 0
      %v2837 = vsel %vm1888, %v2768, 0
      %v2839 = vsel %vm1888, %v2770, 0
      %v2841 = vsel %vm1888, %v2772, 0
      %v2843 = vsel %vm1888, %v2774, 0
      %v2845 = vsel %vm1888, %v2776, 0
      %v2847 = vsel %vm1888, %v2778, 0
      %v2849 = vsel %vm1888, %v2780, 0
      %v2851 = vsel %vm1888, %v2782, 0
      %v2853 = vsel %vm1888, %v2784, 0
      %v2855 = vsel %vm1888, %v2786, 0
      %v2857 = vsel %vm1888, %v2788, 0
      %v2859 = vsel %vm1888, %v2790, 0
      %v2861 = vsel %vm1888, %v2792, 0
      %v2863 = vsel %vm1888, %v2794, 0
      %v2865 = vsel %vm1888, %v2796, 0
      %v2867 = vsel %vm1888, %v2798, 0
      %v2869 = vsel %vm1888, %v2800, 0
      %v2871 = vsel %vm1888, %v2802, 0
      %v2873 = vsel %vm1888, %v2804, 0
      %v2875 = vsel %vm1888, %v2806, 0
      %v2877 = vsel %vm1888, %v2808, 0
      %2879 = vmatpush.xpose.msra.mxu0 %v2841
      %2880 = vmatpush.xpose.msra.mxu0 %v2839
      %2881 = vmatpush.xpose.msra.mxu0 %v2837
      %2882 = vmatpush.xpose.msra.mxu0 %v2835
      %2883 = vmatpush.xpose.msra.mxu0 %v2833
      %2884 = vmatpush.xpose.msra.mxu0 %v2831
      %2885 = vmatpush.xpose.msra.mxu0 %v2829
      %2886 = vmatpush.xpose.msra.mxu0 %v2827
      %2887 = vmatpush.xpose.msra.mxu0 %v2825
      %2888 = vmatpush.xpose.msra.mxu0 %v2823
      %2889 = vmatpush.xpose.msra.mxu0 %v2821
      %2890 = vmatpush.xpose.msra.mxu0 %v2819
      %2891 = vmatpush.xpose.msra.mxu0 %v2817
      %2892 = vmatpush.xpose.msra.mxu0 %v2815
      %2893 = vmatpush.xpose.msra.mxu0 %v2813
      %2894 = vmatpush.xpose.msra.mxu0 %v2811
      %2895 = vmatmul.f32.gmra.mxu0 %v2809
      %v2896 = vpop.f32.mrf.mxu0
      %v2897 = vadd.f32 0.0, %v2896
      %2898 = vdwg.mxu0
      %2899 = vmatpush.xpose.msra.mxu0 %v2873
      %2900 = vmatpush.xpose.msra.mxu0 %v2871
      %2901 = vmatpush.xpose.msra.mxu0 %v2869
      %2902 = vmatpush.xpose.msra.mxu0 %v2867
      %2903 = vmatpush.xpose.msra.mxu0 %v2865
      %2904 = vmatpush.xpose.msra.mxu0 %v2863
      %2905 = vmatpush.xpose.msra.mxu0 %v2861
      %2906 = vmatpush.xpose.msra.mxu0 %v2859
      %2907 = vmatpush.xpose.msra.mxu0 %v2857
      %2908 = vmatpush.xpose.msra.mxu0 %v2855
      %2909 = vmatpush.xpose.msra.mxu0 %v2853
      %2910 = vmatpush.xpose.msra.mxu0 %v2851
      %2911 = vmatpush.xpose.msra.mxu0 %v2849
      %2912 = vmatpush.xpose.msra.mxu0 %v2847
      %2913 = vmatpush.xpose.msra.mxu0 %v2845
      %2914 = vmatpush.xpose.msra.mxu0 %v2843
      %2915 = vmatmul.f32.gmra.mxu0 %v2809
      %v2916 = vpop.f32.mrf.mxu0
      %v2917 = vadd.f32 0.0, %v2916
      %2918 = vdwg.mxu0
      %2919 = vmatpush.xpose.msra.mxu0 0.0
      %2920 = vmatpush.xpose.msra.mxu0 0.0
      %2921 = vmatpush.xpose.msra.mxu0 0.0
      %2922 = vmatpush.xpose.msra.mxu0 0.0
      %2923 = vmatpush.xpose.msra.mxu0 0.0
      %2924 = vmatpush.xpose.msra.mxu0 0.0
      %2925 = vmatpush.xpose.msra.mxu0 0.0
      %2926 = vmatpush.xpose.msra.mxu0 0.0
      %2927 = vmatpush.xpose.msra.mxu0 0.0
      %2928 = vmatpush.xpose.msra.mxu0 0.0
      %2929 = vmatpush.xpose.msra.mxu0 0.0
      %2930 = vmatpush.xpose.msra.mxu0 0.0
      %2931 = vmatpush.xpose.msra.mxu0 0.0
      %2932 = vmatpush.xpose.msra.mxu0 0.0
      %2933 = vmatpush.xpose.msra.mxu0 %v2877
      %2934 = vmatpush.xpose.msra.mxu0 %v2875
      %2935 = vmatmul.f32.gmra.mxu0 %v2809
      %v2936 = vpop.f32.mrf.mxu0
      %v2937 = vadd.f32 0.0, %v2936
      %2938 = vdwg.mxu0
      %v2939 = vmul.f32 %v2897, 0.25
      %v2940 = vmul.f32 %v2917, 0.25
      %v2941 = vmul.f32 %v2937, 0.25
      %2942 = vrot.lane.b32.xlu0 %v1715, 96
      %v2943 = vpop.permute.xlu0 %2942
      %v2944 = vsel %vm1888, %v2943, 0
      %2946 = vmatpush.xpose.msra.mxu0 0.0
      %2947 = vmatpush.xpose.msra.mxu0 0.0
      %2948 = vmatpush.xpose.msra.mxu0 0.0
      %2949 = vmatpush.xpose.msra.mxu0 0.0
      %2950 = vmatpush.xpose.msra.mxu0 0.0
      %2951 = vmatpush.xpose.msra.mxu0 0.0
      %2952 = vmatpush.xpose.msra.mxu0 0.0
      %2953 = vmatpush.xpose.msra.mxu0 0.0
      %2954 = vmatpush.xpose.msra.mxu0 0.0
      %2955 = vmatpush.xpose.msra.mxu0 0.0
      %2956 = vmatpush.xpose.msra.mxu0 0.0
      %2957 = vmatpush.xpose.msra.mxu0 0.0
      %2958 = vmatpush.xpose.msra.mxu0 0.0
      %2959 = vmatpush.xpose.msra.mxu0 0.0
      %2960 = vmatpush.xpose.msra.mxu0 0.0
      %2961 = vmatpush.xpose.msra.mxu0 %v2944
      %2962 = vmatmul.f32.gmra.mxu0 %v2809
      %v2963 = vpop.f32.mrf.mxu0
      %v2964 = vadd.f32 0.0, %v2963
      %2965 = vdwg.mxu0
      %v2966 = vmul.f32 %v2964, 0.25
      %v2967 = vsel %vm2081, %v2941, -inf
      %v2968 = vmax.f32 %v2939, %v2940
      %v2969 = vmax.f32 %v2968, %v2967
      %2970 = vmax.xlane.f32.xlu0 %v2969
      %v2971 = vpop.xlane.xlu0 %2970
      %v2972 = vsel %vm2087, %v2966, -inf
      %2973 = vmax.xlane.f32.xlu0 %v2972
      %v2974 = vpop.xlane.xlu0 %2973
      %v2975 = vmax.f32 %v2971, %v2974
      %v2976 = vsub.f32 %v2939, %v2975
      %v2977 = vsub.f32 %v2940, %v2975
      %v2978 = vsub.f32 %v2941, %v2975
      %v2979 = vmul.f32 %v2976, 1.442695
      %v2980 = vpow.pop %v2979
      %v2981 = vmul.f32 %v2977, 1.442695
      %v2982 = vpow.pop %v2981
      %v2983 = vmul.f32 %v2978, 1.442695
      %v2984 = vpow.pop %v2983
      %v2985 = vsub.f32 %v2966, %v2975
      %v2986 = vmul.f32 %v2985, 1.442695
      %v2987 = vpow.pop %v2986
      %v2988 = vadd.f32 %v2980, %v2982
      %v2989 = vsel %vm2081, %v2984, 0.0
      %v2990 = vadd.f32 %v2988, %v2989
      %2991 = vadd.xlane.f32.xlu0 %v2990
      %v2992 = vpop.xlane.xlu0 %2991
      %v2993 = vsel %vm2087, %v2987, 0.0
      %2994 = vadd.xlane.f32.xlu0 %v2993
      %v2995 = vpop.xlane.xlu0 %2994
      %v2996 = vadd.f32 %v2992, %v2995
      %v2997 = vrcp.pop %v2996
      %v2998 = vmul.f32 %v2980, %v2997
      %v2999 = vmul.f32 %v2982, %v2997
      %v3000 = vmul.f32 %v2984, %v2997
      %v3001 = vperm.slane %v1884, 2
      %v3002 = vperm.slane %v1885, 2
      %v3003 = vperm.slane %v1886, 2
      %v3004 = vmul.f32 %v2998, %v3001
      %v3005 = vmul.f32 %v2999, %v3002
      %v3006 = vmul.f32 %v3000, %v3003
      %v3007 = vmul.f32 %v2987, %v2997
      %v3008 = vperm.slane %v1887, 2
      %v3009 = vmul.f32 %v3007, %v3008
      %v3010 = vpack.c.bf16 %v3004, %v3004
      %v3011 = vpack.c.bf16 %v3005, %v3005
      %v3012 = vpack.c.bf16 %v3006, %v3006
      %v3013 = vpack.c.bf16 %v3009, %v3009
      %3014 = vrot.lane.b32.xlu0 %v2577, 96
      %v3015 = vpop.permute.xlu0 %3014
      %v3017 = vsel %vm2087, %v3013, 0
      %v3020 = vsel %vm2133, %v3015, 0
      %3022 = vmatpush.bf16.msra.mxu0 0
      %3023 = vmatpush.bf16.msra.mxu0 0
      %3024 = vmatpush.bf16.msra.mxu0 0
      %3025 = vmatpush.bf16.msra.mxu0 0
      %3026 = vmatpush.bf16.msra.mxu0 0
      %3027 = vmatpush.bf16.msra.mxu0 0
      %3028 = vmatpush.bf16.msra.mxu0 0
      %3029 = vmatpush.bf16.msra.mxu0 %v3020
      %3030 = vmatmul.bf16.gmra.mxu0 %v3017
      %v3031 = vpop.f32.mrf.mxu0
      %v3032 = vadd.f32 0.0, %v3031
      %v3033 = vpop.f32.mrf.mxu0
      %3034 = vdwg.mxu0
      %3035 = vrot.lane.b32.xlu0 %v2218, 96
      %v3036 = vpop.permute.xlu0 %3035
      %3037 = vrot.lane.b32.xlu0 %v2219, 96
      %v3038 = vpop.permute.xlu0 %3037
      %3039 = vrot.lane.b32.xlu0 %v2220, 96
      %v3040 = vpop.permute.xlu0 %3039
      %3041 = vrot.lane.b32.xlu0 %v2221, 96
      %v3042 = vpop.permute.xlu0 %3041
      %3043 = vrot.lane.b32.xlu0 %v2222, 96
      %v3044 = vpop.permute.xlu0 %3043
      %3045 = vrot.lane.b32.xlu0 %v2223, 96
      %v3046 = vpop.permute.xlu0 %3045
      %3047 = vrot.lane.b32.xlu0 %v2224, 96
      %v3048 = vpop.permute.xlu0 %3047
      %3049 = vrot.lane.b32.xlu0 %v2225, 96
      %v3050 = vpop.permute.xlu0 %3049
      %3051 = vrot.lane.b32.xlu0 %v2226, 96
      %v3052 = vpop.permute.xlu0 %3051
      %3053 = vrot.lane.b32.xlu0 %v2227, 96
      %v3054 = vpop.permute.xlu0 %3053
      %3055 = vrot.lane.b32.xlu0 %v2228, 96
      %v3056 = vpop.permute.xlu0 %3055
      %3057 = vrot.lane.b32.xlu0 %v2229, 96
      %v3058 = vpop.permute.xlu0 %3057
      %3059 = vrot.lane.b32.xlu0 %v2230, 96
      %v3060 = vpop.permute.xlu0 %3059
      %3061 = vrot.lane.b32.xlu0 %v2231, 96
      %v3062 = vpop.permute.xlu0 %3061
      %3063 = vrot.lane.b32.xlu0 %v2232, 96
      %v3064 = vpop.permute.xlu0 %3063
      %3065 = vrot.lane.b32.xlu0 %v2233, 96
      %v3066 = vpop.permute.xlu0 %3065
      %3067 = vrot.lane.b32.xlu0 %v2234, 96
      %v3068 = vpop.permute.xlu0 %3067
      %v3086 = vsel %vm2081, %v3012, 0
      %v3089 = vand.u32 %v3068, %v2256
      %3091 = vmatpush.bf16.msra.mxu0 %v3050
      %3092 = vmatpush.bf16.msra.mxu0 %v3048
      %3093 = vmatpush.bf16.msra.mxu0 %v3046
      %3094 = vmatpush.bf16.msra.mxu0 %v3044
      %3095 = vmatpush.bf16.msra.mxu0 %v3042
      %3096 = vmatpush.bf16.msra.mxu0 %v3040
      %3097 = vmatpush.bf16.msra.mxu0 %v3038
      %3098 = vmatpush.bf16.msra.mxu0 %v3036
      %3099 = vmatmul.bf16.gmra.mxu0 %v3010
      %v3100 = vpop.f32.mrf.mxu0
      %v3101 = vadd.f32 %v3032, %v3100
      %v3102 = vpop.f32.mrf.mxu0
      %3103 = vdwg.mxu0
      %3104 = vmatpush.bf16.msra.mxu0 %v3066
      %3105 = vmatpush.bf16.msra.mxu0 %v3064
      %3106 = vmatpush.bf16.msra.mxu0 %v3062
      %3107 = vmatpush.bf16.msra.mxu0 %v3060
      %3108 = vmatpush.bf16.msra.mxu0 %v3058
      %3109 = vmatpush.bf16.msra.mxu0 %v3056
      %3110 = vmatpush.bf16.msra.mxu0 %v3054
      %3111 = vmatpush.bf16.msra.mxu0 %v3052
      %3112 = vmatmul.bf16.gmra.mxu0 %v3011
      %v3113 = vpop.f32.mrf.mxu0
      %v3114 = vadd.f32 %v3101, %v3113
      %v3115 = vpop.f32.mrf.mxu0
      %3116 = vdwg.mxu0
      %3117 = vmatpush.bf16.msra.mxu0 0
      %3118 = vmatpush.bf16.msra.mxu0 0
      %3119 = vmatpush.bf16.msra.mxu0 0
      %3120 = vmatpush.bf16.msra.mxu0 0
      %3121 = vmatpush.bf16.msra.mxu0 0
      %3122 = vmatpush.bf16.msra.mxu0 0
      %3123 = vmatpush.bf16.msra.mxu0 0
      %3124 = vmatpush.bf16.msra.mxu0 %v3089
      %3125 = vmatmul.bf16.gmra.mxu0 %v3086
      %v3126 = vpop.f32.mrf.mxu0
      %v3127 = vadd.f32 %v3114, %v3126
      %v3128 = vpop.f32.mrf.mxu0
      %3129 = vdwg.mxu0
      %v3130 = vpack.c.bf16 %v3127, %v3127
      %v3133 = vunpack.c.l.b16 %v1484
      %v3134 = vunpack.c.l.b16 %v1485
      %v3135 = vpack.c.b16 %v3134, %v3133
      %v3138 = vsel %vm1888, %v3130, 0
      %3140 = vmatpush.bf16.msra.mxu0 0
      %3141 = vmatpush.bf16.msra.mxu0 0
      %3142 = vmatpush.bf16.msra.mxu0 0
      %3143 = vmatpush.bf16.msra.mxu0 0
      %3144 = vmatpush.bf16.msra.mxu0 0
      %3145 = vmatpush.bf16.msra.mxu0 0
      %3146 = vmatpush.bf16.msra.mxu0 0
      %3147 = vmatpush.bf16.msra.mxu0 %v3135
      %3148 = vmatmul.bf16.gmra.mxu0 %v3138
      %v3149 = vpop.f32.mrf.mxu0
      %v3150 = vadd.f32 0.0, %v3149
      %v3151 = vpop.f32.mrf.mxu0
      %3152 = vdwg.mxu0
      %v3153 = vadd.f32 %v2736, %v3150
      %3154 = vrot.lane.b32.xlu0 %v1533, 80
      %v3155 = vpop.permute.xlu0 %3154
      %3156 = vrot.lane.b32.xlu0 %v1621, 80
      %v3157 = vpop.permute.xlu0 %3156
      %3158 = vrot.lane.b32.xlu0 %v1623, 80
      %v3159 = vpop.permute.xlu0 %3158
      %3160 = vrot.lane.b32.xlu0 %v1626, 80
      %v3161 = vpop.permute.xlu0 %3160
      %3162 = vrot.lane.b32.xlu0 %v1628, 80
      %v3163 = vpop.permute.xlu0 %3162
      %3164 = vrot.lane.b32.xlu0 %v1631, 80
      %v3165 = vpop.permute.xlu0 %3164
      %3166 = vrot.lane.b32.xlu0 %v1633, 80
      %v3167 = vpop.permute.xlu0 %3166
      %3168 = vrot.lane.b32.xlu0 %v1636, 80
      %v3169 = vpop.permute.xlu0 %3168
      %3170 = vrot.lane.b32.xlu0 %v1638, 80
      %v3171 = vpop.permute.xlu0 %3170
      %3172 = vrot.lane.b32.xlu0 %v1641, 80
      %v3173 = vpop.permute.xlu0 %3172
      %3174 = vrot.lane.b32.xlu0 %v1643, 80
      %v3175 = vpop.permute.xlu0 %3174
      %3176 = vrot.lane.b32.xlu0 %v1646, 80
      %v3177 = vpop.permute.xlu0 %3176
      %3178 = vrot.lane.b32.xlu0 %v1648, 80
      %v3179 = vpop.permute.xlu0 %3178
      %3180 = vrot.lane.b32.xlu0 %v1651, 80
      %v3181 = vpop.permute.xlu0 %3180
      %3182 = vrot.lane.b32.xlu0 %v1653, 80
      %v3183 = vpop.permute.xlu0 %3182
      %3184 = vrot.lane.b32.xlu0 %v1656, 80
      %v3185 = vpop.permute.xlu0 %3184
      %3186 = vrot.lane.b32.xlu0 %v1658, 80
      %v3187 = vpop.permute.xlu0 %3186
      %3188 = vrot.lane.b32.xlu0 %v1661, 80
      %v3189 = vpop.permute.xlu0 %3188
      %3190 = vrot.lane.b32.xlu0 %v1663, 80
      %v3191 = vpop.permute.xlu0 %3190
      %3192 = vrot.lane.b32.xlu0 %v1666, 80
      %v3193 = vpop.permute.xlu0 %3192
      %3194 = vrot.lane.b32.xlu0 %v1668, 80
      %v3195 = vpop.permute.xlu0 %3194
      %3196 = vrot.lane.b32.xlu0 %v1671, 80
      %v3197 = vpop.permute.xlu0 %3196
      %3198 = vrot.lane.b32.xlu0 %v1673, 80
      %v3199 = vpop.permute.xlu0 %3198
      %3200 = vrot.lane.b32.xlu0 %v1676, 80
      %v3201 = vpop.permute.xlu0 %3200
      %3202 = vrot.lane.b32.xlu0 %v1678, 80
      %v3203 = vpop.permute.xlu0 %3202
      %3204 = vrot.lane.b32.xlu0 %v1681, 80
      %v3205 = vpop.permute.xlu0 %3204
      %3206 = vrot.lane.b32.xlu0 %v1683, 80
      %v3207 = vpop.permute.xlu0 %3206
      %3208 = vrot.lane.b32.xlu0 %v1686, 80
      %v3209 = vpop.permute.xlu0 %3208
      %3210 = vrot.lane.b32.xlu0 %v1688, 80
      %v3211 = vpop.permute.xlu0 %3210
      %3212 = vrot.lane.b32.xlu0 %v1691, 80
      %v3213 = vpop.permute.xlu0 %3212
      %3214 = vrot.lane.b32.xlu0 %v1693, 80
      %v3215 = vpop.permute.xlu0 %3214
      %3216 = vrot.lane.b32.xlu0 %v1696, 80
      %v3217 = vpop.permute.xlu0 %3216
      %3218 = vrot.lane.b32.xlu0 %v1698, 80
      %v3219 = vpop.permute.xlu0 %3218
      %3220 = vrot.lane.b32.xlu0 %v1701, 80
      %v3221 = vpop.permute.xlu0 %3220
      %3222 = vrot.lane.b32.xlu0 %v1703, 80
      %v3223 = vpop.permute.xlu0 %3222
      %v3224 = vsel %vm1888, %v3155, 0
      %v3226 = vsel %vm1888, %v3157, 0
      %v3228 = vsel %vm1888, %v3159, 0
      %v3230 = vsel %vm1888, %v3161, 0
      %v3232 = vsel %vm1888, %v3163, 0
      %v3234 = vsel %vm1888, %v3165, 0
      %v3236 = vsel %vm1888, %v3167, 0
      %v3238 = vsel %vm1888, %v3169, 0
      %v3240 = vsel %vm1888, %v3171, 0
      %v3242 = vsel %vm1888, %v3173, 0
      %v3244 = vsel %vm1888, %v3175, 0
      %v3246 = vsel %vm1888, %v3177, 0
      %v3248 = vsel %vm1888, %v3179, 0
      %v3250 = vsel %vm1888, %v3181, 0
      %v3252 = vsel %vm1888, %v3183, 0
      %v3254 = vsel %vm1888, %v3185, 0
      %v3256 = vsel %vm1888, %v3187, 0
      %v3258 = vsel %vm1888, %v3189, 0
      %v3260 = vsel %vm1888, %v3191, 0
      %v3262 = vsel %vm1888, %v3193, 0
      %v3264 = vsel %vm1888, %v3195, 0
      %v3266 = vsel %vm1888, %v3197, 0
      %v3268 = vsel %vm1888, %v3199, 0
      %v3270 = vsel %vm1888, %v3201, 0
      %v3272 = vsel %vm1888, %v3203, 0
      %v3274 = vsel %vm1888, %v3205, 0
      %v3276 = vsel %vm1888, %v3207, 0
      %v3278 = vsel %vm1888, %v3209, 0
      %v3280 = vsel %vm1888, %v3211, 0
      %v3282 = vsel %vm1888, %v3213, 0
      %v3284 = vsel %vm1888, %v3215, 0
      %v3286 = vsel %vm1888, %v3217, 0
      %v3288 = vsel %vm1888, %v3219, 0
      %v3290 = vsel %vm1888, %v3221, 0
      %v3292 = vsel %vm1888, %v3223, 0
      %3294 = vmatpush.xpose.msra.mxu0 %v3256
      %3295 = vmatpush.xpose.msra.mxu0 %v3254
      %3296 = vmatpush.xpose.msra.mxu0 %v3252
      %3297 = vmatpush.xpose.msra.mxu0 %v3250
      %3298 = vmatpush.xpose.msra.mxu0 %v3248
      %3299 = vmatpush.xpose.msra.mxu0 %v3246
      %3300 = vmatpush.xpose.msra.mxu0 %v3244
      %3301 = vmatpush.xpose.msra.mxu0 %v3242
      %3302 = vmatpush.xpose.msra.mxu0 %v3240
      %3303 = vmatpush.xpose.msra.mxu0 %v3238
      %3304 = vmatpush.xpose.msra.mxu0 %v3236
      %3305 = vmatpush.xpose.msra.mxu0 %v3234
      %3306 = vmatpush.xpose.msra.mxu0 %v3232
      %3307 = vmatpush.xpose.msra.mxu0 %v3230
      %3308 = vmatpush.xpose.msra.mxu0 %v3228
      %3309 = vmatpush.xpose.msra.mxu0 %v3226
      %3310 = vmatmul.f32.gmra.mxu0 %v3224
      %v3311 = vpop.f32.mrf.mxu0
      %v3312 = vadd.f32 0.0, %v3311
      %3313 = vdwg.mxu0
      %3314 = vmatpush.xpose.msra.mxu0 %v3288
      %3315 = vmatpush.xpose.msra.mxu0 %v3286
      %3316 = vmatpush.xpose.msra.mxu0 %v3284
      %3317 = vmatpush.xpose.msra.mxu0 %v3282
      %3318 = vmatpush.xpose.msra.mxu0 %v3280
      %3319 = vmatpush.xpose.msra.mxu0 %v3278
      %3320 = vmatpush.xpose.msra.mxu0 %v3276
      %3321 = vmatpush.xpose.msra.mxu0 %v3274
      %3322 = vmatpush.xpose.msra.mxu0 %v3272
      %3323 = vmatpush.xpose.msra.mxu0 %v3270
      %3324 = vmatpush.xpose.msra.mxu0 %v3268
      %3325 = vmatpush.xpose.msra.mxu0 %v3266
      %3326 = vmatpush.xpose.msra.mxu0 %v3264
      %3327 = vmatpush.xpose.msra.mxu0 %v3262
      %3328 = vmatpush.xpose.msra.mxu0 %v3260
      %3329 = vmatpush.xpose.msra.mxu0 %v3258
      %3330 = vmatmul.f32.gmra.mxu0 %v3224
      %v3331 = vpop.f32.mrf.mxu0
      %v3332 = vadd.f32 0.0, %v3331
      %3333 = vdwg.mxu0
      %3334 = vmatpush.xpose.msra.mxu0 0.0
      %3335 = vmatpush.xpose.msra.mxu0 0.0
      %3336 = vmatpush.xpose.msra.mxu0 0.0
      %3337 = vmatpush.xpose.msra.mxu0 0.0
      %3338 = vmatpush.xpose.msra.mxu0 0.0
      %3339 = vmatpush.xpose.msra.mxu0 0.0
      %3340 = vmatpush.xpose.msra.mxu0 0.0
      %3341 = vmatpush.xpose.msra.mxu0 0.0
      %3342 = vmatpush.xpose.msra.mxu0 0.0
      %3343 = vmatpush.xpose.msra.mxu0 0.0
      %3344 = vmatpush.xpose.msra.mxu0 0.0
      %3345 = vmatpush.xpose.msra.mxu0 0.0
      %3346 = vmatpush.xpose.msra.mxu0 0.0
      %3347 = vmatpush.xpose.msra.mxu0 0.0
      %3348 = vmatpush.xpose.msra.mxu0 %v3292
      %3349 = vmatpush.xpose.msra.mxu0 %v3290
      %3350 = vmatmul.f32.gmra.mxu0 %v3224
      %v3351 = vpop.f32.mrf.mxu0
      %v3352 = vadd.f32 0.0, %v3351
      %3353 = vdwg.mxu0
      %v3354 = vmul.f32 %v3312, 0.25
      %v3355 = vmul.f32 %v3332, 0.25
      %v3356 = vmul.f32 %v3352, 0.25
      %3357 = vrot.lane.b32.xlu0 %v1715, 80
      %v3358 = vpop.permute.xlu0 %3357
      %v3359 = vsel %vm1888, %v3358, 0
      %3361 = vmatpush.xpose.msra.mxu0 0.0
      %3362 = vmatpush.xpose.msra.mxu0 0.0
      %3363 = vmatpush.xpose.msra.mxu0 0.0
      %3364 = vmatpush.xpose.msra.mxu0 0.0
      %3365 = vmatpush.xpose.msra.mxu0 0.0
      %3366 = vmatpush.xpose.msra.mxu0 0.0
      %3367 = vmatpush.xpose.msra.mxu0 0.0
      %3368 = vmatpush.xpose.msra.mxu0 0.0
      %3369 = vmatpush.xpose.msra.mxu0 0.0
      %3370 = vmatpush.xpose.msra.mxu0 0.0
      %3371 = vmatpush.xpose.msra.mxu0 0.0
      %3372 = vmatpush.xpose.msra.mxu0 0.0
      %3373 = vmatpush.xpose.msra.mxu0 0.0
      %3374 = vmatpush.xpose.msra.mxu0 0.0
      %3375 = vmatpush.xpose.msra.mxu0 0.0
      %3376 = vmatpush.xpose.msra.mxu0 %v3359
      %3377 = vmatmul.f32.gmra.mxu0 %v3224
      %v3378 = vpop.f32.mrf.mxu0
      %v3379 = vadd.f32 0.0, %v3378
      %3380 = vdwg.mxu0
      %v3381 = vmul.f32 %v3379, 0.25
      %v3382 = vsel %vm2081, %v3356, -inf
      %v3383 = vmax.f32 %v3354, %v3355
      %v3384 = vmax.f32 %v3383, %v3382
      %3385 = vmax.xlane.f32.xlu0 %v3384
      %v3386 = vpop.xlane.xlu0 %3385
      %v3387 = vsel %vm2087, %v3381, -inf
      %3388 = vmax.xlane.f32.xlu0 %v3387
      %v3389 = vpop.xlane.xlu0 %3388
      %v3390 = vmax.f32 %v3386, %v3389
      %v3391 = vsub.f32 %v3354, %v3390
      %v3392 = vsub.f32 %v3355, %v3390
      %v3393 = vsub.f32 %v3356, %v3390
      %v3394 = vmul.f32 %v3391, 1.442695
      %v3395 = vpow.pop %v3394
      %v3396 = vmul.f32 %v3392, 1.442695
      %v3397 = vpow.pop %v3396
      %v3398 = vmul.f32 %v3393, 1.442695
      %v3399 = vpow.pop %v3398
      %v3400 = vsub.f32 %v3381, %v3390
      %v3401 = vmul.f32 %v3400, 1.442695
      %v3402 = vpow.pop %v3401
      %v3403 = vadd.f32 %v3395, %v3397
      %v3404 = vsel %vm2081, %v3399, 0.0
      %v3405 = vadd.f32 %v3403, %v3404
      %3406 = vadd.xlane.f32.xlu0 %v3405
      %v3407 = vpop.xlane.xlu0 %3406
      %v3408 = vsel %vm2087, %v3402, 0.0
      %3409 = vadd.xlane.f32.xlu0 %v3408
      %v3410 = vpop.xlane.xlu0 %3409
      %v3411 = vadd.f32 %v3407, %v3410
      %v3412 = vrcp.pop %v3411
      %v3413 = vmul.f32 %v3395, %v3412
      %v3414 = vmul.f32 %v3397, %v3412
      %v3415 = vmul.f32 %v3399, %v3412
      %v3416 = vperm.slane %v1884, 3
      %v3417 = vperm.slane %v1885, 3
      %v3418 = vperm.slane %v1886, 3
      %v3419 = vmul.f32 %v3413, %v3416
      %v3420 = vmul.f32 %v3414, %v3417
      %v3421 = vmul.f32 %v3415, %v3418
      %v3422 = vmul.f32 %v3402, %v3412
      %v3423 = vperm.slane %v1887, 3
      %v3424 = vmul.f32 %v3422, %v3423
      %v3425 = vpack.c.bf16 %v3419, %v3419
      %v3426 = vpack.c.bf16 %v3420, %v3420
      %v3427 = vpack.c.bf16 %v3421, %v3421
      %v3428 = vpack.c.bf16 %v3424, %v3424
      %3429 = vrot.lane.b32.xlu0 %v2577, 80
      %v3430 = vpop.permute.xlu0 %3429
      %v3432 = vsel %vm2087, %v3428, 0
      %v3435 = vsel %vm2133, %v3430, 0
      %3437 = vmatpush.bf16.msra.mxu0 0
      %3438 = vmatpush.bf16.msra.mxu0 0
      %3439 = vmatpush.bf16.msra.mxu0 0
      %3440 = vmatpush.bf16.msra.mxu0 0
      %3441 = vmatpush.bf16.msra.mxu0 0
      %3442 = vmatpush.bf16.msra.mxu0 0
      %3443 = vmatpush.bf16.msra.mxu0 0
      %3444 = vmatpush.bf16.msra.mxu0 %v3435
      %3445 = vmatmul.bf16.gmra.mxu0 %v3432
      %v3446 = vpop.f32.mrf.mxu0
      %v3447 = vadd.f32 0.0, %v3446
      %v3448 = vpop.f32.mrf.mxu0
      %3449 = vdwg.mxu0
      %3450 = vrot.lane.b32.xlu0 %v2218, 80
      %v3451 = vpop.permute.xlu0 %3450
      %3452 = vrot.lane.b32.xlu0 %v2219, 80
      %v3453 = vpop.permute.xlu0 %3452
      %3454 = vrot.lane.b32.xlu0 %v2220, 80
      %v3455 = vpop.permute.xlu0 %3454
      %3456 = vrot.lane.b32.xlu0 %v2221, 80
      %v3457 = vpop.permute.xlu0 %3456
      %3458 = vrot.lane.b32.xlu0 %v2222, 80
      %v3459 = vpop.permute.xlu0 %3458
      %3460 = vrot.lane.b32.xlu0 %v2223, 80
      %v3461 = vpop.permute.xlu0 %3460
      %3462 = vrot.lane.b32.xlu0 %v2224, 80
      %v3463 = vpop.permute.xlu0 %3462
      %3464 = vrot.lane.b32.xlu0 %v2225, 80
      %v3465 = vpop.permute.xlu0 %3464
      %3466 = vrot.lane.b32.xlu0 %v2226, 80
      %v3467 = vpop.permute.xlu0 %3466
      %3468 = vrot.lane.b32.xlu0 %v2227, 80
      %v3469 = vpop.permute.xlu0 %3468
      %3470 = vrot.lane.b32.xlu0 %v2228, 80
      %v3471 = vpop.permute.xlu0 %3470
      %3472 = vrot.lane.b32.xlu0 %v2229, 80
      %v3473 = vpop.permute.xlu0 %3472
      %3474 = vrot.lane.b32.xlu0 %v2230, 80
      %v3475 = vpop.permute.xlu0 %3474
      %3476 = vrot.lane.b32.xlu0 %v2231, 80
      %v3477 = vpop.permute.xlu0 %3476
      %3478 = vrot.lane.b32.xlu0 %v2232, 80
      %v3479 = vpop.permute.xlu0 %3478
      %3480 = vrot.lane.b32.xlu0 %v2233, 80
      %v3481 = vpop.permute.xlu0 %3480
      %3482 = vrot.lane.b32.xlu0 %v2234, 80
      %v3483 = vpop.permute.xlu0 %3482
      %v3501 = vsel %vm2081, %v3427, 0
      %v3504 = vand.u32 %v3483, %v2256
      %3506 = vmatpush.bf16.msra.mxu0 %v3465
      %3507 = vmatpush.bf16.msra.mxu0 %v3463
      %3508 = vmatpush.bf16.msra.mxu0 %v3461
      %3509 = vmatpush.bf16.msra.mxu0 %v3459
      %3510 = vmatpush.bf16.msra.mxu0 %v3457
      %3511 = vmatpush.bf16.msra.mxu0 %v3455
      %3512 = vmatpush.bf16.msra.mxu0 %v3453
      %3513 = vmatpush.bf16.msra.mxu0 %v3451
      %3514 = vmatmul.bf16.gmra.mxu0 %v3425
      %v3515 = vpop.f32.mrf.mxu0
      %v3516 = vadd.f32 %v3447, %v3515
      %v3517 = vpop.f32.mrf.mxu0
      %3518 = vdwg.mxu0
      %3519 = vmatpush.bf16.msra.mxu0 %v3481
      %3520 = vmatpush.bf16.msra.mxu0 %v3479
      %3521 = vmatpush.bf16.msra.mxu0 %v3477
      %3522 = vmatpush.bf16.msra.mxu0 %v3475
      %3523 = vmatpush.bf16.msra.mxu0 %v3473
      %3524 = vmatpush.bf16.msra.mxu0 %v3471
      %3525 = vmatpush.bf16.msra.mxu0 %v3469
      %3526 = vmatpush.bf16.msra.mxu0 %v3467
      %3527 = vmatmul.bf16.gmra.mxu0 %v3426
      %v3528 = vpop.f32.mrf.mxu0
      %v3529 = vadd.f32 %v3516, %v3528
      %v3530 = vpop.f32.mrf.mxu0
      %3531 = vdwg.mxu0
      %3532 = vmatpush.bf16.msra.mxu0 0
      %3533 = vmatpush.bf16.msra.mxu0 0
      %3534 = vmatpush.bf16.msra.mxu0 0
      %3535 = vmatpush.bf16.msra.mxu0 0
      %3536 = vmatpush.bf16.msra.mxu0 0
      %3537 = vmatpush.bf16.msra.mxu0 0
      %3538 = vmatpush.bf16.msra.mxu0 0
      %3539 = vmatpush.bf16.msra.mxu0 %v3504
      %3540 = vmatmul.bf16.gmra.mxu0 %v3501
      %v3541 = vpop.f32.mrf.mxu0
      %v3542 = vadd.f32 %v3529, %v3541
      %v3543 = vpop.f32.mrf.mxu0
      %3544 = vdwg.mxu0
      %v3545 = vpack.c.bf16 %v3542, %v3542
      %v3548 = vunpack.c.l.b16 %v1486
      %v3549 = vunpack.c.l.b16 %v1487
      %v3550 = vpack.c.b16 %v3549, %v3548
      %v3553 = vsel %vm1888, %v3545, 0
      %3555 = vmatpush.bf16.msra.mxu0 0
      %3556 = vmatpush.bf16.msra.mxu0 0
      %3557 = vmatpush.bf16.msra.mxu0 0
      %3558 = vmatpush.bf16.msra.mxu0 0
      %3559 = vmatpush.bf16.msra.mxu0 0
      %3560 = vmatpush.bf16.msra.mxu0 0
      %3561 = vmatpush.bf16.msra.mxu0 0
      %3562 = vmatpush.bf16.msra.mxu0 %v3550
      %3563 = vmatmul.bf16.gmra.mxu0 %v3553
      %v3564 = vpop.f32.mrf.mxu0
      %v3565 = vadd.f32 0.0, %v3564
      %v3566 = vpop.f32.mrf.mxu0
      %3567 = vdwg.mxu0
      %v3568 = vadd.f32 %v3153, %v3565
      %3569 = vrot.lane.b32.xlu0 %v1533, 64
      %v3570 = vpop.permute.xlu0 %3569
      %3571 = vrot.lane.b32.xlu0 %v1621, 64
      %v3572 = vpop.permute.xlu0 %3571
      %3573 = vrot.lane.b32.xlu0 %v1623, 64
      %v3574 = vpop.permute.xlu0 %3573
      %3575 = vrot.lane.b32.xlu0 %v1626, 64
      %v3576 = vpop.permute.xlu0 %3575
      %3577 = vrot.lane.b32.xlu0 %v1628, 64
      %v3578 = vpop.permute.xlu0 %3577
      %3579 = vrot.lane.b32.xlu0 %v1631, 64
      %v3580 = vpop.permute.xlu0 %3579
      %3581 = vrot.lane.b32.xlu0 %v1633, 64
      %v3582 = vpop.permute.xlu0 %3581
      %3583 = vrot.lane.b32.xlu0 %v1636, 64
      %v3584 = vpop.permute.xlu0 %3583
      %3585 = vrot.lane.b32.xlu0 %v1638, 64
      %v3586 = vpop.permute.xlu0 %3585
      %3587 = vrot.lane.b32.xlu0 %v1641, 64
      %v3588 = vpop.permute.xlu0 %3587
      %3589 = vrot.lane.b32.xlu0 %v1643, 64
      %v3590 = vpop.permute.xlu0 %3589
      %3591 = vrot.lane.b32.xlu0 %v1646, 64
      %v3592 = vpop.permute.xlu0 %3591
      %3593 = vrot.lane.b32.xlu0 %v1648, 64
      %v3594 = vpop.permute.xlu0 %3593
      %3595 = vrot.lane.b32.xlu0 %v1651, 64
      %v3596 = vpop.permute.xlu0 %3595
      %3597 = vrot.lane.b32.xlu0 %v1653, 64
      %v3598 = vpop.permute.xlu0 %3597
      %3599 = vrot.lane.b32.xlu0 %v1656, 64
      %v3600 = vpop.permute.xlu0 %3599
      %3601 = vrot.lane.b32.xlu0 %v1658, 64
      %v3602 = vpop.permute.xlu0 %3601
      %3603 = vrot.lane.b32.xlu0 %v1661, 64
      %v3604 = vpop.permute.xlu0 %3603
      %3605 = vrot.lane.b32.xlu0 %v1663, 64
      %v3606 = vpop.permute.xlu0 %3605
      %3607 = vrot.lane.b32.xlu0 %v1666, 64
      %v3608 = vpop.permute.xlu0 %3607
      %3609 = vrot.lane.b32.xlu0 %v1668, 64
      %v3610 = vpop.permute.xlu0 %3609
      %3611 = vrot.lane.b32.xlu0 %v1671, 64
      %v3612 = vpop.permute.xlu0 %3611
      %3613 = vrot.lane.b32.xlu0 %v1673, 64
      %v3614 = vpop.permute.xlu0 %3613
      %3615 = vrot.lane.b32.xlu0 %v1676, 64
      %v3616 = vpop.permute.xlu0 %3615
      %3617 = vrot.lane.b32.xlu0 %v1678, 64
      %v3618 = vpop.permute.xlu0 %3617
      %3619 = vrot.lane.b32.xlu0 %v1681, 64
      %v3620 = vpop.permute.xlu0 %3619
      %3621 = vrot.lane.b32.xlu0 %v1683, 64
      %v3622 = vpop.permute.xlu0 %3621
      %3623 = vrot.lane.b32.xlu0 %v1686, 64
      %v3624 = vpop.permute.xlu0 %3623
      %3625 = vrot.lane.b32.xlu0 %v1688, 64
      %v3626 = vpop.permute.xlu0 %3625
      %3627 = vrot.lane.b32.xlu0 %v1691, 64
      %v3628 = vpop.permute.xlu0 %3627
      %3629 = vrot.lane.b32.xlu0 %v1693, 64
      %v3630 = vpop.permute.xlu0 %3629
      %3631 = vrot.lane.b32.xlu0 %v1696, 64
      %v3632 = vpop.permute.xlu0 %3631
      %3633 = vrot.lane.b32.xlu0 %v1698, 64
      %v3634 = vpop.permute.xlu0 %3633
      %3635 = vrot.lane.b32.xlu0 %v1701, 64
      %v3636 = vpop.permute.xlu0 %3635
      %3637 = vrot.lane.b32.xlu0 %v1703, 64
      %v3638 = vpop.permute.xlu0 %3637
      %v3639 = vsel %vm1888, %v3570, 0
      %v3641 = vsel %vm1888, %v3572, 0
      %v3643 = vsel %vm1888, %v3574, 0
      %v3645 = vsel %vm1888, %v3576, 0
      %v3647 = vsel %vm1888, %v3578, 0
      %v3649 = vsel %vm1888, %v3580, 0
      %v3651 = vsel %vm1888, %v3582, 0
      %v3653 = vsel %vm1888, %v3584, 0
      %v3655 = vsel %vm1888, %v3586, 0
      %v3657 = vsel %vm1888, %v3588, 0
      %v3659 = vsel %vm1888, %v3590, 0
      %v3661 = vsel %vm1888, %v3592, 0
      %v3663 = vsel %vm1888, %v3594, 0
      %v3665 = vsel %vm1888, %v3596, 0
      %v3667 = vsel %vm1888, %v3598, 0
      %v3669 = vsel %vm1888, %v3600, 0
      %v3671 = vsel %vm1888, %v3602, 0
      %v3673 = vsel %vm1888, %v3604, 0
      %v3675 = vsel %vm1888, %v3606, 0
      %v3677 = vsel %vm1888, %v3608, 0
      %v3679 = vsel %vm1888, %v3610, 0
      %v3681 = vsel %vm1888, %v3612, 0
      %v3683 = vsel %vm1888, %v3614, 0
      %v3685 = vsel %vm1888, %v3616, 0
      %v3687 = vsel %vm1888, %v3618, 0
      %v3689 = vsel %vm1888, %v3620, 0
      %v3691 = vsel %vm1888, %v3622, 0
      %v3693 = vsel %vm1888, %v3624, 0
      %v3695 = vsel %vm1888, %v3626, 0
      %v3697 = vsel %vm1888, %v3628, 0
      %v3699 = vsel %vm1888, %v3630, 0
      %v3701 = vsel %vm1888, %v3632, 0
      %v3703 = vsel %vm1888, %v3634, 0
      %v3705 = vsel %vm1888, %v3636, 0
      %v3707 = vsel %vm1888, %v3638, 0
      %3709 = vmatpush.xpose.msra.mxu0 %v3671
      %3710 = vmatpush.xpose.msra.mxu0 %v3669
      %3711 = vmatpush.xpose.msra.mxu0 %v3667
      %3712 = vmatpush.xpose.msra.mxu0 %v3665
      %3713 = vmatpush.xpose.msra.mxu0 %v3663
      %3714 = vmatpush.xpose.msra.mxu0 %v3661
      %3715 = vmatpush.xpose.msra.mxu0 %v3659
      %3716 = vmatpush.xpose.msra.mxu0 %v3657
      %3717 = vmatpush.xpose.msra.mxu0 %v3655
      %3718 = vmatpush.xpose.msra.mxu0 %v3653
      %3719 = vmatpush.xpose.msra.mxu0 %v3651
      %3720 = vmatpush.xpose.msra.mxu0 %v3649
      %3721 = vmatpush.xpose.msra.mxu0 %v3647
      %3722 = vmatpush.xpose.msra.mxu0 %v3645
      %3723 = vmatpush.xpose.msra.mxu0 %v3643
      %3724 = vmatpush.xpose.msra.mxu0 %v3641
      %3725 = vmatmul.f32.gmra.mxu0 %v3639
      %v3726 = vpop.f32.mrf.mxu0
      %v3727 = vadd.f32 0.0, %v3726
      %3728 = vdwg.mxu0
      %3729 = vmatpush.xpose.msra.mxu0 %v3703
      %3730 = vmatpush.xpose.msra.mxu0 %v3701
      %3731 = vmatpush.xpose.msra.mxu0 %v3699
      %3732 = vmatpush.xpose.msra.mxu0 %v3697
      %3733 = vmatpush.xpose.msra.mxu0 %v3695
      %3734 = vmatpush.xpose.msra.mxu0 %v3693
      %3735 = vmatpush.xpose.msra.mxu0 %v3691
      %3736 = vmatpush.xpose.msra.mxu0 %v3689
      %3737 = vmatpush.xpose.msra.mxu0 %v3687
      %3738 = vmatpush.xpose.msra.mxu0 %v3685
      %3739 = vmatpush.xpose.msra.mxu0 %v3683
      %3740 = vmatpush.xpose.msra.mxu0 %v3681
      %3741 = vmatpush.xpose.msra.mxu0 %v3679
      %3742 = vmatpush.xpose.msra.mxu0 %v3677
      %3743 = vmatpush.xpose.msra.mxu0 %v3675
      %3744 = vmatpush.xpose.msra.mxu0 %v3673
      %3745 = vmatmul.f32.gmra.mxu0 %v3639
      %v3746 = vpop.f32.mrf.mxu0
      %v3747 = vadd.f32 0.0, %v3746
      %3748 = vdwg.mxu0
      %3749 = vmatpush.xpose.msra.mxu0 0.0
      %3750 = vmatpush.xpose.msra.mxu0 0.0
      %3751 = vmatpush.xpose.msra.mxu0 0.0
      %3752 = vmatpush.xpose.msra.mxu0 0.0
      %3753 = vmatpush.xpose.msra.mxu0 0.0
      %3754 = vmatpush.xpose.msra.mxu0 0.0
      %3755 = vmatpush.xpose.msra.mxu0 0.0
      %3756 = vmatpush.xpose.msra.mxu0 0.0
      %3757 = vmatpush.xpose.msra.mxu0 0.0
      %3758 = vmatpush.xpose.msra.mxu0 0.0
      %3759 = vmatpush.xpose.msra.mxu0 0.0
      %3760 = vmatpush.xpose.msra.mxu0 0.0
      %3761 = vmatpush.xpose.msra.mxu0 0.0
      %3762 = vmatpush.xpose.msra.mxu0 0.0
      %3763 = vmatpush.xpose.msra.mxu0 %v3707
      %3764 = vmatpush.xpose.msra.mxu0 %v3705
      %3765 = vmatmul.f32.gmra.mxu0 %v3639
      %v3766 = vpop.f32.mrf.mxu0
      %v3767 = vadd.f32 0.0, %v3766
      %3768 = vdwg.mxu0
      %v3769 = vmul.f32 %v3727, 0.25
      %v3770 = vmul.f32 %v3747, 0.25
      %v3771 = vmul.f32 %v3767, 0.25
      %3772 = vrot.lane.b32.xlu0 %v1715, 64
      %v3773 = vpop.permute.xlu0 %3772
      %v3774 = vsel %vm1888, %v3773, 0
      %3776 = vmatpush.xpose.msra.mxu0 0.0
      %3777 = vmatpush.xpose.msra.mxu0 0.0
      %3778 = vmatpush.xpose.msra.mxu0 0.0
      %3779 = vmatpush.xpose.msra.mxu0 0.0
      %3780 = vmatpush.xpose.msra.mxu0 0.0
      %3781 = vmatpush.xpose.msra.mxu0 0.0
      %3782 = vmatpush.xpose.msra.mxu0 0.0
      %3783 = vmatpush.xpose.msra.mxu0 0.0
      %3784 = vmatpush.xpose.msra.mxu0 0.0
      %3785 = vmatpush.xpose.msra.mxu0 0.0
      %3786 = vmatpush.xpose.msra.mxu0 0.0
      %3787 = vmatpush.xpose.msra.mxu0 0.0
      %3788 = vmatpush.xpose.msra.mxu0 0.0
      %3789 = vmatpush.xpose.msra.mxu0 0.0
      %3790 = vmatpush.xpose.msra.mxu0 0.0
      %3791 = vmatpush.xpose.msra.mxu0 %v3774
      %3792 = vmatmul.f32.gmra.mxu0 %v3639
      %v3793 = vpop.f32.mrf.mxu0
      %v3794 = vadd.f32 0.0, %v3793
      %3795 = vdwg.mxu0
      %v3796 = vmul.f32 %v3794, 0.25
      %v3797 = vsel %vm2081, %v3771, -inf
      %v3798 = vmax.f32 %v3769, %v3770
      %v3799 = vmax.f32 %v3798, %v3797
      %3800 = vmax.xlane.f32.xlu0 %v3799
      %v3801 = vpop.xlane.xlu0 %3800
      %v3802 = vsel %vm2087, %v3796, -inf
      %3803 = vmax.xlane.f32.xlu0 %v3802
      %v3804 = vpop.xlane.xlu0 %3803
      %v3805 = vmax.f32 %v3801, %v3804
      %v3806 = vsub.f32 %v3769, %v3805
      %v3807 = vsub.f32 %v3770, %v3805
      %v3808 = vsub.f32 %v3771, %v3805
      %v3809 = vmul.f32 %v3806, 1.442695
      %v3810 = vpow.pop %v3809
      %v3811 = vmul.f32 %v3807, 1.442695
      %v3812 = vpow.pop %v3811
      %v3813 = vmul.f32 %v3808, 1.442695
      %v3814 = vpow.pop %v3813
      %v3815 = vsub.f32 %v3796, %v3805
      %v3816 = vmul.f32 %v3815, 1.442695
      %v3817 = vpow.pop %v3816
      %v3818 = vadd.f32 %v3810, %v3812
      %v3819 = vsel %vm2081, %v3814, 0.0
      %v3820 = vadd.f32 %v3818, %v3819
      %3821 = vadd.xlane.f32.xlu0 %v3820
      %v3822 = vpop.xlane.xlu0 %3821
      %v3823 = vsel %vm2087, %v3817, 0.0
      %3824 = vadd.xlane.f32.xlu0 %v3823
      %v3825 = vpop.xlane.xlu0 %3824
      %v3826 = vadd.f32 %v3822, %v3825
      %v3827 = vrcp.pop %v3826
      %v3828 = vmul.f32 %v3810, %v3827
      %v3829 = vmul.f32 %v3812, %v3827
      %v3830 = vmul.f32 %v3814, %v3827
      %v3831 = vperm.slane %v1884, 4
      %v3832 = vperm.slane %v1885, 4
      %v3833 = vperm.slane %v1886, 4
      %v3834 = vmul.f32 %v3828, %v3831
      %v3835 = vmul.f32 %v3829, %v3832
      %v3836 = vmul.f32 %v3830, %v3833
      %v3837 = vmul.f32 %v3817, %v3827
      %v3838 = vperm.slane %v1887, 4
      %v3839 = vmul.f32 %v3837, %v3838
      %v3840 = vpack.c.bf16 %v3834, %v3834
      %v3841 = vpack.c.bf16 %v3835, %v3835
      %v3842 = vpack.c.bf16 %v3836, %v3836
      %v3843 = vpack.c.bf16 %v3839, %v3839
      %3844 = vrot.lane.b32.xlu0 %v2577, 64
      %v3845 = vpop.permute.xlu0 %3844
      %v3847 = vsel %vm2087, %v3843, 0
      %v3850 = vsel %vm2133, %v3845, 0
      %3852 = vmatpush.bf16.msra.mxu0 0
      %3853 = vmatpush.bf16.msra.mxu0 0
      %3854 = vmatpush.bf16.msra.mxu0 0
      %3855 = vmatpush.bf16.msra.mxu0 0
      %3856 = vmatpush.bf16.msra.mxu0 0
      %3857 = vmatpush.bf16.msra.mxu0 0
      %3858 = vmatpush.bf16.msra.mxu0 0
      %3859 = vmatpush.bf16.msra.mxu0 %v3850
      %3860 = vmatmul.bf16.gmra.mxu0 %v3847
      %v3861 = vpop.f32.mrf.mxu0
      %v3862 = vadd.f32 0.0, %v3861
      %v3863 = vpop.f32.mrf.mxu0
      %3864 = vdwg.mxu0
      %3865 = vrot.lane.b32.xlu0 %v2218, 64
      %v3866 = vpop.permute.xlu0 %3865
      %3867 = vrot.lane.b32.xlu0 %v2219, 64
      %v3868 = vpop.permute.xlu0 %3867
      %3869 = vrot.lane.b32.xlu0 %v2220, 64
      %v3870 = vpop.permute.xlu0 %3869
      %3871 = vrot.lane.b32.xlu0 %v2221, 64
      %v3872 = vpop.permute.xlu0 %3871
      %3873 = vrot.lane.b32.xlu0 %v2222, 64
      %v3874 = vpop.permute.xlu0 %3873
      %3875 = vrot.lane.b32.xlu0 %v2223, 64
      %v3876 = vpop.permute.xlu0 %3875
      %3877 = vrot.lane.b32.xlu0 %v2224, 64
      %v3878 = vpop.permute.xlu0 %3877
      %3879 = vrot.lane.b32.xlu0 %v2225, 64
      %v3880 = vpop.permute.xlu0 %3879
      %3881 = vrot.lane.b32.xlu0 %v2226, 64
      %v3882 = vpop.permute.xlu0 %3881
      %3883 = vrot.lane.b32.xlu0 %v2227, 64
      %v3884 = vpop.permute.xlu0 %3883
      %3885 = vrot.lane.b32.xlu0 %v2228, 64
      %v3886 = vpop.permute.xlu0 %3885
      %3887 = vrot.lane.b32.xlu0 %v2229, 64
      %v3888 = vpop.permute.xlu0 %3887
      %3889 = vrot.lane.b32.xlu0 %v2230, 64
      %v3890 = vpop.permute.xlu0 %3889
      %3891 = vrot.lane.b32.xlu0 %v2231, 64
      %v3892 = vpop.permute.xlu0 %3891
      %3893 = vrot.lane.b32.xlu0 %v2232, 64
      %v3894 = vpop.permute.xlu0 %3893
      %3895 = vrot.lane.b32.xlu0 %v2233, 64
      %v3896 = vpop.permute.xlu0 %3895
      %3897 = vrot.lane.b32.xlu0 %v2234, 64
      %v3898 = vpop.permute.xlu0 %3897
      %v3916 = vsel %vm2081, %v3842, 0
      %v3919 = vand.u32 %v3898, %v2256
      %3921 = vmatpush.bf16.msra.mxu0 %v3880
      %3922 = vmatpush.bf16.msra.mxu0 %v3878
      %3923 = vmatpush.bf16.msra.mxu0 %v3876
      %3924 = vmatpush.bf16.msra.mxu0 %v3874
      %3925 = vmatpush.bf16.msra.mxu0 %v3872
      %3926 = vmatpush.bf16.msra.mxu0 %v3870
      %3927 = vmatpush.bf16.msra.mxu0 %v3868
      %3928 = vmatpush.bf16.msra.mxu0 %v3866
      %3929 = vmatmul.bf16.gmra.mxu0 %v3840
      %v3930 = vpop.f32.mrf.mxu0
      %v3931 = vadd.f32 %v3862, %v3930
      %v3932 = vpop.f32.mrf.mxu0
      %3933 = vdwg.mxu0
      %3934 = vmatpush.bf16.msra.mxu0 %v3896
      %3935 = vmatpush.bf16.msra.mxu0 %v3894
      %3936 = vmatpush.bf16.msra.mxu0 %v3892
      %3937 = vmatpush.bf16.msra.mxu0 %v3890
      %3938 = vmatpush.bf16.msra.mxu0 %v3888
      %3939 = vmatpush.bf16.msra.mxu0 %v3886
      %3940 = vmatpush.bf16.msra.mxu0 %v3884
      %3941 = vmatpush.bf16.msra.mxu0 %v3882
      %3942 = vmatmul.bf16.gmra.mxu0 %v3841
      %v3943 = vpop.f32.mrf.mxu0
      %v3944 = vadd.f32 %v3931, %v3943
      %v3945 = vpop.f32.mrf.mxu0
      %3946 = vdwg.mxu0
      %3947 = vmatpush.bf16.msra.mxu0 0
      %3948 = vmatpush.bf16.msra.mxu0 0
      %3949 = vmatpush.bf16.msra.mxu0 0
      %3950 = vmatpush.bf16.msra.mxu0 0
      %3951 = vmatpush.bf16.msra.mxu0 0
      %3952 = vmatpush.bf16.msra.mxu0 0
      %3953 = vmatpush.bf16.msra.mxu0 0
      %3954 = vmatpush.bf16.msra.mxu0 %v3919
      %3955 = vmatmul.bf16.gmra.mxu0 %v3916
      %v3956 = vpop.f32.mrf.mxu0
      %v3957 = vadd.f32 %v3944, %v3956
      %v3958 = vpop.f32.mrf.mxu0
      %3959 = vdwg.mxu0
      %v3960 = vpack.c.bf16 %v3957, %v3957
      %v3963 = vunpack.c.l.b16 %v1488
      %v3964 = vunpack.c.l.b16 %v1489
      %v3965 = vpack.c.b16 %v3964, %v3963
      %v3968 = vsel %vm1888, %v3960, 0
      %3970 = vmatpush.bf16.msra.mxu0 0
      %3971 = vmatpush.bf16.msra.mxu0 0
      %3972 = vmatpush.bf16.msra.mxu0 0
      %3973 = vmatpush.bf16.msra.mxu0 0
      %3974 = vmatpush.bf16.msra.mxu0 0
      %3975 = vmatpush.bf16.msra.mxu0 0
      %3976 = vmatpush.bf16.msra.mxu0 0
      %3977 = vmatpush.bf16.msra.mxu0 %v3965
      %3978 = vmatmul.bf16.gmra.mxu0 %v3968
      %v3979 = vpop.f32.mrf.mxu0
      %v3980 = vadd.f32 0.0, %v3979
      %v3981 = vpop.f32.mrf.mxu0
      %3982 = vdwg.mxu0
      %v3983 = vadd.f32 %v3568, %v3980
      %3984 = vrot.lane.b32.xlu0 %v1533, 48
      %v3985 = vpop.permute.xlu0 %3984
      %3986 = vrot.lane.b32.xlu0 %v1621, 48
      %v3987 = vpop.permute.xlu0 %3986
      %3988 = vrot.lane.b32.xlu0 %v1623, 48
      %v3989 = vpop.permute.xlu0 %3988
      %3990 = vrot.lane.b32.xlu0 %v1626, 48
      %v3991 = vpop.permute.xlu0 %3990
      %3992 = vrot.lane.b32.xlu0 %v1628, 48
      %v3993 = vpop.permute.xlu0 %3992
      %3994 = vrot.lane.b32.xlu0 %v1631, 48
      %v3995 = vpop.permute.xlu0 %3994
      %3996 = vrot.lane.b32.xlu0 %v1633, 48
      %v3997 = vpop.permute.xlu0 %3996
      %3998 = vrot.lane.b32.xlu0 %v1636, 48
      %v3999 = vpop.permute.xlu0 %3998
      %4000 = vrot.lane.b32.xlu0 %v1638, 48
      %v4001 = vpop.permute.xlu0 %4000
      %4002 = vrot.lane.b32.xlu0 %v1641, 48
      %v4003 = vpop.permute.xlu0 %4002
      %4004 = vrot.lane.b32.xlu0 %v1643, 48
      %v4005 = vpop.permute.xlu0 %4004
      %4006 = vrot.lane.b32.xlu0 %v1646, 48
      %v4007 = vpop.permute.xlu0 %4006
      %4008 = vrot.lane.b32.xlu0 %v1648, 48
      %v4009 = vpop.permute.xlu0 %4008
      %4010 = vrot.lane.b32.xlu0 %v1651, 48
      %v4011 = vpop.permute.xlu0 %4010
      %4012 = vrot.lane.b32.xlu0 %v1653, 48
      %v4013 = vpop.permute.xlu0 %4012
      %4014 = vrot.lane.b32.xlu0 %v1656, 48
      %v4015 = vpop.permute.xlu0 %4014
      %4016 = vrot.lane.b32.xlu0 %v1658, 48
      %v4017 = vpop.permute.xlu0 %4016
      %4018 = vrot.lane.b32.xlu0 %v1661, 48
      %v4019 = vpop.permute.xlu0 %4018
      %4020 = vrot.lane.b32.xlu0 %v1663, 48
      %v4021 = vpop.permute.xlu0 %4020
      %4022 = vrot.lane.b32.xlu0 %v1666, 48
      %v4023 = vpop.permute.xlu0 %4022
      %4024 = vrot.lane.b32.xlu0 %v1668, 48
      %v4025 = vpop.permute.xlu0 %4024
      %4026 = vrot.lane.b32.xlu0 %v1671, 48
      %v4027 = vpop.permute.xlu0 %4026
      %4028 = vrot.lane.b32.xlu0 %v1673, 48
      %v4029 = vpop.permute.xlu0 %4028
      %4030 = vrot.lane.b32.xlu0 %v1676, 48
      %v4031 = vpop.permute.xlu0 %4030
      %4032 = vrot.lane.b32.xlu0 %v1678, 48
      %v4033 = vpop.permute.xlu0 %4032
      %4034 = vrot.lane.b32.xlu0 %v1681, 48
      %v4035 = vpop.permute.xlu0 %4034
      %4036 = vrot.lane.b32.xlu0 %v1683, 48
      %v4037 = vpop.permute.xlu0 %4036
      %4038 = vrot.lane.b32.xlu0 %v1686, 48
      %v4039 = vpop.permute.xlu0 %4038
      %4040 = vrot.lane.b32.xlu0 %v1688, 48
      %v4041 = vpop.permute.xlu0 %4040
      %4042 = vrot.lane.b32.xlu0 %v1691, 48
      %v4043 = vpop.permute.xlu0 %4042
      %4044 = vrot.lane.b32.xlu0 %v1693, 48
      %v4045 = vpop.permute.xlu0 %4044
      %4046 = vrot.lane.b32.xlu0 %v1696, 48
      %v4047 = vpop.permute.xlu0 %4046
      %4048 = vrot.lane.b32.xlu0 %v1698, 48
      %v4049 = vpop.permute.xlu0 %4048
      %4050 = vrot.lane.b32.xlu0 %v1701, 48
      %v4051 = vpop.permute.xlu0 %4050
      %4052 = vrot.lane.b32.xlu0 %v1703, 48
      %v4053 = vpop.permute.xlu0 %4052
      %v4054 = vsel %vm1888, %v3985, 0
      %v4056 = vsel %vm1888, %v3987, 0
      %v4058 = vsel %vm1888, %v3989, 0
      %v4060 = vsel %vm1888, %v3991, 0
      %v4062 = vsel %vm1888, %v3993, 0
      %v4064 = vsel %vm1888, %v3995, 0
      %v4066 = vsel %vm1888, %v3997, 0
      %v4068 = vsel %vm1888, %v3999, 0
      %v4070 = vsel %vm1888, %v4001, 0
      %v4072 = vsel %vm1888, %v4003, 0
      %v4074 = vsel %vm1888, %v4005, 0
      %v4076 = vsel %vm1888, %v4007, 0
      %v4078 = vsel %vm1888, %v4009, 0
      %v4080 = vsel %vm1888, %v4011, 0
      %v4082 = vsel %vm1888, %v4013, 0
      %v4084 = vsel %vm1888, %v4015, 0
      %v4086 = vsel %vm1888, %v4017, 0
      %v4088 = vsel %vm1888, %v4019, 0
      %v4090 = vsel %vm1888, %v4021, 0
      %v4092 = vsel %vm1888, %v4023, 0
      %v4094 = vsel %vm1888, %v4025, 0
      %v4096 = vsel %vm1888, %v4027, 0
      %v4098 = vsel %vm1888, %v4029, 0
      %v4100 = vsel %vm1888, %v4031, 0
      %v4102 = vsel %vm1888, %v4033, 0
      %v4104 = vsel %vm1888, %v4035, 0
      %v4106 = vsel %vm1888, %v4037, 0
      %v4108 = vsel %vm1888, %v4039, 0
      %v4110 = vsel %vm1888, %v4041, 0
      %v4112 = vsel %vm1888, %v4043, 0
      %v4114 = vsel %vm1888, %v4045, 0
      %v4116 = vsel %vm1888, %v4047, 0
      %v4118 = vsel %vm1888, %v4049, 0
      %v4120 = vsel %vm1888, %v4051, 0
      %v4122 = vsel %vm1888, %v4053, 0
      %4124 = vmatpush.xpose.msra.mxu0 %v4086
      %4125 = vmatpush.xpose.msra.mxu0 %v4084
      %4126 = vmatpush.xpose.msra.mxu0 %v4082
      %4127 = vmatpush.xpose.msra.mxu0 %v4080
      %4128 = vmatpush.xpose.msra.mxu0 %v4078
      %4129 = vmatpush.xpose.msra.mxu0 %v4076
      %4130 = vmatpush.xpose.msra.mxu0 %v4074
      %4131 = vmatpush.xpose.msra.mxu0 %v4072
      %4132 = vmatpush.xpose.msra.mxu0 %v4070
      %4133 = vmatpush.xpose.msra.mxu0 %v4068
      %4134 = vmatpush.xpose.msra.mxu0 %v4066
      %4135 = vmatpush.xpose.msra.mxu0 %v4064
      %4136 = vmatpush.xpose.msra.mxu0 %v4062
      %4137 = vmatpush.xpose.msra.mxu0 %v4060
      %4138 = vmatpush.xpose.msra.mxu0 %v4058
      %4139 = vmatpush.xpose.msra.mxu0 %v4056
      %4140 = vmatmul.f32.gmra.mxu0 %v4054
      %v4141 = vpop.f32.mrf.mxu0
      %v4142 = vadd.f32 0.0, %v4141
      %4143 = vdwg.mxu0
      %4144 = vmatpush.xpose.msra.mxu0 %v4118
      %4145 = vmatpush.xpose.msra.mxu0 %v4116
      %4146 = vmatpush.xpose.msra.mxu0 %v4114
      %4147 = vmatpush.xpose.msra.mxu0 %v4112
      %4148 = vmatpush.xpose.msra.mxu0 %v4110
      %4149 = vmatpush.xpose.msra.mxu0 %v4108
      %4150 = vmatpush.xpose.msra.mxu0 %v4106
      %4151 = vmatpush.xpose.msra.mxu0 %v4104
      %4152 = vmatpush.xpose.msra.mxu0 %v4102
      %4153 = vmatpush.xpose.msra.mxu0 %v4100
      %4154 = vmatpush.xpose.msra.mxu0 %v4098
      %4155 = vmatpush.xpose.msra.mxu0 %v4096
      %4156 = vmatpush.xpose.msra.mxu0 %v4094
      %4157 = vmatpush.xpose.msra.mxu0 %v4092
      %4158 = vmatpush.xpose.msra.mxu0 %v4090
      %4159 = vmatpush.xpose.msra.mxu0 %v4088
      %4160 = vmatmul.f32.gmra.mxu0 %v4054
      %v4161 = vpop.f32.mrf.mxu0
      %v4162 = vadd.f32 0.0, %v4161
      %4163 = vdwg.mxu0
      %4164 = vmatpush.xpose.msra.mxu0 0.0
      %4165 = vmatpush.xpose.msra.mxu0 0.0
      %4166 = vmatpush.xpose.msra.mxu0 0.0
      %4167 = vmatpush.xpose.msra.mxu0 0.0
      %4168 = vmatpush.xpose.msra.mxu0 0.0
      %4169 = vmatpush.xpose.msra.mxu0 0.0
      %4170 = vmatpush.xpose.msra.mxu0 0.0
      %4171 = vmatpush.xpose.msra.mxu0 0.0
      %4172 = vmatpush.xpose.msra.mxu0 0.0
      %4173 = vmatpush.xpose.msra.mxu0 0.0
      %4174 = vmatpush.xpose.msra.mxu0 0.0
      %4175 = vmatpush.xpose.msra.mxu0 0.0
      %4176 = vmatpush.xpose.msra.mxu0 0.0
      %4177 = vmatpush.xpose.msra.mxu0 0.0
      %4178 = vmatpush.xpose.msra.mxu0 %v4122
      %4179 = vmatpush.xpose.msra.mxu0 %v4120
      %4180 = vmatmul.f32.gmra.mxu0 %v4054
      %v4181 = vpop.f32.mrf.mxu0
      %v4182 = vadd.f32 0.0, %v4181
      %4183 = vdwg.mxu0
      %v4184 = vmul.f32 %v4142, 0.25
      %v4185 = vmul.f32 %v4162, 0.25
      %v4186 = vmul.f32 %v4182, 0.25
      %4187 = vrot.lane.b32.xlu0 %v1715, 48
      %v4188 = vpop.permute.xlu0 %4187
      %v4189 = vsel %vm1888, %v4188, 0
      %4191 = vmatpush.xpose.msra.mxu0 0.0
      %4192 = vmatpush.xpose.msra.mxu0 0.0
      %4193 = vmatpush.xpose.msra.mxu0 0.0
      %4194 = vmatpush.xpose.msra.mxu0 0.0
      %4195 = vmatpush.xpose.msra.mxu0 0.0
      %4196 = vmatpush.xpose.msra.mxu0 0.0
      %4197 = vmatpush.xpose.msra.mxu0 0.0
      %4198 = vmatpush.xpose.msra.mxu0 0.0
      %4199 = vmatpush.xpose.msra.mxu0 0.0
      %4200 = vmatpush.xpose.msra.mxu0 0.0
      %4201 = vmatpush.xpose.msra.mxu0 0.0
      %4202 = vmatpush.xpose.msra.mxu0 0.0
      %4203 = vmatpush.xpose.msra.mxu0 0.0
      %4204 = vmatpush.xpose.msra.mxu0 0.0
      %4205 = vmatpush.xpose.msra.mxu0 0.0
      %4206 = vmatpush.xpose.msra.mxu0 %v4189
      %4207 = vmatmul.f32.gmra.mxu0 %v4054
      %v4208 = vpop.f32.mrf.mxu0
      %v4209 = vadd.f32 0.0, %v4208
      %4210 = vdwg.mxu0
      %v4211 = vmul.f32 %v4209, 0.25
      %v4212 = vsel %vm2081, %v4186, -inf
      %v4213 = vmax.f32 %v4184, %v4185
      %v4214 = vmax.f32 %v4213, %v4212
      %4215 = vmax.xlane.f32.xlu0 %v4214
      %v4216 = vpop.xlane.xlu0 %4215
      %v4217 = vsel %vm2087, %v4211, -inf
      %4218 = vmax.xlane.f32.xlu0 %v4217
      %v4219 = vpop.xlane.xlu0 %4218
      %v4220 = vmax.f32 %v4216, %v4219
      %v4221 = vsub.f32 %v4184, %v4220
      %v4222 = vsub.f32 %v4185, %v4220
      %v4223 = vsub.f32 %v4186, %v4220
      %v4224 = vmul.f32 %v4221, 1.442695
      %v4225 = vpow.pop %v4224
      %v4226 = vmul.f32 %v4222, 1.442695
      %v4227 = vpow.pop %v4226
      %v4228 = vmul.f32 %v4223, 1.442695
      %v4229 = vpow.pop %v4228
      %v4230 = vsub.f32 %v4211, %v4220
      %v4231 = vmul.f32 %v4230, 1.442695
      %v4232 = vpow.pop %v4231
      %v4233 = vadd.f32 %v4225, %v4227
      %v4234 = vsel %vm2081, %v4229, 0.0
      %v4235 = vadd.f32 %v4233, %v4234
      %4236 = vadd.xlane.f32.xlu0 %v4235
      %v4237 = vpop.xlane.xlu0 %4236
      %v4238 = vsel %vm2087, %v4232, 0.0
      %4239 = vadd.xlane.f32.xlu0 %v4238
      %v4240 = vpop.xlane.xlu0 %4239
      %v4241 = vadd.f32 %v4237, %v4240
      %v4242 = vrcp.pop %v4241
      %v4243 = vmul.f32 %v4225, %v4242
      %v4244 = vmul.f32 %v4227, %v4242
      %v4245 = vmul.f32 %v4229, %v4242
      %v4246 = vperm.slane %v1884, 5
      %v4247 = vperm.slane %v1885, 5
      %v4248 = vperm.slane %v1886, 5
      %v4249 = vmul.f32 %v4243, %v4246
      %v4250 = vmul.f32 %v4244, %v4247
      %v4251 = vmul.f32 %v4245, %v4248
      %v4252 = vmul.f32 %v4232, %v4242
      %v4253 = vperm.slane %v1887, 5
      %v4254 = vmul.f32 %v4252, %v4253
      %v4255 = vpack.c.bf16 %v4249, %v4249
      %v4256 = vpack.c.bf16 %v4250, %v4250
      %v4257 = vpack.c.bf16 %v4251, %v4251
      %v4258 = vpack.c.bf16 %v4254, %v4254
      %4259 = vrot.lane.b32.xlu0 %v2577, 48
      %v4260 = vpop.permute.xlu0 %4259
      %v4262 = vsel %vm2087, %v4258, 0
      %v4265 = vsel %vm2133, %v4260, 0
      %4267 = vmatpush.bf16.msra.mxu0 0
      %4268 = vmatpush.bf16.msra.mxu0 0
      %4269 = vmatpush.bf16.msra.mxu0 0
      %4270 = vmatpush.bf16.msra.mxu0 0
      %4271 = vmatpush.bf16.msra.mxu0 0
      %4272 = vmatpush.bf16.msra.mxu0 0
      %4273 = vmatpush.bf16.msra.mxu0 0
      %4274 = vmatpush.bf16.msra.mxu0 %v4265
      %4275 = vmatmul.bf16.gmra.mxu0 %v4262
      %v4276 = vpop.f32.mrf.mxu0
      %v4277 = vadd.f32 0.0, %v4276
      %v4278 = vpop.f32.mrf.mxu0
      %4279 = vdwg.mxu0
      %4280 = vrot.lane.b32.xlu0 %v2218, 48
      %v4281 = vpop.permute.xlu0 %4280
      %4282 = vrot.lane.b32.xlu0 %v2219, 48
      %v4283 = vpop.permute.xlu0 %4282
      %4284 = vrot.lane.b32.xlu0 %v2220, 48
      %v4285 = vpop.permute.xlu0 %4284
      %4286 = vrot.lane.b32.xlu0 %v2221, 48
      %v4287 = vpop.permute.xlu0 %4286
      %4288 = vrot.lane.b32.xlu0 %v2222, 48
      %v4289 = vpop.permute.xlu0 %4288
      %4290 = vrot.lane.b32.xlu0 %v2223, 48
      %v4291 = vpop.permute.xlu0 %4290
      %4292 = vrot.lane.b32.xlu0 %v2224, 48
      %v4293 = vpop.permute.xlu0 %4292
      %4294 = vrot.lane.b32.xlu0 %v2225, 48
      %v4295 = vpop.permute.xlu0 %4294
      %4296 = vrot.lane.b32.xlu0 %v2226, 48
      %v4297 = vpop.permute.xlu0 %4296
      %4298 = vrot.lane.b32.xlu0 %v2227, 48
      %v4299 = vpop.permute.xlu0 %4298
      %4300 = vrot.lane.b32.xlu0 %v2228, 48
      %v4301 = vpop.permute.xlu0 %4300
      %4302 = vrot.lane.b32.xlu0 %v2229, 48
      %v4303 = vpop.permute.xlu0 %4302
      %4304 = vrot.lane.b32.xlu0 %v2230, 48
      %v4305 = vpop.permute.xlu0 %4304
      %4306 = vrot.lane.b32.xlu0 %v2231, 48
      %v4307 = vpop.permute.xlu0 %4306
      %4308 = vrot.lane.b32.xlu0 %v2232, 48
      %v4309 = vpop.permute.xlu0 %4308
      %4310 = vrot.lane.b32.xlu0 %v2233, 48
      %v4311 = vpop.permute.xlu0 %4310
      %4312 = vrot.lane.b32.xlu0 %v2234, 48
      %v4313 = vpop.permute.xlu0 %4312
      %v4331 = vsel %vm2081, %v4257, 0
      %v4334 = vand.u32 %v4313, %v2256
      %4336 = vmatpush.bf16.msra.mxu0 %v4295
      %4337 = vmatpush.bf16.msra.mxu0 %v4293
      %4338 = vmatpush.bf16.msra.mxu0 %v4291
      %4339 = vmatpush.bf16.msra.mxu0 %v4289
      %4340 = vmatpush.bf16.msra.mxu0 %v4287
      %4341 = vmatpush.bf16.msra.mxu0 %v4285
      %4342 = vmatpush.bf16.msra.mxu0 %v4283
      %4343 = vmatpush.bf16.msra.mxu0 %v4281
      %4344 = vmatmul.bf16.gmra.mxu0 %v4255
      %v4345 = vpop.f32.mrf.mxu0
      %v4346 = vadd.f32 %v4277, %v4345
      %v4347 = vpop.f32.mrf.mxu0
      %4348 = vdwg.mxu0
      %4349 = vmatpush.bf16.msra.mxu0 %v4311
      %4350 = vmatpush.bf16.msra.mxu0 %v4309
      %4351 = vmatpush.bf16.msra.mxu0 %v4307
      %4352 = vmatpush.bf16.msra.mxu0 %v4305
      %4353 = vmatpush.bf16.msra.mxu0 %v4303
      %4354 = vmatpush.bf16.msra.mxu0 %v4301
      %4355 = vmatpush.bf16.msra.mxu0 %v4299
      %4356 = vmatpush.bf16.msra.mxu0 %v4297
      %4357 = vmatmul.bf16.gmra.mxu0 %v4256
      %v4358 = vpop.f32.mrf.mxu0
      %v4359 = vadd.f32 %v4346, %v4358
      %v4360 = vpop.f32.mrf.mxu0
      %4361 = vdwg.mxu0
      %4362 = vmatpush.bf16.msra.mxu0 0
      %4363 = vmatpush.bf16.msra.mxu0 0
      %4364 = vmatpush.bf16.msra.mxu0 0
      %4365 = vmatpush.bf16.msra.mxu0 0
      %4366 = vmatpush.bf16.msra.mxu0 0
      %4367 = vmatpush.bf16.msra.mxu0 0
      %4368 = vmatpush.bf16.msra.mxu0 0
      %4369 = vmatpush.bf16.msra.mxu0 %v4334
      %4370 = vmatmul.bf16.gmra.mxu0 %v4331
      %v4371 = vpop.f32.mrf.mxu0
      %v4372 = vadd.f32 %v4359, %v4371
      %v4373 = vpop.f32.mrf.mxu0
      %4374 = vdwg.mxu0
      %v4375 = vpack.c.bf16 %v4372, %v4372
      %v4378 = vunpack.c.l.b16 %v1490
      %v4379 = vunpack.c.l.b16 %v1491
      %v4380 = vpack.c.b16 %v4379, %v4378
      %v4383 = vsel %vm1888, %v4375, 0
      %4385 = vmatpush.bf16.msra.mxu0 0
      %4386 = vmatpush.bf16.msra.mxu0 0
      %4387 = vmatpush.bf16.msra.mxu0 0
      %4388 = vmatpush.bf16.msra.mxu0 0
      %4389 = vmatpush.bf16.msra.mxu0 0
      %4390 = vmatpush.bf16.msra.mxu0 0
      %4391 = vmatpush.bf16.msra.mxu0 0
      %4392 = vmatpush.bf16.msra.mxu0 %v4380
      %4393 = vmatmul.bf16.gmra.mxu0 %v4383
      %v4394 = vpop.f32.mrf.mxu0
      %v4395 = vadd.f32 0.0, %v4394
      %v4396 = vpop.f32.mrf.mxu0
      %4397 = vdwg.mxu0
      %v4398 = vadd.f32 %v3983, %v4395
      %4399 = vrot.lane.b32.xlu0 %v1533, 32
      %v4400 = vpop.permute.xlu0 %4399
      %4401 = vrot.lane.b32.xlu0 %v1621, 32
      %v4402 = vpop.permute.xlu0 %4401
      %4403 = vrot.lane.b32.xlu0 %v1623, 32
      %v4404 = vpop.permute.xlu0 %4403
      %4405 = vrot.lane.b32.xlu0 %v1626, 32
      %v4406 = vpop.permute.xlu0 %4405
      %4407 = vrot.lane.b32.xlu0 %v1628, 32
      %v4408 = vpop.permute.xlu0 %4407
      %4409 = vrot.lane.b32.xlu0 %v1631, 32
      %v4410 = vpop.permute.xlu0 %4409
      %4411 = vrot.lane.b32.xlu0 %v1633, 32
      %v4412 = vpop.permute.xlu0 %4411
      %4413 = vrot.lane.b32.xlu0 %v1636, 32
      %v4414 = vpop.permute.xlu0 %4413
      %4415 = vrot.lane.b32.xlu0 %v1638, 32
      %v4416 = vpop.permute.xlu0 %4415
      %4417 = vrot.lane.b32.xlu0 %v1641, 32
      %v4418 = vpop.permute.xlu0 %4417
      %4419 = vrot.lane.b32.xlu0 %v1643, 32
      %v4420 = vpop.permute.xlu0 %4419
      %4421 = vrot.lane.b32.xlu0 %v1646, 32
      %v4422 = vpop.permute.xlu0 %4421
      %4423 = vrot.lane.b32.xlu0 %v1648, 32
      %v4424 = vpop.permute.xlu0 %4423
      %4425 = vrot.lane.b32.xlu0 %v1651, 32
      %v4426 = vpop.permute.xlu0 %4425
      %4427 = vrot.lane.b32.xlu0 %v1653, 32
      %v4428 = vpop.permute.xlu0 %4427
      %4429 = vrot.lane.b32.xlu0 %v1656, 32
      %v4430 = vpop.permute.xlu0 %4429
      %4431 = vrot.lane.b32.xlu0 %v1658, 32
      %v4432 = vpop.permute.xlu0 %4431
      %4433 = vrot.lane.b32.xlu0 %v1661, 32
      %v4434 = vpop.permute.xlu0 %4433
      %4435 = vrot.lane.b32.xlu0 %v1663, 32
      %v4436 = vpop.permute.xlu0 %4435
      %4437 = vrot.lane.b32.xlu0 %v1666, 32
      %v4438 = vpop.permute.xlu0 %4437
      %4439 = vrot.lane.b32.xlu0 %v1668, 32
      %v4440 = vpop.permute.xlu0 %4439
      %4441 = vrot.lane.b32.xlu0 %v1671, 32
      %v4442 = vpop.permute.xlu0 %4441
      %4443 = vrot.lane.b32.xlu0 %v1673, 32
      %v4444 = vpop.permute.xlu0 %4443
      %4445 = vrot.lane.b32.xlu0 %v1676, 32
      %v4446 = vpop.permute.xlu0 %4445
      %4447 = vrot.lane.b32.xlu0 %v1678, 32
      %v4448 = vpop.permute.xlu0 %4447
      %4449 = vrot.lane.b32.xlu0 %v1681, 32
      %v4450 = vpop.permute.xlu0 %4449
      %4451 = vrot.lane.b32.xlu0 %v1683, 32
      %v4452 = vpop.permute.xlu0 %4451
      %4453 = vrot.lane.b32.xlu0 %v1686, 32
      %v4454 = vpop.permute.xlu0 %4453
      %4455 = vrot.lane.b32.xlu0 %v1688, 32
      %v4456 = vpop.permute.xlu0 %4455
      %4457 = vrot.lane.b32.xlu0 %v1691, 32
      %v4458 = vpop.permute.xlu0 %4457
      %4459 = vrot.lane.b32.xlu0 %v1693, 32
      %v4460 = vpop.permute.xlu0 %4459
      %4461 = vrot.lane.b32.xlu0 %v1696, 32
      %v4462 = vpop.permute.xlu0 %4461
      %4463 = vrot.lane.b32.xlu0 %v1698, 32
      %v4464 = vpop.permute.xlu0 %4463
      %4465 = vrot.lane.b32.xlu0 %v1701, 32
      %v4466 = vpop.permute.xlu0 %4465
      %4467 = vrot.lane.b32.xlu0 %v1703, 32
      %v4468 = vpop.permute.xlu0 %4467
      %v4469 = vsel %vm1888, %v4400, 0
      %v4471 = vsel %vm1888, %v4402, 0
      %v4473 = vsel %vm1888, %v4404, 0
      %v4475 = vsel %vm1888, %v4406, 0
      %v4477 = vsel %vm1888, %v4408, 0
      %v4479 = vsel %vm1888, %v4410, 0
      %v4481 = vsel %vm1888, %v4412, 0
      %v4483 = vsel %vm1888, %v4414, 0
      %v4485 = vsel %vm1888, %v4416, 0
      %v4487 = vsel %vm1888, %v4418, 0
      %v4489 = vsel %vm1888, %v4420, 0
      %v4491 = vsel %vm1888, %v4422, 0
      %v4493 = vsel %vm1888, %v4424, 0
      %v4495 = vsel %vm1888, %v4426, 0
      %v4497 = vsel %vm1888, %v4428, 0
      %v4499 = vsel %vm1888, %v4430, 0
      %v4501 = vsel %vm1888, %v4432, 0
      %v4503 = vsel %vm1888, %v4434, 0
      %v4505 = vsel %vm1888, %v4436, 0
      %v4507 = vsel %vm1888, %v4438, 0
      %v4509 = vsel %vm1888, %v4440, 0
      %v4511 = vsel %vm1888, %v4442, 0
      %v4513 = vsel %vm1888, %v4444, 0
      %v4515 = vsel %vm1888, %v4446, 0
      %v4517 = vsel %vm1888, %v4448, 0
      %v4519 = vsel %vm1888, %v4450, 0
      %v4521 = vsel %vm1888, %v4452, 0
      %v4523 = vsel %vm1888, %v4454, 0
      %v4525 = vsel %vm1888, %v4456, 0
      %v4527 = vsel %vm1888, %v4458, 0
      %v4529 = vsel %vm1888, %v4460, 0
      %v4531 = vsel %vm1888, %v4462, 0
      %v4533 = vsel %vm1888, %v4464, 0
      %v4535 = vsel %vm1888, %v4466, 0
      %v4537 = vsel %vm1888, %v4468, 0
      %4539 = vmatpush.xpose.msra.mxu0 %v4501
      %4540 = vmatpush.xpose.msra.mxu0 %v4499
      %4541 = vmatpush.xpose.msra.mxu0 %v4497
      %4542 = vmatpush.xpose.msra.mxu0 %v4495
      %4543 = vmatpush.xpose.msra.mxu0 %v4493
      %4544 = vmatpush.xpose.msra.mxu0 %v4491
      %4545 = vmatpush.xpose.msra.mxu0 %v4489
      %4546 = vmatpush.xpose.msra.mxu0 %v4487
      %4547 = vmatpush.xpose.msra.mxu0 %v4485
      %4548 = vmatpush.xpose.msra.mxu0 %v4483
      %4549 = vmatpush.xpose.msra.mxu0 %v4481
      %4550 = vmatpush.xpose.msra.mxu0 %v4479
      %4551 = vmatpush.xpose.msra.mxu0 %v4477
      %4552 = vmatpush.xpose.msra.mxu0 %v4475
      %4553 = vmatpush.xpose.msra.mxu0 %v4473
      %4554 = vmatpush.xpose.msra.mxu0 %v4471
      %4555 = vmatmul.f32.gmra.mxu0 %v4469
      %v4556 = vpop.f32.mrf.mxu0
      %v4557 = vadd.f32 0.0, %v4556
      %4558 = vdwg.mxu0
      %4559 = vmatpush.xpose.msra.mxu0 %v4533
      %4560 = vmatpush.xpose.msra.mxu0 %v4531
      %4561 = vmatpush.xpose.msra.mxu0 %v4529
      %4562 = vmatpush.xpose.msra.mxu0 %v4527
      %4563 = vmatpush.xpose.msra.mxu0 %v4525
      %4564 = vmatpush.xpose.msra.mxu0 %v4523
      %4565 = vmatpush.xpose.msra.mxu0 %v4521
      %4566 = vmatpush.xpose.msra.mxu0 %v4519
      %4567 = vmatpush.xpose.msra.mxu0 %v4517
      %4568 = vmatpush.xpose.msra.mxu0 %v4515
      %4569 = vmatpush.xpose.msra.mxu0 %v4513
      %4570 = vmatpush.xpose.msra.mxu0 %v4511
      %4571 = vmatpush.xpose.msra.mxu0 %v4509
      %4572 = vmatpush.xpose.msra.mxu0 %v4507
      %4573 = vmatpush.xpose.msra.mxu0 %v4505
      %4574 = vmatpush.xpose.msra.mxu0 %v4503
      %4575 = vmatmul.f32.gmra.mxu0 %v4469
      %v4576 = vpop.f32.mrf.mxu0
      %v4577 = vadd.f32 0.0, %v4576
      %4578 = vdwg.mxu0
      %4579 = vmatpush.xpose.msra.mxu0 0.0
      %4580 = vmatpush.xpose.msra.mxu0 0.0
      %4581 = vmatpush.xpose.msra.mxu0 0.0
      %4582 = vmatpush.xpose.msra.mxu0 0.0
      %4583 = vmatpush.xpose.msra.mxu0 0.0
      %4584 = vmatpush.xpose.msra.mxu0 0.0
      %4585 = vmatpush.xpose.msra.mxu0 0.0
      %4586 = vmatpush.xpose.msra.mxu0 0.0
      %4587 = vmatpush.xpose.msra.mxu0 0.0
      %4588 = vmatpush.xpose.msra.mxu0 0.0
      %4589 = vmatpush.xpose.msra.mxu0 0.0
      %4590 = vmatpush.xpose.msra.mxu0 0.0
      %4591 = vmatpush.xpose.msra.mxu0 0.0
      %4592 = vmatpush.xpose.msra.mxu0 0.0
      %4593 = vmatpush.xpose.msra.mxu0 %v4537
      %4594 = vmatpush.xpose.msra.mxu0 %v4535
      %4595 = vmatmul.f32.gmra.mxu0 %v4469
      %v4596 = vpop.f32.mrf.mxu0
      %v4597 = vadd.f32 0.0, %v4596
      %4598 = vdwg.mxu0
      %v4599 = vmul.f32 %v4557, 0.25
      %v4600 = vmul.f32 %v4577, 0.25
      %v4601 = vmul.f32 %v4597, 0.25
      %4602 = vrot.lane.b32.xlu0 %v1715, 32
      %v4603 = vpop.permute.xlu0 %4602
      %v4604 = vsel %vm1888, %v4603, 0
      %4606 = vmatpush.xpose.msra.mxu0 0.0
      %4607 = vmatpush.xpose.msra.mxu0 0.0
      %4608 = vmatpush.xpose.msra.mxu0 0.0
      %4609 = vmatpush.xpose.msra.mxu0 0.0
      %4610 = vmatpush.xpose.msra.mxu0 0.0
      %4611 = vmatpush.xpose.msra.mxu0 0.0
      %4612 = vmatpush.xpose.msra.mxu0 0.0
      %4613 = vmatpush.xpose.msra.mxu0 0.0
      %4614 = vmatpush.xpose.msra.mxu0 0.0
      %4615 = vmatpush.xpose.msra.mxu0 0.0
      %4616 = vmatpush.xpose.msra.mxu0 0.0
      %4617 = vmatpush.xpose.msra.mxu0 0.0
      %4618 = vmatpush.xpose.msra.mxu0 0.0
      %4619 = vmatpush.xpose.msra.mxu0 0.0
      %4620 = vmatpush.xpose.msra.mxu0 0.0
      %4621 = vmatpush.xpose.msra.mxu0 %v4604
      %4622 = vmatmul.f32.gmra.mxu0 %v4469
      %v4623 = vpop.f32.mrf.mxu0
      %v4624 = vadd.f32 0.0, %v4623
      %4625 = vdwg.mxu0
      %v4626 = vmul.f32 %v4624, 0.25
      %v4627 = vsel %vm2081, %v4601, -inf
      %v4628 = vmax.f32 %v4599, %v4600
      %v4629 = vmax.f32 %v4628, %v4627
      %4630 = vmax.xlane.f32.xlu0 %v4629
      %v4631 = vpop.xlane.xlu0 %4630
      %v4632 = vsel %vm2087, %v4626, -inf
      %4633 = vmax.xlane.f32.xlu0 %v4632
      %v4634 = vpop.xlane.xlu0 %4633
      %v4635 = vmax.f32 %v4631, %v4634
      %v4636 = vsub.f32 %v4599, %v4635
      %v4637 = vsub.f32 %v4600, %v4635
      %v4638 = vsub.f32 %v4601, %v4635
      %v4639 = vmul.f32 %v4636, 1.442695
      %v4640 = vpow.pop %v4639
      %v4641 = vmul.f32 %v4637, 1.442695
      %v4642 = vpow.pop %v4641
      %v4643 = vmul.f32 %v4638, 1.442695
      %v4644 = vpow.pop %v4643
      %v4645 = vsub.f32 %v4626, %v4635
      %v4646 = vmul.f32 %v4645, 1.442695
      %v4647 = vpow.pop %v4646
      %v4648 = vadd.f32 %v4640, %v4642
      %v4649 = vsel %vm2081, %v4644, 0.0
      %v4650 = vadd.f32 %v4648, %v4649
      %4651 = vadd.xlane.f32.xlu0 %v4650
      %v4652 = vpop.xlane.xlu0 %4651
      %v4653 = vsel %vm2087, %v4647, 0.0
      %4654 = vadd.xlane.f32.xlu0 %v4653
      %v4655 = vpop.xlane.xlu0 %4654
      %v4656 = vadd.f32 %v4652, %v4655
      %v4657 = vrcp.pop %v4656
      %v4658 = vmul.f32 %v4640, %v4657
      %v4659 = vmul.f32 %v4642, %v4657
      %v4660 = vmul.f32 %v4644, %v4657
      %v4661 = vperm.slane %v1884, 6
      %v4662 = vperm.slane %v1885, 6
      %v4663 = vperm.slane %v1886, 6
      %v4664 = vmul.f32 %v4658, %v4661
      %v4665 = vmul.f32 %v4659, %v4662
      %v4666 = vmul.f32 %v4660, %v4663
      %v4667 = vmul.f32 %v4647, %v4657
      %v4668 = vperm.slane %v1887, 6
      %v4669 = vmul.f32 %v4667, %v4668
      %v4670 = vpack.c.bf16 %v4664, %v4664
      %v4671 = vpack.c.bf16 %v4665, %v4665
      %v4672 = vpack.c.bf16 %v4666, %v4666
      %v4673 = vpack.c.bf16 %v4669, %v4669
      %4674 = vrot.lane.b32.xlu0 %v2577, 32
      %v4675 = vpop.permute.xlu0 %4674
      %v4677 = vsel %vm2087, %v4673, 0
      %v4680 = vsel %vm2133, %v4675, 0
      %4682 = vmatpush.bf16.msra.mxu0 0
      %4683 = vmatpush.bf16.msra.mxu0 0
      %4684 = vmatpush.bf16.msra.mxu0 0
      %4685 = vmatpush.bf16.msra.mxu0 0
      %4686 = vmatpush.bf16.msra.mxu0 0
      %4687 = vmatpush.bf16.msra.mxu0 0
      %4688 = vmatpush.bf16.msra.mxu0 0
      %4689 = vmatpush.bf16.msra.mxu0 %v4680
      %4690 = vmatmul.bf16.gmra.mxu0 %v4677
      %v4691 = vpop.f32.mrf.mxu0
      %v4692 = vadd.f32 0.0, %v4691
      %v4693 = vpop.f32.mrf.mxu0
      %4694 = vdwg.mxu0
      %4695 = vrot.lane.b32.xlu0 %v2218, 32
      %v4696 = vpop.permute.xlu0 %4695
      %4697 = vrot.lane.b32.xlu0 %v2219, 32
      %v4698 = vpop.permute.xlu0 %4697
      %4699 = vrot.lane.b32.xlu0 %v2220, 32
      %v4700 = vpop.permute.xlu0 %4699
      %4701 = vrot.lane.b32.xlu0 %v2221, 32
      %v4702 = vpop.permute.xlu0 %4701
      %4703 = vrot.lane.b32.xlu0 %v2222, 32
      %v4704 = vpop.permute.xlu0 %4703
      %4705 = vrot.lane.b32.xlu0 %v2223, 32
      %v4706 = vpop.permute.xlu0 %4705
      %4707 = vrot.lane.b32.xlu0 %v2224, 32
      %v4708 = vpop.permute.xlu0 %4707
      %4709 = vrot.lane.b32.xlu0 %v2225, 32
      %v4710 = vpop.permute.xlu0 %4709
      %4711 = vrot.lane.b32.xlu0 %v2226, 32
      %v4712 = vpop.permute.xlu0 %4711
      %4713 = vrot.lane.b32.xlu0 %v2227, 32
      %v4714 = vpop.permute.xlu0 %4713
      %4715 = vrot.lane.b32.xlu0 %v2228, 32
      %v4716 = vpop.permute.xlu0 %4715
      %4717 = vrot.lane.b32.xlu0 %v2229, 32
      %v4718 = vpop.permute.xlu0 %4717
      %4719 = vrot.lane.b32.xlu0 %v2230, 32
      %v4720 = vpop.permute.xlu0 %4719
      %4721 = vrot.lane.b32.xlu0 %v2231, 32
      %v4722 = vpop.permute.xlu0 %4721
      %4723 = vrot.lane.b32.xlu0 %v2232, 32
      %v4724 = vpop.permute.xlu0 %4723
      %4725 = vrot.lane.b32.xlu0 %v2233, 32
      %v4726 = vpop.permute.xlu0 %4725
      %4727 = vrot.lane.b32.xlu0 %v2234, 32
      %v4728 = vpop.permute.xlu0 %4727
      %v4746 = vsel %vm2081, %v4672, 0
      %v4749 = vand.u32 %v4728, %v2256
      %4751 = vmatpush.bf16.msra.mxu0 %v4710
      %4752 = vmatpush.bf16.msra.mxu0 %v4708
      %4753 = vmatpush.bf16.msra.mxu0 %v4706
      %4754 = vmatpush.bf16.msra.mxu0 %v4704
      %4755 = vmatpush.bf16.msra.mxu0 %v4702
      %4756 = vmatpush.bf16.msra.mxu0 %v4700
      %4757 = vmatpush.bf16.msra.mxu0 %v4698
      %4758 = vmatpush.bf16.msra.mxu0 %v4696
      %4759 = vmatmul.bf16.gmra.mxu0 %v4670
      %v4760 = vpop.f32.mrf.mxu0
      %v4761 = vadd.f32 %v4692, %v4760
      %v4762 = vpop.f32.mrf.mxu0
      %4763 = vdwg.mxu0
      %4764 = vmatpush.bf16.msra.mxu0 %v4726
      %4765 = vmatpush.bf16.msra.mxu0 %v4724
      %4766 = vmatpush.bf16.msra.mxu0 %v4722
      %4767 = vmatpush.bf16.msra.mxu0 %v4720
      %4768 = vmatpush.bf16.msra.mxu0 %v4718
      %4769 = vmatpush.bf16.msra.mxu0 %v4716
      %4770 = vmatpush.bf16.msra.mxu0 %v4714
      %4771 = vmatpush.bf16.msra.mxu0 %v4712
      %4772 = vmatmul.bf16.gmra.mxu0 %v4671
      %v4773 = vpop.f32.mrf.mxu0
      %v4774 = vadd.f32 %v4761, %v4773
      %v4775 = vpop.f32.mrf.mxu0
      %4776 = vdwg.mxu0
      %4777 = vmatpush.bf16.msra.mxu0 0
      %4778 = vmatpush.bf16.msra.mxu0 0
      %4779 = vmatpush.bf16.msra.mxu0 0
      %4780 = vmatpush.bf16.msra.mxu0 0
      %4781 = vmatpush.bf16.msra.mxu0 0
      %4782 = vmatpush.bf16.msra.mxu0 0
      %4783 = vmatpush.bf16.msra.mxu0 0
      %4784 = vmatpush.bf16.msra.mxu0 %v4749
      %4785 = vmatmul.bf16.gmra.mxu0 %v4746
      %v4786 = vpop.f32.mrf.mxu0
      %v4787 = vadd.f32 %v4774, %v4786
      %v4788 = vpop.f32.mrf.mxu0
      %4789 = vdwg.mxu0
      %v4790 = vpack.c.bf16 %v4787, %v4787
      %v4793 = vunpack.c.l.b16 %v1492
      %v4794 = vunpack.c.l.b16 %v1493
      %v4795 = vpack.c.b16 %v4794, %v4793
      %v4798 = vsel %vm1888, %v4790, 0
      %4800 = vmatpush.bf16.msra.mxu0 0
      %4801 = vmatpush.bf16.msra.mxu0 0
      %4802 = vmatpush.bf16.msra.mxu0 0
      %4803 = vmatpush.bf16.msra.mxu0 0
      %4804 = vmatpush.bf16.msra.mxu0 0
      %4805 = vmatpush.bf16.msra.mxu0 0
      %4806 = vmatpush.bf16.msra.mxu0 0
      %4807 = vmatpush.bf16.msra.mxu0 %v4795
      %4808 = vmatmul.bf16.gmra.mxu0 %v4798
      %v4809 = vpop.f32.mrf.mxu0
      %v4810 = vadd.f32 0.0, %v4809
      %v4811 = vpop.f32.mrf.mxu0
      %4812 = vdwg.mxu0
      %v4813 = vadd.f32 %v4398, %v4810
      %4814 = vrot.lane.b32.xlu0 %v1533, 16
      %v4815 = vpop.permute.xlu0 %4814
      %4816 = vrot.lane.b32.xlu0 %v1621, 16
      %v4817 = vpop.permute.xlu0 %4816
      %4818 = vrot.lane.b32.xlu0 %v1623, 16
      %v4819 = vpop.permute.xlu0 %4818
      %4820 = vrot.lane.b32.xlu0 %v1626, 16
      %v4821 = vpop.permute.xlu0 %4820
      %4822 = vrot.lane.b32.xlu0 %v1628, 16
      %v4823 = vpop.permute.xlu0 %4822
      %4824 = vrot.lane.b32.xlu0 %v1631, 16
      %v4825 = vpop.permute.xlu0 %4824
      %4826 = vrot.lane.b32.xlu0 %v1633, 16
      %v4827 = vpop.permute.xlu0 %4826
      %4828 = vrot.lane.b32.xlu0 %v1636, 16
      %v4829 = vpop.permute.xlu0 %4828
      %4830 = vrot.lane.b32.xlu0 %v1638, 16
      %v4831 = vpop.permute.xlu0 %4830
      %4832 = vrot.lane.b32.xlu0 %v1641, 16
      %v4833 = vpop.permute.xlu0 %4832
      %4834 = vrot.lane.b32.xlu0 %v1643, 16
      %v4835 = vpop.permute.xlu0 %4834
      %4836 = vrot.lane.b32.xlu0 %v1646, 16
      %v4837 = vpop.permute.xlu0 %4836
      %4838 = vrot.lane.b32.xlu0 %v1648, 16
      %v4839 = vpop.permute.xlu0 %4838
      %4840 = vrot.lane.b32.xlu0 %v1651, 16
      %v4841 = vpop.permute.xlu0 %4840
      %4842 = vrot.lane.b32.xlu0 %v1653, 16
      %v4843 = vpop.permute.xlu0 %4842
      %4844 = vrot.lane.b32.xlu0 %v1656, 16
      %v4845 = vpop.permute.xlu0 %4844
      %4846 = vrot.lane.b32.xlu0 %v1658, 16
      %v4847 = vpop.permute.xlu0 %4846
      %4848 = vrot.lane.b32.xlu0 %v1661, 16
      %v4849 = vpop.permute.xlu0 %4848
      %4850 = vrot.lane.b32.xlu0 %v1663, 16
      %v4851 = vpop.permute.xlu0 %4850
      %4852 = vrot.lane.b32.xlu0 %v1666, 16
      %v4853 = vpop.permute.xlu0 %4852
      %4854 = vrot.lane.b32.xlu0 %v1668, 16
      %v4855 = vpop.permute.xlu0 %4854
      %4856 = vrot.lane.b32.xlu0 %v1671, 16
      %v4857 = vpop.permute.xlu0 %4856
      %4858 = vrot.lane.b32.xlu0 %v1673, 16
      %v4859 = vpop.permute.xlu0 %4858
      %4860 = vrot.lane.b32.xlu0 %v1676, 16
      %v4861 = vpop.permute.xlu0 %4860
      %4862 = vrot.lane.b32.xlu0 %v1678, 16
      %v4863 = vpop.permute.xlu0 %4862
      %4864 = vrot.lane.b32.xlu0 %v1681, 16
      %v4865 = vpop.permute.xlu0 %4864
      %4866 = vrot.lane.b32.xlu0 %v1683, 16
      %v4867 = vpop.permute.xlu0 %4866
      %4868 = vrot.lane.b32.xlu0 %v1686, 16
      %v4869 = vpop.permute.xlu0 %4868
      %4870 = vrot.lane.b32.xlu0 %v1688, 16
      %v4871 = vpop.permute.xlu0 %4870
      %4872 = vrot.lane.b32.xlu0 %v1691, 16
      %v4873 = vpop.permute.xlu0 %4872
      %4874 = vrot.lane.b32.xlu0 %v1693, 16
      %v4875 = vpop.permute.xlu0 %4874
      %4876 = vrot.lane.b32.xlu0 %v1696, 16
      %v4877 = vpop.permute.xlu0 %4876
      %4878 = vrot.lane.b32.xlu0 %v1698, 16
      %v4879 = vpop.permute.xlu0 %4878
      %4880 = vrot.lane.b32.xlu0 %v1701, 16
      %v4881 = vpop.permute.xlu0 %4880
      %4882 = vrot.lane.b32.xlu0 %v1703, 16
      %v4883 = vpop.permute.xlu0 %4882
      %v4884 = vsel %vm1888, %v4815, 0
      %v4886 = vsel %vm1888, %v4817, 0
      %v4888 = vsel %vm1888, %v4819, 0
      %v4890 = vsel %vm1888, %v4821, 0
      %v4892 = vsel %vm1888, %v4823, 0
      %v4894 = vsel %vm1888, %v4825, 0
      %v4896 = vsel %vm1888, %v4827, 0
      %v4898 = vsel %vm1888, %v4829, 0
      %v4900 = vsel %vm1888, %v4831, 0
      %v4902 = vsel %vm1888, %v4833, 0
      %v4904 = vsel %vm1888, %v4835, 0
      %v4906 = vsel %vm1888, %v4837, 0
      %v4908 = vsel %vm1888, %v4839, 0
      %v4910 = vsel %vm1888, %v4841, 0
      %v4912 = vsel %vm1888, %v4843, 0
      %v4914 = vsel %vm1888, %v4845, 0
      %v4916 = vsel %vm1888, %v4847, 0
      %v4918 = vsel %vm1888, %v4849, 0
      %v4920 = vsel %vm1888, %v4851, 0
      %v4922 = vsel %vm1888, %v4853, 0
      %v4924 = vsel %vm1888, %v4855, 0
      %v4926 = vsel %vm1888, %v4857, 0
      %v4928 = vsel %vm1888, %v4859, 0
      %v4930 = vsel %vm1888, %v4861, 0
      %v4932 = vsel %vm1888, %v4863, 0
      %v4934 = vsel %vm1888, %v4865, 0
      %v4936 = vsel %vm1888, %v4867, 0
      %v4938 = vsel %vm1888, %v4869, 0
      %v4940 = vsel %vm1888, %v4871, 0
      %v4942 = vsel %vm1888, %v4873, 0
      %v4944 = vsel %vm1888, %v4875, 0
      %v4946 = vsel %vm1888, %v4877, 0
      %v4948 = vsel %vm1888, %v4879, 0
      %v4950 = vsel %vm1888, %v4881, 0
      %v4952 = vsel %vm1888, %v4883, 0
      %4954 = vmatpush.xpose.msra.mxu0 %v4916
      %4955 = vmatpush.xpose.msra.mxu0 %v4914
      %4956 = vmatpush.xpose.msra.mxu0 %v4912
      %4957 = vmatpush.xpose.msra.mxu0 %v4910
      %4958 = vmatpush.xpose.msra.mxu0 %v4908
      %4959 = vmatpush.xpose.msra.mxu0 %v4906
      %4960 = vmatpush.xpose.msra.mxu0 %v4904
      %4961 = vmatpush.xpose.msra.mxu0 %v4902
      %4962 = vmatpush.xpose.msra.mxu0 %v4900
      %4963 = vmatpush.xpose.msra.mxu0 %v4898
      %4964 = vmatpush.xpose.msra.mxu0 %v4896
      %4965 = vmatpush.xpose.msra.mxu0 %v4894
      %4966 = vmatpush.xpose.msra.mxu0 %v4892
      %4967 = vmatpush.xpose.msra.mxu0 %v4890
      %4968 = vmatpush.xpose.msra.mxu0 %v4888
      %4969 = vmatpush.xpose.msra.mxu0 %v4886
      %4970 = vmatmul.f32.gmra.mxu0 %v4884
      %v4971 = vpop.f32.mrf.mxu0
      %v4972 = vadd.f32 0.0, %v4971
      %4973 = vdwg.mxu0
      %4974 = vmatpush.xpose.msra.mxu0 %v4948
      %4975 = vmatpush.xpose.msra.mxu0 %v4946
      %4976 = vmatpush.xpose.msra.mxu0 %v4944
      %4977 = vmatpush.xpose.msra.mxu0 %v4942
      %4978 = vmatpush.xpose.msra.mxu0 %v4940
      %4979 = vmatpush.xpose.msra.mxu0 %v4938
      %4980 = vmatpush.xpose.msra.mxu0 %v4936
      %4981 = vmatpush.xpose.msra.mxu0 %v4934
      %4982 = vmatpush.xpose.msra.mxu0 %v4932
      %4983 = vmatpush.xpose.msra.mxu0 %v4930
      %4984 = vmatpush.xpose.msra.mxu0 %v4928
      %4985 = vmatpush.xpose.msra.mxu0 %v4926
      %4986 = vmatpush.xpose.msra.mxu0 %v4924
      %4987 = vmatpush.xpose.msra.mxu0 %v4922
      %4988 = vmatpush.xpose.msra.mxu0 %v4920
      %4989 = vmatpush.xpose.msra.mxu0 %v4918
      %4990 = vmatmul.f32.gmra.mxu0 %v4884
      %v4991 = vpop.f32.mrf.mxu0
      %v4992 = vadd.f32 0.0, %v4991
      %4993 = vdwg.mxu0
      %4994 = vmatpush.xpose.msra.mxu0 0.0
      %4995 = vmatpush.xpose.msra.mxu0 0.0
      %4996 = vmatpush.xpose.msra.mxu0 0.0
      %4997 = vmatpush.xpose.msra.mxu0 0.0
      %4998 = vmatpush.xpose.msra.mxu0 0.0
      %4999 = vmatpush.xpose.msra.mxu0 0.0
      %5000 = vmatpush.xpose.msra.mxu0 0.0
      %5001 = vmatpush.xpose.msra.mxu0 0.0
      %5002 = vmatpush.xpose.msra.mxu0 0.0
      %5003 = vmatpush.xpose.msra.mxu0 0.0
      %5004 = vmatpush.xpose.msra.mxu0 0.0
      %5005 = vmatpush.xpose.msra.mxu0 0.0
      %5006 = vmatpush.xpose.msra.mxu0 0.0
      %5007 = vmatpush.xpose.msra.mxu0 0.0
      %5008 = vmatpush.xpose.msra.mxu0 %v4952
      %5009 = vmatpush.xpose.msra.mxu0 %v4950
      %5010 = vmatmul.f32.gmra.mxu0 %v4884
      %v5011 = vpop.f32.mrf.mxu0
      %v5012 = vadd.f32 0.0, %v5011
      %5013 = vdwg.mxu0
      %v5014 = vmul.f32 %v4972, 0.25
      %v5015 = vmul.f32 %v4992, 0.25
      %v5016 = vmul.f32 %v5012, 0.25
      %5017 = vrot.lane.b32.xlu0 %v1715, 16
      %v5018 = vpop.permute.xlu0 %5017
      %v5019 = vsel %vm1888, %v5018, 0
      %5021 = vmatpush.xpose.msra.mxu0 0.0
      %5022 = vmatpush.xpose.msra.mxu0 0.0
      %5023 = vmatpush.xpose.msra.mxu0 0.0
      %5024 = vmatpush.xpose.msra.mxu0 0.0
      %5025 = vmatpush.xpose.msra.mxu0 0.0
      %5026 = vmatpush.xpose.msra.mxu0 0.0
      %5027 = vmatpush.xpose.msra.mxu0 0.0
      %5028 = vmatpush.xpose.msra.mxu0 0.0
      %5029 = vmatpush.xpose.msra.mxu0 0.0
      %5030 = vmatpush.xpose.msra.mxu0 0.0
      %5031 = vmatpush.xpose.msra.mxu0 0.0
      %5032 = vmatpush.xpose.msra.mxu0 0.0
      %5033 = vmatpush.xpose.msra.mxu0 0.0
      %5034 = vmatpush.xpose.msra.mxu0 0.0
      %5035 = vmatpush.xpose.msra.mxu0 0.0
      %5036 = vmatpush.xpose.msra.mxu0 %v5019
      %5037 = vmatmul.f32.gmra.mxu0 %v4884
      %v5038 = vpop.f32.mrf.mxu0
      %v5039 = vadd.f32 0.0, %v5038
      %5040 = vdwg.mxu0
      %v5041 = vmul.f32 %v5039, 0.25
      %v5042 = vsel %vm2081, %v5016, -inf
      %v5043 = vmax.f32 %v5014, %v5015
      %v5044 = vmax.f32 %v5043, %v5042
      %5045 = vmax.xlane.f32.xlu0 %v5044
      %v5046 = vpop.xlane.xlu0 %5045
      %v5047 = vsel %vm2087, %v5041, -inf
      %5048 = vmax.xlane.f32.xlu0 %v5047
      %v5049 = vpop.xlane.xlu0 %5048
      %v5050 = vmax.f32 %v5046, %v5049
      %v5051 = vsub.f32 %v5014, %v5050
      %v5052 = vsub.f32 %v5015, %v5050
      %v5053 = vsub.f32 %v5016, %v5050
      %v5054 = vmul.f32 %v5051, 1.442695
      %v5055 = vpow.pop %v5054
      %v5056 = vmul.f32 %v5052, 1.442695
      %v5057 = vpow.pop %v5056
      %v5058 = vmul.f32 %v5053, 1.442695
      %v5059 = vpow.pop %v5058
      %v5060 = vsub.f32 %v5041, %v5050
      %v5061 = vmul.f32 %v5060, 1.442695
      %v5062 = vpow.pop %v5061
      %v5063 = vadd.f32 %v5055, %v5057
      %v5064 = vsel %vm2081, %v5059, 0.0
      %v5065 = vadd.f32 %v5063, %v5064
      %5066 = vadd.xlane.f32.xlu0 %v5065
      %v5067 = vpop.xlane.xlu0 %5066
      %v5068 = vsel %vm2087, %v5062, 0.0
      %5069 = vadd.xlane.f32.xlu0 %v5068
      %v5070 = vpop.xlane.xlu0 %5069
      %v5071 = vadd.f32 %v5067, %v5070
      %v5072 = vrcp.pop %v5071
      %v5073 = vmul.f32 %v5055, %v5072
      %v5074 = vmul.f32 %v5057, %v5072
      %v5075 = vmul.f32 %v5059, %v5072
      %v5076 = vperm.slane %v1884, 7
      %v5077 = vperm.slane %v1885, 7
      %v5078 = vperm.slane %v1886, 7
      %v5079 = vmul.f32 %v5073, %v5076
      %v5080 = vmul.f32 %v5074, %v5077
      %v5081 = vmul.f32 %v5075, %v5078
      %v5082 = vmul.f32 %v5062, %v5072
      %v5083 = vperm.slane %v1887, 7
      %v5084 = vmul.f32 %v5082, %v5083
      %v5085 = vpack.c.bf16 %v5079, %v5079
      %v5086 = vpack.c.bf16 %v5080, %v5080
      %v5087 = vpack.c.bf16 %v5081, %v5081
      %v5088 = vpack.c.bf16 %v5084, %v5084
      %5089 = vrot.lane.b32.xlu0 %v2577, 16
      %v5090 = vpop.permute.xlu0 %5089
      %v5092 = vsel %vm2087, %v5088, 0
      %v5095 = vsel %vm2133, %v5090, 0
      %5097 = vmatpush.bf16.msra.mxu0 0
      %5098 = vmatpush.bf16.msra.mxu0 0
      %5099 = vmatpush.bf16.msra.mxu0 0
      %5100 = vmatpush.bf16.msra.mxu0 0
      %5101 = vmatpush.bf16.msra.mxu0 0
      %5102 = vmatpush.bf16.msra.mxu0 0
      %5103 = vmatpush.bf16.msra.mxu0 0
      %5104 = vmatpush.bf16.msra.mxu0 %v5095
      %5105 = vmatmul.bf16.gmra.mxu0 %v5092
      %v5106 = vpop.f32.mrf.mxu0
      %v5107 = vadd.f32 0.0, %v5106
      %v5108 = vpop.f32.mrf.mxu0
      %5109 = vdwg.mxu0
      %5110 = vrot.lane.b32.xlu0 %v2218, 16
      %v5111 = vpop.permute.xlu0 %5110
      %5112 = vrot.lane.b32.xlu0 %v2219, 16
      %v5113 = vpop.permute.xlu0 %5112
      %5114 = vrot.lane.b32.xlu0 %v2220, 16
      %v5115 = vpop.permute.xlu0 %5114
      %5116 = vrot.lane.b32.xlu0 %v2221, 16
      %v5117 = vpop.permute.xlu0 %5116
      %5118 = vrot.lane.b32.xlu0 %v2222, 16
      %v5119 = vpop.permute.xlu0 %5118
      %5120 = vrot.lane.b32.xlu0 %v2223, 16
      %v5121 = vpop.permute.xlu0 %5120
      %5122 = vrot.lane.b32.xlu0 %v2224, 16
      %v5123 = vpop.permute.xlu0 %5122
      %5124 = vrot.lane.b32.xlu0 %v2225, 16
      %v5125 = vpop.permute.xlu0 %5124
      %5126 = vrot.lane.b32.xlu0 %v2226, 16
      %v5127 = vpop.permute.xlu0 %5126
      %5128 = vrot.lane.b32.xlu0 %v2227, 16
      %v5129 = vpop.permute.xlu0 %5128
      %5130 = vrot.lane.b32.xlu0 %v2228, 16
      %v5131 = vpop.permute.xlu0 %5130
      %5132 = vrot.lane.b32.xlu0 %v2229, 16
      %v5133 = vpop.permute.xlu0 %5132
      %5134 = vrot.lane.b32.xlu0 %v2230, 16
      %v5135 = vpop.permute.xlu0 %5134
      %5136 = vrot.lane.b32.xlu0 %v2231, 16
      %v5137 = vpop.permute.xlu0 %5136
      %5138 = vrot.lane.b32.xlu0 %v2232, 16
      %v5139 = vpop.permute.xlu0 %5138
      %5140 = vrot.lane.b32.xlu0 %v2233, 16
      %v5141 = vpop.permute.xlu0 %5140
      %5142 = vrot.lane.b32.xlu0 %v2234, 16
      %v5143 = vpop.permute.xlu0 %5142
      %v5161 = vsel %vm2081, %v5087, 0
      %v5164 = vand.u32 %v5143, %v2256
      %5166 = vmatpush.bf16.msra.mxu0 %v5125
      %5167 = vmatpush.bf16.msra.mxu0 %v5123
      %5168 = vmatpush.bf16.msra.mxu0 %v5121
      %5169 = vmatpush.bf16.msra.mxu0 %v5119
      %5170 = vmatpush.bf16.msra.mxu0 %v5117
      %5171 = vmatpush.bf16.msra.mxu0 %v5115
      %5172 = vmatpush.bf16.msra.mxu0 %v5113
      %5173 = vmatpush.bf16.msra.mxu0 %v5111
      %5174 = vmatmul.bf16.gmra.mxu0 %v5085
      %v5175 = vpop.f32.mrf.mxu0
      %v5176 = vadd.f32 %v5107, %v5175
      %v5177 = vpop.f32.mrf.mxu0
      %5178 = vdwg.mxu0
      %5179 = vmatpush.bf16.msra.mxu0 %v5141
      %5180 = vmatpush.bf16.msra.mxu0 %v5139
      %5181 = vmatpush.bf16.msra.mxu0 %v5137
      %5182 = vmatpush.bf16.msra.mxu0 %v5135
      %5183 = vmatpush.bf16.msra.mxu0 %v5133
      %5184 = vmatpush.bf16.msra.mxu0 %v5131
      %5185 = vmatpush.bf16.msra.mxu0 %v5129
      %5186 = vmatpush.bf16.msra.mxu0 %v5127
      %5187 = vmatmul.bf16.gmra.mxu0 %v5086
      %v5188 = vpop.f32.mrf.mxu0
      %v5189 = vadd.f32 %v5176, %v5188
      %v5190 = vpop.f32.mrf.mxu0
      %5191 = vdwg.mxu0
      %5192 = vmatpush.bf16.msra.mxu0 0
      %5193 = vmatpush.bf16.msra.mxu0 0
      %5194 = vmatpush.bf16.msra.mxu0 0
      %5195 = vmatpush.bf16.msra.mxu0 0
      %5196 = vmatpush.bf16.msra.mxu0 0
      %5197 = vmatpush.bf16.msra.mxu0 0
      %5198 = vmatpush.bf16.msra.mxu0 0
      %5199 = vmatpush.bf16.msra.mxu0 %v5164
      %5200 = vmatmul.bf16.gmra.mxu0 %v5161
      %v5201 = vpop.f32.mrf.mxu0
      %v5202 = vadd.f32 %v5189, %v5201
      %v5203 = vpop.f32.mrf.mxu0
      %5204 = vdwg.mxu0
      %v5205 = vpack.c.bf16 %v5202, %v5202
      %v5208 = vunpack.c.l.b16 %v1494
      %v5209 = vunpack.c.l.b16 %v1495
      %v5210 = vpack.c.b16 %v5209, %v5208
      %v5213 = vsel %vm1888, %v5205, 0
      %5215 = vmatpush.bf16.msra.mxu0 0
      %5216 = vmatpush.bf16.msra.mxu0 0
      %5217 = vmatpush.bf16.msra.mxu0 0
      %5218 = vmatpush.bf16.msra.mxu0 0
      %5219 = vmatpush.bf16.msra.mxu0 0
      %5220 = vmatpush.bf16.msra.mxu0 0
      %5221 = vmatpush.bf16.msra.mxu0 0
      %5222 = vmatpush.bf16.msra.mxu0 %v5210
      %5223 = vmatmul.bf16.gmra.mxu0 %v5213
      %v5224 = vpop.f32.mrf.mxu0
      %v5225 = vadd.f32 0.0, %v5224
      %v5226 = vpop.f32.mrf.mxu0
      %5227 = vdwg.mxu0
      %v5228 = vadd.f32 %v4813, %v5225
      %v5229 = vadd.f32 %v5228, %v538
      %v5230 = vld [vmem:[%s12] sm:$0x1]
      %v5231 = vld [vmem:[%s13] sm:$0x1]
      %v5232 = vsel %vm575, %v5229, 0.0
      %5233 = vadd.xlane.f32.xlu0 %v5232
      %v5234 = vpop.xlane.xlu0 %5233
      %v5235 = vmul.f32 %v5234, %v685
      %v5236 = vsub.f32 %v5229, %v5235
      %v5237 = vmul.f32 %v5236, %v5236
      %v5238 = vsel %vm575, %v5237, 0.0
      %5239 = vadd.xlane.f32.xlu0 %v5238
      %v5240 = vpop.xlane.xlu0 %5239
      %v5241 = vmul.f32 %v5240, %v685
      %v5242 = vadd.f32 %v5241, 1e-05
      %v5243 = vrsqrt.pop %v5242
      %v5244 = vmul.f32 %v5243, %v5242
      %v5245 = vmul.f32 %v5244, %v5243
      %v5246 = vmul.f32 0.5, %v5245
      %v5247 = vsub.f32 1.5, %v5246
      %v5248 = vmul.f32 %v5243, %v5247
      %vm5249 = vweird.f32 %v5242
      %vm5250 = vweird.f32 %v5243
      %vm5251 = vmor %vm5249, %vm5250
      %v5252 = vsel %vm5251, %v5243, %v5248
      %v5253 = vmul.f32 %v5236, %v5252
      %v5255 = vperm.slane %v5230, 0
      %v5257 = vmul.f32 %v5253, %v5255
      %v5259 = vperm.slane %v5231, 0
      %v5261 = vadd.f32 %v5257, %v5259
      %v5262 = vpack.c.bf16 %v5261, %v5261
      %v5263 = vld [vmem:[%s14] sm:$0xf]
      %v5264 = vld [vmem:[%s14 + $0x4] sm:$0xf]
      %v5265 = vld [vmem:[%s14 + $0x8] sm:$0xf]
      %v5266 = vld [vmem:[%s14 + $0xc] sm:$0xf]
      %v5267 = vld [vmem:[%s14 + $0x10] sm:$0xf]
      %v5268 = vld [vmem:[%s14 + $0x14] sm:$0xf]
      %v5269 = vld [vmem:[%s14 + $0x18] sm:$0xf]
      %v5270 = vld [vmem:[%s14 + $0x1c] sm:$0xf]
      %v5279 = vunpack.c.l.b16 %v5263
      %v5280 = vunpack.c.l.b16 %v5264
      %v5281 = vunpack.c.l.b16 %v5265
      %v5282 = vunpack.c.l.b16 %v5266
      %v5283 = vunpack.c.l.b16 %v5267
      %v5284 = vunpack.c.l.b16 %v5268
      %v5285 = vunpack.c.l.b16 %v5269
      %v5286 = vunpack.c.l.b16 %v5270
      %v5287 = vpack.c.b16 %v5280, %v5279
      %v5288 = vpack.c.b16 %v5282, %v5281
      %v5289 = vpack.c.b16 %v5284, %v5283
      %v5290 = vpack.c.b16 %v5286, %v5285
      %v5296 = vsel %vm575, %v5262, 0
      %5298 = vmatpush.bf16.msra.mxu0 0
      %5299 = vmatpush.bf16.msra.mxu0 0
      %5300 = vmatpush.bf16.msra.mxu0 0
      %5301 = vmatpush.bf16.msra.mxu0 0
      %5302 = vmatpush.bf16.msra.mxu0 %v5290
      %5303 = vmatpush.bf16.msra.mxu0 %v5289
      %5304 = vmatpush.bf16.msra.mxu0 %v5288
      %5305 = vmatpush.bf16.msra.mxu0 %v5287
      %5306 = vmatmul.bf16.gmra.mxu0 %v5296
      %v5307 = vpop.f32.mrf.mxu0
      %v5308 = vadd.f32 0.0, %v5307
      %v5309 = vpop.f32.mrf.mxu0
      %5310 = vdwg.mxu0
      %v5311 = vmul.f32 %v5308, %v5308
      %v5312 = vmul.f32 %v5308, %v5311
      %v5313 = vmul.f32 %v5312, 0.044715
      %v5314 = vadd.f32 %v5308, %v5313
      %v5315 = vmul.f32 %v5314, 0.7978846
      %v5316 = vtanh.pop %v5315
      %v5317 = vadd.f32 %v5316, 1.0
      %v5318 = vmul.f32 %v5317, 0.5
      %v5319 = vmul.f32 %v5308, %v5318
      %v5320 = vpack.c.bf16 %v5319, %v5319
      %v5321 = vld [vmem:[%s15] sm:$0xf]
      %v5322 = vld [vmem:[%s15 + $0x4] sm:$0xf]
      %v5323 = vld [vmem:[%s15 + $0x8] sm:$0xf]
      %v5324 = vld [vmem:[%s15 + $0xc] sm:$0xf]
      %v5325 = vld [vmem:[%s15 + $0x10] sm:$0xf]
      %v5326 = vld [vmem:[%s15 + $0x14] sm:$0xf]
      %v5327 = vld [vmem:[%s15 + $0x18] sm:$0xf]
      %v5328 = vld [vmem:[%s15 + $0x1c] sm:$0xf]
      %v5329 = vld [vmem:[%s15 + $0x20] sm:$0xf]
      %v5330 = vld [vmem:[%s15 + $0x24] sm:$0xf]
      %v5331 = vld [vmem:[%s15 + $0x28] sm:$0xf]
      %v5332 = vld [vmem:[%s15 + $0x2c] sm:$0xf]
      %v5333 = vld [vmem:[%s15 + $0x30] sm:$0xf]
      %v5334 = vld [vmem:[%s15 + $0x34] sm:$0xf]
      %v5335 = vld [vmem:[%s15 + $0x38] sm:$0xf]
      %v5336 = vld [vmem:[%s15 + $0x3c] sm:$0xf]
      %v5353 = vunpack.c.l.b16 %v5321
      %v5354 = vunpack.c.l.b16 %v5322
      %v5355 = vunpack.c.l.b16 %v5323
      %v5356 = vunpack.c.l.b16 %v5324
      %v5357 = vunpack.c.l.b16 %v5325
      %v5358 = vunpack.c.l.b16 %v5326
      %v5359 = vunpack.c.l.b16 %v5327
      %v5360 = vunpack.c.l.b16 %v5328
      %v5361 = vunpack.c.l.b16 %v5329
      %v5362 = vunpack.c.l.b16 %v5330
      %v5363 = vunpack.c.l.b16 %v5331
      %v5364 = vunpack.c.l.b16 %v5332
      %v5365 = vunpack.c.l.b16 %v5333
      %v5366 = vunpack.c.l.b16 %v5334
      %v5367 = vunpack.c.l.b16 %v5335
      %v5368 = vunpack.c.l.b16 %v5336
      %v5369 = vpack.c.b16 %v5354, %v5353
      %v5370 = vpack.c.b16 %v5356, %v5355
      %v5371 = vpack.c.b16 %v5358, %v5357
      %v5372 = vpack.c.b16 %v5360, %v5359
      %v5373 = vpack.c.b16 %v5362, %v5361
      %v5374 = vpack.c.b16 %v5364, %v5363
      %v5375 = vpack.c.b16 %v5366, %v5365
      %v5376 = vpack.c.b16 %v5368, %v5367
      %5385 = vmatpush.bf16.msra.mxu0 %v5376
      %5386 = vmatpush.bf16.msra.mxu0 %v5375
      %5387 = vmatpush.bf16.msra.mxu0 %v5374
      %5388 = vmatpush.bf16.msra.mxu0 %v5373
      %5389 = vmatpush.bf16.msra.mxu0 %v5372
      %5390 = vmatpush.bf16.msra.mxu0 %v5371
      %5391 = vmatpush.bf16.msra.mxu0 %v5370
      %5392 = vmatpush.bf16.msra.mxu0 %v5369
      %5393 = vmatmul.bf16.gmra.mxu0 %v5320
      %v5394 = vpop.f32.mrf.mxu0
      %v5395 = vadd.f32 %v5229, %v5394
      %v5396 = vpop.f32.mrf.mxu0
      %5397 = vdwg.mxu0
      %5398 = vst.msk [vmem:[%s536] sm:$0xff] %vm575, %v5395
      %p5399 = scmp.lt.s32.totalorder %s27, 1
      %s5400 = scalar_select %p5399, %s27, 1
      %s5401 = smul.addr %s5400, 8
      %s5402 = scalar_lea.vmem %s16, %s5401
      // Predicated region
      $region85: #{position_resampler_forward.4} parent=83 // pred_check
        %p5403 = pneg %p391
      $region86: #{position_resampler_forward.4} parent=83 // pred_check_branch
        %5405 = sbr.rel (%p5403) target = $region88
      $region87: #{position_resampler_forward.4} parent=83 // pred_region
        _
      $region88: #{position_resampler_forward.4} parent=83 // pred_fallthru
        _
    $region84: #{position_resampler_forward.4} parent=5 // pred_fallthru
      _
    %p5406 = scmp.le.s32.totalorder 2, %s22
    // Predicated region
    $region89: #{position_resampler_forward.4} parent=5 // pred_check
      %p5407 = pneg %p5406
    $region90: #{position_resampler_forward.4} parent=5 // pred_check_branch
      %5409 = sbr.rel (%p5407) target = $region92
    $region91: #{position_resampler_forward.4} parent=5 // pred_region
      %s5410 = ssub.s32 %s22, 2
      // Predicated region
      $region93: #{position_resampler_forward.4} parent=91 // pred_check
        %p5411 = pneg %p397
      $region94: #{position_resampler_forward.4} parent=91 // pred_check_branch
        %5413 = sbr.rel (%p5411) target = $region96
      $region95: #{position_resampler_forward.4} parent=91 // pred_region
        %p5414 = scmp.lt.s32.totalorder %s28, 1
        %s5415 = scalar_select %p5414, %s28, 1
        %s5416 = smul.addr %s5415, 8
        %s5417 = scalar_lea.vmem %s16, %s5416
      $region96: #{position_resampler_forward.4} parent=91 // pred_fallthru
        _
    $region92: #{position_resampler_forward.4} parent=5 // pred_fallthru
      _
  $region6: #{position_resampler_forward.4} parent=0 // loop_footer
    %s26 = sadd.s32 1, %s22
  $region7: #{position_resampler_forward.4} parent=0 // loop_footer_branch
    %21 = sbr.rel target = $region3
  $region8: #{position_resampler_forward.4} parent=0 // loop_exit
    _

</llo_original>
